<compile_context>
chip_gen: v7x
topology: tpu7x:2x2x1
jax: 0.10.0
libtpu: 0.0.40
codegen_flags: <defaults>
</compile_context>

<pallas_src>
import math

import jax
import jax.numpy as jnp
from jax.experimental import pallas as pl
from jax.experimental.pallas import tpu as pltpu

# ---- true model sizes (from the module) ----
DATA_SHAPE = (16, 16)                       # args.output_shape
D = int(DATA_SHAPE[0] * DATA_SHAPE[1])      # np.prod(data_shape) = 256
H = 300                                     # hidden width (fixed in module)
L = 40                                      # args.latent_length

# ---- lane-padded sizes used inside the kernel ----
DP = 256                                    # D is already a multiple of 128
HP = 384                                    # 300 -> 3 * 128
LP = 128                                    # 40  -> 1 * 128
assert D == DP

# fused-layer output widths (order: enc0, enc1, latent, dec0, dec1, out)
_FUSED_WIDTHS = (2 * HP, 2 * HP, 2 * LP, 2 * HP, 2 * HP, 2 * DP)
_BIAS_OFFSETS = []
_acc = 0
for _w in _FUSED_WIDTHS:
    _BIAS_OFFSETS.append(_acc)
    _acc += _w
BIAS_TOTAL = _acc                           # 3840 (multiple of 128)

TILE_M = 512                                # batch rows per grid step (tunable)


def _round_up(v, m):
    return (v + m - 1) // m * m


def _sigmoid(t):
    # Exact sigmoid as a single EUP transcendental (tanh).  Replaces the
    # approx-reciprocal version whose error compounded through 4 gated layers.
    return 0.5 * jnp.tanh(0.5 * t) + 0.5


# ----------------------------- kernel -----------------------------
def vae_forward_kernel(
    x_ref, eps_ref,                                   # streamed f32 per-tile
    w1_ref, w2_ref, w3_ref, w4_ref, w5_ref, w6_ref,   # resident bf16 weights
    b_ref,                                            # resident f32 bias blob
    recon_ref, latent_ref,                            # coalesced bf16 outputs
):
    def fused(v_bf16, w_ref, layer_idx, half):
        """One fused MXU matmul for a (h, gate) or (mean, sigma) pair."""
        off = _BIAS_OFFSETS[layer_idx]                # static, 128-aligned
        y = jnp.dot(v_bf16, w_ref[...], preferred_element_type=jnp.float32)
        y = y + b_ref[:, off:off + 2 * half]
        return y[:, :half], y[:, half:]

    x = x_ref[...].astype(jnp.bfloat16)               # cast on VPU, stream f32

    # ---------------- encoder (gated MLP) ----------------
    h, g = fused(x, w1_ref, 0, HP)
    h = (h * _sigmoid(g)).astype(jnp.bfloat16)
    h, g = fused(h, w2_ref, 1, HP)
    h = (h * _sigmoid(g)).astype(jnp.bfloat16)
    latent_mean, latent_sigma = fused(h, w3_ref, 2, LP)
    latent_sigma = jnp.clip(latent_sigma, -6.0, 2.0)   # Hardtanh(-6, 2)

    # ---------------- reparameterization (f32 noise) ----------------
    std = jnp.exp(0.5 * latent_sigma)
    z = eps_ref[...] * std + latent_mean

    # ---------------- decoder (gated MLP) ----------------
    d, g = fused(z.astype(jnp.bfloat16), w4_ref, 3, HP)
    d = (d * _sigmoid(g)).astype(jnp.bfloat16)
    d, g = fused(d, w5_ref, 4, HP)
    d = (d * _sigmoid(g)).astype(jnp.bfloat16)
    out_mean, out_sigma = fused(d, w6_ref, 5, DP)
    # Freyfaces branch: clamp sigmoid(mean), Hardtanh(-4.5, 0) on sigma
    out_mean = jnp.clip(_sigmoid(out_mean), 1.0 / 512.0, 1.0 - 1.0 / 512.0)
    out_sigma = jnp.clip(out_sigma, -4.5, 0.0)

    # Coalesced, lane-dense bf16 stores (all offsets multiples of 128).
    odt = recon_ref.dtype
    recon_ref[:, :DP] = out_mean.astype(odt)
    recon_ref[:, DP:] = out_sigma.astype(odt)
    ldt = latent_ref.dtype
    latent_ref[:, :LP] = z.astype(ldt)
    latent_ref[:, LP:2 * LP] = latent_mean.astype(ldt)
    latent_ref[:, 2 * LP:] = latent_sigma.astype(ldt)


# ----------------------------- wrapper -----------------------------
def vae_forward(x, eps, fused_params, *, tile_m=TILE_M):
    """x: [B, D] f32, eps: [B, L] f32, fused_params: (6 bf16 weights, bias blob)."""
    w1, w2, w3, w4, w5, w6, bias = fused_params
    B = x.shape[0]

    # Batch tile: clamp to the 128-aligned batch; keep >= 2 grid steps for
    # v7x's 2 TensorCores whenever that needs no extra padding rows.
    b128 = _round_up(B, 128)
    tile_m = max(128, min(_round_up(tile_m, 128), b128))
    if (b128 // tile_m) < 2 and b128 >= 256 and (b128 // 2) % 128 == 0:
        tile_m = b128 // 2
    nb = pl.cdiv(b128, tile_m)
    Bp = nb * tile_m

    # Inputs stay f32 (cast to bf16 inside the kernel); only zero-pad shapes.
    xp = jnp.pad(x, ((0, Bp - B), (0, 0))) if Bp != B else x
    ep = jnp.pad(eps, ((0, Bp - B), (0, LP - L)))

    stream = lambda cols: pl.BlockSpec((tile_m, cols), lambda i: (i, 0))
    resident = lambda shape: pl.BlockSpec(shape, lambda i: (0, 0))

    out_shapes = (
        jax.ShapeDtypeStruct((Bp, 2 * DP), jnp.bfloat16),   # mean ++ sigma
        jax.ShapeDtypeStruct((Bp, 3 * LP), jnp.bfloat16),   # z ++ lmean ++ lsigma
    )

    grid_spec = pltpu.PrefetchScalarGridSpec(
        num_scalar_prefetch=0,
        grid=(nb,),
        in_specs=[
            stream(DP),                     # x tile (f32)
            stream(LP),                     # eps tile (f32)
            resident((DP, 2 * HP)),         # w1 (enc h0 ++ gate0)
            resident((HP, 2 * HP)),         # w2 (enc h1 ++ gate1)
            resident((HP, 2 * LP)),         # w3 (latent mean ++ sigma)
            resident((LP, 2 * HP)),         # w4 (dec h0 ++ gate0)
            resident((HP, 2 * HP)),         # w5 (dec h1 ++ gate1)
            resident((HP, 2 * DP)),         # w6 (out mean ++ sigma)
            resident((1, BIAS_TOTAL)),      # fused bias blob
        ],
        out_specs=(stream(2 * DP), stream(3 * LP)),
    )

    recon, lat = pl.pallas_call(
        vae_forward_kernel,
        out_shape=out_shapes,
        grid_spec=grid_spec,
        compiler_params=pltpu.CompilerParams(
            dimension_semantics=("parallel",),
            vmem_limit_bytes=32 << 20,
        ),
    )(xp, ep, w1, w2, w3, w4, w5, w6, bias)

    # Slice away padding and restore f32 for downstream loss code.
    f32 = jnp.float32
    out_mean = recon[:B, :D].astype(f32)
    out_sigma = recon[:B, DP:DP + D].astype(f32)
    z = lat[:B, :L].astype(f32)
    latent_mean = lat[:B, LP:LP + L].astype(f32)
    latent_sigma = lat[:B, 2 * LP:2 * LP + L].astype(f32)
    return out_mean, out_sigma, z, latent_mean, latent_sigma


# ---------------- parameter construction ----------------
def make_raw_params(key):
    """12 (weight[in,out], bias[out]) pairs, f32, at the true (unpadded) sizes."""
    dims = [
        (D, H), (D, H), (H, H), (H, H), (H, L), (H, L),   # encoder
        (L, H), (L, H), (H, H), (H, H), (H, D), (H, D),   # decoder
    ]
    params = []
    for fin, fout in dims:
        kw, kb, key = jax.random.split(key, 3)
        w = jax.random.normal(kw, (fin, fout), jnp.float32) * math.sqrt(2.0 / fin)
        b = jax.random.normal(kb, (fout,), jnp.float32) * 0.01
        params.append((w, b))
    return params


def _fuse_pair(pa, pb, in_pad, out_pad):
    (wa, ba), (wb, bb) = pa, pb
    fin, fout = wa.shape
    # Padded rows/cols are exactly zero -> padded lanes stay zero through the
    # whole network (z_pad = 0*exp(0)+0 = 0), which the kernel relies on.
    w = jnp.zeros((in_pad, 2 * out_pad), jnp.float32)
    w = w.at[:fin, :fout].set(wa)
    w = w.at[:fin, out_pad:out_pad + fout].set(wb)
    b = jnp.zeros((2 * out_pad,), jnp.float32)
    b = b.at[:fout].set(ba)
    b = b.at[out_pad:out_pad + fout].set(bb)
    return w.astype(jnp.bfloat16), b


def fuse_and_pad(raw):
    """Pack 12 linear layers into 6 fused bf16 weights + one f32 bias blob."""
    specs = [  # (idx_a, idx_b, in_pad, out_pad)
        (0, 1, DP, HP),    # encoder layer 0
        (2, 3, HP, HP),    # encoder layer 1
        (4, 5, HP, LP),    # latent mean / sigma
        (6, 7, LP, HP),    # decoder layer 0
        (8, 9, HP, HP),    # decoder layer 1
        (10, 11, HP, DP),  # output mean / sigma
    ]
    weights, biases = [], []
    for ia, ib, ip, op in specs:
        w, b = _fuse_pair(raw[ia], raw[ib], ip, op)
        weights.append(w)
        biases.append(b)
    bias_blob = jnp.concatenate(biases).reshape(1, BIAS_TOTAL)
    return (*weights, bias_blob)


# ---------------- pure-JAX reference ----------------
def vae_forward_ref(x, eps, raw):
    """Reference with the same bf16 weight/activation quantization as the kernel."""
    bf = jnp.bfloat16

    def mm(a, w):
        return jnp.dot(a.astype(bf), w.astype(bf),
                       preferred_element_type=jnp.float32)

    sig = jax.nn.sigmoid
    (weh0, beh0), (weg0, beg0), (weh1, beh1), (weg1, beg1), (wem, bem), (wes, bes), \
        (wdh0, bdh0), (wdg0, bdg0), (wdh1, bdh1), (wdg1, bdg1), (wom, bom), (wos, bos) \
        = raw

    h = (mm(x, weh0) + beh0) * sig(mm(x, weg0) + beg0)
    h = (mm(h, weh1) + beh1) * sig(mm(h, weg1) + beg1)
    lm = mm(h, wem) + bem
    ls = jnp.clip(mm(h, wes) + bes, -6.0, 2.0)
    z = eps * jnp.exp(0.5 * ls) + lm
    d = (mm(z, wdh0) + bdh0) * sig(mm(z, wdg0) + bdg0)
    d = (mm(d, wdh1) + bdh1) * sig(mm(d, wdg1) + bdg1)
    om = jnp.clip(sig(mm(d, wom) + bom), 1.0 / 512.0, 1.0 - 1.0 / 512.0)
    osg = jnp.clip(mm(d, wos) + bos, -4.5, 0.0)
    return om, osg, z, lm, ls


if __name__ == "__main__":
    key = jax.random.PRNGKey(0)
    kx, keps, kp = jax.random.split(key, 3)

    B = 8                                                   # small batch
    x = jax.random.uniform(kx, (B, D), jnp.float32)         # flattened images
    eps = jax.random.normal(keps, (B, L), jnp.float32)      # reparam noise
    # TODO(synk): torch.normal noise sampling is done host-side (eps is an
    # input); the VampPrior log-prior and training/likelihood loops are
    # loss-side code, not part of forward().

    raw = make_raw_params(kp)
    fused = fuse_and_pad(raw)

    fwd = jax.jit(vae_forward)
    outs = jax.block_until_ready(fwd(x, eps, fused))
    refs = jax.block_until_ready(vae_forward_ref(x, eps, raw))

    names = ("output_mean", "output_sigma", "z_prior", "latent_mean", "latent_sigma")
    for name, o, r in zip(names, outs, refs):
        assert o.shape == r.shape and o.dtype == r.dtype, name
        assert jnp.allclose(o, r, rtol=2e-2, atol=2e-2), f"mismatch vs reference: {name}"

    print("KERNEL_OK")
</pallas_src>

<mosaic_0001>
module attributes {stable_mosaic.version = 11 : i64} {
  func.func @vae_forward_kernel(%arg0: i32, %arg1: memref<128x256xf32, #tpu.memory_space<vmem>>, %arg2: memref<128x128xf32, #tpu.memory_space<vmem>>, %arg3: memref<256x768xbf16, #tpu.memory_space<vmem>>, %arg4: memref<384x768xbf16, #tpu.memory_space<vmem>>, %arg5: memref<384x256xbf16, #tpu.memory_space<vmem>>, %arg6: memref<128x768xbf16, #tpu.memory_space<vmem>>, %arg7: memref<384x768xbf16, #tpu.memory_space<vmem>>, %arg8: memref<384x512xbf16, #tpu.memory_space<vmem>>, %arg9: memref<1x3840xf32, #tpu.memory_space<vmem>>, %arg10: memref<128x512xbf16, #tpu.memory_space<vmem>>, %arg11: memref<128x384xbf16, #tpu.memory_space<vmem>>) attributes {dimension_semantics = [#tpu.dimension_semantics<parallel>], iteration_bounds = array<i64: 1>, scalar_prefetch = 0 : i64, scratch_operands = 0 : i64, tpu.core_type = #tpu.core_type<tc>, window_params = [{transform_indices = @transform_0, window_bounds = array<i64: 128, 256>}, {transform_indices = @transform_1, window_bounds = array<i64: 128, 128>}, {pipeline_mode = #tpu.pipeline_mode<synchronous>, transform_indices = @transform_2, window_bounds = array<i64: 256, 768>}, {pipeline_mode = #tpu.pipeline_mode<synchronous>, transform_indices = @transform_3, window_bounds = array<i64: 384, 768>}, {pipeline_mode = #tpu.pipeline_mode<synchronous>, transform_indices = @transform_4, window_bounds = array<i64: 384, 256>}, {pipeline_mode = #tpu.pipeline_mode<synchronous>, transform_indices = @transform_5, window_bounds = array<i64: 128, 768>}, {pipeline_mode = #tpu.pipeline_mode<synchronous>, transform_indices = @transform_6, window_bounds = array<i64: 384, 768>}, {pipeline_mode = #tpu.pipeline_mode<synchronous>, transform_indices = @transform_7, window_bounds = array<i64: 384, 512>}, {pipeline_mode = #tpu.pipeline_mode<synchronous>, transform_indices = @transform_8, window_bounds = array<i64: 1, 3840>}, {transform_indices = @transform_9, window_bounds = array<i64: 128, 512>}, {transform_indices = @transform_10, window_bounds = array<i64: 128, 384>}]} {
    %c0 = arith.constant 0 : index
    %c0_0 = arith.constant 0 : index
    %0 = vector.load %arg1[%c0, %c0_0] : memref<128x256xf32, #tpu.memory_space<vmem>>, vector<128x256xf32>
    %1 = arith.truncf %0 : vector<128x256xf32> to vector<128x256xbf16>
    %c0_1 = arith.constant 0 : index
    %c0_2 = arith.constant 0 : index
    %2 = vector.load %arg3[%c0_1, %c0_2] : memref<256x768xbf16, #tpu.memory_space<vmem>>, vector<256x768xbf16>
    %cst = arith.constant dense<0.000000e+00> : vector<128x768xf32>
    %3 = tpu.matmul %1, %2, %cst {dimension_numbers = #tpu.dot_dimension_numbers<[1], [0], [0], [1], [0, 0, 1, 1], [], []>} : vector<128x256xbf16>, vector<256x768xbf16>, vector<128x768xf32> -> vector<128x768xf32>
    %c0_3 = arith.constant 0 : index
    %c0_4 = arith.constant 0 : index
    %4 = vector.load %arg9[%c0_3, %c0_4] : memref<1x3840xf32, #tpu.memory_space<vmem>>, vector<1x768xf32>
    %5 = vector.broadcast %4 : vector<1x768xf32> to vector<128x768xf32>
    %6 = arith.addf %3, %5 : vector<128x768xf32>
    %7 = vector.extract_strided_slice %6 {offsets = [0, 0], sizes = [128, 384], strides = [1, 1]} : vector<128x768xf32> to vector<128x384xf32>
    %8 = vector.extract_strided_slice %6 {offsets = [0, 384], sizes = [128, 384], strides = [1, 1]} : vector<128x768xf32> to vector<128x384xf32>
    %cst_5 = arith.constant 5.000000e-01 : f32
    %9 = vector.broadcast %cst_5 : f32 to vector<128x384xf32>
    %10 = arith.mulf %9, %8 : vector<128x384xf32>
    %11 = math.tanh %10 : vector<128x384xf32>
    %cst_6 = arith.constant 5.000000e-01 : f32
    %12 = vector.broadcast %cst_6 : f32 to vector<128x384xf32>
    %13 = arith.mulf %12, %11 : vector<128x384xf32>
    %cst_7 = arith.constant 5.000000e-01 : f32
    %14 = vector.broadcast %cst_7 : f32 to vector<128x384xf32>
    %15 = arith.addf %13, %14 : vector<128x384xf32>
    %16 = arith.mulf %7, %15 : vector<128x384xf32>
    %17 = arith.truncf %16 : vector<128x384xf32> to vector<128x384xbf16>
    %c0_8 = arith.constant 0 : index
    %c0_9 = arith.constant 0 : index
    %18 = vector.load %arg4[%c0_8, %c0_9] : memref<384x768xbf16, #tpu.memory_space<vmem>>, vector<384x768xbf16>
    %cst_10 = arith.constant dense<0.000000e+00> : vector<128x768xf32>
    %19 = tpu.matmul %17, %18, %cst_10 {dimension_numbers = #tpu.dot_dimension_numbers<[1], [0], [0], [1], [0, 0, 1, 1], [], []>} : vector<128x384xbf16>, vector<384x768xbf16>, vector<128x768xf32> -> vector<128x768xf32>
    %c0_11 = arith.constant 0 : index
    %c768 = arith.constant 768 : index
    %20 = vector.load %arg9[%c0_11, %c768] : memref<1x3840xf32, #tpu.memory_space<vmem>>, vector<1x768xf32>
    %21 = vector.broadcast %20 : vector<1x768xf32> to vector<128x768xf32>
    %22 = arith.addf %19, %21 : vector<128x768xf32>
    %23 = vector.extract_strided_slice %22 {offsets = [0, 0], sizes = [128, 384], strides = [1, 1]} : vector<128x768xf32> to vector<128x384xf32>
    %24 = vector.extract_strided_slice %22 {offsets = [0, 384], sizes = [128, 384], strides = [1, 1]} : vector<128x768xf32> to vector<128x384xf32>
    %cst_12 = arith.constant 5.000000e-01 : f32
    %25 = vector.broadcast %cst_12 : f32 to vector<128x384xf32>
    %26 = arith.mulf %25, %24 : vector<128x384xf32>
    %27 = math.tanh %26 : vector<128x384xf32>
    %cst_13 = arith.constant 5.000000e-01 : f32
    %28 = vector.broadcast %cst_13 : f32 to vector<128x384xf32>
    %29 = arith.mulf %28, %27 : vector<128x384xf32>
    %cst_14 = arith.constant 5.000000e-01 : f32
    %30 = vector.broadcast %cst_14 : f32 to vector<128x384xf32>
    %31 = arith.addf %29, %30 : vector<128x384xf32>
    %32 = arith.mulf %23, %31 : vector<128x384xf32>
    %33 = arith.truncf %32 : vector<128x384xf32> to vector<128x384xbf16>
    %c0_15 = arith.constant 0 : index
    %c0_16 = arith.constant 0 : index
    %34 = vector.load %arg5[%c0_15, %c0_16] : memref<384x256xbf16, #tpu.memory_space<vmem>>, vector<384x256xbf16>
    %cst_17 = arith.constant dense<0.000000e+00> : vector<128x256xf32>
    %35 = tpu.matmul %33, %34, %cst_17 {dimension_numbers = #tpu.dot_dimension_numbers<[1], [0], [0], [1], [0, 0, 1, 1], [], []>} : vector<128x384xbf16>, vector<384x256xbf16>, vector<128x256xf32> -> vector<128x256xf32>
    %c0_18 = arith.constant 0 : index
    %c1536 = arith.constant 1536 : index
    %36 = vector.load %arg9[%c0_18, %c1536] : memref<1x3840xf32, #tpu.memory_space<vmem>>, vector<1x256xf32>
    %37 = vector.broadcast %36 : vector<1x256xf32> to vector<128x256xf32>
    %38 = arith.addf %35, %37 : vector<128x256xf32>
    %39 = vector.extract_strided_slice %38 {offsets = [0, 0], sizes = [128, 128], strides = [1, 1]} : vector<128x256xf32> to vector<128x128xf32>
    %40 = vector.extract_strided_slice %38 {offsets = [0, 128], sizes = [128, 128], strides = [1, 1]} : vector<128x256xf32> to vector<128x128xf32>
    %cst_19 = arith.constant -6.000000e+00 : f32
    %cst_20 = arith.constant 2.000000e+00 : f32
    %41 = vector.broadcast %cst_19 : f32 to vector<128x128xf32>
    %42 = arith.maximumf %41, %40 : vector<128x128xf32>
    %43 = vector.broadcast %cst_20 : f32 to vector<128x128xf32>
    %44 = arith.minimumf %43, %42 : vector<128x128xf32>
    %cst_21 = arith.constant 5.000000e-01 : f32
    %45 = vector.broadcast %cst_21 : f32 to vector<128x128xf32>
    %46 = arith.mulf %45, %44 : vector<128x128xf32>
    %47 = math.exp %46 : vector<128x128xf32>
    %c0_22 = arith.constant 0 : index
    %c0_23 = arith.constant 0 : index
    %48 = vector.load %arg2[%c0_22, %c0_23] : memref<128x128xf32, #tpu.memory_space<vmem>>, vector<128x128xf32>
    %49 = arith.mulf %48, %47 : vector<128x128xf32>
    %50 = arith.addf %49, %39 : vector<128x128xf32>
    %51 = arith.truncf %50 : vector<128x128xf32> to vector<128x128xbf16>
    %c0_24 = arith.constant 0 : index
    %c0_25 = arith.constant 0 : index
    %52 = vector.load %arg6[%c0_24, %c0_25] : memref<128x768xbf16, #tpu.memory_space<vmem>>, vector<128x768xbf16>
    %cst_26 = arith.constant dense<0.000000e+00> : vector<128x768xf32>
    %53 = tpu.matmul %51, %52, %cst_26 {dimension_numbers = #tpu.dot_dimension_numbers<[1], [0], [0], [1], [0, 0, 1, 1], [], []>} : vector<128x128xbf16>, vector<128x768xbf16>, vector<128x768xf32> -> vector<128x768xf32>
    %c0_27 = arith.constant 0 : index
    %c1792 = arith.constant 1792 : index
    %54 = vector.load %arg9[%c0_27, %c1792] : memref<1x3840xf32, #tpu.memory_space<vmem>>, vector<1x768xf32>
    %55 = vector.broadcast %54 : vector<1x768xf32> to vector<128x768xf32>
    %56 = arith.addf %53, %55 : vector<128x768xf32>
    %57 = vector.extract_strided_slice %56 {offsets = [0, 0], sizes = [128, 384], strides = [1, 1]} : vector<128x768xf32> to vector<128x384xf32>
    %58 = vector.extract_strided_slice %56 {offsets = [0, 384], sizes = [128, 384], strides = [1, 1]} : vector<128x768xf32> to vector<128x384xf32>
    %cst_28 = arith.constant 5.000000e-01 : f32
    %59 = vector.broadcast %cst_28 : f32 to vector<128x384xf32>
    %60 = arith.mulf %59, %58 : vector<128x384xf32>
    %61 = math.tanh %60 : vector<128x384xf32>
    %cst_29 = arith.constant 5.000000e-01 : f32
    %62 = vector.broadcast %cst_29 : f32 to vector<128x384xf32>
    %63 = arith.mulf %62, %61 : vector<128x384xf32>
    %cst_30 = arith.constant 5.000000e-01 : f32
    %64 = vector.broadcast %cst_30 : f32 to vector<128x384xf32>
    %65 = arith.addf %63, %64 : vector<128x384xf32>
    %66 = arith.mulf %57, %65 : vector<128x384xf32>
    %67 = arith.truncf %66 : vector<128x384xf32> to vector<128x384xbf16>
    %c0_31 = arith.constant 0 : index
    %c0_32 = arith.constant 0 : index
    %68 = vector.load %arg7[%c0_31, %c0_32] : memref<384x768xbf16, #tpu.memory_space<vmem>>, vector<384x768xbf16>
    %cst_33 = arith.constant dense<0.000000e+00> : vector<128x768xf32>
    %69 = tpu.matmul %67, %68, %cst_33 {dimension_numbers = #tpu.dot_dimension_numbers<[1], [0], [0], [1], [0, 0, 1, 1], [], []>} : vector<128x384xbf16>, vector<384x768xbf16>, vector<128x768xf32> -> vector<128x768xf32>
    %c0_34 = arith.constant 0 : index
    %c2560 = arith.constant 2560 : index
    %70 = vector.load %arg9[%c0_34, %c2560] : memref<1x3840xf32, #tpu.memory_space<vmem>>, vector<1x768xf32>
    %71 = vector.broadcast %70 : vector<1x768xf32> to vector<128x768xf32>
    %72 = arith.addf %69, %71 : vector<128x768xf32>
    %73 = vector.extract_strided_slice %72 {offsets = [0, 0], sizes = [128, 384], strides = [1, 1]} : vector<128x768xf32> to vector<128x384xf32>
    %74 = vector.extract_strided_slice %72 {offsets = [0, 384], sizes = [128, 384], strides = [1, 1]} : vector<128x768xf32> to vector<128x384xf32>
    %cst_35 = arith.constant 5.000000e-01 : f32
    %75 = vector.broadcast %cst_35 : f32 to vector<128x384xf32>
    %76 = arith.mulf %75, %74 : vector<128x384xf32>
    %77 = math.tanh %76 : vector<128x384xf32>
    %cst_36 = arith.constant 5.000000e-01 : f32
    %78 = vector.broadcast %cst_36 : f32 to vector<128x384xf32>
    %79 = arith.mulf %78, %77 : vector<128x384xf32>
    %cst_37 = arith.constant 5.000000e-01 : f32
    %80 = vector.broadcast %cst_37 : f32 to vector<128x384xf32>
    %81 = arith.addf %79, %80 : vector<128x384xf32>
    %82 = arith.mulf %73, %81 : vector<128x384xf32>
    %83 = arith.truncf %82 : vector<128x384xf32> to vector<128x384xbf16>
    %c0_38 = arith.constant 0 : index
    %c0_39 = arith.constant 0 : index
    %84 = vector.load %arg8[%c0_38, %c0_39] : memref<384x512xbf16, #tpu.memory_space<vmem>>, vector<384x512xbf16>
    %cst_40 = arith.constant dense<0.000000e+00> : vector<128x512xf32>
    %85 = tpu.matmul %83, %84, %cst_40 {dimension_numbers = #tpu.dot_dimension_numbers<[1], [0], [0], [1], [0, 0, 1, 1], [], []>} : vector<128x384xbf16>, vector<384x512xbf16>, vector<128x512xf32> -> vector<128x512xf32>
    %c0_41 = arith.constant 0 : index
    %c3328 = arith.constant 3328 : index
    %86 = vector.load %arg9[%c0_41, %c3328] : memref<1x3840xf32, #tpu.memory_space<vmem>>, vector<1x512xf32>
    %87 = vector.broadcast %86 : vector<1x512xf32> to vector<128x512xf32>
    %88 = arith.addf %85, %87 : vector<128x512xf32>
    %89 = vector.extract_strided_slice %88 {offsets = [0, 0], sizes = [128, 256], strides = [1, 1]} : vector<128x512xf32> to vector<128x256xf32>
    %90 = vector.extract_strided_slice %88 {offsets = [0, 256], sizes = [128, 256], strides = [1, 1]} : vector<128x512xf32> to vector<128x256xf32>
    %cst_42 = arith.constant 5.000000e-01 : f32
    %91 = vector.broadcast %cst_42 : f32 to vector<128x256xf32>
    %92 = arith.mulf %91, %89 : vector<128x256xf32>
    %93 = math.tanh %92 : vector<128x256xf32>
    %cst_43 = arith.constant 5.000000e-01 : f32
    %94 = vector.broadcast %cst_43 : f32 to vector<128x256xf32>
    %95 = arith.mulf %94, %93 : vector<128x256xf32>
    %cst_44 = arith.constant 5.000000e-01 : f32
    %96 = vector.broadcast %cst_44 : f32 to vector<128x256xf32>
    %97 = arith.addf %95, %96 : vector<128x256xf32>
    %cst_45 = arith.constant 0.001953125 : f32
    %cst_46 = arith.constant 0.998046875 : f32
    %98 = vector.broadcast %cst_45 : f32 to vector<128x256xf32>
    %99 = arith.maximumf %98, %97 : vector<128x256xf32>
    %100 = vector.broadcast %cst_46 : f32 to vector<128x256xf32>
    %101 = arith.minimumf %100, %99 : vector<128x256xf32>
    %cst_47 = arith.constant -4.500000e+00 : f32
    %cst_48 = arith.constant 0.000000e+00 : f32
    %102 = vector.broadcast %cst_47 : f32 to vector<128x256xf32>
    %103 = arith.maximumf %102, %90 : vector<128x256xf32>
    %104 = vector.broadcast %cst_48 : f32 to vector<128x256xf32>
    %105 = arith.minimumf %104, %103 : vector<128x256xf32>
    %106 = arith.truncf %101 : vector<128x256xf32> to vector<128x256xbf16>
    %c0_49 = arith.constant 0 : index
    %c0_50 = arith.constant 0 : index
    %107 = vector.load %arg10[%c0_49, %c0_50] : memref<128x512xbf16, #tpu.memory_space<vmem>>, vector<128x256xbf16>
    tpu.vector_store %arg10[%c0_49, %c0_50], %106 {strides = array<i32>} : memref<128x512xbf16, #tpu.memory_space<vmem>>, vector<128x256xbf16>,
    %108 = arith.truncf %105 : vector<128x256xf32> to vector<128x256xbf16>
    %c0_51 = arith.constant 0 : index
    %c256 = arith.constant 256 : index
    %109 = vector.load %arg10[%c0_51, %c256] : memref<128x512xbf16, #tpu.memory_space<vmem>>, vector<128x256xbf16>
    tpu.vector_store %arg10[%c0_51, %c256], %108 {strides = array<i32>} : memref<128x512xbf16, #tpu.memory_space<vmem>>, vector<128x256xbf16>,
    %110 = arith.truncf %50 : vector<128x128xf32> to vector<128x128xbf16>
    %c0_52 = arith.constant 0 : index
    %c0_53 = arith.constant 0 : index
    %111 = vector.load %arg11[%c0_52, %c0_53] : memref<128x384xbf16, #tpu.memory_space<vmem>>, vector<128x128xbf16>
    tpu.vector_store %arg11[%c0_52, %c0_53], %110 {strides = array<i32>} : memref<128x384xbf16, #tpu.memory_space<vmem>>, vector<128x128xbf16>,
    %112 = arith.truncf %39 : vector<128x128xf32> to vector<128x128xbf16>
    %c0_54 = arith.constant 0 : index
    %c128 = arith.constant 128 : index
    %113 = vector.load %arg11[%c0_54, %c128] : memref<128x384xbf16, #tpu.memory_space<vmem>>, vector<128x128xbf16>
    tpu.vector_store %arg11[%c0_54, %c128], %112 {strides = array<i32>} : memref<128x384xbf16, #tpu.memory_space<vmem>>, vector<128x128xbf16>,
    %114 = arith.truncf %44 : vector<128x128xf32> to vector<128x128xbf16>
    %c0_55 = arith.constant 0 : index
    %c256_56 = arith.constant 256 : index
    %115 = vector.load %arg11[%c0_55, %c256_56] : memref<128x384xbf16, #tpu.memory_space<vmem>>, vector<128x128xbf16>
    tpu.vector_store %arg11[%c0_55, %c256_56], %114 {strides = array<i32>} : memref<128x384xbf16, #tpu.memory_space<vmem>>, vector<128x128xbf16>,
    return
  }
  func.func @transform_0(%arg0: i32) -> (i32, i32) {
    %c0_i32 = arith.constant 0 : i32
    %c0_i32_0 = arith.constant 0 : i32
    return %arg0, %c0_i32 : i32, i32
  }
  func.func @transform_1(%arg0: i32) -> (i32, i32) {
    %c0_i32 = arith.constant 0 : i32
    %c0_i32_0 = arith.constant 0 : i32
    return %arg0, %c0_i32 : i32, i32
  }
  func.func @transform_2(%arg0: i32) -> (i32, i32) {
    %c0_i32 = arith.constant 0 : i32
    %c0_i32_0 = arith.constant 0 : i32
    %c0_i32_1 = arith.constant 0 : i32
    return %c0_i32, %c0_i32_0 : i32, i32
  }
  func.func @transform_3(%arg0: i32) -> (i32, i32) {
    %c0_i32 = arith.constant 0 : i32
    %c0_i32_0 = arith.constant 0 : i32
    %c0_i32_1 = arith.constant 0 : i32
    return %c0_i32, %c0_i32_0 : i32, i32
  }
  func.func @transform_4(%arg0: i32) -> (i32, i32) {
    %c0_i32 = arith.constant 0 : i32
    %c0_i32_0 = arith.constant 0 : i32
    %c0_i32_1 = arith.constant 0 : i32
    return %c0_i32, %c0_i32_0 : i32, i32
  }
  func.func @transform_5(%arg0: i32) -> (i32, i32) {
    %c0_i32 = arith.constant 0 : i32
    %c0_i32_0 = arith.constant 0 : i32
    %c0_i32_1 = arith.constant 0 : i32
    return %c0_i32, %c0_i32_0 : i32, i32
  }
  func.func @transform_6(%arg0: i32) -> (i32, i32) {
    %c0_i32 = arith.constant 0 : i32
    %c0_i32_0 = arith.constant 0 : i32
    %c0_i32_1 = arith.constant 0 : i32
    return %c0_i32, %c0_i32_0 : i32, i32
  }
  func.func @transform_7(%arg0: i32) -> (i32, i32) {
    %c0_i32 = arith.constant 0 : i32
    %c0_i32_0 = arith.constant 0 : i32
    %c0_i32_1 = arith.constant 0 : i32
    return %c0_i32, %c0_i32_0 : i32, i32
  }
  func.func @transform_8(%arg0: i32) -> (i32, i32) {
    %c0_i32 = arith.constant 0 : i32
    %c0_i32_0 = arith.constant 0 : i32
    %c0_i32_1 = arith.constant 0 : i32
    return %c0_i32, %c0_i32_0 : i32, i32
  }
  func.func @transform_9(%arg0: i32) -> (i32, i32) {
    %c0_i32 = arith.constant 0 : i32
    %c0_i32_0 = arith.constant 0 : i32
    return %arg0, %c0_i32 : i32, i32
  }
  func.func @transform_10(%arg0: i32) -> (i32, i32) {
    %c0_i32 = arith.constant 0 : i32
    %c0_i32_0 = arith.constant 0 : i32
    return %arg0, %c0_i32 : i32, i32
  }
}

</mosaic_0001>

<llo_original>
// kernel: vae_forward.1
$region0: #{vae_forward.1}
  #allocation0 [shape = 'u32[]', space=smem, size = 0x4, offset = 0x4, fixed_abs, tag = 'smem constant byte address 0x4 - core index']
  #allocation1 [shape = 'u32[144,128]{1,0:T(1,128)}', space=vmem, size = 0x12000, scoped, tag = 'internal scratch']
  %s0 = inlined_call_operand.vmem [shape: f32[128,256], index: 0, kind: input, shape index: {}]
  %s1 = inlined_call_operand.vmem [shape: f32[128,128], index: 1, kind: input, shape index: {}]
  %s2 = inlined_call_operand.hbm [shape: bf16[256,768], index: 2, kind: input, shape index: {}]
  %s3 = inlined_call_operand.hbm [shape: bf16[384,768], index: 3, kind: input, shape index: {}]
  %s4 = inlined_call_operand.vmem [shape: bf16[384,256], index: 4, kind: input, shape index: {}]
  %s5 = inlined_call_operand.hbm [shape: bf16[128,768], index: 5, kind: input, shape index: {}]
  %s6 = inlined_call_operand.hbm [shape: bf16[384,768], index: 6, kind: input, shape index: {}]
  %s7 = inlined_call_operand.hbm [shape: bf16[384,512], index: 7, kind: input, shape index: {}]
  %s8 = inlined_call_operand.vmem [shape: f32[1,3840], index: 8, kind: input, shape index: {}]
  %s9 = inlined_call_operand.vmem [shape: bf16[128,512], index: 9, kind: output, shape index: {0}]
  %s10 = inlined_call_operand.vmem [shape: bf16[128,384], index: 10, kind: output, shape index: {1}]
  %11 = xla_tuple %s9, %s10
  %s12 = sld [smem:[#allocation0]]
  $region74: #{vae_forward.1} parent=0
    _
  %s14 = ssub.s32 1, %s12
  %s15 = scalar_select 0, %s14, %s12
  $region1: #{vae_forward.1} parent=0
    #allocation2 [shape = 'u8[393216]{0}', space=vmem, size = 0x60000, scoped, tag = 'input window, operand 2, single buffered']
    #allocation3 [shape = 's32[1]{0}', space=sflag, size = 0x4, scoped, tag = 'scoped memory for vae_forward.1']
    #allocation4 [shape = 'u8[589824]{0}', space=vmem, size = 0x90000, scoped, tag = 'input window, operand 3, single buffered']
    #allocation5 [shape = 's32[1]{0}', space=sflag, size = 0x4, scoped, tag = 'scoped memory for vae_forward.1']
    #allocation6 [shape = 'u8[196608]{0}', space=vmem, size = 0x30000, scoped, tag = 'input window, operand 5, single buffered']
    #allocation7 [shape = 'u8[589824]{0}', space=vmem, size = 0x90000, scoped, tag = 'input window, operand 6, single buffered']
    #allocation8 [shape = 's32[1]{0}', space=sflag, size = 0x4, scoped, tag = 'scoped memory for vae_forward.1']
    #allocation9 [shape = 'u8[393216]{0}', space=vmem, size = 0x60000, scoped, tag = 'input window, operand 7, single buffered']
    %16 = vsyncpa [#allocation3], 0
    %17 = vsyncpa [#allocation5], 0
    %18 = vsyncpa [#allocation8], 0
    // Predicated region
    $region2: #{vae_forward.1} parent=1 // pred_check
      _
    $region3: #{vae_forward.1} parent=1 // pred_check_branch
      %20 = sbr.rel (0) target = $region5
    $region4: #{vae_forward.1} parent=1 // pred_region
      _
    $region5: #{vae_forward.1} parent=1 // pred_fallthru
      _
    // Predicated region
    $region6: #{vae_forward.1} parent=1 // pred_check
      _
    $region7: #{vae_forward.1} parent=1 // pred_check_branch
      %22 = sbr.rel (0) target = $region9
    $region8: #{vae_forward.1} parent=1 // pred_region
      _
    $region9: #{vae_forward.1} parent=1 // pred_fallthru
      _
    // Predicated region
    $region10: #{vae_forward.1} parent=1 // pred_check
      _
    $region11: #{vae_forward.1} parent=1 // pred_check_branch
      %24 = sbr.rel (0) target = $region13
    $region12: #{vae_forward.1} parent=1 // pred_region
      %s26 = ssub.s32 12288, 12288
      %27 = vsyncadd [#allocation3], %s26
      %s28 = sshll.u32 [#allocation2], 4
      %s29 = int_to_ptr.vmem [resolvable:$true] %s28
      %34 = dma.hbm_to_vmem [thread:$0]  %s2, 12288, %s29, [#allocation3], 384, 384, 24
    $region13: #{vae_forward.1} parent=1 // pred_fallthru
      _
    // Predicated region
    $region14: #{vae_forward.1} parent=1 // pred_check
      _
    $region15: #{vae_forward.1} parent=1 // pred_check_branch
      %36 = sbr.rel (0) target = $region17
    $region16: #{vae_forward.1} parent=1 // pred_region
      %s38 = ssub.s32 18432, 18432
      %39 = vsyncadd [#allocation5], %s38
      %s40 = sshll.u32 [#allocation4], 4
      %s41 = int_to_ptr.vmem [resolvable:$true] %s40
      %46 = dma.hbm_to_vmem [thread:$0]  %s3, 18432, %s41, [#allocation5], 384, 384, 24
    $region17: #{vae_forward.1} parent=1 // pred_fallthru
      _
    // Predicated region
    $region18: #{vae_forward.1} parent=1 // pred_check
      _
    $region19: #{vae_forward.1} parent=1 // pred_check_branch
      %48 = sbr.rel (0) target = $region21
    $region20: #{vae_forward.1} parent=1 // pred_region
      _
    $region21: #{vae_forward.1} parent=1 // pred_fallthru
      _
    // Predicated region
    $region22: #{vae_forward.1} parent=1 // pred_check
      _
    $region23: #{vae_forward.1} parent=1 // pred_check_branch
      %50 = sbr.rel (0) target = $region25
    $region24: #{vae_forward.1} parent=1 // pred_region
      %s52 = ssub.s32 6144, 6144
      %53 = vsyncadd [#allocation5], %s52
      %s54 = sshll.u32 [#allocation6], 4
      %s55 = int_to_ptr.vmem [resolvable:$true] %s54
      %60 = dma.hbm_to_vmem [thread:$0]  %s5, 6144, %s55, [#allocation5], 384, 384, 24
    $region25: #{vae_forward.1} parent=1 // pred_fallthru
      _
    // Predicated region
    $region26: #{vae_forward.1} parent=1 // pred_check
      _
    $region27: #{vae_forward.1} parent=1 // pred_check_branch
      %62 = sbr.rel (0) target = $region29
    $region28: #{vae_forward.1} parent=1 // pred_region
      %s64 = ssub.s32 18432, 18432
      %65 = vsyncadd [#allocation8], %s64
      %s66 = sshll.u32 [#allocation7], 4
      %s67 = int_to_ptr.vmem [resolvable:$true] %s66
      %72 = dma.hbm_to_vmem [thread:$0]  %s6, 18432, %s67, [#allocation8], 384, 384, 24
    $region29: #{vae_forward.1} parent=1 // pred_fallthru
      _
    // Predicated region
    $region30: #{vae_forward.1} parent=1 // pred_check
      _
    $region31: #{vae_forward.1} parent=1 // pred_check_branch
      %74 = sbr.rel (0) target = $region33
    $region32: #{vae_forward.1} parent=1 // pred_region
      %s76 = ssub.s32 12288, 12288
      %77 = vsyncadd [#allocation8], %s76
      %s78 = sshll.u32 [#allocation9], 4
      %s79 = int_to_ptr.vmem [resolvable:$true] %s78
      %84 = dma.hbm_to_vmem [thread:$0]  %s7, 12288, %s79, [#allocation8], 256, 256, 16
    $region33: #{vae_forward.1} parent=1 // pred_fallthru
      _
    // Predicated region
    $region34: #{vae_forward.1} parent=1 // pred_check
      _
    $region35: #{vae_forward.1} parent=1 // pred_check_branch
      %86 = sbr.rel (0) target = $region37
    $region36: #{vae_forward.1} parent=1 // pred_region
      _
    $region37: #{vae_forward.1} parent=1 // pred_fallthru
      _
    // Predicated region
    $region38: #{vae_forward.1} parent=1 // pred_check
      _
    $region39: #{vae_forward.1} parent=1 // pred_check_branch
      %88 = sbr.rel (0) target = $region41
    $region40: #{vae_forward.1} parent=1 // pred_region
      %89 = dma.done [#allocation3], 12288
    $region41: #{vae_forward.1} parent=1 // pred_fallthru
      _
    // Predicated region
    $region42: #{vae_forward.1} parent=1 // pred_check
      _
    $region43: #{vae_forward.1} parent=1 // pred_check_branch
      %91 = sbr.rel (0) target = $region45
    $region44: #{vae_forward.1} parent=1 // pred_region
      %92 = dma.done [#allocation5], 18432
    $region45: #{vae_forward.1} parent=1 // pred_fallthru
      _
    // Predicated region
    $region46: #{vae_forward.1} parent=1 // pred_check
      _
    $region47: #{vae_forward.1} parent=1 // pred_check_branch
      %94 = sbr.rel (0) target = $region49
    $region48: #{vae_forward.1} parent=1 // pred_region
      %95 = dma.done [#allocation5], 6144
    $region49: #{vae_forward.1} parent=1 // pred_fallthru
      _
    // Predicated region
    $region50: #{vae_forward.1} parent=1 // pred_check
      _
    $region51: #{vae_forward.1} parent=1 // pred_check_branch
      %97 = sbr.rel (0) target = $region53
    $region52: #{vae_forward.1} parent=1 // pred_region
      %98 = dma.done [#allocation8], 18432
    $region53: #{vae_forward.1} parent=1 // pred_fallthru
      _
    // Predicated region
    $region54: #{vae_forward.1} parent=1 // pred_check
      _
    $region55: #{vae_forward.1} parent=1 // pred_check_branch
      %100 = sbr.rel (0) target = $region57
    $region56: #{vae_forward.1} parent=1 // pred_region
      %101 = dma.done [#allocation8], 12288
    $region57: #{vae_forward.1} parent=1 // pred_fallthru
      _
    %v103 = vld [vmem:[%s0] sm:$0xff]
    %v104 = vld [vmem:[%s0 + $0x8] sm:$0xff]
    %v105 = vld [vmem:[%s0 + $0x10] sm:$0xff]
    %v106 = vld [vmem:[%s0 + $0x18] sm:$0xff]
    %v107 = vld [vmem:[%s0 + $0x20] sm:$0xff]
    %v108 = vld [vmem:[%s0 + $0x28] sm:$0xff]
    %v109 = vld [vmem:[%s0 + $0x30] sm:$0xff]
    %v110 = vld [vmem:[%s0 + $0x38] sm:$0xff]
    %v111 = vld [vmem:[%s0 + $0x40] sm:$0xff]
    %v112 = vld [vmem:[%s0 + $0x48] sm:$0xff]
    %v113 = vld [vmem:[%s0 + $0x50] sm:$0xff]
    %v114 = vld [vmem:[%s0 + $0x58] sm:$0xff]
    %v115 = vld [vmem:[%s0 + $0x60] sm:$0xff]
    %v116 = vld [vmem:[%s0 + $0x68] sm:$0xff]
    %v117 = vld [vmem:[%s0 + $0x70] sm:$0xff]
    %v118 = vld [vmem:[%s0 + $0x78] sm:$0xff]
    %v119 = vld [vmem:[%s0 + $0x80] sm:$0xff]
    %v120 = vld [vmem:[%s0 + $0x88] sm:$0xff]
    %v121 = vld [vmem:[%s0 + $0x90] sm:$0xff]
    %v122 = vld [vmem:[%s0 + $0x98] sm:$0xff]
    %v123 = vld [vmem:[%s0 + $0xa0] sm:$0xff]
    %v124 = vld [vmem:[%s0 + $0xa8] sm:$0xff]
    %v125 = vld [vmem:[%s0 + $0xb0] sm:$0xff]
    %v126 = vld [vmem:[%s0 + $0xb8] sm:$0xff]
    %v127 = vld [vmem:[%s0 + $0xc0] sm:$0xff]
    %v128 = vld [vmem:[%s0 + $0xc8] sm:$0xff]
    %v129 = vld [vmem:[%s0 + $0xd0] sm:$0xff]
    %v130 = vld [vmem:[%s0 + $0xd8] sm:$0xff]
    %v131 = vld [vmem:[%s0 + $0xe0] sm:$0xff]
    %v132 = vld [vmem:[%s0 + $0xe8] sm:$0xff]
    %v133 = vld [vmem:[%s0 + $0xf0] sm:$0xff]
    %v134 = vld [vmem:[%s0 + $0xf8] sm:$0xff]
    %v135 = vpack.c.bf16 %v105, %v103
    %v136 = vpack.c.bf16 %v106, %v104
    %v137 = vpack.c.bf16 %v109, %v107
    %v138 = vpack.c.bf16 %v110, %v108
    %v139 = vpack.c.bf16 %v113, %v111
    %v140 = vpack.c.bf16 %v114, %v112
    %v141 = vpack.c.bf16 %v117, %v115
    %v142 = vpack.c.bf16 %v118, %v116
    %v143 = vpack.c.bf16 %v121, %v119
    %v144 = vpack.c.bf16 %v122, %v120
    %v145 = vpack.c.bf16 %v125, %v123
    %v146 = vpack.c.bf16 %v126, %v124
    %v147 = vpack.c.bf16 %v129, %v127
    %v148 = vpack.c.bf16 %v130, %v128
    %v149 = vpack.c.bf16 %v133, %v131
    %v150 = vpack.c.bf16 %v134, %v132
    %v151 = vld [vmem:[#allocation2] sm:$0xff]
    %v152 = vld [vmem:[#allocation2 + $0x8] sm:$0xff]
    %v153 = vld [vmem:[#allocation2 + $0x10] sm:$0xff]
    %v154 = vld [vmem:[#allocation2 + $0x18] sm:$0xff]
    %v155 = vld [vmem:[#allocation2 + $0x20] sm:$0xff]
    %v156 = vld [vmem:[#allocation2 + $0x28] sm:$0xff]
    %v157 = vld [vmem:[#allocation2 + $0x30] sm:$0xff]
    %v158 = vld [vmem:[#allocation2 + $0x38] sm:$0xff]
    %v159 = vld [vmem:[#allocation2 + $0x40] sm:$0xff]
    %v160 = vld [vmem:[#allocation2 + $0x48] sm:$0xff]
    %v161 = vld [vmem:[#allocation2 + $0x50] sm:$0xff]
    %v162 = vld [vmem:[#allocation2 + $0x58] sm:$0xff]
    %v163 = vld [vmem:[#allocation2 + $0x60] sm:$0xff]
    %v164 = vld [vmem:[#allocation2 + $0x68] sm:$0xff]
    %v165 = vld [vmem:[#allocation2 + $0x70] sm:$0xff]
    %v166 = vld [vmem:[#allocation2 + $0x78] sm:$0xff]
    %v167 = vld [vmem:[#allocation2 + $0x80] sm:$0xff]
    %v168 = vld [vmem:[#allocation2 + $0x88] sm:$0xff]
    %v169 = vld [vmem:[#allocation2 + $0x90] sm:$0xff]
    %v170 = vld [vmem:[#allocation2 + $0x98] sm:$0xff]
    %v171 = vld [vmem:[#allocation2 + $0xa0] sm:$0xff]
    %v172 = vld [vmem:[#allocation2 + $0xa8] sm:$0xff]
    %v173 = vld [vmem:[#allocation2 + $0xb0] sm:$0xff]
    %v174 = vld [vmem:[#allocation2 + $0xb8] sm:$0xff]
    %v175 = vld [vmem:[#allocation2 + $0xc0] sm:$0xff]
    %v176 = vld [vmem:[#allocation2 + $0xc8] sm:$0xff]
    %v177 = vld [vmem:[#allocation2 + $0xd0] sm:$0xff]
    %v178 = vld [vmem:[#allocation2 + $0xd8] sm:$0xff]
    %v179 = vld [vmem:[#allocation2 + $0xe0] sm:$0xff]
    %v180 = vld [vmem:[#allocation2 + $0xe8] sm:$0xff]
    %v181 = vld [vmem:[#allocation2 + $0xf0] sm:$0xff]
    %v182 = vld [vmem:[#allocation2 + $0xf8] sm:$0xff]
    %v183 = vld [vmem:[#allocation2 + $0x100] sm:$0xff]
    %v184 = vld [vmem:[#allocation2 + $0x108] sm:$0xff]
    %v185 = vld [vmem:[#allocation2 + $0x110] sm:$0xff]
    %v186 = vld [vmem:[#allocation2 + $0x118] sm:$0xff]
    %v187 = vld [vmem:[#allocation2 + $0x120] sm:$0xff]
    %v188 = vld [vmem:[#allocation2 + $0x128] sm:$0xff]
    %v189 = vld [vmem:[#allocation2 + $0x130] sm:$0xff]
    %v190 = vld [vmem:[#allocation2 + $0x138] sm:$0xff]
    %v191 = vld [vmem:[#allocation2 + $0x140] sm:$0xff]
    %v192 = vld [vmem:[#allocation2 + $0x148] sm:$0xff]
    %v193 = vld [vmem:[#allocation2 + $0x150] sm:$0xff]
    %v194 = vld [vmem:[#allocation2 + $0x158] sm:$0xff]
    %v195 = vld [vmem:[#allocation2 + $0x160] sm:$0xff]
    %v196 = vld [vmem:[#allocation2 + $0x168] sm:$0xff]
    %v197 = vld [vmem:[#allocation2 + $0x170] sm:$0xff]
    %v198 = vld [vmem:[#allocation2 + $0x178] sm:$0xff]
    %v199 = vld [vmem:[#allocation2 + $0x180] sm:$0xff]
    %v200 = vld [vmem:[#allocation2 + $0x188] sm:$0xff]
    %v201 = vld [vmem:[#allocation2 + $0x190] sm:$0xff]
    %v202 = vld [vmem:[#allocation2 + $0x198] sm:$0xff]
    %v203 = vld [vmem:[#allocation2 + $0x1a0] sm:$0xff]
    %v204 = vld [vmem:[#allocation2 + $0x1a8] sm:$0xff]
    %v205 = vld [vmem:[#allocation2 + $0x1b0] sm:$0xff]
    %v206 = vld [vmem:[#allocation2 + $0x1b8] sm:$0xff]
    %v207 = vld [vmem:[#allocation2 + $0x1c0] sm:$0xff]
    %v208 = vld [vmem:[#allocation2 + $0x1c8] sm:$0xff]
    %v209 = vld [vmem:[#allocation2 + $0x1d0] sm:$0xff]
    %v210 = vld [vmem:[#allocation2 + $0x1d8] sm:$0xff]
    %v211 = vld [vmem:[#allocation2 + $0x1e0] sm:$0xff]
    %v212 = vld [vmem:[#allocation2 + $0x1e8] sm:$0xff]
    %v213 = vld [vmem:[#allocation2 + $0x1f0] sm:$0xff]
    %v214 = vld [vmem:[#allocation2 + $0x1f8] sm:$0xff]
    %v215 = vld [vmem:[#allocation2 + $0x200] sm:$0xff]
    %v216 = vld [vmem:[#allocation2 + $0x208] sm:$0xff]
    %v217 = vld [vmem:[#allocation2 + $0x210] sm:$0xff]
    %v218 = vld [vmem:[#allocation2 + $0x218] sm:$0xff]
    %v219 = vld [vmem:[#allocation2 + $0x220] sm:$0xff]
    %v220 = vld [vmem:[#allocation2 + $0x228] sm:$0xff]
    %v221 = vld [vmem:[#allocation2 + $0x230] sm:$0xff]
    %v222 = vld [vmem:[#allocation2 + $0x238] sm:$0xff]
    %v223 = vld [vmem:[#allocation2 + $0x240] sm:$0xff]
    %v224 = vld [vmem:[#allocation2 + $0x248] sm:$0xff]
    %v225 = vld [vmem:[#allocation2 + $0x250] sm:$0xff]
    %v226 = vld [vmem:[#allocation2 + $0x258] sm:$0xff]
    %v227 = vld [vmem:[#allocation2 + $0x260] sm:$0xff]
    %v228 = vld [vmem:[#allocation2 + $0x268] sm:$0xff]
    %v229 = vld [vmem:[#allocation2 + $0x270] sm:$0xff]
    %v230 = vld [vmem:[#allocation2 + $0x278] sm:$0xff]
    %v231 = vld [vmem:[#allocation2 + $0x280] sm:$0xff]
    %v232 = vld [vmem:[#allocation2 + $0x288] sm:$0xff]
    %v233 = vld [vmem:[#allocation2 + $0x290] sm:$0xff]
    %v234 = vld [vmem:[#allocation2 + $0x298] sm:$0xff]
    %v235 = vld [vmem:[#allocation2 + $0x2a0] sm:$0xff]
    %v236 = vld [vmem:[#allocation2 + $0x2a8] sm:$0xff]
    %v237 = vld [vmem:[#allocation2 + $0x2b0] sm:$0xff]
    %v238 = vld [vmem:[#allocation2 + $0x2b8] sm:$0xff]
    %v239 = vld [vmem:[#allocation2 + $0x2c0] sm:$0xff]
    %v240 = vld [vmem:[#allocation2 + $0x2c8] sm:$0xff]
    %v241 = vld [vmem:[#allocation2 + $0x2d0] sm:$0xff]
    %v242 = vld [vmem:[#allocation2 + $0x2d8] sm:$0xff]
    %v243 = vld [vmem:[#allocation2 + $0x2e0] sm:$0xff]
    %v244 = vld [vmem:[#allocation2 + $0x2e8] sm:$0xff]
    %v245 = vld [vmem:[#allocation2 + $0x2f0] sm:$0xff]
    %v246 = vld [vmem:[#allocation2 + $0x2f8] sm:$0xff]
    %v247 = vld [vmem:[%s8] sm:$0x3f]
    %v249 = vlaneseq
    %v250 = vshrl.u32 %v249, 7
    %v251 = vsub.s32 0, %v250
    %v252 = vrot.slane %v247, %v251
    %v253 = vlaneseq
    %v254 = vshrl.u32 %v253, 7
    %v255 = vsub.s32 1, %v254
    %v256 = vrot.slane %v247, %v255
    %v257 = vlaneseq
    %v258 = vshrl.u32 %v257, 7
    %v259 = vsub.s32 2, %v258
    %v260 = vrot.slane %v247, %v259
    %v261 = vlaneseq
    %v262 = vshrl.u32 %v261, 7
    %v263 = vsub.s32 3, %v262
    %v264 = vrot.slane %v247, %v263
    %v265 = vlaneseq
    %v266 = vshrl.u32 %v265, 7
    %v267 = vsub.s32 4, %v266
    %v268 = vrot.slane %v247, %v267
    %v269 = vlaneseq
    %v270 = vshrl.u32 %v269, 7
    %v271 = vsub.s32 5, %v270
    %v272 = vrot.slane %v247, %v271
    %v375 = vunpack.c.l.b16 %v151
    %v376 = vunpack.c.h.b16 %v151
    %v377 = vunpack.c.l.b16 %v152
    %v378 = vunpack.c.h.b16 %v152
    %v379 = vunpack.c.l.b16 %v153
    %v380 = vunpack.c.h.b16 %v153
    %v381 = vunpack.c.l.b16 %v154
    %v382 = vunpack.c.h.b16 %v154
    %v383 = vunpack.c.l.b16 %v155
    %v384 = vunpack.c.h.b16 %v155
    %v385 = vunpack.c.l.b16 %v156
    %v386 = vunpack.c.h.b16 %v156
    %v387 = vunpack.c.l.b16 %v157
    %v388 = vunpack.c.h.b16 %v157
    %v389 = vunpack.c.l.b16 %v158
    %v390 = vunpack.c.h.b16 %v158
    %v391 = vunpack.c.l.b16 %v159
    %v392 = vunpack.c.h.b16 %v159
    %v393 = vunpack.c.l.b16 %v160
    %v394 = vunpack.c.h.b16 %v160
    %v395 = vunpack.c.l.b16 %v161
    %v396 = vunpack.c.h.b16 %v161
    %v397 = vunpack.c.l.b16 %v162
    %v398 = vunpack.c.h.b16 %v162
    %v399 = vunpack.c.l.b16 %v163
    %v400 = vunpack.c.h.b16 %v163
    %v401 = vunpack.c.l.b16 %v164
    %v402 = vunpack.c.h.b16 %v164
    %v403 = vunpack.c.l.b16 %v165
    %v404 = vunpack.c.h.b16 %v165
    %v405 = vunpack.c.l.b16 %v166
    %v406 = vunpack.c.h.b16 %v166
    %v407 = vunpack.c.l.b16 %v167
    %v408 = vunpack.c.h.b16 %v167
    %v409 = vunpack.c.l.b16 %v168
    %v410 = vunpack.c.h.b16 %v168
    %v411 = vunpack.c.l.b16 %v169
    %v412 = vunpack.c.h.b16 %v169
    %v413 = vunpack.c.l.b16 %v170
    %v414 = vunpack.c.h.b16 %v170
    %v415 = vunpack.c.l.b16 %v171
    %v416 = vunpack.c.h.b16 %v171
    %v417 = vunpack.c.l.b16 %v172
    %v418 = vunpack.c.h.b16 %v172
    %v419 = vunpack.c.l.b16 %v173
    %v420 = vunpack.c.h.b16 %v173
    %v421 = vunpack.c.l.b16 %v174
    %v422 = vunpack.c.h.b16 %v174
    %v423 = vunpack.c.l.b16 %v175
    %v424 = vunpack.c.h.b16 %v175
    %v425 = vunpack.c.l.b16 %v176
    %v426 = vunpack.c.h.b16 %v176
    %v427 = vunpack.c.l.b16 %v177
    %v428 = vunpack.c.h.b16 %v177
    %v429 = vunpack.c.l.b16 %v178
    %v430 = vunpack.c.h.b16 %v178
    %v431 = vunpack.c.l.b16 %v179
    %v432 = vunpack.c.h.b16 %v179
    %v433 = vunpack.c.l.b16 %v180
    %v434 = vunpack.c.h.b16 %v180
    %v435 = vunpack.c.l.b16 %v181
    %v436 = vunpack.c.h.b16 %v181
    %v437 = vunpack.c.l.b16 %v182
    %v438 = vunpack.c.h.b16 %v182
    %v439 = vunpack.c.l.b16 %v183
    %v440 = vunpack.c.h.b16 %v183
    %v441 = vunpack.c.l.b16 %v184
    %v442 = vunpack.c.h.b16 %v184
    %v443 = vunpack.c.l.b16 %v185
    %v444 = vunpack.c.h.b16 %v185
    %v445 = vunpack.c.l.b16 %v186
    %v446 = vunpack.c.h.b16 %v186
    %v447 = vunpack.c.l.b16 %v187
    %v448 = vunpack.c.h.b16 %v187
    %v449 = vunpack.c.l.b16 %v188
    %v450 = vunpack.c.h.b16 %v188
    %v451 = vunpack.c.l.b16 %v189
    %v452 = vunpack.c.h.b16 %v189
    %v453 = vunpack.c.l.b16 %v190
    %v454 = vunpack.c.h.b16 %v190
    %v455 = vunpack.c.l.b16 %v191
    %v456 = vunpack.c.h.b16 %v191
    %v457 = vunpack.c.l.b16 %v192
    %v458 = vunpack.c.h.b16 %v192
    %v459 = vunpack.c.l.b16 %v193
    %v460 = vunpack.c.h.b16 %v193
    %v461 = vunpack.c.l.b16 %v194
    %v462 = vunpack.c.h.b16 %v194
    %v463 = vunpack.c.l.b16 %v195
    %v464 = vunpack.c.h.b16 %v195
    %v465 = vunpack.c.l.b16 %v196
    %v466 = vunpack.c.h.b16 %v196
    %v467 = vunpack.c.l.b16 %v197
    %v468 = vunpack.c.h.b16 %v197
    %v469 = vunpack.c.l.b16 %v198
    %v470 = vunpack.c.h.b16 %v198
    %v471 = vunpack.c.l.b16 %v199
    %v472 = vunpack.c.h.b16 %v199
    %v473 = vunpack.c.l.b16 %v200
    %v474 = vunpack.c.h.b16 %v200
    %v475 = vunpack.c.l.b16 %v201
    %v476 = vunpack.c.h.b16 %v201
    %v477 = vunpack.c.l.b16 %v202
    %v478 = vunpack.c.h.b16 %v202
    %v479 = vunpack.c.l.b16 %v203
    %v480 = vunpack.c.h.b16 %v203
    %v481 = vunpack.c.l.b16 %v204
    %v482 = vunpack.c.h.b16 %v204
    %v483 = vunpack.c.l.b16 %v205
    %v484 = vunpack.c.h.b16 %v205
    %v485 = vunpack.c.l.b16 %v206
    %v486 = vunpack.c.h.b16 %v206
    %v487 = vunpack.c.l.b16 %v207
    %v488 = vunpack.c.h.b16 %v207
    %v489 = vunpack.c.l.b16 %v208
    %v490 = vunpack.c.h.b16 %v208
    %v491 = vunpack.c.l.b16 %v209
    %v492 = vunpack.c.h.b16 %v209
    %v493 = vunpack.c.l.b16 %v210
    %v494 = vunpack.c.h.b16 %v210
    %v495 = vunpack.c.l.b16 %v211
    %v496 = vunpack.c.h.b16 %v211
    %v497 = vunpack.c.l.b16 %v212
    %v498 = vunpack.c.h.b16 %v212
    %v499 = vunpack.c.l.b16 %v213
    %v500 = vunpack.c.h.b16 %v213
    %v501 = vunpack.c.l.b16 %v214
    %v502 = vunpack.c.h.b16 %v214
    %v503 = vunpack.c.l.b16 %v215
    %v504 = vunpack.c.h.b16 %v215
    %v505 = vunpack.c.l.b16 %v216
    %v506 = vunpack.c.h.b16 %v216
    %v507 = vunpack.c.l.b16 %v217
    %v508 = vunpack.c.h.b16 %v217
    %v509 = vunpack.c.l.b16 %v218
    %v510 = vunpack.c.h.b16 %v218
    %v511 = vunpack.c.l.b16 %v219
    %v512 = vunpack.c.h.b16 %v219
    %v513 = vunpack.c.l.b16 %v220
    %v514 = vunpack.c.h.b16 %v220
    %v515 = vunpack.c.l.b16 %v221
    %v516 = vunpack.c.h.b16 %v221
    %v517 = vunpack.c.l.b16 %v222
    %v518 = vunpack.c.h.b16 %v222
    %v519 = vunpack.c.l.b16 %v223
    %v520 = vunpack.c.h.b16 %v223
    %v521 = vunpack.c.l.b16 %v224
    %v522 = vunpack.c.h.b16 %v224
    %v523 = vunpack.c.l.b16 %v225
    %v524 = vunpack.c.h.b16 %v225
    %v525 = vunpack.c.l.b16 %v226
    %v526 = vunpack.c.h.b16 %v226
    %v527 = vunpack.c.l.b16 %v227
    %v528 = vunpack.c.h.b16 %v227
    %v529 = vunpack.c.l.b16 %v228
    %v530 = vunpack.c.h.b16 %v228
    %v531 = vunpack.c.l.b16 %v229
    %v532 = vunpack.c.h.b16 %v229
    %v533 = vunpack.c.l.b16 %v230
    %v534 = vunpack.c.h.b16 %v230
    %v535 = vunpack.c.l.b16 %v231
    %v536 = vunpack.c.h.b16 %v231
    %v537 = vunpack.c.l.b16 %v232
    %v538 = vunpack.c.h.b16 %v232
    %v539 = vunpack.c.l.b16 %v233
    %v540 = vunpack.c.h.b16 %v233
    %v541 = vunpack.c.l.b16 %v234
    %v542 = vunpack.c.h.b16 %v234
    %v543 = vunpack.c.l.b16 %v235
    %v544 = vunpack.c.h.b16 %v235
    %v545 = vunpack.c.l.b16 %v236
    %v546 = vunpack.c.h.b16 %v236
    %v547 = vunpack.c.l.b16 %v237
    %v548 = vunpack.c.h.b16 %v237
    %v549 = vunpack.c.l.b16 %v238
    %v550 = vunpack.c.h.b16 %v238
    %v551 = vunpack.c.l.b16 %v239
    %v552 = vunpack.c.h.b16 %v239
    %v553 = vunpack.c.l.b16 %v240
    %v554 = vunpack.c.h.b16 %v240
    %v555 = vunpack.c.l.b16 %v241
    %v556 = vunpack.c.h.b16 %v241
    %v557 = vunpack.c.l.b16 %v242
    %v558 = vunpack.c.h.b16 %v242
    %v559 = vunpack.c.l.b16 %v243
    %v560 = vunpack.c.h.b16 %v243
    %v561 = vunpack.c.l.b16 %v244
    %v562 = vunpack.c.h.b16 %v244
    %v563 = vunpack.c.l.b16 %v245
    %v564 = vunpack.c.h.b16 %v245
    %v565 = vunpack.c.l.b16 %v246
    %v566 = vunpack.c.h.b16 %v246
    %v567 = vpack.c.b16 %v381, %v375
    %v568 = vpack.c.b16 %v382, %v376
    %v569 = vpack.c.b16 %v383, %v377
    %v570 = vpack.c.b16 %v384, %v378
    %v571 = vpack.c.b16 %v385, %v379
    %v572 = vpack.c.b16 %v386, %v380
    %v573 = vpack.c.b16 %v393, %v387
    %v574 = vpack.c.b16 %v394, %v388
    %v575 = vpack.c.b16 %v395, %v389
    %v576 = vpack.c.b16 %v396, %v390
    %v577 = vpack.c.b16 %v397, %v391
    %v578 = vpack.c.b16 %v398, %v392
    %v579 = vpack.c.b16 %v405, %v399
    %v580 = vpack.c.b16 %v406, %v400
    %v581 = vpack.c.b16 %v407, %v401
    %v582 = vpack.c.b16 %v408, %v402
    %v583 = vpack.c.b16 %v409, %v403
    %v584 = vpack.c.b16 %v410, %v404
    %v585 = vpack.c.b16 %v417, %v411
    %v586 = vpack.c.b16 %v418, %v412
    %v587 = vpack.c.b16 %v419, %v413
    %v588 = vpack.c.b16 %v420, %v414
    %v589 = vpack.c.b16 %v421, %v415
    %v590 = vpack.c.b16 %v422, %v416
    %v591 = vpack.c.b16 %v429, %v423
    %v592 = vpack.c.b16 %v430, %v424
    %v593 = vpack.c.b16 %v431, %v425
    %v594 = vpack.c.b16 %v432, %v426
    %v595 = vpack.c.b16 %v433, %v427
    %v596 = vpack.c.b16 %v434, %v428
    %v597 = vpack.c.b16 %v441, %v435
    %v598 = vpack.c.b16 %v442, %v436
    %v599 = vpack.c.b16 %v443, %v437
    %v600 = vpack.c.b16 %v444, %v438
    %v601 = vpack.c.b16 %v445, %v439
    %v602 = vpack.c.b16 %v446, %v440
    %v603 = vpack.c.b16 %v453, %v447
    %v604 = vpack.c.b16 %v454, %v448
    %v605 = vpack.c.b16 %v455, %v449
    %v606 = vpack.c.b16 %v456, %v450
    %v607 = vpack.c.b16 %v457, %v451
    %v608 = vpack.c.b16 %v458, %v452
    %v609 = vpack.c.b16 %v465, %v459
    %v610 = vpack.c.b16 %v466, %v460
    %v611 = vpack.c.b16 %v467, %v461
    %v612 = vpack.c.b16 %v468, %v462
    %v613 = vpack.c.b16 %v469, %v463
    %v614 = vpack.c.b16 %v470, %v464
    %v615 = vpack.c.b16 %v477, %v471
    %v616 = vpack.c.b16 %v478, %v472
    %v617 = vpack.c.b16 %v479, %v473
    %v618 = vpack.c.b16 %v480, %v474
    %v619 = vpack.c.b16 %v481, %v475
    %v620 = vpack.c.b16 %v482, %v476
    %v621 = vpack.c.b16 %v489, %v483
    %v622 = vpack.c.b16 %v490, %v484
    %v623 = vpack.c.b16 %v491, %v485
    %v624 = vpack.c.b16 %v492, %v486
    %v625 = vpack.c.b16 %v493, %v487
    %v626 = vpack.c.b16 %v494, %v488
    %v627 = vpack.c.b16 %v501, %v495
    %v628 = vpack.c.b16 %v502, %v496
    %v629 = vpack.c.b16 %v503, %v497
    %v630 = vpack.c.b16 %v504, %v498
    %v631 = vpack.c.b16 %v505, %v499
    %v632 = vpack.c.b16 %v506, %v500
    %v633 = vpack.c.b16 %v513, %v507
    %v634 = vpack.c.b16 %v514, %v508
    %v635 = vpack.c.b16 %v515, %v509
    %v636 = vpack.c.b16 %v516, %v510
    %v637 = vpack.c.b16 %v517, %v511
    %v638 = vpack.c.b16 %v518, %v512
    %v639 = vpack.c.b16 %v525, %v519
    %v640 = vpack.c.b16 %v526, %v520
    %v641 = vpack.c.b16 %v527, %v521
    %v642 = vpack.c.b16 %v528, %v522
    %v643 = vpack.c.b16 %v529, %v523
    %v644 = vpack.c.b16 %v530, %v524
    %v645 = vpack.c.b16 %v537, %v531
    %v646 = vpack.c.b16 %v538, %v532
    %v647 = vpack.c.b16 %v539, %v533
    %v648 = vpack.c.b16 %v540, %v534
    %v649 = vpack.c.b16 %v541, %v535
    %v650 = vpack.c.b16 %v542, %v536
    %v651 = vpack.c.b16 %v549, %v543
    %v652 = vpack.c.b16 %v550, %v544
    %v653 = vpack.c.b16 %v551, %v545
    %v654 = vpack.c.b16 %v552, %v546
    %v655 = vpack.c.b16 %v553, %v547
    %v656 = vpack.c.b16 %v554, %v548
    %v657 = vpack.c.b16 %v561, %v555
    %v658 = vpack.c.b16 %v562, %v556
    %v659 = vpack.c.b16 %v563, %v557
    %v660 = vpack.c.b16 %v564, %v558
    %v661 = vpack.c.b16 %v565, %v559
    %v662 = vpack.c.b16 %v566, %v560
    %759 = vmatprep.subr.bf16.mxu0 %v568
    %760 = vmatpush1.bf16.msra.mxu0 %v567
    %761 = vmatprep.subr.bf16.mxu0 %v574
    %762 = vmatpush1.bf16.msra.mxu0 %v573
    %763 = vmatprep.subr.bf16.mxu0 %v580
    %764 = vmatpush1.bf16.msra.mxu0 %v579
    %765 = vmatprep.subr.bf16.mxu0 %v586
    %766 = vmatpush1.bf16.msra.mxu0 %v585
    %767 = vmatprep.subr.bf16.mxu0 %v592
    %768 = vmatpush1.bf16.msra.mxu0 %v591
    %769 = vmatprep.subr.bf16.mxu0 %v598
    %770 = vmatpush1.bf16.msra.mxu0 %v597
    %771 = vmatprep.subr.bf16.mxu0 %v604
    %772 = vmatpush1.bf16.msra.mxu0 %v603
    %773 = vmatprep.subr.bf16.mxu0 %v610
    %774 = vmatpush1.bf16.msra.mxu0 %v609
    %775 = vmatprep.subr.bf16.mxu0 %v616
    %776 = vmatpush1.bf16.msra.mxu0 %v615
    %777 = vmatprep.subr.bf16.mxu0 %v622
    %778 = vmatpush1.bf16.msra.mxu0 %v621
    %779 = vmatprep.subr.bf16.mxu0 %v628
    %780 = vmatpush1.bf16.msra.mxu0 %v627
    %781 = vmatprep.subr.bf16.mxu0 %v634
    %782 = vmatpush1.bf16.msra.mxu0 %v633
    %783 = vmatprep.subr.bf16.mxu0 %v640
    %784 = vmatpush1.bf16.msra.mxu0 %v639
    %785 = vmatprep.subr.bf16.mxu0 %v646
    %786 = vmatpush1.bf16.msra.mxu0 %v645
    %787 = vmatprep.subr.bf16.mxu0 %v652
    %788 = vmatpush1.bf16.msra.mxu0 %v651
    %789 = vmatprep.subr.bf16.mxu0 %v658
    %790 = vmatpush1.bf16.msra.mxu0 %v657
    %791 = vmatprep.mubr.bf16.mxu0 %v136
    %792 = vmatmul.mubr.bf16.gmra.mrb[0].mxu0 %v135
    %v793 = vpop.f32.mrb[0].mxu0
    %v794 = vadd.f32 %v252, %v793
    %v795 = vpop.f32.mrb[0].mxu0
    %v796 = vadd.f32 %v256, %v795
    %v797 = vpop.f32.mrb[0].mxu0
    %v798 = vadd.f32 %v252, %v797
    %v799 = vpop.f32.mrb[0].mxu0
    %v800 = vadd.f32 %v256, %v799
    %801 = vmatprep.mubr.bf16.mxu0 %v138
    %802 = vmatmul.mubr.bf16.gmra.mrb[0].mxu0 %v137
    %v803 = vpop.f32.mrb[0].mxu0
    %v804 = vadd.f32 %v252, %v803
    %v805 = vpop.f32.mrb[0].mxu0
    %v806 = vadd.f32 %v256, %v805
    %v807 = vpop.f32.mrb[0].mxu0
    %v808 = vadd.f32 %v252, %v807
    %v809 = vpop.f32.mrb[0].mxu0
    %v810 = vadd.f32 %v256, %v809
    %811 = vmatprep.mubr.bf16.mxu0 %v140
    %812 = vmatmul.mubr.bf16.gmra.mrb[0].mxu0 %v139
    %v813 = vpop.f32.mrb[0].mxu0
    %v814 = vadd.f32 %v252, %v813
    %v815 = vpop.f32.mrb[0].mxu0
    %v816 = vadd.f32 %v256, %v815
    %v817 = vpop.f32.mrb[0].mxu0
    %v818 = vadd.f32 %v252, %v817
    %v819 = vpop.f32.mrb[0].mxu0
    %v820 = vadd.f32 %v256, %v819
    %821 = vmatprep.mubr.bf16.mxu0 %v142
    %822 = vmatmul.mubr.bf16.gmra.mrb[0].mxu0 %v141
    %v823 = vpop.f32.mrb[0].mxu0
    %v824 = vadd.f32 %v252, %v823
    %v825 = vpop.f32.mrb[0].mxu0
    %v826 = vadd.f32 %v256, %v825
    %v827 = vpop.f32.mrb[0].mxu0
    %v828 = vadd.f32 %v252, %v827
    %v829 = vpop.f32.mrb[0].mxu0
    %v830 = vadd.f32 %v256, %v829
    %831 = vmatprep.mubr.bf16.mxu0 %v144
    %832 = vmatmul.mubr.bf16.gmra.mrb[0].mxu0 %v143
    %v833 = vpop.f32.mrb[0].mxu0
    %v834 = vadd.f32 %v252, %v833
    %v835 = vpop.f32.mrb[0].mxu0
    %v836 = vadd.f32 %v256, %v835
    %v837 = vpop.f32.mrb[0].mxu0
    %v838 = vadd.f32 %v252, %v837
    %v839 = vpop.f32.mrb[0].mxu0
    %v840 = vadd.f32 %v256, %v839
    %841 = vmatprep.mubr.bf16.mxu0 %v146
    %842 = vmatmul.mubr.bf16.gmra.mrb[0].mxu0 %v145
    %v843 = vpop.f32.mrb[0].mxu0
    %v844 = vadd.f32 %v252, %v843
    %v845 = vpop.f32.mrb[0].mxu0
    %v846 = vadd.f32 %v256, %v845
    %v847 = vpop.f32.mrb[0].mxu0
    %v848 = vadd.f32 %v252, %v847
    %v849 = vpop.f32.mrb[0].mxu0
    %v850 = vadd.f32 %v256, %v849
    %851 = vmatprep.mubr.bf16.mxu0 %v148
    %852 = vmatmul.mubr.bf16.gmra.mrb[0].mxu0 %v147
    %v853 = vpop.f32.mrb[0].mxu0
    %v854 = vadd.f32 %v252, %v853
    %v855 = vpop.f32.mrb[0].mxu0
    %v856 = vadd.f32 %v256, %v855
    %v857 = vpop.f32.mrb[0].mxu0
    %v858 = vadd.f32 %v252, %v857
    %v859 = vpop.f32.mrb[0].mxu0
    %v860 = vadd.f32 %v256, %v859
    %861 = vmatprep.mubr.bf16.mxu0 %v150
    %862 = vmatmul.mubr.bf16.gmra.mrb[0].mxu0 %v149
    %v863 = vpop.f32.mrb[0].mxu0
    %v864 = vadd.f32 %v252, %v863
    %v865 = vpop.f32.mrb[0].mxu0
    %v866 = vadd.f32 %v256, %v865
    %v867 = vpop.f32.mrb[0].mxu0
    %v868 = vadd.f32 %v252, %v867
    %v869 = vpop.f32.mrb[0].mxu0
    %v870 = vadd.f32 %v256, %v869
    %871 = vdwg.mxu0
    %872 = vmatprep.subr.bf16.mxu0 %v570
    %873 = vmatpush1.bf16.msra.mxu0 %v569
    %874 = vmatprep.subr.bf16.mxu0 %v576
    %875 = vmatpush1.bf16.msra.mxu0 %v575
    %876 = vmatprep.subr.bf16.mxu0 %v582
    %877 = vmatpush1.bf16.msra.mxu0 %v581
    %878 = vmatprep.subr.bf16.mxu0 %v588
    %879 = vmatpush1.bf16.msra.mxu0 %v587
    %880 = vmatprep.subr.bf16.mxu0 %v594
    %881 = vmatpush1.bf16.msra.mxu0 %v593
    %882 = vmatprep.subr.bf16.mxu0 %v600
    %883 = vmatpush1.bf16.msra.mxu0 %v599
    %884 = vmatprep.subr.bf16.mxu0 %v606
    %885 = vmatpush1.bf16.msra.mxu0 %v605
    %886 = vmatprep.subr.bf16.mxu0 %v612
    %887 = vmatpush1.bf16.msra.mxu0 %v611
    %888 = vmatprep.subr.bf16.mxu0 %v618
    %889 = vmatpush1.bf16.msra.mxu0 %v617
    %890 = vmatprep.subr.bf16.mxu0 %v624
    %891 = vmatpush1.bf16.msra.mxu0 %v623
    %892 = vmatprep.subr.bf16.mxu0 %v630
    %893 = vmatpush1.bf16.msra.mxu0 %v629
    %894 = vmatprep.subr.bf16.mxu0 %v636
    %895 = vmatpush1.bf16.msra.mxu0 %v635
    %896 = vmatprep.subr.bf16.mxu0 %v642
    %897 = vmatpush1.bf16.msra.mxu0 %v641
    %898 = vmatprep.subr.bf16.mxu0 %v648
    %899 = vmatpush1.bf16.msra.mxu0 %v647
    %900 = vmatprep.subr.bf16.mxu0 %v654
    %901 = vmatpush1.bf16.msra.mxu0 %v653
    %902 = vmatprep.subr.bf16.mxu0 %v660
    %903 = vmatpush1.bf16.msra.mxu0 %v659
    %904 = vmatprep.mubr.bf16.mxu0 %v136
    %905 = vmatmul.mubr.bf16.gmra.mrb[0].mxu0 %v135
    %v906 = vpop.f32.mrb[0].mxu0
    %v907 = vadd.f32 %v260, %v906
    %v908 = vpop.f32.mrb[0].mxu0
    %v909 = vadd.f32 %v264, %v908
    %v910 = vpop.f32.mrb[0].mxu0
    %v911 = vadd.f32 %v260, %v910
    %v912 = vpop.f32.mrb[0].mxu0
    %v913 = vadd.f32 %v264, %v912
    %914 = vmatprep.mubr.bf16.mxu0 %v138
    %915 = vmatmul.mubr.bf16.gmra.mrb[0].mxu0 %v137
    %v916 = vpop.f32.mrb[0].mxu0
    %v917 = vadd.f32 %v260, %v916
    %v918 = vpop.f32.mrb[0].mxu0
    %v919 = vadd.f32 %v264, %v918
    %v920 = vpop.f32.mrb[0].mxu0
    %v921 = vadd.f32 %v260, %v920
    %v922 = vpop.f32.mrb[0].mxu0
    %v923 = vadd.f32 %v264, %v922
    %924 = vmatprep.mubr.bf16.mxu0 %v140
    %925 = vmatmul.mubr.bf16.gmra.mrb[0].mxu0 %v139
    %v926 = vpop.f32.mrb[0].mxu0
    %v927 = vadd.f32 %v260, %v926
    %v928 = vpop.f32.mrb[0].mxu0
    %v929 = vadd.f32 %v264, %v928
    %v930 = vpop.f32.mrb[0].mxu0
    %v931 = vadd.f32 %v260, %v930
    %v932 = vpop.f32.mrb[0].mxu0
    %v933 = vadd.f32 %v264, %v932
    %934 = vmatprep.mubr.bf16.mxu0 %v142
    %935 = vmatmul.mubr.bf16.gmra.mrb[0].mxu0 %v141
    %v936 = vpop.f32.mrb[0].mxu0
    %v937 = vadd.f32 %v260, %v936
    %v938 = vpop.f32.mrb[0].mxu0
    %v939 = vadd.f32 %v264, %v938
    %v940 = vpop.f32.mrb[0].mxu0
    %v941 = vadd.f32 %v260, %v940
    %v942 = vpop.f32.mrb[0].mxu0
    %v943 = vadd.f32 %v264, %v942
    %944 = vmatprep.mubr.bf16.mxu0 %v144
    %945 = vmatmul.mubr.bf16.gmra.mrb[0].mxu0 %v143
    %v946 = vpop.f32.mrb[0].mxu0
    %v947 = vadd.f32 %v260, %v946
    %v948 = vpop.f32.mrb[0].mxu0
    %v949 = vadd.f32 %v264, %v948
    %v950 = vpop.f32.mrb[0].mxu0
    %v951 = vadd.f32 %v260, %v950
    %v952 = vpop.f32.mrb[0].mxu0
    %v953 = vadd.f32 %v264, %v952
    %954 = vmatprep.mubr.bf16.mxu0 %v146
    %955 = vmatmul.mubr.bf16.gmra.mrb[0].mxu0 %v145
    %v956 = vpop.f32.mrb[0].mxu0
    %v957 = vadd.f32 %v260, %v956
    %v958 = vpop.f32.mrb[0].mxu0
    %v959 = vadd.f32 %v264, %v958
    %v960 = vpop.f32.mrb[0].mxu0
    %v961 = vadd.f32 %v260, %v960
    %v962 = vpop.f32.mrb[0].mxu0
    %v963 = vadd.f32 %v264, %v962
    %964 = vmatprep.mubr.bf16.mxu0 %v148
    %965 = vmatmul.mubr.bf16.gmra.mrb[0].mxu0 %v147
    %v966 = vpop.f32.mrb[0].mxu0
    %v967 = vadd.f32 %v260, %v966
    %v968 = vpop.f32.mrb[0].mxu0
    %v969 = vadd.f32 %v264, %v968
    %v970 = vpop.f32.mrb[0].mxu0
    %v971 = vadd.f32 %v260, %v970
    %v972 = vpop.f32.mrb[0].mxu0
    %v973 = vadd.f32 %v264, %v972
    %974 = vmatprep.mubr.bf16.mxu0 %v150
    %975 = vmatmul.mubr.bf16.gmra.mrb[0].mxu0 %v149
    %v976 = vpop.f32.mrb[0].mxu0
    %v977 = vadd.f32 %v260, %v976
    %v978 = vpop.f32.mrb[0].mxu0
    %v979 = vadd.f32 %v264, %v978
    %v980 = vpop.f32.mrb[0].mxu0
    %v981 = vadd.f32 %v260, %v980
    %v982 = vpop.f32.mrb[0].mxu0
    %v983 = vadd.f32 %v264, %v982
    %984 = vdwg.mxu0
    %985 = vmatprep.subr.bf16.mxu0 %v572
    %986 = vmatpush1.bf16.msra.mxu0 %v571
    %987 = vmatprep.subr.bf16.mxu0 %v578
    %988 = vmatpush1.bf16.msra.mxu0 %v577
    %989 = vmatprep.subr.bf16.mxu0 %v584
    %990 = vmatpush1.bf16.msra.mxu0 %v583
    %991 = vmatprep.subr.bf16.mxu0 %v590
    %992 = vmatpush1.bf16.msra.mxu0 %v589
    %993 = vmatprep.subr.bf16.mxu0 %v596
    %994 = vmatpush1.bf16.msra.mxu0 %v595
    %995 = vmatprep.subr.bf16.mxu0 %v602
    %996 = vmatpush1.bf16.msra.mxu0 %v601
    %997 = vmatprep.subr.bf16.mxu0 %v608
    %998 = vmatpush1.bf16.msra.mxu0 %v607
    %999 = vmatprep.subr.bf16.mxu0 %v614
    %1000 = vmatpush1.bf16.msra.mxu0 %v613
    %1001 = vmatprep.subr.bf16.mxu0 %v620
    %1002 = vmatpush1.bf16.msra.mxu0 %v619
    %1003 = vmatprep.subr.bf16.mxu0 %v626
    %1004 = vmatpush1.bf16.msra.mxu0 %v625
    %1005 = vmatprep.subr.bf16.mxu0 %v632
    %1006 = vmatpush1.bf16.msra.mxu0 %v631
    %1007 = vmatprep.subr.bf16.mxu0 %v638
    %1008 = vmatpush1.bf16.msra.mxu0 %v637
    %1009 = vmatprep.subr.bf16.mxu0 %v644
    %1010 = vmatpush1.bf16.msra.mxu0 %v643
    %1011 = vmatprep.subr.bf16.mxu0 %v650
    %1012 = vmatpush1.bf16.msra.mxu0 %v649
    %1013 = vmatprep.subr.bf16.mxu0 %v656
    %1014 = vmatpush1.bf16.msra.mxu0 %v655
    %1015 = vmatprep.subr.bf16.mxu0 %v662
    %1016 = vmatpush1.bf16.msra.mxu0 %v661
    %1017 = vmatprep.mubr.bf16.mxu0 %v136
    %1018 = vmatmul.mubr.bf16.gmra.mrb[0].mxu0 %v135
    %v1019 = vpop.f32.mrb[0].mxu0
    %v1020 = vadd.f32 %v268, %v1019
    %v1021 = vpop.f32.mrb[0].mxu0
    %v1022 = vadd.f32 %v272, %v1021
    %v1023 = vpop.f32.mrb[0].mxu0
    %v1024 = vadd.f32 %v268, %v1023
    %v1025 = vpop.f32.mrb[0].mxu0
    %v1026 = vadd.f32 %v272, %v1025
    %1027 = vmatprep.mubr.bf16.mxu0 %v138
    %1028 = vmatmul.mubr.bf16.gmra.mrb[0].mxu0 %v137
    %v1029 = vpop.f32.mrb[0].mxu0
    %v1030 = vadd.f32 %v268, %v1029
    %v1031 = vpop.f32.mrb[0].mxu0
    %v1032 = vadd.f32 %v272, %v1031
    %v1033 = vpop.f32.mrb[0].mxu0
    %v1034 = vadd.f32 %v268, %v1033
    %v1035 = vpop.f32.mrb[0].mxu0
    %v1036 = vadd.f32 %v272, %v1035
    %1037 = vmatprep.mubr.bf16.mxu0 %v140
    %1038 = vmatmul.mubr.bf16.gmra.mrb[0].mxu0 %v139
    %v1039 = vpop.f32.mrb[0].mxu0
    %v1040 = vadd.f32 %v268, %v1039
    %v1041 = vpop.f32.mrb[0].mxu0
    %v1042 = vadd.f32 %v272, %v1041
    %v1043 = vpop.f32.mrb[0].mxu0
    %v1044 = vadd.f32 %v268, %v1043
    %v1045 = vpop.f32.mrb[0].mxu0
    %v1046 = vadd.f32 %v272, %v1045
    %1047 = vmatprep.mubr.bf16.mxu0 %v142
    %1048 = vmatmul.mubr.bf16.gmra.mrb[0].mxu0 %v141
    %v1049 = vpop.f32.mrb[0].mxu0
    %v1050 = vadd.f32 %v268, %v1049
    %v1051 = vpop.f32.mrb[0].mxu0
    %v1052 = vadd.f32 %v272, %v1051
    %v1053 = vpop.f32.mrb[0].mxu0
    %v1054 = vadd.f32 %v268, %v1053
    %v1055 = vpop.f32.mrb[0].mxu0
    %v1056 = vadd.f32 %v272, %v1055
    %1057 = vmatprep.mubr.bf16.mxu0 %v144
    %1058 = vmatmul.mubr.bf16.gmra.mrb[0].mxu0 %v143
    %v1059 = vpop.f32.mrb[0].mxu0
    %v1060 = vadd.f32 %v268, %v1059
    %v1061 = vpop.f32.mrb[0].mxu0
    %v1062 = vadd.f32 %v272, %v1061
    %v1063 = vpop.f32.mrb[0].mxu0
    %v1064 = vadd.f32 %v268, %v1063
    %v1065 = vpop.f32.mrb[0].mxu0
    %v1066 = vadd.f32 %v272, %v1065
    %1067 = vmatprep.mubr.bf16.mxu0 %v146
    %1068 = vmatmul.mubr.bf16.gmra.mrb[0].mxu0 %v145
    %v1069 = vpop.f32.mrb[0].mxu0
    %v1070 = vadd.f32 %v268, %v1069
    %v1071 = vpop.f32.mrb[0].mxu0
    %v1072 = vadd.f32 %v272, %v1071
    %v1073 = vpop.f32.mrb[0].mxu0
    %v1074 = vadd.f32 %v268, %v1073
    %v1075 = vpop.f32.mrb[0].mxu0
    %v1076 = vadd.f32 %v272, %v1075
    %1077 = vmatprep.mubr.bf16.mxu0 %v148
    %1078 = vmatmul.mubr.bf16.gmra.mrb[0].mxu0 %v147
    %v1079 = vpop.f32.mrb[0].mxu0
    %v1080 = vadd.f32 %v268, %v1079
    %v1081 = vpop.f32.mrb[0].mxu0
    %v1082 = vadd.f32 %v272, %v1081
    %v1083 = vpop.f32.mrb[0].mxu0
    %v1084 = vadd.f32 %v268, %v1083
    %v1085 = vpop.f32.mrb[0].mxu0
    %v1086 = vadd.f32 %v272, %v1085
    %1087 = vmatprep.mubr.bf16.mxu0 %v150
    %1088 = vmatmul.mubr.bf16.gmra.mrb[0].mxu0 %v149
    %v1089 = vpop.f32.mrb[0].mxu0
    %v1090 = vadd.f32 %v268, %v1089
    %v1091 = vpop.f32.mrb[0].mxu0
    %v1092 = vadd.f32 %v272, %v1091
    %v1093 = vpop.f32.mrb[0].mxu0
    %v1094 = vadd.f32 %v268, %v1093
    %v1095 = vpop.f32.mrb[0].mxu0
    %v1096 = vadd.f32 %v272, %v1095
    %1097 = vdwg.mxu0
    %v1098 = vmul.f32 %v909, 0.5
    %v1099 = vmul.f32 %v1020, 0.5
    %v1100 = vmul.f32 %v1022, 0.5
    %v1101 = vmul.f32 %v913, 0.5
    %v1102 = vmul.f32 %v1024, 0.5
    %v1103 = vmul.f32 %v1026, 0.5
    %v1104 = vmul.f32 %v919, 0.5
    %v1105 = vmul.f32 %v1030, 0.5
    %v1106 = vmul.f32 %v1032, 0.5
    %v1107 = vmul.f32 %v923, 0.5
    %v1108 = vmul.f32 %v1034, 0.5
    %v1109 = vmul.f32 %v1036, 0.5
    %v1110 = vmul.f32 %v929, 0.5
    %v1111 = vmul.f32 %v1040, 0.5
    %v1112 = vmul.f32 %v1042, 0.5
    %v1113 = vmul.f32 %v933, 0.5
    %v1114 = vmul.f32 %v1044, 0.5
    %v1115 = vmul.f32 %v1046, 0.5
    %v1116 = vmul.f32 %v939, 0.5
    %v1117 = vmul.f32 %v1050, 0.5
    %v1118 = vmul.f32 %v1052, 0.5
    %v1119 = vmul.f32 %v943, 0.5
    %v1120 = vmul.f32 %v1054, 0.5
    %v1121 = vmul.f32 %v1056, 0.5
    %v1122 = vmul.f32 %v949, 0.5
    %v1123 = vmul.f32 %v1060, 0.5
    %v1124 = vmul.f32 %v1062, 0.5
    %v1125 = vmul.f32 %v953, 0.5
    %v1126 = vmul.f32 %v1064, 0.5
    %v1127 = vmul.f32 %v1066, 0.5
    %v1128 = vmul.f32 %v959, 0.5
    %v1129 = vmul.f32 %v1070, 0.5
    %v1130 = vmul.f32 %v1072, 0.5
    %v1131 = vmul.f32 %v963, 0.5
    %v1132 = vmul.f32 %v1074, 0.5
    %v1133 = vmul.f32 %v1076, 0.5
    %v1134 = vmul.f32 %v969, 0.5
    %v1135 = vmul.f32 %v1080, 0.5
    %v1136 = vmul.f32 %v1082, 0.5
    %v1137 = vmul.f32 %v973, 0.5
    %v1138 = vmul.f32 %v1084, 0.5
    %v1139 = vmul.f32 %v1086, 0.5
    %v1140 = vmul.f32 %v979, 0.5
    %v1141 = vmul.f32 %v1090, 0.5
    %v1142 = vmul.f32 %v1092, 0.5
    %v1143 = vmul.f32 %v983, 0.5
    %v1144 = vmul.f32 %v1094, 0.5
    %v1145 = vmul.f32 %v1096, 0.5
    %v1146 = vtanh.pop %v1098
    %v1147 = vtanh.pop %v1099
    %v1148 = vtanh.pop %v1100
    %v1149 = vtanh.pop %v1101
    %v1150 = vtanh.pop %v1102
    %v1151 = vtanh.pop %v1103
    %v1152 = vtanh.pop %v1104
    %v1153 = vtanh.pop %v1105
    %v1154 = vtanh.pop %v1106
    %v1155 = vtanh.pop %v1107
    %v1156 = vtanh.pop %v1108
    %v1157 = vtanh.pop %v1109
    %v1158 = vtanh.pop %v1110
    %v1159 = vtanh.pop %v1111
    %v1160 = vtanh.pop %v1112
    %v1161 = vtanh.pop %v1113
    %v1162 = vtanh.pop %v1114
    %v1163 = vtanh.pop %v1115
    %v1164 = vtanh.pop %v1116
    %v1165 = vtanh.pop %v1117
    %v1166 = vtanh.pop %v1118
    %v1167 = vtanh.pop %v1119
    %v1168 = vtanh.pop %v1120
    %v1169 = vtanh.pop %v1121
    %v1170 = vtanh.pop %v1122
    %v1171 = vtanh.pop %v1123
    %v1172 = vtanh.pop %v1124
    %v1173 = vtanh.pop %v1125
    %v1174 = vtanh.pop %v1126
    %v1175 = vtanh.pop %v1127
    %v1176 = vtanh.pop %v1128
    %v1177 = vtanh.pop %v1129
    %v1178 = vtanh.pop %v1130
    %v1179 = vtanh.pop %v1131
    %v1180 = vtanh.pop %v1132
    %v1181 = vtanh.pop %v1133
    %v1182 = vtanh.pop %v1134
    %v1183 = vtanh.pop %v1135
    %v1184 = vtanh.pop %v1136
    %v1185 = vtanh.pop %v1137
    %v1186 = vtanh.pop %v1138
    %v1187 = vtanh.pop %v1139
    %v1188 = vtanh.pop %v1140
    %v1189 = vtanh.pop %v1141
    %v1190 = vtanh.pop %v1142
    %v1191 = vtanh.pop %v1143
    %v1192 = vtanh.pop %v1144
    %v1193 = vtanh.pop %v1145
    %v1194 = vmul.f32 %v1146, 0.5
    %v1195 = vmul.f32 %v1147, 0.5
    %v1196 = vmul.f32 %v1148, 0.5
    %v1197 = vmul.f32 %v1149, 0.5
    %v1198 = vmul.f32 %v1150, 0.5
    %v1199 = vmul.f32 %v1151, 0.5
    %v1200 = vmul.f32 %v1152, 0.5
    %v1201 = vmul.f32 %v1153, 0.5
    %v1202 = vmul.f32 %v1154, 0.5
    %v1203 = vmul.f32 %v1155, 0.5
    %v1204 = vmul.f32 %v1156, 0.5
    %v1205 = vmul.f32 %v1157, 0.5
    %v1206 = vmul.f32 %v1158, 0.5
    %v1207 = vmul.f32 %v1159, 0.5
    %v1208 = vmul.f32 %v1160, 0.5
    %v1209 = vmul.f32 %v1161, 0.5
    %v1210 = vmul.f32 %v1162, 0.5
    %v1211 = vmul.f32 %v1163, 0.5
    %v1212 = vmul.f32 %v1164, 0.5
    %v1213 = vmul.f32 %v1165, 0.5
    %v1214 = vmul.f32 %v1166, 0.5
    %v1215 = vmul.f32 %v1167, 0.5
    %v1216 = vmul.f32 %v1168, 0.5
    %v1217 = vmul.f32 %v1169, 0.5
    %v1218 = vmul.f32 %v1170, 0.5
    %v1219 = vmul.f32 %v1171, 0.5
    %v1220 = vmul.f32 %v1172, 0.5
    %v1221 = vmul.f32 %v1173, 0.5
    %v1222 = vmul.f32 %v1174, 0.5
    %v1223 = vmul.f32 %v1175, 0.5
    %v1224 = vmul.f32 %v1176, 0.5
    %v1225 = vmul.f32 %v1177, 0.5
    %v1226 = vmul.f32 %v1178, 0.5
    %v1227 = vmul.f32 %v1179, 0.5
    %v1228 = vmul.f32 %v1180, 0.5
    %v1229 = vmul.f32 %v1181, 0.5
    %v1230 = vmul.f32 %v1182, 0.5
    %v1231 = vmul.f32 %v1183, 0.5
    %v1232 = vmul.f32 %v1184, 0.5
    %v1233 = vmul.f32 %v1185, 0.5
    %v1234 = vmul.f32 %v1186, 0.5
    %v1235 = vmul.f32 %v1187, 0.5
    %v1236 = vmul.f32 %v1188, 0.5
    %v1237 = vmul.f32 %v1189, 0.5
    %v1238 = vmul.f32 %v1190, 0.5
    %v1239 = vmul.f32 %v1191, 0.5
    %v1240 = vmul.f32 %v1192, 0.5
    %v1241 = vmul.f32 %v1193, 0.5
    %v1242 = vadd.f32 %v1194, 0.5
    %v1243 = vadd.f32 %v1195, 0.5
    %v1244 = vadd.f32 %v1196, 0.5
    %v1245 = vadd.f32 %v1197, 0.5
    %v1246 = vadd.f32 %v1198, 0.5
    %v1247 = vadd.f32 %v1199, 0.5
    %v1248 = vadd.f32 %v1200, 0.5
    %v1249 = vadd.f32 %v1201, 0.5
    %v1250 = vadd.f32 %v1202, 0.5
    %v1251 = vadd.f32 %v1203, 0.5
    %v1252 = vadd.f32 %v1204, 0.5
    %v1253 = vadd.f32 %v1205, 0.5
    %v1254 = vadd.f32 %v1206, 0.5
    %v1255 = vadd.f32 %v1207, 0.5
    %v1256 = vadd.f32 %v1208, 0.5
    %v1257 = vadd.f32 %v1209, 0.5
    %v1258 = vadd.f32 %v1210, 0.5
    %v1259 = vadd.f32 %v1211, 0.5
    %v1260 = vadd.f32 %v1212, 0.5
    %v1261 = vadd.f32 %v1213, 0.5
    %v1262 = vadd.f32 %v1214, 0.5
    %v1263 = vadd.f32 %v1215, 0.5
    %v1264 = vadd.f32 %v1216, 0.5
    %v1265 = vadd.f32 %v1217, 0.5
    %v1266 = vadd.f32 %v1218, 0.5
    %v1267 = vadd.f32 %v1219, 0.5
    %v1268 = vadd.f32 %v1220, 0.5
    %v1269 = vadd.f32 %v1221, 0.5
    %v1270 = vadd.f32 %v1222, 0.5
    %v1271 = vadd.f32 %v1223, 0.5
    %v1272 = vadd.f32 %v1224, 0.5
    %v1273 = vadd.f32 %v1225, 0.5
    %v1274 = vadd.f32 %v1226, 0.5
    %v1275 = vadd.f32 %v1227, 0.5
    %v1276 = vadd.f32 %v1228, 0.5
    %v1277 = vadd.f32 %v1229, 0.5
    %v1278 = vadd.f32 %v1230, 0.5
    %v1279 = vadd.f32 %v1231, 0.5
    %v1280 = vadd.f32 %v1232, 0.5
    %v1281 = vadd.f32 %v1233, 0.5
    %v1282 = vadd.f32 %v1234, 0.5
    %v1283 = vadd.f32 %v1235, 0.5
    %v1284 = vadd.f32 %v1236, 0.5
    %v1285 = vadd.f32 %v1237, 0.5
    %v1286 = vadd.f32 %v1238, 0.5
    %v1287 = vadd.f32 %v1239, 0.5
    %v1288 = vadd.f32 %v1240, 0.5
    %v1289 = vadd.f32 %v1241, 0.5
    %v1290 = vmul.f32 %v794, %v1242
    %v1291 = vmul.f32 %v796, %v1243
    %v1292 = vmul.f32 %v907, %v1244
    %v1293 = vmul.f32 %v798, %v1245
    %v1294 = vmul.f32 %v800, %v1246
    %v1295 = vmul.f32 %v911, %v1247
    %v1296 = vmul.f32 %v804, %v1248
    %v1297 = vmul.f32 %v806, %v1249
    %v1298 = vmul.f32 %v917, %v1250
    %v1299 = vmul.f32 %v808, %v1251
    %v1300 = vmul.f32 %v810, %v1252
    %v1301 = vmul.f32 %v921, %v1253
    %v1302 = vmul.f32 %v814, %v1254
    %v1303 = vmul.f32 %v816, %v1255
    %v1304 = vmul.f32 %v927, %v1256
    %v1305 = vmul.f32 %v818, %v1257
    %v1306 = vmul.f32 %v820, %v1258
    %v1307 = vmul.f32 %v931, %v1259
    %v1308 = vmul.f32 %v824, %v1260
    %v1309 = vmul.f32 %v826, %v1261
    %v1310 = vmul.f32 %v937, %v1262
    %v1311 = vmul.f32 %v828, %v1263
    %v1312 = vmul.f32 %v830, %v1264
    %v1313 = vmul.f32 %v941, %v1265
    %v1314 = vmul.f32 %v834, %v1266
    %v1315 = vmul.f32 %v836, %v1267
    %v1316 = vmul.f32 %v947, %v1268
    %v1317 = vmul.f32 %v838, %v1269
    %v1318 = vmul.f32 %v840, %v1270
    %v1319 = vmul.f32 %v951, %v1271
    %v1320 = vmul.f32 %v844, %v1272
    %v1321 = vmul.f32 %v846, %v1273
    %v1322 = vmul.f32 %v957, %v1274
    %v1323 = vmul.f32 %v848, %v1275
    %v1324 = vmul.f32 %v850, %v1276
    %v1325 = vmul.f32 %v961, %v1277
    %v1326 = vmul.f32 %v854, %v1278
    %v1327 = vmul.f32 %v856, %v1279
    %v1328 = vmul.f32 %v967, %v1280
    %v1329 = vmul.f32 %v858, %v1281
    %v1330 = vmul.f32 %v860, %v1282
    %v1331 = vmul.f32 %v971, %v1283
    %v1332 = vmul.f32 %v864, %v1284
    %v1333 = vmul.f32 %v866, %v1285
    %v1334 = vmul.f32 %v977, %v1286
    %v1335 = vmul.f32 %v868, %v1287
    %v1336 = vmul.f32 %v870, %v1288
    %v1337 = vmul.f32 %v981, %v1289
    %v1338 = vpack.c.bf16 %v1293, %v1290
    %v1339 = vpack.c.bf16 %v1294, %v1291
    %v1340 = vpack.c.bf16 %v1295, %v1292
    %v1341 = vpack.c.bf16 %v1299, %v1296
    %v1342 = vpack.c.bf16 %v1300, %v1297
    %v1343 = vpack.c.bf16 %v1301, %v1298
    %v1344 = vpack.c.bf16 %v1305, %v1302
    %v1345 = vpack.c.bf16 %v1306, %v1303
    %v1346 = vpack.c.bf16 %v1307, %v1304
    %v1347 = vpack.c.bf16 %v1311, %v1308
    %v1348 = vpack.c.bf16 %v1312, %v1309
    %v1349 = vpack.c.bf16 %v1313, %v1310
    %v1350 = vpack.c.bf16 %v1317, %v1314
    %v1351 = vpack.c.bf16 %v1318, %v1315
    %v1352 = vpack.c.bf16 %v1319, %v1316
    %v1353 = vpack.c.bf16 %v1323, %v1320
    %v1354 = vpack.c.bf16 %v1324, %v1321
    %v1355 = vpack.c.bf16 %v1325, %v1322
    %v1356 = vpack.c.bf16 %v1329, %v1326
    %v1357 = vpack.c.bf16 %v1330, %v1327
    %v1358 = vpack.c.bf16 %v1331, %v1328
    %v1359 = vpack.c.bf16 %v1335, %v1332
    %v1360 = vpack.c.bf16 %v1336, %v1333
    %v1361 = vpack.c.bf16 %v1337, %v1334
    %v1362 = vld [vmem:[#allocation4] sm:$0xff]
    %v1363 = vld [vmem:[#allocation4 + $0x8] sm:$0xff]
    %v1364 = vld [vmem:[#allocation4 + $0x10] sm:$0xff]
    %v1365 = vld [vmem:[#allocation4 + $0x18] sm:$0xff]
    %v1366 = vld [vmem:[#allocation4 + $0x20] sm:$0xff]
    %v1367 = vld [vmem:[#allocation4 + $0x28] sm:$0xff]
    %v1368 = vld [vmem:[#allocation4 + $0x30] sm:$0xff]
    %v1369 = vld [vmem:[#allocation4 + $0x38] sm:$0xff]
    %v1370 = vld [vmem:[#allocation4 + $0x40] sm:$0xff]
    %v1371 = vld [vmem:[#allocation4 + $0x48] sm:$0xff]
    %v1372 = vld [vmem:[#allocation4 + $0x50] sm:$0xff]
    %v1373 = vld [vmem:[#allocation4 + $0x58] sm:$0xff]
    %v1374 = vld [vmem:[#allocation4 + $0x60] sm:$0xff]
    %v1375 = vld [vmem:[#allocation4 + $0x68] sm:$0xff]
    %v1376 = vld [vmem:[#allocation4 + $0x70] sm:$0xff]
    %v1377 = vld [vmem:[#allocation4 + $0x78] sm:$0xff]
    %v1378 = vld [vmem:[#allocation4 + $0x80] sm:$0xff]
    %v1379 = vld [vmem:[#allocation4 + $0x88] sm:$0xff]
    %v1380 = vld [vmem:[#allocation4 + $0x90] sm:$0xff]
    %v1381 = vld [vmem:[#allocation4 + $0x98] sm:$0xff]
    %v1382 = vld [vmem:[#allocation4 + $0xa0] sm:$0xff]
    %v1383 = vld [vmem:[#allocation4 + $0xa8] sm:$0xff]
    %v1384 = vld [vmem:[#allocation4 + $0xb0] sm:$0xff]
    %v1385 = vld [vmem:[#allocation4 + $0xb8] sm:$0xff]
    %v1386 = vld [vmem:[#allocation4 + $0xc0] sm:$0xff]
    %v1387 = vld [vmem:[#allocation4 + $0xc8] sm:$0xff]
    %v1388 = vld [vmem:[#allocation4 + $0xd0] sm:$0xff]
    %v1389 = vld [vmem:[#allocation4 + $0xd8] sm:$0xff]
    %v1390 = vld [vmem:[#allocation4 + $0xe0] sm:$0xff]
    %v1391 = vld [vmem:[#allocation4 + $0xe8] sm:$0xff]
    %v1392 = vld [vmem:[#allocation4 + $0xf0] sm:$0xff]
    %v1393 = vld [vmem:[#allocation4 + $0xf8] sm:$0xff]
    %v1394 = vld [vmem:[#allocation4 + $0x100] sm:$0xff]
    %v1395 = vld [vmem:[#allocation4 + $0x108] sm:$0xff]
    %v1396 = vld [vmem:[#allocation4 + $0x110] sm:$0xff]
    %v1397 = vld [vmem:[#allocation4 + $0x118] sm:$0xff]
    %v1398 = vld [vmem:[#allocation4 + $0x120] sm:$0xff]
    %v1399 = vld [vmem:[#allocation4 + $0x128] sm:$0xff]
    %v1400 = vld [vmem:[#allocation4 + $0x130] sm:$0xff]
    %v1401 = vld [vmem:[#allocation4 + $0x138] sm:$0xff]
    %v1402 = vld [vmem:[#allocation4 + $0x140] sm:$0xff]
    %v1403 = vld [vmem:[#allocation4 + $0x148] sm:$0xff]
    %v1404 = vld [vmem:[#allocation4 + $0x150] sm:$0xff]
    %v1405 = vld [vmem:[#allocation4 + $0x158] sm:$0xff]
    %v1406 = vld [vmem:[#allocation4 + $0x160] sm:$0xff]
    %v1407 = vld [vmem:[#allocation4 + $0x168] sm:$0xff]
    %v1408 = vld [vmem:[#allocation4 + $0x170] sm:$0xff]
    %v1409 = vld [vmem:[#allocation4 + $0x178] sm:$0xff]
    %v1410 = vld [vmem:[#allocation4 + $0x180] sm:$0xff]
    %v1411 = vld [vmem:[#allocation4 + $0x188] sm:$0xff]
    %v1412 = vld [vmem:[#allocation4 + $0x190] sm:$0xff]
    %v1413 = vld [vmem:[#allocation4 + $0x198] sm:$0xff]
    %v1414 = vld [vmem:[#allocation4 + $0x1a0] sm:$0xff]
    %v1415 = vld [vmem:[#allocation4 + $0x1a8] sm:$0xff]
    %v1416 = vld [vmem:[#allocation4 + $0x1b0] sm:$0xff]
    %v1417 = vld [vmem:[#allocation4 + $0x1b8] sm:$0xff]
    %v1418 = vld [vmem:[#allocation4 + $0x1c0] sm:$0xff]
    %v1419 = vld [vmem:[#allocation4 + $0x1c8] sm:$0xff]
    %v1420 = vld [vmem:[#allocation4 + $0x1d0] sm:$0xff]
    %v1421 = vld [vmem:[#allocation4 + $0x1d8] sm:$0xff]
    %v1422 = vld [vmem:[#allocation4 + $0x1e0] sm:$0xff]
    %v1423 = vld [vmem:[#allocation4 + $0x1e8] sm:$0xff]
    %v1424 = vld [vmem:[#allocation4 + $0x1f0] sm:$0xff]
    %v1425 = vld [vmem:[#allocation4 + $0x1f8] sm:$0xff]
    %v1426 = vld [vmem:[#allocation4 + $0x200] sm:$0xff]
    %v1427 = vld [vmem:[#allocation4 + $0x208] sm:$0xff]
    %v1428 = vld [vmem:[#allocation4 + $0x210] sm:$0xff]
    %v1429 = vld [vmem:[#allocation4 + $0x218] sm:$0xff]
    %v1430 = vld [vmem:[#allocation4 + $0x220] sm:$0xff]
    %v1431 = vld [vmem:[#allocation4 + $0x228] sm:$0xff]
    %v1432 = vld [vmem:[#allocation4 + $0x230] sm:$0xff]
    %v1433 = vld [vmem:[#allocation4 + $0x238] sm:$0xff]
    %v1434 = vld [vmem:[#allocation4 + $0x240] sm:$0xff]
    %v1435 = vld [vmem:[#allocation4 + $0x248] sm:$0xff]
    %v1436 = vld [vmem:[#allocation4 + $0x250] sm:$0xff]
    %v1437 = vld [vmem:[#allocation4 + $0x258] sm:$0xff]
    %v1438 = vld [vmem:[#allocation4 + $0x260] sm:$0xff]
    %v1439 = vld [vmem:[#allocation4 + $0x268] sm:$0xff]
    %v1440 = vld [vmem:[#allocation4 + $0x270] sm:$0xff]
    %v1441 = vld [vmem:[#allocation4 + $0x278] sm:$0xff]
    %v1442 = vld [vmem:[#allocation4 + $0x280] sm:$0xff]
    %v1443 = vld [vmem:[#allocation4 + $0x288] sm:$0xff]
    %v1444 = vld [vmem:[#allocation4 + $0x290] sm:$0xff]
    %v1445 = vld [vmem:[#allocation4 + $0x298] sm:$0xff]
    %v1446 = vld [vmem:[#allocation4 + $0x2a0] sm:$0xff]
    %v1447 = vld [vmem:[#allocation4 + $0x2a8] sm:$0xff]
    %v1448 = vld [vmem:[#allocation4 + $0x2b0] sm:$0xff]
    %v1449 = vld [vmem:[#allocation4 + $0x2b8] sm:$0xff]
    %v1450 = vld [vmem:[#allocation4 + $0x2c0] sm:$0xff]
    %v1451 = vld [vmem:[#allocation4 + $0x2c8] sm:$0xff]
    %v1452 = vld [vmem:[#allocation4 + $0x2d0] sm:$0xff]
    %v1453 = vld [vmem:[#allocation4 + $0x2d8] sm:$0xff]
    %v1454 = vld [vmem:[#allocation4 + $0x2e0] sm:$0xff]
    %v1455 = vld [vmem:[#allocation4 + $0x2e8] sm:$0xff]
    %v1456 = vld [vmem:[#allocation4 + $0x2f0] sm:$0xff]
    %v1457 = vld [vmem:[#allocation4 + $0x2f8] sm:$0xff]
    %v1458 = vld [vmem:[#allocation4 + $0x300] sm:$0xff]
    %v1459 = vld [vmem:[#allocation4 + $0x308] sm:$0xff]
    %v1460 = vld [vmem:[#allocation4 + $0x310] sm:$0xff]
    %v1461 = vld [vmem:[#allocation4 + $0x318] sm:$0xff]
    %v1462 = vld [vmem:[#allocation4 + $0x320] sm:$0xff]
    %v1463 = vld [vmem:[#allocation4 + $0x328] sm:$0xff]
    %v1464 = vld [vmem:[#allocation4 + $0x330] sm:$0xff]
    %v1465 = vld [vmem:[#allocation4 + $0x338] sm:$0xff]
    %v1466 = vld [vmem:[#allocation4 + $0x340] sm:$0xff]
    %v1467 = vld [vmem:[#allocation4 + $0x348] sm:$0xff]
    %v1468 = vld [vmem:[#allocation4 + $0x350] sm:$0xff]
    %v1469 = vld [vmem:[#allocation4 + $0x358] sm:$0xff]
    %v1470 = vld [vmem:[#allocation4 + $0x360] sm:$0xff]
    %v1471 = vld [vmem:[#allocation4 + $0x368] sm:$0xff]
    %v1472 = vld [vmem:[#allocation4 + $0x370] sm:$0xff]
    %v1473 = vld [vmem:[#allocation4 + $0x378] sm:$0xff]
    %v1474 = vld [vmem:[#allocation4 + $0x380] sm:$0xff]
    %v1475 = vld [vmem:[#allocation4 + $0x388] sm:$0xff]
    %v1476 = vld [vmem:[#allocation4 + $0x390] sm:$0xff]
    %v1477 = vld [vmem:[#allocation4 + $0x398] sm:$0xff]
    %v1478 = vld [vmem:[#allocation4 + $0x3a0] sm:$0xff]
    %v1479 = vld [vmem:[#allocation4 + $0x3a8] sm:$0xff]
    %v1480 = vld [vmem:[#allocation4 + $0x3b0] sm:$0xff]
    %v1481 = vld [vmem:[#allocation4 + $0x3b8] sm:$0xff]
    %v1482 = vld [vmem:[#allocation4 + $0x3c0] sm:$0xff]
    %v1483 = vld [vmem:[#allocation4 + $0x3c8] sm:$0xff]
    %v1484 = vld [vmem:[#allocation4 + $0x3d0] sm:$0xff]
    %v1485 = vld [vmem:[#allocation4 + $0x3d8] sm:$0xff]
    %v1486 = vld [vmem:[#allocation4 + $0x3e0] sm:$0xff]
    %v1487 = vld [vmem:[#allocation4 + $0x3e8] sm:$0xff]
    %v1488 = vld [vmem:[#allocation4 + $0x3f0] sm:$0xff]
    %v1489 = vld [vmem:[#allocation4 + $0x3f8] sm:$0xff]
    %v1490 = vld [vmem:[#allocation4 + $0x400] sm:$0xff]
    %v1491 = vld [vmem:[#allocation4 + $0x408] sm:$0xff]
    %v1492 = vld [vmem:[#allocation4 + $0x410] sm:$0xff]
    %v1493 = vld [vmem:[#allocation4 + $0x418] sm:$0xff]
    %v1494 = vld [vmem:[#allocation4 + $0x420] sm:$0xff]
    %v1495 = vld [vmem:[#allocation4 + $0x428] sm:$0xff]
    %v1496 = vld [vmem:[#allocation4 + $0x430] sm:$0xff]
    %v1497 = vld [vmem:[#allocation4 + $0x438] sm:$0xff]
    %v1498 = vld [vmem:[#allocation4 + $0x440] sm:$0xff]
    %v1499 = vld [vmem:[#allocation4 + $0x448] sm:$0xff]
    %v1500 = vld [vmem:[#allocation4 + $0x450] sm:$0xff]
    %v1501 = vld [vmem:[#allocation4 + $0x458] sm:$0xff]
    %v1502 = vld [vmem:[#allocation4 + $0x460] sm:$0xff]
    %v1503 = vld [vmem:[#allocation4 + $0x468] sm:$0xff]
    %v1504 = vld [vmem:[#allocation4 + $0x470] sm:$0xff]
    %v1505 = vld [vmem:[#allocation4 + $0x478] sm:$0xff]
    %v1506 = vld [vmem:[%s8 + $0x6] sm:$0x3f]
    %v1508 = vlaneseq
    %v1509 = vshrl.u32 %v1508, 7
    %v1510 = vsub.s32 0, %v1509
    %v1511 = vrot.slane %v1506, %v1510
    %v1512 = vlaneseq
    %v1513 = vshrl.u32 %v1512, 7
    %v1514 = vsub.s32 1, %v1513
    %v1515 = vrot.slane %v1506, %v1514
    %v1516 = vlaneseq
    %v1517 = vshrl.u32 %v1516, 7
    %v1518 = vsub.s32 2, %v1517
    %v1519 = vrot.slane %v1506, %v1518
    %v1520 = vlaneseq
    %v1521 = vshrl.u32 %v1520, 7
    %v1522 = vsub.s32 3, %v1521
    %v1523 = vrot.slane %v1506, %v1522
    %v1524 = vlaneseq
    %v1525 = vshrl.u32 %v1524, 7
    %v1526 = vsub.s32 4, %v1525
    %v1527 = vrot.slane %v1506, %v1526
    %v1528 = vlaneseq
    %v1529 = vshrl.u32 %v1528, 7
    %v1530 = vsub.s32 5, %v1529
    %v1531 = vrot.slane %v1506, %v1530
    %v1682 = vunpack.c.l.b16 %v1362
    %v1683 = vunpack.c.h.b16 %v1362
    %v1684 = vunpack.c.l.b16 %v1363
    %v1685 = vunpack.c.h.b16 %v1363
    %v1686 = vunpack.c.l.b16 %v1364
    %v1687 = vunpack.c.h.b16 %v1364
    %v1688 = vunpack.c.l.b16 %v1365
    %v1689 = vunpack.c.h.b16 %v1365
    %v1690 = vunpack.c.l.b16 %v1366
    %v1691 = vunpack.c.h.b16 %v1366
    %v1692 = vunpack.c.l.b16 %v1367
    %v1693 = vunpack.c.h.b16 %v1367
    %v1694 = vunpack.c.l.b16 %v1368
    %v1695 = vunpack.c.h.b16 %v1368
    %v1696 = vunpack.c.l.b16 %v1369
    %v1697 = vunpack.c.h.b16 %v1369
    %v1698 = vunpack.c.l.b16 %v1370
    %v1699 = vunpack.c.h.b16 %v1370
    %v1700 = vunpack.c.l.b16 %v1371
    %v1701 = vunpack.c.h.b16 %v1371
    %v1702 = vunpack.c.l.b16 %v1372
    %v1703 = vunpack.c.h.b16 %v1372
    %v1704 = vunpack.c.l.b16 %v1373
    %v1705 = vunpack.c.h.b16 %v1373
    %v1706 = vunpack.c.l.b16 %v1374
    %v1707 = vunpack.c.h.b16 %v1374
    %v1708 = vunpack.c.l.b16 %v1375
    %v1709 = vunpack.c.h.b16 %v1375
    %v1710 = vunpack.c.l.b16 %v1376
    %v1711 = vunpack.c.h.b16 %v1376
    %v1712 = vunpack.c.l.b16 %v1377
    %v1713 = vunpack.c.h.b16 %v1377
    %v1714 = vunpack.c.l.b16 %v1378
    %v1715 = vunpack.c.h.b16 %v1378
    %v1716 = vunpack.c.l.b16 %v1379
    %v1717 = vunpack.c.h.b16 %v1379
    %v1718 = vunpack.c.l.b16 %v1380
    %v1719 = vunpack.c.h.b16 %v1380
    %v1720 = vunpack.c.l.b16 %v1381
    %v1721 = vunpack.c.h.b16 %v1381
    %v1722 = vunpack.c.l.b16 %v1382
    %v1723 = vunpack.c.h.b16 %v1382
    %v1724 = vunpack.c.l.b16 %v1383
    %v1725 = vunpack.c.h.b16 %v1383
    %v1726 = vunpack.c.l.b16 %v1384
    %v1727 = vunpack.c.h.b16 %v1384
    %v1728 = vunpack.c.l.b16 %v1385
    %v1729 = vunpack.c.h.b16 %v1385
    %v1730 = vunpack.c.l.b16 %v1386
    %v1731 = vunpack.c.h.b16 %v1386
    %v1732 = vunpack.c.l.b16 %v1387
    %v1733 = vunpack.c.h.b16 %v1387
    %v1734 = vunpack.c.l.b16 %v1388
    %v1735 = vunpack.c.h.b16 %v1388
    %v1736 = vunpack.c.l.b16 %v1389
    %v1737 = vunpack.c.h.b16 %v1389
    %v1738 = vunpack.c.l.b16 %v1390
    %v1739 = vunpack.c.h.b16 %v1390
    %v1740 = vunpack.c.l.b16 %v1391
    %v1741 = vunpack.c.h.b16 %v1391
    %v1742 = vunpack.c.l.b16 %v1392
    %v1743 = vunpack.c.h.b16 %v1392
    %v1744 = vunpack.c.l.b16 %v1393
    %v1745 = vunpack.c.h.b16 %v1393
    %v1746 = vunpack.c.l.b16 %v1394
    %v1747 = vunpack.c.h.b16 %v1394
    %v1748 = vunpack.c.l.b16 %v1395
    %v1749 = vunpack.c.h.b16 %v1395
    %v1750 = vunpack.c.l.b16 %v1396
    %v1751 = vunpack.c.h.b16 %v1396
    %v1752 = vunpack.c.l.b16 %v1397
    %v1753 = vunpack.c.h.b16 %v1397
    %v1754 = vunpack.c.l.b16 %v1398
    %v1755 = vunpack.c.h.b16 %v1398
    %v1756 = vunpack.c.l.b16 %v1399
    %v1757 = vunpack.c.h.b16 %v1399
    %v1758 = vunpack.c.l.b16 %v1400
    %v1759 = vunpack.c.h.b16 %v1400
    %v1760 = vunpack.c.l.b16 %v1401
    %v1761 = vunpack.c.h.b16 %v1401
    %v1762 = vunpack.c.l.b16 %v1402
    %v1763 = vunpack.c.h.b16 %v1402
    %v1764 = vunpack.c.l.b16 %v1403
    %v1765 = vunpack.c.h.b16 %v1403
    %v1766 = vunpack.c.l.b16 %v1404
    %v1767 = vunpack.c.h.b16 %v1404
    %v1768 = vunpack.c.l.b16 %v1405
    %v1769 = vunpack.c.h.b16 %v1405
    %v1770 = vunpack.c.l.b16 %v1406
    %v1771 = vunpack.c.h.b16 %v1406
    %v1772 = vunpack.c.l.b16 %v1407
    %v1773 = vunpack.c.h.b16 %v1407
    %v1774 = vunpack.c.l.b16 %v1408
    %v1775 = vunpack.c.h.b16 %v1408
    %v1776 = vunpack.c.l.b16 %v1409
    %v1777 = vunpack.c.h.b16 %v1409
    %v1778 = vunpack.c.l.b16 %v1410
    %v1779 = vunpack.c.h.b16 %v1410
    %v1780 = vunpack.c.l.b16 %v1411
    %v1781 = vunpack.c.h.b16 %v1411
    %v1782 = vunpack.c.l.b16 %v1412
    %v1783 = vunpack.c.h.b16 %v1412
    %v1784 = vunpack.c.l.b16 %v1413
    %v1785 = vunpack.c.h.b16 %v1413
    %v1786 = vunpack.c.l.b16 %v1414
    %v1787 = vunpack.c.h.b16 %v1414
    %v1788 = vunpack.c.l.b16 %v1415
    %v1789 = vunpack.c.h.b16 %v1415
    %v1790 = vunpack.c.l.b16 %v1416
    %v1791 = vunpack.c.h.b16 %v1416
    %v1792 = vunpack.c.l.b16 %v1417
    %v1793 = vunpack.c.h.b16 %v1417
    %v1794 = vunpack.c.l.b16 %v1418
    %v1795 = vunpack.c.h.b16 %v1418
    %v1796 = vunpack.c.l.b16 %v1419
    %v1797 = vunpack.c.h.b16 %v1419
    %v1798 = vunpack.c.l.b16 %v1420
    %v1799 = vunpack.c.h.b16 %v1420
    %v1800 = vunpack.c.l.b16 %v1421
    %v1801 = vunpack.c.h.b16 %v1421
    %v1802 = vunpack.c.l.b16 %v1422
    %v1803 = vunpack.c.h.b16 %v1422
    %v1804 = vunpack.c.l.b16 %v1423
    %v1805 = vunpack.c.h.b16 %v1423
    %v1806 = vunpack.c.l.b16 %v1424
    %v1807 = vunpack.c.h.b16 %v1424
    %v1808 = vunpack.c.l.b16 %v1425
    %v1809 = vunpack.c.h.b16 %v1425
    %v1810 = vunpack.c.l.b16 %v1426
    %v1811 = vunpack.c.h.b16 %v1426
    %v1812 = vunpack.c.l.b16 %v1427
    %v1813 = vunpack.c.h.b16 %v1427
    %v1814 = vunpack.c.l.b16 %v1428
    %v1815 = vunpack.c.h.b16 %v1428
    %v1816 = vunpack.c.l.b16 %v1429
    %v1817 = vunpack.c.h.b16 %v1429
    %v1818 = vunpack.c.l.b16 %v1430
    %v1819 = vunpack.c.h.b16 %v1430
    %v1820 = vunpack.c.l.b16 %v1431
    %v1821 = vunpack.c.h.b16 %v1431
    %v1822 = vunpack.c.l.b16 %v1432
    %v1823 = vunpack.c.h.b16 %v1432
    %v1824 = vunpack.c.l.b16 %v1433
    %v1825 = vunpack.c.h.b16 %v1433
    %v1826 = vunpack.c.l.b16 %v1434
    %v1827 = vunpack.c.h.b16 %v1434
    %v1828 = vunpack.c.l.b16 %v1435
    %v1829 = vunpack.c.h.b16 %v1435
    %v1830 = vunpack.c.l.b16 %v1436
    %v1831 = vunpack.c.h.b16 %v1436
    %v1832 = vunpack.c.l.b16 %v1437
    %v1833 = vunpack.c.h.b16 %v1437
    %v1834 = vunpack.c.l.b16 %v1438
    %v1835 = vunpack.c.h.b16 %v1438
    %v1836 = vunpack.c.l.b16 %v1439
    %v1837 = vunpack.c.h.b16 %v1439
    %v1838 = vunpack.c.l.b16 %v1440
    %v1839 = vunpack.c.h.b16 %v1440
    %v1840 = vunpack.c.l.b16 %v1441
    %v1841 = vunpack.c.h.b16 %v1441
    %v1842 = vunpack.c.l.b16 %v1442
    %v1843 = vunpack.c.h.b16 %v1442
    %v1844 = vunpack.c.l.b16 %v1443
    %v1845 = vunpack.c.h.b16 %v1443
    %v1846 = vunpack.c.l.b16 %v1444
    %v1847 = vunpack.c.h.b16 %v1444
    %v1848 = vunpack.c.l.b16 %v1445
    %v1849 = vunpack.c.h.b16 %v1445
    %v1850 = vunpack.c.l.b16 %v1446
    %v1851 = vunpack.c.h.b16 %v1446
    %v1852 = vunpack.c.l.b16 %v1447
    %v1853 = vunpack.c.h.b16 %v1447
    %v1854 = vunpack.c.l.b16 %v1448
    %v1855 = vunpack.c.h.b16 %v1448
    %v1856 = vunpack.c.l.b16 %v1449
    %v1857 = vunpack.c.h.b16 %v1449
    %v1858 = vunpack.c.l.b16 %v1450
    %v1859 = vunpack.c.h.b16 %v1450
    %v1860 = vunpack.c.l.b16 %v1451
    %v1861 = vunpack.c.h.b16 %v1451
    %v1862 = vunpack.c.l.b16 %v1452
    %v1863 = vunpack.c.h.b16 %v1452
    %v1864 = vunpack.c.l.b16 %v1453
    %v1865 = vunpack.c.h.b16 %v1453
    %v1866 = vunpack.c.l.b16 %v1454
    %v1867 = vunpack.c.h.b16 %v1454
    %v1868 = vunpack.c.l.b16 %v1455
    %v1869 = vunpack.c.h.b16 %v1455
    %v1870 = vunpack.c.l.b16 %v1456
    %v1871 = vunpack.c.h.b16 %v1456
    %v1872 = vunpack.c.l.b16 %v1457
    %v1873 = vunpack.c.h.b16 %v1457
    %v1874 = vunpack.c.l.b16 %v1458
    %v1875 = vunpack.c.h.b16 %v1458
    %v1876 = vunpack.c.l.b16 %v1459
    %v1877 = vunpack.c.h.b16 %v1459
    %v1878 = vunpack.c.l.b16 %v1460
    %v1879 = vunpack.c.h.b16 %v1460
    %v1880 = vunpack.c.l.b16 %v1461
    %v1881 = vunpack.c.h.b16 %v1461
    %v1882 = vunpack.c.l.b16 %v1462
    %v1883 = vunpack.c.h.b16 %v1462
    %v1884 = vunpack.c.l.b16 %v1463
    %v1885 = vunpack.c.h.b16 %v1463
    %v1886 = vunpack.c.l.b16 %v1464
    %v1887 = vunpack.c.h.b16 %v1464
    %v1888 = vunpack.c.l.b16 %v1465
    %v1889 = vunpack.c.h.b16 %v1465
    %v1890 = vunpack.c.l.b16 %v1466
    %v1891 = vunpack.c.h.b16 %v1466
    %v1892 = vunpack.c.l.b16 %v1467
    %v1893 = vunpack.c.h.b16 %v1467
    %v1894 = vunpack.c.l.b16 %v1468
    %v1895 = vunpack.c.h.b16 %v1468
    %v1896 = vunpack.c.l.b16 %v1469
    %v1897 = vunpack.c.h.b16 %v1469
    %v1898 = vunpack.c.l.b16 %v1470
    %v1899 = vunpack.c.h.b16 %v1470
    %v1900 = vunpack.c.l.b16 %v1471
    %v1901 = vunpack.c.h.b16 %v1471
    %v1902 = vunpack.c.l.b16 %v1472
    %v1903 = vunpack.c.h.b16 %v1472
    %v1904 = vunpack.c.l.b16 %v1473
    %v1905 = vunpack.c.h.b16 %v1473
    %v1906 = vunpack.c.l.b16 %v1474
    %v1907 = vunpack.c.h.b16 %v1474
    %v1908 = vunpack.c.l.b16 %v1475
    %v1909 = vunpack.c.h.b16 %v1475
    %v1910 = vunpack.c.l.b16 %v1476
    %v1911 = vunpack.c.h.b16 %v1476
    %v1912 = vunpack.c.l.b16 %v1477
    %v1913 = vunpack.c.h.b16 %v1477
    %v1914 = vunpack.c.l.b16 %v1478
    %v1915 = vunpack.c.h.b16 %v1478
    %v1916 = vunpack.c.l.b16 %v1479
    %v1917 = vunpack.c.h.b16 %v1479
    %v1918 = vunpack.c.l.b16 %v1480
    %v1919 = vunpack.c.h.b16 %v1480
    %v1920 = vunpack.c.l.b16 %v1481
    %v1921 = vunpack.c.h.b16 %v1481
    %v1922 = vunpack.c.l.b16 %v1482
    %v1923 = vunpack.c.h.b16 %v1482
    %v1924 = vunpack.c.l.b16 %v1483
    %v1925 = vunpack.c.h.b16 %v1483
    %v1926 = vunpack.c.l.b16 %v1484
    %v1927 = vunpack.c.h.b16 %v1484
    %v1928 = vunpack.c.l.b16 %v1485
    %v1929 = vunpack.c.h.b16 %v1485
    %v1930 = vunpack.c.l.b16 %v1486
    %v1931 = vunpack.c.h.b16 %v1486
    %v1932 = vunpack.c.l.b16 %v1487
    %v1933 = vunpack.c.h.b16 %v1487
    %v1934 = vunpack.c.l.b16 %v1488
    %v1935 = vunpack.c.h.b16 %v1488
    %v1936 = vunpack.c.l.b16 %v1489
    %v1937 = vunpack.c.h.b16 %v1489
    %v1938 = vunpack.c.l.b16 %v1490
    %v1939 = vunpack.c.h.b16 %v1490
    %v1940 = vunpack.c.l.b16 %v1491
    %v1941 = vunpack.c.h.b16 %v1491
    %v1942 = vunpack.c.l.b16 %v1492
    %v1943 = vunpack.c.h.b16 %v1492
    %v1944 = vunpack.c.l.b16 %v1493
    %v1945 = vunpack.c.h.b16 %v1493
    %v1946 = vunpack.c.l.b16 %v1494
    %v1947 = vunpack.c.h.b16 %v1494
    %v1948 = vunpack.c.l.b16 %v1495
    %v1949 = vunpack.c.h.b16 %v1495
    %v1950 = vunpack.c.l.b16 %v1496
    %v1951 = vunpack.c.h.b16 %v1496
    %v1952 = vunpack.c.l.b16 %v1497
    %v1953 = vunpack.c.h.b16 %v1497
    %v1954 = vunpack.c.l.b16 %v1498
    %v1955 = vunpack.c.h.b16 %v1498
    %v1956 = vunpack.c.l.b16 %v1499
    %v1957 = vunpack.c.h.b16 %v1499
    %v1958 = vunpack.c.l.b16 %v1500
    %v1959 = vunpack.c.h.b16 %v1500
    %v1960 = vunpack.c.l.b16 %v1501
    %v1961 = vunpack.c.h.b16 %v1501
    %v1962 = vunpack.c.l.b16 %v1502
    %v1963 = vunpack.c.h.b16 %v1502
    %v1964 = vunpack.c.l.b16 %v1503
    %v1965 = vunpack.c.h.b16 %v1503
    %v1966 = vunpack.c.l.b16 %v1504
    %v1967 = vunpack.c.h.b16 %v1504
    %v1968 = vunpack.c.l.b16 %v1505
    %v1969 = vunpack.c.h.b16 %v1505
    %v1970 = vpack.c.b16 %v1688, %v1682
    %v1971 = vpack.c.b16 %v1689, %v1683
    %v1972 = vpack.c.b16 %v1690, %v1684
    %v1973 = vpack.c.b16 %v1691, %v1685
    %v1974 = vpack.c.b16 %v1692, %v1686
    %v1975 = vpack.c.b16 %v1693, %v1687
    %v1976 = vpack.c.b16 %v1700, %v1694
    %v1977 = vpack.c.b16 %v1701, %v1695
    %v1978 = vpack.c.b16 %v1702, %v1696
    %v1979 = vpack.c.b16 %v1703, %v1697
    %v1980 = vpack.c.b16 %v1704, %v1698
    %v1981 = vpack.c.b16 %v1705, %v1699
    %v1982 = vpack.c.b16 %v1712, %v1706
    %v1983 = vpack.c.b16 %v1713, %v1707
    %v1984 = vpack.c.b16 %v1714, %v1708
    %v1985 = vpack.c.b16 %v1715, %v1709
    %v1986 = vpack.c.b16 %v1716, %v1710
    %v1987 = vpack.c.b16 %v1717, %v1711
    %v1988 = vpack.c.b16 %v1724, %v1718
    %v1989 = vpack.c.b16 %v1725, %v1719
    %v1990 = vpack.c.b16 %v1726, %v1720
    %v1991 = vpack.c.b16 %v1727, %v1721
    %v1992 = vpack.c.b16 %v1728, %v1722
    %v1993 = vpack.c.b16 %v1729, %v1723
    %v1994 = vpack.c.b16 %v1736, %v1730
    %v1995 = vpack.c.b16 %v1737, %v1731
    %v1996 = vpack.c.b16 %v1738, %v1732
    %v1997 = vpack.c.b16 %v1739, %v1733
    %v1998 = vpack.c.b16 %v1740, %v1734
    %v1999 = vpack.c.b16 %v1741, %v1735
    %v2000 = vpack.c.b16 %v1748, %v1742
    %v2001 = vpack.c.b16 %v1749, %v1743
    %v2002 = vpack.c.b16 %v1750, %v1744
    %v2003 = vpack.c.b16 %v1751, %v1745
    %v2004 = vpack.c.b16 %v1752, %v1746
    %v2005 = vpack.c.b16 %v1753, %v1747
    %v2006 = vpack.c.b16 %v1760, %v1754
    %v2007 = vpack.c.b16 %v1761, %v1755
    %v2008 = vpack.c.b16 %v1762, %v1756
    %v2009 = vpack.c.b16 %v1763, %v1757
    %v2010 = vpack.c.b16 %v1764, %v1758
    %v2011 = vpack.c.b16 %v1765, %v1759
    %v2012 = vpack.c.b16 %v1772, %v1766
    %v2013 = vpack.c.b16 %v1773, %v1767
    %v2014 = vpack.c.b16 %v1774, %v1768
    %v2015 = vpack.c.b16 %v1775, %v1769
    %v2016 = vpack.c.b16 %v1776, %v1770
    %v2017 = vpack.c.b16 %v1777, %v1771
    %v2018 = vpack.c.b16 %v1784, %v1778
    %v2019 = vpack.c.b16 %v1785, %v1779
    %v2020 = vpack.c.b16 %v1786, %v1780
    %v2021 = vpack.c.b16 %v1787, %v1781
    %v2022 = vpack.c.b16 %v1788, %v1782
    %v2023 = vpack.c.b16 %v1789, %v1783
    %v2024 = vpack.c.b16 %v1796, %v1790
    %v2025 = vpack.c.b16 %v1797, %v1791
    %v2026 = vpack.c.b16 %v1798, %v1792
    %v2027 = vpack.c.b16 %v1799, %v1793
    %v2028 = vpack.c.b16 %v1800, %v1794
    %v2029 = vpack.c.b16 %v1801, %v1795
    %v2030 = vpack.c.b16 %v1808, %v1802
    %v2031 = vpack.c.b16 %v1809, %v1803
    %v2032 = vpack.c.b16 %v1810, %v1804
    %v2033 = vpack.c.b16 %v1811, %v1805
    %v2034 = vpack.c.b16 %v1812, %v1806
    %v2035 = vpack.c.b16 %v1813, %v1807
    %v2036 = vpack.c.b16 %v1820, %v1814
    %v2037 = vpack.c.b16 %v1821, %v1815
    %v2038 = vpack.c.b16 %v1822, %v1816
    %v2039 = vpack.c.b16 %v1823, %v1817
    %v2040 = vpack.c.b16 %v1824, %v1818
    %v2041 = vpack.c.b16 %v1825, %v1819
    %v2042 = vpack.c.b16 %v1832, %v1826
    %v2043 = vpack.c.b16 %v1833, %v1827
    %v2044 = vpack.c.b16 %v1834, %v1828
    %v2045 = vpack.c.b16 %v1835, %v1829
    %v2046 = vpack.c.b16 %v1836, %v1830
    %v2047 = vpack.c.b16 %v1837, %v1831
    %v2048 = vpack.c.b16 %v1844, %v1838
    %v2049 = vpack.c.b16 %v1845, %v1839
    %v2050 = vpack.c.b16 %v1846, %v1840
    %v2051 = vpack.c.b16 %v1847, %v1841
    %v2052 = vpack.c.b16 %v1848, %v1842
    %v2053 = vpack.c.b16 %v1849, %v1843
    %v2054 = vpack.c.b16 %v1856, %v1850
    %v2055 = vpack.c.b16 %v1857, %v1851
    %v2056 = vpack.c.b16 %v1858, %v1852
    %v2057 = vpack.c.b16 %v1859, %v1853
    %v2058 = vpack.c.b16 %v1860, %v1854
    %v2059 = vpack.c.b16 %v1861, %v1855
    %v2060 = vpack.c.b16 %v1868, %v1862
    %v2061 = vpack.c.b16 %v1869, %v1863
    %v2062 = vpack.c.b16 %v1870, %v1864
    %v2063 = vpack.c.b16 %v1871, %v1865
    %v2064 = vpack.c.b16 %v1872, %v1866
    %v2065 = vpack.c.b16 %v1873, %v1867
    %v2066 = vpack.c.b16 %v1880, %v1874
    %v2067 = vpack.c.b16 %v1881, %v1875
    %v2068 = vpack.c.b16 %v1882, %v1876
    %v2069 = vpack.c.b16 %v1883, %v1877
    %v2070 = vpack.c.b16 %v1884, %v1878
    %v2071 = vpack.c.b16 %v1885, %v1879
    %v2072 = vpack.c.b16 %v1892, %v1886
    %v2073 = vpack.c.b16 %v1893, %v1887
    %v2074 = vpack.c.b16 %v1894, %v1888
    %v2075 = vpack.c.b16 %v1895, %v1889
    %v2076 = vpack.c.b16 %v1896, %v1890
    %v2077 = vpack.c.b16 %v1897, %v1891
    %v2078 = vpack.c.b16 %v1904, %v1898
    %v2079 = vpack.c.b16 %v1905, %v1899
    %v2080 = vpack.c.b16 %v1906, %v1900
    %v2081 = vpack.c.b16 %v1907, %v1901
    %v2082 = vpack.c.b16 %v1908, %v1902
    %v2083 = vpack.c.b16 %v1909, %v1903
    %v2084 = vpack.c.b16 %v1916, %v1910
    %v2085 = vpack.c.b16 %v1917, %v1911
    %v2086 = vpack.c.b16 %v1918, %v1912
    %v2087 = vpack.c.b16 %v1919, %v1913
    %v2088 = vpack.c.b16 %v1920, %v1914
    %v2089 = vpack.c.b16 %v1921, %v1915
    %v2090 = vpack.c.b16 %v1928, %v1922
    %v2091 = vpack.c.b16 %v1929, %v1923
    %v2092 = vpack.c.b16 %v1930, %v1924
    %v2093 = vpack.c.b16 %v1931, %v1925
    %v2094 = vpack.c.b16 %v1932, %v1926
    %v2095 = vpack.c.b16 %v1933, %v1927
    %v2096 = vpack.c.b16 %v1940, %v1934
    %v2097 = vpack.c.b16 %v1941, %v1935
    %v2098 = vpack.c.b16 %v1942, %v1936
    %v2099 = vpack.c.b16 %v1943, %v1937
    %v2100 = vpack.c.b16 %v1944, %v1938
    %v2101 = vpack.c.b16 %v1945, %v1939
    %v2102 = vpack.c.b16 %v1952, %v1946
    %v2103 = vpack.c.b16 %v1953, %v1947
    %v2104 = vpack.c.b16 %v1954, %v1948
    %v2105 = vpack.c.b16 %v1955, %v1949
    %v2106 = vpack.c.b16 %v1956, %v1950
    %v2107 = vpack.c.b16 %v1957, %v1951
    %v2108 = vpack.c.b16 %v1964, %v1958
    %v2109 = vpack.c.b16 %v1965, %v1959
    %v2110 = vpack.c.b16 %v1966, %v1960
    %v2111 = vpack.c.b16 %v1967, %v1961
    %v2112 = vpack.c.b16 %v1968, %v1962
    %v2113 = vpack.c.b16 %v1969, %v1963
    %2258 = vmatprep.subr.bf16.mxu0 %v1971
    %2259 = vmatpush1.bf16.msra.mxu0 %v1970
    %2260 = vmatprep.subr.bf16.mxu0 %v1977
    %2261 = vmatpush1.bf16.msra.mxu0 %v1976
    %2262 = vmatprep.subr.bf16.mxu0 %v1983
    %2263 = vmatpush1.bf16.msra.mxu0 %v1982
    %2264 = vmatprep.subr.bf16.mxu0 %v1989
    %2265 = vmatpush1.bf16.msra.mxu0 %v1988
    %2266 = vmatprep.subr.bf16.mxu0 %v1995
    %2267 = vmatpush1.bf16.msra.mxu0 %v1994
    %2268 = vmatprep.subr.bf16.mxu0 %v2001
    %2269 = vmatpush1.bf16.msra.mxu0 %v2000
    %2270 = vmatprep.subr.bf16.mxu0 %v2007
    %2271 = vmatpush1.bf16.msra.mxu0 %v2006
    %2272 = vmatprep.subr.bf16.mxu0 %v2013
    %2273 = vmatpush1.bf16.msra.mxu0 %v2012
    %2274 = vmatprep.subr.bf16.mxu0 %v2019
    %2275 = vmatpush1.bf16.msra.mxu0 %v2018
    %2276 = vmatprep.subr.bf16.mxu0 %v2025
    %2277 = vmatpush1.bf16.msra.mxu0 %v2024
    %2278 = vmatprep.subr.bf16.mxu0 %v2031
    %2279 = vmatpush1.bf16.msra.mxu0 %v2030
    %2280 = vmatprep.subr.bf16.mxu0 %v2037
    %2281 = vmatpush1.bf16.msra.mxu0 %v2036
    %2282 = vmatprep.subr.bf16.mxu0 %v2043
    %2283 = vmatpush1.bf16.msra.mxu0 %v2042
    %2284 = vmatprep.subr.bf16.mxu0 %v2049
    %2285 = vmatpush1.bf16.msra.mxu0 %v2048
    %2286 = vmatprep.subr.bf16.mxu0 %v2055
    %2287 = vmatpush1.bf16.msra.mxu0 %v2054
    %2288 = vmatprep.subr.bf16.mxu0 %v2061
    %2289 = vmatpush1.bf16.msra.mxu0 %v2060
    %2290 = vmatprep.mubr.bf16.mxu0 %v1339
    %2291 = vmatmul.mubr.bf16.gmra.mrb[0].mxu0 %v1338
    %v2292 = vpop.f32.mrb[0].mxu0
    %v2293 = vadd.f32 %v1511, %v2292
    %v2294 = vpop.f32.mrb[0].mxu0
    %v2295 = vadd.f32 %v1515, %v2294
    %v2296 = vpop.f32.mrb[0].mxu0
    %v2297 = vadd.f32 %v1511, %v2296
    %v2298 = vpop.f32.mrb[0].mxu0
    %v2299 = vadd.f32 %v1515, %v2298
    %2300 = vmatprep.mubr.bf16.mxu0 %v1342
    %2301 = vmatmul.mubr.bf16.gmra.mrb[0].mxu0 %v1341
    %v2302 = vpop.f32.mrb[0].mxu0
    %v2303 = vadd.f32 %v1511, %v2302
    %v2304 = vpop.f32.mrb[0].mxu0
    %v2305 = vadd.f32 %v1515, %v2304
    %v2306 = vpop.f32.mrb[0].mxu0
    %v2307 = vadd.f32 %v1511, %v2306
    %v2308 = vpop.f32.mrb[0].mxu0
    %v2309 = vadd.f32 %v1515, %v2308
    %2310 = vmatprep.mubr.bf16.mxu0 %v1345
    %2311 = vmatmul.mubr.bf16.gmra.mrb[0].mxu0 %v1344
    %v2312 = vpop.f32.mrb[0].mxu0
    %v2313 = vadd.f32 %v1511, %v2312
    %v2314 = vpop.f32.mrb[0].mxu0
    %v2315 = vadd.f32 %v1515, %v2314
    %v2316 = vpop.f32.mrb[0].mxu0
    %v2317 = vadd.f32 %v1511, %v2316
    %v2318 = vpop.f32.mrb[0].mxu0
    %v2319 = vadd.f32 %v1515, %v2318
    %2320 = vmatprep.mubr.bf16.mxu0 %v1348
    %2321 = vmatmul.mubr.bf16.gmra.mrb[0].mxu0 %v1347
    %v2322 = vpop.f32.mrb[0].mxu0
    %v2323 = vadd.f32 %v1511, %v2322
    %v2324 = vpop.f32.mrb[0].mxu0
    %v2325 = vadd.f32 %v1515, %v2324
    %v2326 = vpop.f32.mrb[0].mxu0
    %v2327 = vadd.f32 %v1511, %v2326
    %v2328 = vpop.f32.mrb[0].mxu0
    %v2329 = vadd.f32 %v1515, %v2328
    %2330 = vmatprep.mubr.bf16.mxu0 %v1351
    %2331 = vmatmul.mubr.bf16.gmra.mrb[0].mxu0 %v1350
    %v2332 = vpop.f32.mrb[0].mxu0
    %v2333 = vadd.f32 %v1511, %v2332
    %v2334 = vpop.f32.mrb[0].mxu0
    %v2335 = vadd.f32 %v1515, %v2334
    %v2336 = vpop.f32.mrb[0].mxu0
    %v2337 = vadd.f32 %v1511, %v2336
    %v2338 = vpop.f32.mrb[0].mxu0
    %v2339 = vadd.f32 %v1515, %v2338
    %2340 = vmatprep.mubr.bf16.mxu0 %v1354
    %2341 = vmatmul.mubr.bf16.gmra.mrb[0].mxu0 %v1353
    %v2342 = vpop.f32.mrb[0].mxu0
    %v2343 = vadd.f32 %v1511, %v2342
    %v2344 = vpop.f32.mrb[0].mxu0
    %v2345 = vadd.f32 %v1515, %v2344
    %v2346 = vpop.f32.mrb[0].mxu0
    %v2347 = vadd.f32 %v1511, %v2346
    %v2348 = vpop.f32.mrb[0].mxu0
    %v2349 = vadd.f32 %v1515, %v2348
    %2350 = vmatprep.mubr.bf16.mxu0 %v1357
    %2351 = vmatmul.mubr.bf16.gmra.mrb[0].mxu0 %v1356
    %v2352 = vpop.f32.mrb[0].mxu0
    %v2353 = vadd.f32 %v1511, %v2352
    %v2354 = vpop.f32.mrb[0].mxu0
    %v2355 = vadd.f32 %v1515, %v2354
    %v2356 = vpop.f32.mrb[0].mxu0
    %v2357 = vadd.f32 %v1511, %v2356
    %v2358 = vpop.f32.mrb[0].mxu0
    %v2359 = vadd.f32 %v1515, %v2358
    %2360 = vmatprep.mubr.bf16.mxu0 %v1360
    %2361 = vmatmul.mubr.bf16.gmra.mrb[0].mxu0 %v1359
    %v2362 = vpop.f32.mrb[0].mxu0
    %v2363 = vadd.f32 %v1511, %v2362
    %v2364 = vpop.f32.mrb[0].mxu0
    %v2365 = vadd.f32 %v1515, %v2364
    %v2366 = vpop.f32.mrb[0].mxu0
    %v2367 = vadd.f32 %v1511, %v2366
    %v2368 = vpop.f32.mrb[0].mxu0
    %v2369 = vadd.f32 %v1515, %v2368
    %2370 = vdwg.mxu0
    %2371 = vmatprep.subr.bf16.mxu0 %v2067
    %2372 = vmatpush1.bf16.msra.mxu0 %v2066
    %2373 = vmatprep.subr.bf16.mxu0 %v2073
    %2374 = vmatpush1.bf16.msra.mxu0 %v2072
    %2375 = vmatprep.subr.bf16.mxu0 %v2079
    %2376 = vmatpush1.bf16.msra.mxu0 %v2078
    %2377 = vmatprep.subr.bf16.mxu0 %v2085
    %2378 = vmatpush1.bf16.msra.mxu0 %v2084
    %2379 = vmatprep.subr.bf16.mxu0 %v2091
    %2380 = vmatpush1.bf16.msra.mxu0 %v2090
    %2381 = vmatprep.subr.bf16.mxu0 %v2097
    %2382 = vmatpush1.bf16.msra.mxu0 %v2096
    %2383 = vmatprep.subr.bf16.mxu0 %v2103
    %2384 = vmatpush1.bf16.msra.mxu0 %v2102
    %2385 = vmatprep.subr.bf16.mxu0 %v2109
    %2386 = vmatpush1.bf16.msra.mxu0 %v2108
    %2387 = vmatprep.subr.bf16.mxu0 0
    %2388 = vmatpush1.bf16.msra.mxu0 0
    %2389 = vmatprep.subr.bf16.mxu0 0
    %2390 = vmatpush1.bf16.msra.mxu0 0
    %2391 = vmatprep.subr.bf16.mxu0 0
    %2392 = vmatpush1.bf16.msra.mxu0 0
    %2393 = vmatprep.subr.bf16.mxu0 0
    %2394 = vmatpush1.bf16.msra.mxu0 0
    %2395 = vmatprep.subr.bf16.mxu0 0
    %2396 = vmatpush1.bf16.msra.mxu0 0
    %2397 = vmatprep.subr.bf16.mxu0 0
    %2398 = vmatpush1.bf16.msra.mxu0 0
    %2399 = vmatprep.subr.bf16.mxu0 0
    %2400 = vmatpush1.bf16.msra.mxu0 0
    %2401 = vmatprep.subr.bf16.mxu0 0
    %2402 = vmatpush1.bf16.msra.mxu0 0
    %2403 = vmatprep.mubr.bf16.mxu0 0
    %2404 = vmatmul.mubr.bf16.gmra.mrb[0].mxu0 %v1340
    %v2405 = vpop.f32.mrb[0].mxu0
    %v2406 = vadd.f32 %v2293, %v2405
    %v2407 = vpop.f32.mrb[0].mxu0
    %v2408 = vadd.f32 %v2295, %v2407
    %v2409 = vpop.f32.mrb[0].mxu0
    %v2410 = vadd.f32 %v2297, %v2409
    %v2411 = vpop.f32.mrb[0].mxu0
    %v2412 = vadd.f32 %v2299, %v2411
    %2413 = vmatprep.mubr.bf16.mxu0 0
    %2414 = vmatmul.mubr.bf16.gmra.mrb[0].mxu0 %v1343
    %v2415 = vpop.f32.mrb[0].mxu0
    %v2416 = vadd.f32 %v2303, %v2415
    %v2417 = vpop.f32.mrb[0].mxu0
    %v2418 = vadd.f32 %v2305, %v2417
    %v2419 = vpop.f32.mrb[0].mxu0
    %v2420 = vadd.f32 %v2307, %v2419
    %v2421 = vpop.f32.mrb[0].mxu0
    %v2422 = vadd.f32 %v2309, %v2421
    %2423 = vmatprep.mubr.bf16.mxu0 0
    %2424 = vmatmul.mubr.bf16.gmra.mrb[0].mxu0 %v1346
    %v2425 = vpop.f32.mrb[0].mxu0
    %v2426 = vadd.f32 %v2313, %v2425
    %v2427 = vpop.f32.mrb[0].mxu0
    %v2428 = vadd.f32 %v2315, %v2427
    %v2429 = vpop.f32.mrb[0].mxu0
    %v2430 = vadd.f32 %v2317, %v2429
    %v2431 = vpop.f32.mrb[0].mxu0
    %v2432 = vadd.f32 %v2319, %v2431
    %2433 = vmatprep.mubr.bf16.mxu0 0
    %2434 = vmatmul.mubr.bf16.gmra.mrb[0].mxu0 %v1349
    %v2435 = vpop.f32.mrb[0].mxu0
    %v2436 = vadd.f32 %v2323, %v2435
    %v2437 = vpop.f32.mrb[0].mxu0
    %v2438 = vadd.f32 %v2325, %v2437
    %v2439 = vpop.f32.mrb[0].mxu0
    %v2440 = vadd.f32 %v2327, %v2439
    %v2441 = vpop.f32.mrb[0].mxu0
    %v2442 = vadd.f32 %v2329, %v2441
    %2443 = vmatprep.mubr.bf16.mxu0 0
    %2444 = vmatmul.mubr.bf16.gmra.mrb[0].mxu0 %v1352
    %v2445 = vpop.f32.mrb[0].mxu0
    %v2446 = vadd.f32 %v2333, %v2445
    %v2447 = vpop.f32.mrb[0].mxu0
    %v2448 = vadd.f32 %v2335, %v2447
    %v2449 = vpop.f32.mrb[0].mxu0
    %v2450 = vadd.f32 %v2337, %v2449
    %v2451 = vpop.f32.mrb[0].mxu0
    %v2452 = vadd.f32 %v2339, %v2451
    %2453 = vmatprep.mubr.bf16.mxu0 0
    %2454 = vmatmul.mubr.bf16.gmra.mrb[0].mxu0 %v1355
    %v2455 = vpop.f32.mrb[0].mxu0
    %v2456 = vadd.f32 %v2343, %v2455
    %v2457 = vpop.f32.mrb[0].mxu0
    %v2458 = vadd.f32 %v2345, %v2457
    %v2459 = vpop.f32.mrb[0].mxu0
    %v2460 = vadd.f32 %v2347, %v2459
    %v2461 = vpop.f32.mrb[0].mxu0
    %v2462 = vadd.f32 %v2349, %v2461
    %2463 = vmatprep.mubr.bf16.mxu0 0
    %2464 = vmatmul.mubr.bf16.gmra.mrb[0].mxu0 %v1358
    %v2465 = vpop.f32.mrb[0].mxu0
    %v2466 = vadd.f32 %v2353, %v2465
    %v2467 = vpop.f32.mrb[0].mxu0
    %v2468 = vadd.f32 %v2355, %v2467
    %v2469 = vpop.f32.mrb[0].mxu0
    %v2470 = vadd.f32 %v2357, %v2469
    %v2471 = vpop.f32.mrb[0].mxu0
    %v2472 = vadd.f32 %v2359, %v2471
    %2473 = vmatprep.mubr.bf16.mxu0 0
    %2474 = vmatmul.mubr.bf16.gmra.mrb[0].mxu0 %v1361
    %v2475 = vpop.f32.mrb[0].mxu0
    %v2476 = vadd.f32 %v2363, %v2475
    %v2477 = vpop.f32.mrb[0].mxu0
    %v2478 = vadd.f32 %v2365, %v2477
    %v2479 = vpop.f32.mrb[0].mxu0
    %v2480 = vadd.f32 %v2367, %v2479
    %v2481 = vpop.f32.mrb[0].mxu0
    %v2482 = vadd.f32 %v2369, %v2481
    %2483 = vdwg.mxu0
    %2484 = vmatprep.subr.bf16.mxu0 %v1973
    %2485 = vmatpush1.bf16.msra.mxu0 %v1972
    %2486 = vmatprep.subr.bf16.mxu0 %v1979
    %2487 = vmatpush1.bf16.msra.mxu0 %v1978
    %2488 = vmatprep.subr.bf16.mxu0 %v1985
    %2489 = vmatpush1.bf16.msra.mxu0 %v1984
    %2490 = vmatprep.subr.bf16.mxu0 %v1991
    %2491 = vmatpush1.bf16.msra.mxu0 %v1990
    %2492 = vmatprep.subr.bf16.mxu0 %v1997
    %2493 = vmatpush1.bf16.msra.mxu0 %v1996
    %2494 = vmatprep.subr.bf16.mxu0 %v2003
    %2495 = vmatpush1.bf16.msra.mxu0 %v2002
    %2496 = vmatprep.subr.bf16.mxu0 %v2009
    %2497 = vmatpush1.bf16.msra.mxu0 %v2008
    %2498 = vmatprep.subr.bf16.mxu0 %v2015
    %2499 = vmatpush1.bf16.msra.mxu0 %v2014
    %2500 = vmatprep.subr.bf16.mxu0 %v2021
    %2501 = vmatpush1.bf16.msra.mxu0 %v2020
    %2502 = vmatprep.subr.bf16.mxu0 %v2027
    %2503 = vmatpush1.bf16.msra.mxu0 %v2026
    %2504 = vmatprep.subr.bf16.mxu0 %v2033
    %2505 = vmatpush1.bf16.msra.mxu0 %v2032
    %2506 = vmatprep.subr.bf16.mxu0 %v2039
    %2507 = vmatpush1.bf16.msra.mxu0 %v2038
    %2508 = vmatprep.subr.bf16.mxu0 %v2045
    %2509 = vmatpush1.bf16.msra.mxu0 %v2044
    %2510 = vmatprep.subr.bf16.mxu0 %v2051
    %2511 = vmatpush1.bf16.msra.mxu0 %v2050
    %2512 = vmatprep.subr.bf16.mxu0 %v2057
    %2513 = vmatpush1.bf16.msra.mxu0 %v2056
    %2514 = vmatprep.subr.bf16.mxu0 %v2063
    %2515 = vmatpush1.bf16.msra.mxu0 %v2062
    %2516 = vmatprep.mubr.bf16.mxu0 %v1339
    %2517 = vmatmul.mubr.bf16.gmra.mrb[0].mxu0 %v1338
    %v2518 = vpop.f32.mrb[0].mxu0
    %v2519 = vadd.f32 %v1519, %v2518
    %v2520 = vpop.f32.mrb[0].mxu0
    %v2521 = vadd.f32 %v1523, %v2520
    %v2522 = vpop.f32.mrb[0].mxu0
    %v2523 = vadd.f32 %v1519, %v2522
    %v2524 = vpop.f32.mrb[0].mxu0
    %v2525 = vadd.f32 %v1523, %v2524
    %2526 = vmatprep.mubr.bf16.mxu0 %v1342
    %2527 = vmatmul.mubr.bf16.gmra.mrb[0].mxu0 %v1341
    %v2528 = vpop.f32.mrb[0].mxu0
    %v2529 = vadd.f32 %v1519, %v2528
    %v2530 = vpop.f32.mrb[0].mxu0
    %v2531 = vadd.f32 %v1523, %v2530
    %v2532 = vpop.f32.mrb[0].mxu0
    %v2533 = vadd.f32 %v1519, %v2532
    %v2534 = vpop.f32.mrb[0].mxu0
    %v2535 = vadd.f32 %v1523, %v2534
    %2536 = vmatprep.mubr.bf16.mxu0 %v1345
    %2537 = vmatmul.mubr.bf16.gmra.mrb[0].mxu0 %v1344
    %v2538 = vpop.f32.mrb[0].mxu0
    %v2539 = vadd.f32 %v1519, %v2538
    %v2540 = vpop.f32.mrb[0].mxu0
    %v2541 = vadd.f32 %v1523, %v2540
    %v2542 = vpop.f32.mrb[0].mxu0
    %v2543 = vadd.f32 %v1519, %v2542
    %v2544 = vpop.f32.mrb[0].mxu0
    %v2545 = vadd.f32 %v1523, %v2544
    %2546 = vmatprep.mubr.bf16.mxu0 %v1348
    %2547 = vmatmul.mubr.bf16.gmra.mrb[0].mxu0 %v1347
    %v2548 = vpop.f32.mrb[0].mxu0
    %v2549 = vadd.f32 %v1519, %v2548
    %v2550 = vpop.f32.mrb[0].mxu0
    %v2551 = vadd.f32 %v1523, %v2550
    %v2552 = vpop.f32.mrb[0].mxu0
    %v2553 = vadd.f32 %v1519, %v2552
    %v2554 = vpop.f32.mrb[0].mxu0
    %v2555 = vadd.f32 %v1523, %v2554
    %2556 = vmatprep.mubr.bf16.mxu0 %v1351
    %2557 = vmatmul.mubr.bf16.gmra.mrb[0].mxu0 %v1350
    %v2558 = vpop.f32.mrb[0].mxu0
    %v2559 = vadd.f32 %v1519, %v2558
    %v2560 = vpop.f32.mrb[0].mxu0
    %v2561 = vadd.f32 %v1523, %v2560
    %v2562 = vpop.f32.mrb[0].mxu0
    %v2563 = vadd.f32 %v1519, %v2562
    %v2564 = vpop.f32.mrb[0].mxu0
    %v2565 = vadd.f32 %v1523, %v2564
    %2566 = vmatprep.mubr.bf16.mxu0 %v1354
    %2567 = vmatmul.mubr.bf16.gmra.mrb[0].mxu0 %v1353
    %v2568 = vpop.f32.mrb[0].mxu0
    %v2569 = vadd.f32 %v1519, %v2568
    %v2570 = vpop.f32.mrb[0].mxu0
    %v2571 = vadd.f32 %v1523, %v2570
    %v2572 = vpop.f32.mrb[0].mxu0
    %v2573 = vadd.f32 %v1519, %v2572
    %v2574 = vpop.f32.mrb[0].mxu0
    %v2575 = vadd.f32 %v1523, %v2574
    %2576 = vmatprep.mubr.bf16.mxu0 %v1357
    %2577 = vmatmul.mubr.bf16.gmra.mrb[0].mxu0 %v1356
    %v2578 = vpop.f32.mrb[0].mxu0
    %v2579 = vadd.f32 %v1519, %v2578
    %v2580 = vpop.f32.mrb[0].mxu0
    %v2581 = vadd.f32 %v1523, %v2580
    %v2582 = vpop.f32.mrb[0].mxu0
    %v2583 = vadd.f32 %v1519, %v2582
    %v2584 = vpop.f32.mrb[0].mxu0
    %v2585 = vadd.f32 %v1523, %v2584
    %2586 = vmatprep.mubr.bf16.mxu0 %v1360
    %2587 = vmatmul.mubr.bf16.gmra.mrb[0].mxu0 %v1359
    %v2588 = vpop.f32.mrb[0].mxu0
    %v2589 = vadd.f32 %v1519, %v2588
    %v2590 = vpop.f32.mrb[0].mxu0
    %v2591 = vadd.f32 %v1523, %v2590
    %v2592 = vpop.f32.mrb[0].mxu0
    %v2593 = vadd.f32 %v1519, %v2592
    %v2594 = vpop.f32.mrb[0].mxu0
    %v2595 = vadd.f32 %v1523, %v2594
    %2596 = vdwg.mxu0
    %2597 = vmatprep.subr.bf16.mxu0 %v2069
    %2598 = vmatpush1.bf16.msra.mxu0 %v2068
    %2599 = vmatprep.subr.bf16.mxu0 %v2075
    %2600 = vmatpush1.bf16.msra.mxu0 %v2074
    %2601 = vmatprep.subr.bf16.mxu0 %v2081
    %2602 = vmatpush1.bf16.msra.mxu0 %v2080
    %2603 = vmatprep.subr.bf16.mxu0 %v2087
    %2604 = vmatpush1.bf16.msra.mxu0 %v2086
    %2605 = vmatprep.subr.bf16.mxu0 %v2093
    %2606 = vmatpush1.bf16.msra.mxu0 %v2092
    %2607 = vmatprep.subr.bf16.mxu0 %v2099
    %2608 = vmatpush1.bf16.msra.mxu0 %v2098
    %2609 = vmatprep.subr.bf16.mxu0 %v2105
    %2610 = vmatpush1.bf16.msra.mxu0 %v2104
    %2611 = vmatprep.subr.bf16.mxu0 %v2111
    %2612 = vmatpush1.bf16.msra.mxu0 %v2110
    %2613 = vmatprep.subr.bf16.mxu0 0
    %2614 = vmatpush1.bf16.msra.mxu0 0
    %2615 = vmatprep.subr.bf16.mxu0 0
    %2616 = vmatpush1.bf16.msra.mxu0 0
    %2617 = vmatprep.subr.bf16.mxu0 0
    %2618 = vmatpush1.bf16.msra.mxu0 0
    %2619 = vmatprep.subr.bf16.mxu0 0
    %2620 = vmatpush1.bf16.msra.mxu0 0
    %2621 = vmatprep.subr.bf16.mxu0 0
    %2622 = vmatpush1.bf16.msra.mxu0 0
    %2623 = vmatprep.subr.bf16.mxu0 0
    %2624 = vmatpush1.bf16.msra.mxu0 0
    %2625 = vmatprep.subr.bf16.mxu0 0
    %2626 = vmatpush1.bf16.msra.mxu0 0
    %2627 = vmatprep.subr.bf16.mxu0 0
    %2628 = vmatpush1.bf16.msra.mxu0 0
    %2629 = vmatprep.mubr.bf16.mxu0 0
    %2630 = vmatmul.mubr.bf16.gmra.mrb[0].mxu0 %v1340
    %v2631 = vpop.f32.mrb[0].mxu0
    %v2632 = vadd.f32 %v2519, %v2631
    %v2633 = vpop.f32.mrb[0].mxu0
    %v2634 = vadd.f32 %v2521, %v2633
    %v2635 = vpop.f32.mrb[0].mxu0
    %v2636 = vadd.f32 %v2523, %v2635
    %v2637 = vpop.f32.mrb[0].mxu0
    %v2638 = vadd.f32 %v2525, %v2637
    %2639 = vmatprep.mubr.bf16.mxu0 0
    %2640 = vmatmul.mubr.bf16.gmra.mrb[0].mxu0 %v1343
    %v2641 = vpop.f32.mrb[0].mxu0
    %v2642 = vadd.f32 %v2529, %v2641
    %v2643 = vpop.f32.mrb[0].mxu0
    %v2644 = vadd.f32 %v2531, %v2643
    %v2645 = vpop.f32.mrb[0].mxu0
    %v2646 = vadd.f32 %v2533, %v2645
    %v2647 = vpop.f32.mrb[0].mxu0
    %v2648 = vadd.f32 %v2535, %v2647
    %2649 = vmatprep.mubr.bf16.mxu0 0
    %2650 = vmatmul.mubr.bf16.gmra.mrb[0].mxu0 %v1346
    %v2651 = vpop.f32.mrb[0].mxu0
    %v2652 = vadd.f32 %v2539, %v2651
    %v2653 = vpop.f32.mrb[0].mxu0
    %v2654 = vadd.f32 %v2541, %v2653
    %v2655 = vpop.f32.mrb[0].mxu0
    %v2656 = vadd.f32 %v2543, %v2655
    %v2657 = vpop.f32.mrb[0].mxu0
    %v2658 = vadd.f32 %v2545, %v2657
    %2659 = vmatprep.mubr.bf16.mxu0 0
    %2660 = vmatmul.mubr.bf16.gmra.mrb[0].mxu0 %v1349
    %v2661 = vpop.f32.mrb[0].mxu0
    %v2662 = vadd.f32 %v2549, %v2661
    %v2663 = vpop.f32.mrb[0].mxu0
    %v2664 = vadd.f32 %v2551, %v2663
    %v2665 = vpop.f32.mrb[0].mxu0
    %v2666 = vadd.f32 %v2553, %v2665
    %v2667 = vpop.f32.mrb[0].mxu0
    %v2668 = vadd.f32 %v2555, %v2667
    %2669 = vmatprep.mubr.bf16.mxu0 0
    %2670 = vmatmul.mubr.bf16.gmra.mrb[0].mxu0 %v1352
    %v2671 = vpop.f32.mrb[0].mxu0
    %v2672 = vadd.f32 %v2559, %v2671
    %v2673 = vpop.f32.mrb[0].mxu0
    %v2674 = vadd.f32 %v2561, %v2673
    %v2675 = vpop.f32.mrb[0].mxu0
    %v2676 = vadd.f32 %v2563, %v2675
    %v2677 = vpop.f32.mrb[0].mxu0
    %v2678 = vadd.f32 %v2565, %v2677
    %2679 = vmatprep.mubr.bf16.mxu0 0
    %2680 = vmatmul.mubr.bf16.gmra.mrb[0].mxu0 %v1355
    %v2681 = vpop.f32.mrb[0].mxu0
    %v2682 = vadd.f32 %v2569, %v2681
    %v2683 = vpop.f32.mrb[0].mxu0
    %v2684 = vadd.f32 %v2571, %v2683
    %v2685 = vpop.f32.mrb[0].mxu0
    %v2686 = vadd.f32 %v2573, %v2685
    %v2687 = vpop.f32.mrb[0].mxu0
    %v2688 = vadd.f32 %v2575, %v2687
    %2689 = vmatprep.mubr.bf16.mxu0 0
    %2690 = vmatmul.mubr.bf16.gmra.mrb[0].mxu0 %v1358
    %v2691 = vpop.f32.mrb[0].mxu0
    %v2692 = vadd.f32 %v2579, %v2691
    %v2693 = vpop.f32.mrb[0].mxu0
    %v2694 = vadd.f32 %v2581, %v2693
    %v2695 = vpop.f32.mrb[0].mxu0
    %v2696 = vadd.f32 %v2583, %v2695
    %v2697 = vpop.f32.mrb[0].mxu0
    %v2698 = vadd.f32 %v2585, %v2697
    %2699 = vmatprep.mubr.bf16.mxu0 0
    %2700 = vmatmul.mubr.bf16.gmra.mrb[0].mxu0 %v1361
    %v2701 = vpop.f32.mrb[0].mxu0
    %v2702 = vadd.f32 %v2589, %v2701
    %v2703 = vpop.f32.mrb[0].mxu0
    %v2704 = vadd.f32 %v2591, %v2703
    %v2705 = vpop.f32.mrb[0].mxu0
    %v2706 = vadd.f32 %v2593, %v2705
    %v2707 = vpop.f32.mrb[0].mxu0
    %v2708 = vadd.f32 %v2595, %v2707
    %2709 = vdwg.mxu0
    %2710 = vmatprep.subr.bf16.mxu0 %v1975
    %2711 = vmatpush1.bf16.msra.mxu0 %v1974
    %2712 = vmatprep.subr.bf16.mxu0 %v1981
    %2713 = vmatpush1.bf16.msra.mxu0 %v1980
    %2714 = vmatprep.subr.bf16.mxu0 %v1987
    %2715 = vmatpush1.bf16.msra.mxu0 %v1986
    %2716 = vmatprep.subr.bf16.mxu0 %v1993
    %2717 = vmatpush1.bf16.msra.mxu0 %v1992
    %2718 = vmatprep.subr.bf16.mxu0 %v1999
    %2719 = vmatpush1.bf16.msra.mxu0 %v1998
    %2720 = vmatprep.subr.bf16.mxu0 %v2005
    %2721 = vmatpush1.bf16.msra.mxu0 %v2004
    %2722 = vmatprep.subr.bf16.mxu0 %v2011
    %2723 = vmatpush1.bf16.msra.mxu0 %v2010
    %2724 = vmatprep.subr.bf16.mxu0 %v2017
    %2725 = vmatpush1.bf16.msra.mxu0 %v2016
    %2726 = vmatprep.subr.bf16.mxu0 %v2023
    %2727 = vmatpush1.bf16.msra.mxu0 %v2022
    %2728 = vmatprep.subr.bf16.mxu0 %v2029
    %2729 = vmatpush1.bf16.msra.mxu0 %v2028
    %2730 = vmatprep.subr.bf16.mxu0 %v2035
    %2731 = vmatpush1.bf16.msra.mxu0 %v2034
    %2732 = vmatprep.subr.bf16.mxu0 %v2041
    %2733 = vmatpush1.bf16.msra.mxu0 %v2040
    %2734 = vmatprep.subr.bf16.mxu0 %v2047
    %2735 = vmatpush1.bf16.msra.mxu0 %v2046
    %2736 = vmatprep.subr.bf16.mxu0 %v2053
    %2737 = vmatpush1.bf16.msra.mxu0 %v2052
    %2738 = vmatprep.subr.bf16.mxu0 %v2059
    %2739 = vmatpush1.bf16.msra.mxu0 %v2058
    %2740 = vmatprep.subr.bf16.mxu0 %v2065
    %2741 = vmatpush1.bf16.msra.mxu0 %v2064
    %2742 = vmatprep.mubr.bf16.mxu0 %v1339
    %2743 = vmatmul.mubr.bf16.gmra.mrb[0].mxu0 %v1338
    %v2744 = vpop.f32.mrb[0].mxu0
    %v2745 = vadd.f32 %v1527, %v2744
    %v2746 = vpop.f32.mrb[0].mxu0
    %v2747 = vadd.f32 %v1531, %v2746
    %v2748 = vpop.f32.mrb[0].mxu0
    %v2749 = vadd.f32 %v1527, %v2748
    %v2750 = vpop.f32.mrb[0].mxu0
    %v2751 = vadd.f32 %v1531, %v2750
    %2752 = vmatprep.mubr.bf16.mxu0 %v1342
    %2753 = vmatmul.mubr.bf16.gmra.mrb[0].mxu0 %v1341
    %v2754 = vpop.f32.mrb[0].mxu0
    %v2755 = vadd.f32 %v1527, %v2754
    %v2756 = vpop.f32.mrb[0].mxu0
    %v2757 = vadd.f32 %v1531, %v2756
    %v2758 = vpop.f32.mrb[0].mxu0
    %v2759 = vadd.f32 %v1527, %v2758
    %v2760 = vpop.f32.mrb[0].mxu0
    %v2761 = vadd.f32 %v1531, %v2760
    %2762 = vmatprep.mubr.bf16.mxu0 %v1345
    %2763 = vmatmul.mubr.bf16.gmra.mrb[0].mxu0 %v1344
    %v2764 = vpop.f32.mrb[0].mxu0
    %v2765 = vadd.f32 %v1527, %v2764
    %v2766 = vpop.f32.mrb[0].mxu0
    %v2767 = vadd.f32 %v1531, %v2766
    %v2768 = vpop.f32.mrb[0].mxu0
    %v2769 = vadd.f32 %v1527, %v2768
    %v2770 = vpop.f32.mrb[0].mxu0
    %v2771 = vadd.f32 %v1531, %v2770
    %2772 = vmatprep.mubr.bf16.mxu0 %v1348
    %2773 = vmatmul.mubr.bf16.gmra.mrb[0].mxu0 %v1347
    %v2774 = vpop.f32.mrb[0].mxu0
    %v2775 = vadd.f32 %v1527, %v2774
    %v2776 = vpop.f32.mrb[0].mxu0
    %v2777 = vadd.f32 %v1531, %v2776
    %v2778 = vpop.f32.mrb[0].mxu0
    %v2779 = vadd.f32 %v1527, %v2778
    %v2780 = vpop.f32.mrb[0].mxu0
    %v2781 = vadd.f32 %v1531, %v2780
    %2782 = vmatprep.mubr.bf16.mxu0 %v1351
    %2783 = vmatmul.mubr.bf16.gmra.mrb[0].mxu0 %v1350
    %v2784 = vpop.f32.mrb[0].mxu0
    %v2785 = vadd.f32 %v1527, %v2784
    %v2786 = vpop.f32.mrb[0].mxu0
    %v2787 = vadd.f32 %v1531, %v2786
    %v2788 = vpop.f32.mrb[0].mxu0
    %v2789 = vadd.f32 %v1527, %v2788
    %v2790 = vpop.f32.mrb[0].mxu0
    %v2791 = vadd.f32 %v1531, %v2790
    %2792 = vmatprep.mubr.bf16.mxu0 %v1354
    %2793 = vmatmul.mubr.bf16.gmra.mrb[0].mxu0 %v1353
    %v2794 = vpop.f32.mrb[0].mxu0
    %v2795 = vadd.f32 %v1527, %v2794
    %v2796 = vpop.f32.mrb[0].mxu0
    %v2797 = vadd.f32 %v1531, %v2796
    %v2798 = vpop.f32.mrb[0].mxu0
    %v2799 = vadd.f32 %v1527, %v2798
    %v2800 = vpop.f32.mrb[0].mxu0
    %v2801 = vadd.f32 %v1531, %v2800
    %2802 = vmatprep.mubr.bf16.mxu0 %v1357
    %2803 = vmatmul.mubr.bf16.gmra.mrb[0].mxu0 %v1356
    %v2804 = vpop.f32.mrb[0].mxu0
    %v2805 = vadd.f32 %v1527, %v2804
    %v2806 = vpop.f32.mrb[0].mxu0
    %v2807 = vadd.f32 %v1531, %v2806
    %v2808 = vpop.f32.mrb[0].mxu0
    %v2809 = vadd.f32 %v1527, %v2808
    %v2810 = vpop.f32.mrb[0].mxu0
    %v2811 = vadd.f32 %v1531, %v2810
    %2812 = vmatprep.mubr.bf16.mxu0 %v1360
    %2813 = vmatmul.mubr.bf16.gmra.mrb[0].mxu0 %v1359
    %v2814 = vpop.f32.mrb[0].mxu0
    %v2815 = vadd.f32 %v1527, %v2814
    %v2816 = vpop.f32.mrb[0].mxu0
    %v2817 = vadd.f32 %v1531, %v2816
    %v2818 = vpop.f32.mrb[0].mxu0
    %v2819 = vadd.f32 %v1527, %v2818
    %v2820 = vpop.f32.mrb[0].mxu0
    %v2821 = vadd.f32 %v1531, %v2820
    %2822 = vdwg.mxu0
    %2823 = vmatprep.subr.bf16.mxu0 %v2071
    %2824 = vmatpush1.bf16.msra.mxu0 %v2070
    %2825 = vmatprep.subr.bf16.mxu0 %v2077
    %2826 = vmatpush1.bf16.msra.mxu0 %v2076
    %2827 = vmatprep.subr.bf16.mxu0 %v2083
    %2828 = vmatpush1.bf16.msra.mxu0 %v2082
    %2829 = vmatprep.subr.bf16.mxu0 %v2089
    %2830 = vmatpush1.bf16.msra.mxu0 %v2088
    %2831 = vmatprep.subr.bf16.mxu0 %v2095
    %2832 = vmatpush1.bf16.msra.mxu0 %v2094
    %2833 = vmatprep.subr.bf16.mxu0 %v2101
    %2834 = vmatpush1.bf16.msra.mxu0 %v2100
    %2835 = vmatprep.subr.bf16.mxu0 %v2107
    %2836 = vmatpush1.bf16.msra.mxu0 %v2106
    %2837 = vmatprep.subr.bf16.mxu0 %v2113
    %2838 = vmatpush1.bf16.msra.mxu0 %v2112
    %2839 = vmatprep.subr.bf16.mxu0 0
    %2840 = vmatpush1.bf16.msra.mxu0 0
    %2841 = vmatprep.subr.bf16.mxu0 0
    %2842 = vmatpush1.bf16.msra.mxu0 0
    %2843 = vmatprep.subr.bf16.mxu0 0
    %2844 = vmatpush1.bf16.msra.mxu0 0
    %2845 = vmatprep.subr.bf16.mxu0 0
    %2846 = vmatpush1.bf16.msra.mxu0 0
    %2847 = vmatprep.subr.bf16.mxu0 0
    %2848 = vmatpush1.bf16.msra.mxu0 0
    %2849 = vmatprep.subr.bf16.mxu0 0
    %2850 = vmatpush1.bf16.msra.mxu0 0
    %2851 = vmatprep.subr.bf16.mxu0 0
    %2852 = vmatpush1.bf16.msra.mxu0 0
    %2853 = vmatprep.subr.bf16.mxu0 0
    %2854 = vmatpush1.bf16.msra.mxu0 0
    %2855 = vmatprep.mubr.bf16.mxu0 0
    %2856 = vmatmul.mubr.bf16.gmra.mrb[0].mxu0 %v1340
    %v2857 = vpop.f32.mrb[0].mxu0
    %v2858 = vadd.f32 %v2745, %v2857
    %v2859 = vpop.f32.mrb[0].mxu0
    %v2860 = vadd.f32 %v2747, %v2859
    %v2861 = vpop.f32.mrb[0].mxu0
    %v2862 = vadd.f32 %v2749, %v2861
    %v2863 = vpop.f32.mrb[0].mxu0
    %v2864 = vadd.f32 %v2751, %v2863
    %2865 = vmatprep.mubr.bf16.mxu0 0
    %2866 = vmatmul.mubr.bf16.gmra.mrb[0].mxu0 %v1343
    %v2867 = vpop.f32.mrb[0].mxu0
    %v2868 = vadd.f32 %v2755, %v2867
    %v2869 = vpop.f32.mrb[0].mxu0
    %v2870 = vadd.f32 %v2757, %v2869
    %v2871 = vpop.f32.mrb[0].mxu0
    %v2872 = vadd.f32 %v2759, %v2871
    %v2873 = vpop.f32.mrb[0].mxu0
    %v2874 = vadd.f32 %v2761, %v2873
    %2875 = vmatprep.mubr.bf16.mxu0 0
    %2876 = vmatmul.mubr.bf16.gmra.mrb[0].mxu0 %v1346
    %v2877 = vpop.f32.mrb[0].mxu0
    %v2878 = vadd.f32 %v2765, %v2877
    %v2879 = vpop.f32.mrb[0].mxu0
    %v2880 = vadd.f32 %v2767, %v2879
    %v2881 = vpop.f32.mrb[0].mxu0
    %v2882 = vadd.f32 %v2769, %v2881
    %v2883 = vpop.f32.mrb[0].mxu0
    %v2884 = vadd.f32 %v2771, %v2883
    %2885 = vmatprep.mubr.bf16.mxu0 0
    %2886 = vmatmul.mubr.bf16.gmra.mrb[0].mxu0 %v1349
    %v2887 = vpop.f32.mrb[0].mxu0
    %v2888 = vadd.f32 %v2775, %v2887
    %v2889 = vpop.f32.mrb[0].mxu0
    %v2890 = vadd.f32 %v2777, %v2889
    %v2891 = vpop.f32.mrb[0].mxu0
    %v2892 = vadd.f32 %v2779, %v2891
    %v2893 = vpop.f32.mrb[0].mxu0
    %v2894 = vadd.f32 %v2781, %v2893
    %2895 = vmatprep.mubr.bf16.mxu0 0
    %2896 = vmatmul.mubr.bf16.gmra.mrb[0].mxu0 %v1352
    %v2897 = vpop.f32.mrb[0].mxu0
    %v2898 = vadd.f32 %v2785, %v2897
    %v2899 = vpop.f32.mrb[0].mxu0
    %v2900 = vadd.f32 %v2787, %v2899
    %v2901 = vpop.f32.mrb[0].mxu0
    %v2902 = vadd.f32 %v2789, %v2901
    %v2903 = vpop.f32.mrb[0].mxu0
    %v2904 = vadd.f32 %v2791, %v2903
    %2905 = vmatprep.mubr.bf16.mxu0 0
    %2906 = vmatmul.mubr.bf16.gmra.mrb[0].mxu0 %v1355
    %v2907 = vpop.f32.mrb[0].mxu0
    %v2908 = vadd.f32 %v2795, %v2907
    %v2909 = vpop.f32.mrb[0].mxu0
    %v2910 = vadd.f32 %v2797, %v2909
    %v2911 = vpop.f32.mrb[0].mxu0
    %v2912 = vadd.f32 %v2799, %v2911
    %v2913 = vpop.f32.mrb[0].mxu0
    %v2914 = vadd.f32 %v2801, %v2913
    %2915 = vmatprep.mubr.bf16.mxu0 0
    %2916 = vmatmul.mubr.bf16.gmra.mrb[0].mxu0 %v1358
    %v2917 = vpop.f32.mrb[0].mxu0
    %v2918 = vadd.f32 %v2805, %v2917
    %v2919 = vpop.f32.mrb[0].mxu0
    %v2920 = vadd.f32 %v2807, %v2919
    %v2921 = vpop.f32.mrb[0].mxu0
    %v2922 = vadd.f32 %v2809, %v2921
    %v2923 = vpop.f32.mrb[0].mxu0
    %v2924 = vadd.f32 %v2811, %v2923
    %2925 = vmatprep.mubr.bf16.mxu0 0
    %2926 = vmatmul.mubr.bf16.gmra.mrb[0].mxu0 %v1361
    %v2927 = vpop.f32.mrb[0].mxu0
    %v2928 = vadd.f32 %v2815, %v2927
    %v2929 = vpop.f32.mrb[0].mxu0
    %v2930 = vadd.f32 %v2817, %v2929
    %v2931 = vpop.f32.mrb[0].mxu0
    %v2932 = vadd.f32 %v2819, %v2931
    %v2933 = vpop.f32.mrb[0].mxu0
    %v2934 = vadd.f32 %v2821, %v2933
    %2935 = vdwg.mxu0
    %v2936 = vmul.f32 %v2634, 0.5
    %v2937 = vmul.f32 %v2858, 0.5
    %v2938 = vmul.f32 %v2860, 0.5
    %v2939 = vmul.f32 %v2638, 0.5
    %v2940 = vmul.f32 %v2862, 0.5
    %v2941 = vmul.f32 %v2864, 0.5
    %v2942 = vmul.f32 %v2644, 0.5
    %v2943 = vmul.f32 %v2868, 0.5
    %v2944 = vmul.f32 %v2870, 0.5
    %v2945 = vmul.f32 %v2648, 0.5
    %v2946 = vmul.f32 %v2872, 0.5
    %v2947 = vmul.f32 %v2874, 0.5
    %v2948 = vmul.f32 %v2654, 0.5
    %v2949 = vmul.f32 %v2878, 0.5
    %v2950 = vmul.f32 %v2880, 0.5
    %v2951 = vmul.f32 %v2658, 0.5
    %v2952 = vmul.f32 %v2882, 0.5
    %v2953 = vmul.f32 %v2884, 0.5
    %v2954 = vmul.f32 %v2664, 0.5
    %v2955 = vmul.f32 %v2888, 0.5
    %v2956 = vmul.f32 %v2890, 0.5
    %v2957 = vmul.f32 %v2668, 0.5
    %v2958 = vmul.f32 %v2892, 0.5
    %v2959 = vmul.f32 %v2894, 0.5
    %v2960 = vmul.f32 %v2674, 0.5
    %v2961 = vmul.f32 %v2898, 0.5
    %v2962 = vmul.f32 %v2900, 0.5
    %v2963 = vmul.f32 %v2678, 0.5
    %v2964 = vmul.f32 %v2902, 0.5
    %v2965 = vmul.f32 %v2904, 0.5
    %v2966 = vmul.f32 %v2684, 0.5
    %v2967 = vmul.f32 %v2908, 0.5
    %v2968 = vmul.f32 %v2910, 0.5
    %v2969 = vmul.f32 %v2688, 0.5
    %v2970 = vmul.f32 %v2912, 0.5
    %v2971 = vmul.f32 %v2914, 0.5
    %v2972 = vmul.f32 %v2694, 0.5
    %v2973 = vmul.f32 %v2918, 0.5
    %v2974 = vmul.f32 %v2920, 0.5
    %v2975 = vmul.f32 %v2698, 0.5
    %v2976 = vmul.f32 %v2922, 0.5
    %v2977 = vmul.f32 %v2924, 0.5
    %v2978 = vmul.f32 %v2704, 0.5
    %v2979 = vmul.f32 %v2928, 0.5
    %v2980 = vmul.f32 %v2930, 0.5
    %v2981 = vmul.f32 %v2708, 0.5
    %v2982 = vmul.f32 %v2932, 0.5
    %v2983 = vmul.f32 %v2934, 0.5
    %v2984 = vtanh.pop %v2936
    %v2985 = vtanh.pop %v2937
    %v2986 = vtanh.pop %v2938
    %v2987 = vtanh.pop %v2939
    %v2988 = vtanh.pop %v2940
    %v2989 = vtanh.pop %v2941
    %v2990 = vtanh.pop %v2942
    %v2991 = vtanh.pop %v2943
    %v2992 = vtanh.pop %v2944
    %v2993 = vtanh.pop %v2945
    %v2994 = vtanh.pop %v2946
    %v2995 = vtanh.pop %v2947
    %v2996 = vtanh.pop %v2948
    %v2997 = vtanh.pop %v2949
    %v2998 = vtanh.pop %v2950
    %v2999 = vtanh.pop %v2951
    %v3000 = vtanh.pop %v2952
    %v3001 = vtanh.pop %v2953
    %v3002 = vtanh.pop %v2954
    %v3003 = vtanh.pop %v2955
    %v3004 = vtanh.pop %v2956
    %v3005 = vtanh.pop %v2957
    %v3006 = vtanh.pop %v2958
    %v3007 = vtanh.pop %v2959
    %v3008 = vtanh.pop %v2960
    %v3009 = vtanh.pop %v2961
    %v3010 = vtanh.pop %v2962
    %v3011 = vtanh.pop %v2963
    %v3012 = vtanh.pop %v2964
    %v3013 = vtanh.pop %v2965
    %v3014 = vtanh.pop %v2966
    %v3015 = vtanh.pop %v2967
    %v3016 = vtanh.pop %v2968
    %v3017 = vtanh.pop %v2969
    %v3018 = vtanh.pop %v2970
    %v3019 = vtanh.pop %v2971
    %v3020 = vtanh.pop %v2972
    %v3021 = vtanh.pop %v2973
    %v3022 = vtanh.pop %v2974
    %v3023 = vtanh.pop %v2975
    %v3024 = vtanh.pop %v2976
    %v3025 = vtanh.pop %v2977
    %v3026 = vtanh.pop %v2978
    %v3027 = vtanh.pop %v2979
    %v3028 = vtanh.pop %v2980
    %v3029 = vtanh.pop %v2981
    %v3030 = vtanh.pop %v2982
    %v3031 = vtanh.pop %v2983
    %v3032 = vmul.f32 %v2984, 0.5
    %v3033 = vmul.f32 %v2985, 0.5
    %v3034 = vmul.f32 %v2986, 0.5
    %v3035 = vmul.f32 %v2987, 0.5
    %v3036 = vmul.f32 %v2988, 0.5
    %v3037 = vmul.f32 %v2989, 0.5
    %v3038 = vmul.f32 %v2990, 0.5
    %v3039 = vmul.f32 %v2991, 0.5
    %v3040 = vmul.f32 %v2992, 0.5
    %v3041 = vmul.f32 %v2993, 0.5
    %v3042 = vmul.f32 %v2994, 0.5
    %v3043 = vmul.f32 %v2995, 0.5
    %v3044 = vmul.f32 %v2996, 0.5
    %v3045 = vmul.f32 %v2997, 0.5
    %v3046 = vmul.f32 %v2998, 0.5
    %v3047 = vmul.f32 %v2999, 0.5
    %v3048 = vmul.f32 %v3000, 0.5
    %v3049 = vmul.f32 %v3001, 0.5
    %v3050 = vmul.f32 %v3002, 0.5
    %v3051 = vmul.f32 %v3003, 0.5
    %v3052 = vmul.f32 %v3004, 0.5
    %v3053 = vmul.f32 %v3005, 0.5
    %v3054 = vmul.f32 %v3006, 0.5
    %v3055 = vmul.f32 %v3007, 0.5
    %v3056 = vmul.f32 %v3008, 0.5
    %v3057 = vmul.f32 %v3009, 0.5
    %v3058 = vmul.f32 %v3010, 0.5
    %v3059 = vmul.f32 %v3011, 0.5
    %v3060 = vmul.f32 %v3012, 0.5
    %v3061 = vmul.f32 %v3013, 0.5
    %v3062 = vmul.f32 %v3014, 0.5
    %v3063 = vmul.f32 %v3015, 0.5
    %v3064 = vmul.f32 %v3016, 0.5
    %v3065 = vmul.f32 %v3017, 0.5
    %v3066 = vmul.f32 %v3018, 0.5
    %v3067 = vmul.f32 %v3019, 0.5
    %v3068 = vmul.f32 %v3020, 0.5
    %v3069 = vmul.f32 %v3021, 0.5
    %v3070 = vmul.f32 %v3022, 0.5
    %v3071 = vmul.f32 %v3023, 0.5
    %v3072 = vmul.f32 %v3024, 0.5
    %v3073 = vmul.f32 %v3025, 0.5
    %v3074 = vmul.f32 %v3026, 0.5
    %v3075 = vmul.f32 %v3027, 0.5
    %v3076 = vmul.f32 %v3028, 0.5
    %v3077 = vmul.f32 %v3029, 0.5
    %v3078 = vmul.f32 %v3030, 0.5
    %v3079 = vmul.f32 %v3031, 0.5
    %v3080 = vadd.f32 %v3032, 0.5
    %v3081 = vadd.f32 %v3033, 0.5
    %v3082 = vadd.f32 %v3034, 0.5
    %v3083 = vadd.f32 %v3035, 0.5
    %v3084 = vadd.f32 %v3036, 0.5
    %v3085 = vadd.f32 %v3037, 0.5
    %v3086 = vadd.f32 %v3038, 0.5
    %v3087 = vadd.f32 %v3039, 0.5
    %v3088 = vadd.f32 %v3040, 0.5
    %v3089 = vadd.f32 %v3041, 0.5
    %v3090 = vadd.f32 %v3042, 0.5
    %v3091 = vadd.f32 %v3043, 0.5
    %v3092 = vadd.f32 %v3044, 0.5
    %v3093 = vadd.f32 %v3045, 0.5
    %v3094 = vadd.f32 %v3046, 0.5
    %v3095 = vadd.f32 %v3047, 0.5
    %v3096 = vadd.f32 %v3048, 0.5
    %v3097 = vadd.f32 %v3049, 0.5
    %v3098 = vadd.f32 %v3050, 0.5
    %v3099 = vadd.f32 %v3051, 0.5
    %v3100 = vadd.f32 %v3052, 0.5
    %v3101 = vadd.f32 %v3053, 0.5
    %v3102 = vadd.f32 %v3054, 0.5
    %v3103 = vadd.f32 %v3055, 0.5
    %v3104 = vadd.f32 %v3056, 0.5
    %v3105 = vadd.f32 %v3057, 0.5
    %v3106 = vadd.f32 %v3058, 0.5
    %v3107 = vadd.f32 %v3059, 0.5
    %v3108 = vadd.f32 %v3060, 0.5
    %v3109 = vadd.f32 %v3061, 0.5
    %v3110 = vadd.f32 %v3062, 0.5
    %v3111 = vadd.f32 %v3063, 0.5
    %v3112 = vadd.f32 %v3064, 0.5
    %v3113 = vadd.f32 %v3065, 0.5
    %v3114 = vadd.f32 %v3066, 0.5
    %v3115 = vadd.f32 %v3067, 0.5
    %v3116 = vadd.f32 %v3068, 0.5
    %v3117 = vadd.f32 %v3069, 0.5
    %v3118 = vadd.f32 %v3070, 0.5
    %v3119 = vadd.f32 %v3071, 0.5
    %v3120 = vadd.f32 %v3072, 0.5
    %v3121 = vadd.f32 %v3073, 0.5
    %v3122 = vadd.f32 %v3074, 0.5
    %v3123 = vadd.f32 %v3075, 0.5
    %v3124 = vadd.f32 %v3076, 0.5
    %v3125 = vadd.f32 %v3077, 0.5
    %v3126 = vadd.f32 %v3078, 0.5
    %v3127 = vadd.f32 %v3079, 0.5
    %v3128 = vmul.f32 %v2406, %v3080
    %v3129 = vmul.f32 %v2408, %v3081
    %v3130 = vmul.f32 %v2632, %v3082
    %v3131 = vmul.f32 %v2410, %v3083
    %v3132 = vmul.f32 %v2412, %v3084
    %v3133 = vmul.f32 %v2636, %v3085
    %v3134 = vmul.f32 %v2416, %v3086
    %v3135 = vmul.f32 %v2418, %v3087
    %v3136 = vmul.f32 %v2642, %v3088
    %v3137 = vmul.f32 %v2420, %v3089
    %v3138 = vmul.f32 %v2422, %v3090
    %v3139 = vmul.f32 %v2646, %v3091
    %v3140 = vmul.f32 %v2426, %v3092
    %v3141 = vmul.f32 %v2428, %v3093
    %v3142 = vmul.f32 %v2652, %v3094
    %v3143 = vmul.f32 %v2430, %v3095
    %v3144 = vmul.f32 %v2432, %v3096
    %v3145 = vmul.f32 %v2656, %v3097
    %v3146 = vmul.f32 %v2436, %v3098
    %v3147 = vmul.f32 %v2438, %v3099
    %v3148 = vmul.f32 %v2662, %v3100
    %v3149 = vmul.f32 %v2440, %v3101
    %v3150 = vmul.f32 %v2442, %v3102
    %v3151 = vmul.f32 %v2666, %v3103
    %v3152 = vmul.f32 %v2446, %v3104
    %v3153 = vmul.f32 %v2448, %v3105
    %v3154 = vmul.f32 %v2672, %v3106
    %v3155 = vmul.f32 %v2450, %v3107
    %v3156 = vmul.f32 %v2452, %v3108
    %v3157 = vmul.f32 %v2676, %v3109
    %v3158 = vmul.f32 %v2456, %v3110
    %v3159 = vmul.f32 %v2458, %v3111
    %v3160 = vmul.f32 %v2682, %v3112
    %v3161 = vmul.f32 %v2460, %v3113
    %v3162 = vmul.f32 %v2462, %v3114
    %v3163 = vmul.f32 %v2686, %v3115
    %v3164 = vmul.f32 %v2466, %v3116
    %v3165 = vmul.f32 %v2468, %v3117
    %v3166 = vmul.f32 %v2692, %v3118
    %v3167 = vmul.f32 %v2470, %v3119
    %v3168 = vmul.f32 %v2472, %v3120
    %v3169 = vmul.f32 %v2696, %v3121
    %v3170 = vmul.f32 %v2476, %v3122
    %v3171 = vmul.f32 %v2478, %v3123
    %v3172 = vmul.f32 %v2702, %v3124
    %v3173 = vmul.f32 %v2480, %v3125
    %v3174 = vmul.f32 %v2482, %v3126
    %v3175 = vmul.f32 %v2706, %v3127
    %v3176 = vpack.c.bf16 %v3131, %v3128
    %v3177 = vpack.c.bf16 %v3132, %v3129
    %v3178 = vpack.c.bf16 %v3133, %v3130
    %v3179 = vpack.c.bf16 %v3137, %v3134
    %v3180 = vpack.c.bf16 %v3138, %v3135
    %v3181 = vpack.c.bf16 %v3139, %v3136
    %v3182 = vpack.c.bf16 %v3143, %v3140
    %v3183 = vpack.c.bf16 %v3144, %v3141
    %v3184 = vpack.c.bf16 %v3145, %v3142
    %v3185 = vpack.c.bf16 %v3149, %v3146
    %v3186 = vpack.c.bf16 %v3150, %v3147
    %v3187 = vpack.c.bf16 %v3151, %v3148
    %v3188 = vpack.c.bf16 %v3155, %v3152
    %v3189 = vpack.c.bf16 %v3156, %v3153
    %v3190 = vpack.c.bf16 %v3157, %v3154
    %v3191 = vpack.c.bf16 %v3161, %v3158
    %v3192 = vpack.c.bf16 %v3162, %v3159
    %v3193 = vpack.c.bf16 %v3163, %v3160
    %v3194 = vpack.c.bf16 %v3167, %v3164
    %v3195 = vpack.c.bf16 %v3168, %v3165
    %v3196 = vpack.c.bf16 %v3169, %v3166
    %v3197 = vpack.c.bf16 %v3173, %v3170
    %v3198 = vpack.c.bf16 %v3174, %v3171
    %v3199 = vpack.c.bf16 %v3175, %v3172
    %v3200 = vld [vmem:[%s4] sm:$0xff]
    %v3201 = vld [vmem:[%s4 + $0x8] sm:$0xff]
    %v3202 = vld [vmem:[%s4 + $0x10] sm:$0xff]
    %v3203 = vld [vmem:[%s4 + $0x18] sm:$0xff]
    %v3204 = vld [vmem:[%s4 + $0x20] sm:$0xff]
    %v3205 = vld [vmem:[%s4 + $0x28] sm:$0xff]
    %v3206 = vld [vmem:[%s4 + $0x30] sm:$0xff]
    %v3207 = vld [vmem:[%s4 + $0x38] sm:$0xff]
    %v3208 = vld [vmem:[%s4 + $0x40] sm:$0xff]
    %v3209 = vld [vmem:[%s4 + $0x48] sm:$0xff]
    %v3210 = vld [vmem:[%s4 + $0x50] sm:$0xff]
    %v3211 = vld [vmem:[%s4 + $0x58] sm:$0xff]
    %v3212 = vld [vmem:[%s4 + $0x60] sm:$0xff]
    %v3213 = vld [vmem:[%s4 + $0x68] sm:$0xff]
    %v3214 = vld [vmem:[%s4 + $0x70] sm:$0xff]
    %v3215 = vld [vmem:[%s4 + $0x78] sm:$0xff]
    %v3216 = vld [vmem:[%s4 + $0x80] sm:$0xff]
    %v3217 = vld [vmem:[%s4 + $0x88] sm:$0xff]
    %v3218 = vld [vmem:[%s4 + $0x90] sm:$0xff]
    %v3219 = vld [vmem:[%s4 + $0x98] sm:$0xff]
    %v3220 = vld [vmem:[%s4 + $0xa0] sm:$0xff]
    %v3221 = vld [vmem:[%s4 + $0xa8] sm:$0xff]
    %v3222 = vld [vmem:[%s4 + $0xb0] sm:$0xff]
    %v3223 = vld [vmem:[%s4 + $0xb8] sm:$0xff]
    %v3224 = vld [vmem:[%s4 + $0xc0] sm:$0xff]
    %v3225 = vld [vmem:[%s4 + $0xc8] sm:$0xff]
    %v3226 = vld [vmem:[%s4 + $0xd0] sm:$0xff]
    %v3227 = vld [vmem:[%s4 + $0xd8] sm:$0xff]
    %v3228 = vld [vmem:[%s4 + $0xe0] sm:$0xff]
    %v3229 = vld [vmem:[%s4 + $0xe8] sm:$0xff]
    %v3230 = vld [vmem:[%s4 + $0xf0] sm:$0xff]
    %v3231 = vld [vmem:[%s4 + $0xf8] sm:$0xff]
    %v3232 = vld [vmem:[%s4 + $0x100] sm:$0xff]
    %v3233 = vld [vmem:[%s4 + $0x108] sm:$0xff]
    %v3234 = vld [vmem:[%s4 + $0x110] sm:$0xff]
    %v3235 = vld [vmem:[%s4 + $0x118] sm:$0xff]
    %v3236 = vld [vmem:[%s4 + $0x120] sm:$0xff]
    %v3237 = vld [vmem:[%s4 + $0x128] sm:$0xff]
    %v3238 = vld [vmem:[%s4 + $0x130] sm:$0xff]
    %v3239 = vld [vmem:[%s4 + $0x138] sm:$0xff]
    %v3240 = vld [vmem:[%s4 + $0x140] sm:$0xff]
    %v3241 = vld [vmem:[%s4 + $0x148] sm:$0xff]
    %v3242 = vld [vmem:[%s4 + $0x150] sm:$0xff]
    %v3243 = vld [vmem:[%s4 + $0x158] sm:$0xff]
    %v3244 = vld [vmem:[%s4 + $0x160] sm:$0xff]
    %v3245 = vld [vmem:[%s4 + $0x168] sm:$0xff]
    %v3246 = vld [vmem:[%s4 + $0x170] sm:$0xff]
    %v3247 = vld [vmem:[%s4 + $0x178] sm:$0xff]
    %v3248 = vld [vmem:[%s8 + $0xc] sm:$0x3]
    %v3250 = vlaneseq
    %v3251 = vshrl.u32 %v3250, 7
    %v3252 = vsub.s32 0, %v3251
    %v3253 = vrot.slane %v3248, %v3252
    %v3254 = vlaneseq
    %v3255 = vshrl.u32 %v3254, 7
    %v3256 = vsub.s32 1, %v3255
    %v3257 = vrot.slane %v3248, %v3256
    %v3308 = vunpack.c.l.b16 %v3200
    %v3309 = vunpack.c.h.b16 %v3200
    %v3310 = vunpack.c.l.b16 %v3201
    %v3311 = vunpack.c.h.b16 %v3201
    %v3312 = vunpack.c.l.b16 %v3202
    %v3313 = vunpack.c.h.b16 %v3202
    %v3314 = vunpack.c.l.b16 %v3203
    %v3315 = vunpack.c.h.b16 %v3203
    %v3316 = vunpack.c.l.b16 %v3204
    %v3317 = vunpack.c.h.b16 %v3204
    %v3318 = vunpack.c.l.b16 %v3205
    %v3319 = vunpack.c.h.b16 %v3205
    %v3320 = vunpack.c.l.b16 %v3206
    %v3321 = vunpack.c.h.b16 %v3206
    %v3322 = vunpack.c.l.b16 %v3207
    %v3323 = vunpack.c.h.b16 %v3207
    %v3324 = vunpack.c.l.b16 %v3208
    %v3325 = vunpack.c.h.b16 %v3208
    %v3326 = vunpack.c.l.b16 %v3209
    %v3327 = vunpack.c.h.b16 %v3209
    %v3328 = vunpack.c.l.b16 %v3210
    %v3329 = vunpack.c.h.b16 %v3210
    %v3330 = vunpack.c.l.b16 %v3211
    %v3331 = vunpack.c.h.b16 %v3211
    %v3332 = vunpack.c.l.b16 %v3212
    %v3333 = vunpack.c.h.b16 %v3212
    %v3334 = vunpack.c.l.b16 %v3213
    %v3335 = vunpack.c.h.b16 %v3213
    %v3336 = vunpack.c.l.b16 %v3214
    %v3337 = vunpack.c.h.b16 %v3214
    %v3338 = vunpack.c.l.b16 %v3215
    %v3339 = vunpack.c.h.b16 %v3215
    %v3340 = vunpack.c.l.b16 %v3216
    %v3341 = vunpack.c.h.b16 %v3216
    %v3342 = vunpack.c.l.b16 %v3217
    %v3343 = vunpack.c.h.b16 %v3217
    %v3344 = vunpack.c.l.b16 %v3218
    %v3345 = vunpack.c.h.b16 %v3218
    %v3346 = vunpack.c.l.b16 %v3219
    %v3347 = vunpack.c.h.b16 %v3219
    %v3348 = vunpack.c.l.b16 %v3220
    %v3349 = vunpack.c.h.b16 %v3220
    %v3350 = vunpack.c.l.b16 %v3221
    %v3351 = vunpack.c.h.b16 %v3221
    %v3352 = vunpack.c.l.b16 %v3222
    %v3353 = vunpack.c.h.b16 %v3222
    %v3354 = vunpack.c.l.b16 %v3223
    %v3355 = vunpack.c.h.b16 %v3223
    %v3356 = vunpack.c.l.b16 %v3224
    %v3357 = vunpack.c.h.b16 %v3224
    %v3358 = vunpack.c.l.b16 %v3225
    %v3359 = vunpack.c.h.b16 %v3225
    %v3360 = vunpack.c.l.b16 %v3226
    %v3361 = vunpack.c.h.b16 %v3226
    %v3362 = vunpack.c.l.b16 %v3227
    %v3363 = vunpack.c.h.b16 %v3227
    %v3364 = vunpack.c.l.b16 %v3228
    %v3365 = vunpack.c.h.b16 %v3228
    %v3366 = vunpack.c.l.b16 %v3229
    %v3367 = vunpack.c.h.b16 %v3229
    %v3368 = vunpack.c.l.b16 %v3230
    %v3369 = vunpack.c.h.b16 %v3230
    %v3370 = vunpack.c.l.b16 %v3231
    %v3371 = vunpack.c.h.b16 %v3231
    %v3372 = vunpack.c.l.b16 %v3232
    %v3373 = vunpack.c.h.b16 %v3232
    %v3374 = vunpack.c.l.b16 %v3233
    %v3375 = vunpack.c.h.b16 %v3233
    %v3376 = vunpack.c.l.b16 %v3234
    %v3377 = vunpack.c.h.b16 %v3234
    %v3378 = vunpack.c.l.b16 %v3235
    %v3379 = vunpack.c.h.b16 %v3235
    %v3380 = vunpack.c.l.b16 %v3236
    %v3381 = vunpack.c.h.b16 %v3236
    %v3382 = vunpack.c.l.b16 %v3237
    %v3383 = vunpack.c.h.b16 %v3237
    %v3384 = vunpack.c.l.b16 %v3238
    %v3385 = vunpack.c.h.b16 %v3238
    %v3386 = vunpack.c.l.b16 %v3239
    %v3387 = vunpack.c.h.b16 %v3239
    %v3388 = vunpack.c.l.b16 %v3240
    %v3389 = vunpack.c.h.b16 %v3240
    %v3390 = vunpack.c.l.b16 %v3241
    %v3391 = vunpack.c.h.b16 %v3241
    %v3392 = vunpack.c.l.b16 %v3242
    %v3393 = vunpack.c.h.b16 %v3242
    %v3394 = vunpack.c.l.b16 %v3243
    %v3395 = vunpack.c.h.b16 %v3243
    %v3396 = vunpack.c.l.b16 %v3244
    %v3397 = vunpack.c.h.b16 %v3244
    %v3398 = vunpack.c.l.b16 %v3245
    %v3399 = vunpack.c.h.b16 %v3245
    %v3400 = vunpack.c.l.b16 %v3246
    %v3401 = vunpack.c.h.b16 %v3246
    %v3402 = vunpack.c.l.b16 %v3247
    %v3403 = vunpack.c.h.b16 %v3247
    %v3404 = vpack.c.b16 %v3310, %v3308
    %v3405 = vpack.c.b16 %v3311, %v3309
    %v3406 = vpack.c.b16 %v3314, %v3312
    %v3407 = vpack.c.b16 %v3315, %v3313
    %v3408 = vpack.c.b16 %v3318, %v3316
    %v3409 = vpack.c.b16 %v3319, %v3317
    %v3410 = vpack.c.b16 %v3322, %v3320
    %v3411 = vpack.c.b16 %v3323, %v3321
    %v3412 = vpack.c.b16 %v3326, %v3324
    %v3413 = vpack.c.b16 %v3327, %v3325
    %v3414 = vpack.c.b16 %v3330, %v3328
    %v3415 = vpack.c.b16 %v3331, %v3329
    %v3416 = vpack.c.b16 %v3334, %v3332
    %v3417 = vpack.c.b16 %v3335, %v3333
    %v3418 = vpack.c.b16 %v3338, %v3336
    %v3419 = vpack.c.b16 %v3339, %v3337
    %v3420 = vpack.c.b16 %v3342, %v3340
    %v3421 = vpack.c.b16 %v3343, %v3341
    %v3422 = vpack.c.b16 %v3346, %v3344
    %v3423 = vpack.c.b16 %v3347, %v3345
    %v3424 = vpack.c.b16 %v3350, %v3348
    %v3425 = vpack.c.b16 %v3351, %v3349
    %v3426 = vpack.c.b16 %v3354, %v3352
    %v3427 = vpack.c.b16 %v3355, %v3353
    %v3428 = vpack.c.b16 %v3358, %v3356
    %v3429 = vpack.c.b16 %v3359, %v3357
    %v3430 = vpack.c.b16 %v3362, %v3360
    %v3431 = vpack.c.b16 %v3363, %v3361
    %v3432 = vpack.c.b16 %v3366, %v3364
    %v3433 = vpack.c.b16 %v3367, %v3365
    %v3434 = vpack.c.b16 %v3370, %v3368
    %v3435 = vpack.c.b16 %v3371, %v3369
    %v3436 = vpack.c.b16 %v3374, %v3372
    %v3437 = vpack.c.b16 %v3375, %v3373
    %v3438 = vpack.c.b16 %v3378, %v3376
    %v3439 = vpack.c.b16 %v3379, %v3377
    %v3440 = vpack.c.b16 %v3382, %v3380
    %v3441 = vpack.c.b16 %v3383, %v3381
    %v3442 = vpack.c.b16 %v3386, %v3384
    %v3443 = vpack.c.b16 %v3387, %v3385
    %v3444 = vpack.c.b16 %v3390, %v3388
    %v3445 = vpack.c.b16 %v3391, %v3389
    %v3446 = vpack.c.b16 %v3394, %v3392
    %v3447 = vpack.c.b16 %v3395, %v3393
    %v3448 = vpack.c.b16 %v3398, %v3396
    %v3449 = vpack.c.b16 %v3399, %v3397
    %v3450 = vpack.c.b16 %v3402, %v3400
    %v3451 = vpack.c.b16 %v3403, %v3401
    %3500 = vmatprep.subr.bf16.mxu0 %v3405
    %3501 = vmatpush1.bf16.msra.mxu0 %v3404
    %3502 = vmatprep.subr.bf16.mxu0 %v3407
    %3503 = vmatpush1.bf16.msra.mxu0 %v3406
    %3504 = vmatprep.subr.bf16.mxu0 %v3409
    %3505 = vmatpush1.bf16.msra.mxu0 %v3408
    %3506 = vmatprep.subr.bf16.mxu0 %v3411
    %3507 = vmatpush1.bf16.msra.mxu0 %v3410
    %3508 = vmatprep.subr.bf16.mxu0 %v3413
    %3509 = vmatpush1.bf16.msra.mxu0 %v3412
    %3510 = vmatprep.subr.bf16.mxu0 %v3415
    %3511 = vmatpush1.bf16.msra.mxu0 %v3414
    %3512 = vmatprep.subr.bf16.mxu0 %v3417
    %3513 = vmatpush1.bf16.msra.mxu0 %v3416
    %3514 = vmatprep.subr.bf16.mxu0 %v3419
    %3515 = vmatpush1.bf16.msra.mxu0 %v3418
    %3516 = vmatprep.subr.bf16.mxu0 %v3421
    %3517 = vmatpush1.bf16.msra.mxu0 %v3420
    %3518 = vmatprep.subr.bf16.mxu0 %v3423
    %3519 = vmatpush1.bf16.msra.mxu0 %v3422
    %3520 = vmatprep.subr.bf16.mxu0 %v3425
    %3521 = vmatpush1.bf16.msra.mxu0 %v3424
    %3522 = vmatprep.subr.bf16.mxu0 %v3427
    %3523 = vmatpush1.bf16.msra.mxu0 %v3426
    %3524 = vmatprep.subr.bf16.mxu0 %v3429
    %3525 = vmatpush1.bf16.msra.mxu0 %v3428
    %3526 = vmatprep.subr.bf16.mxu0 %v3431
    %3527 = vmatpush1.bf16.msra.mxu0 %v3430
    %3528 = vmatprep.subr.bf16.mxu0 %v3433
    %3529 = vmatpush1.bf16.msra.mxu0 %v3432
    %3530 = vmatprep.subr.bf16.mxu0 %v3435
    %3531 = vmatpush1.bf16.msra.mxu0 %v3434
    %3532 = vmatprep.mubr.bf16.mxu0 %v3177
    %3533 = vmatmul.mubr.bf16.gmra.mrb[0].mxu0 %v3176
    %v3534 = vpop.f32.mrb[0].mxu0
    %v3535 = vadd.f32 %v3253, %v3534
    %v3536 = vpop.f32.mrb[0].mxu0
    %v3537 = vadd.f32 %v3257, %v3536
    %v3538 = vpop.f32.mrb[0].mxu0
    %v3539 = vadd.f32 %v3253, %v3538
    %v3540 = vpop.f32.mrb[0].mxu0
    %v3541 = vadd.f32 %v3257, %v3540
    %3542 = vmatprep.mubr.bf16.mxu0 %v3180
    %3543 = vmatmul.mubr.bf16.gmra.mrb[0].mxu0 %v3179
    %v3544 = vpop.f32.mrb[0].mxu0
    %v3545 = vadd.f32 %v3253, %v3544
    %v3546 = vpop.f32.mrb[0].mxu0
    %v3547 = vadd.f32 %v3257, %v3546
    %v3548 = vpop.f32.mrb[0].mxu0
    %v3549 = vadd.f32 %v3253, %v3548
    %v3550 = vpop.f32.mrb[0].mxu0
    %v3551 = vadd.f32 %v3257, %v3550
    %3552 = vmatprep.mubr.bf16.mxu0 %v3183
    %3553 = vmatmul.mubr.bf16.gmra.mrb[0].mxu0 %v3182
    %v3554 = vpop.f32.mrb[0].mxu0
    %v3555 = vadd.f32 %v3253, %v3554
    %v3556 = vpop.f32.mrb[0].mxu0
    %v3557 = vadd.f32 %v3257, %v3556
    %v3558 = vpop.f32.mrb[0].mxu0
    %v3559 = vadd.f32 %v3253, %v3558
    %v3560 = vpop.f32.mrb[0].mxu0
    %v3561 = vadd.f32 %v3257, %v3560
    %3562 = vmatprep.mubr.bf16.mxu0 %v3186
    %3563 = vmatmul.mubr.bf16.gmra.mrb[0].mxu0 %v3185
    %v3564 = vpop.f32.mrb[0].mxu0
    %v3565 = vadd.f32 %v3253, %v3564
    %v3566 = vpop.f32.mrb[0].mxu0
    %v3567 = vadd.f32 %v3257, %v3566
    %v3568 = vpop.f32.mrb[0].mxu0
    %v3569 = vadd.f32 %v3253, %v3568
    %v3570 = vpop.f32.mrb[0].mxu0
    %v3571 = vadd.f32 %v3257, %v3570
    %3572 = vmatprep.mubr.bf16.mxu0 %v3189
    %3573 = vmatmul.mubr.bf16.gmra.mrb[0].mxu0 %v3188
    %v3574 = vpop.f32.mrb[0].mxu0
    %v3575 = vadd.f32 %v3253, %v3574
    %v3576 = vpop.f32.mrb[0].mxu0
    %v3577 = vadd.f32 %v3257, %v3576
    %v3578 = vpop.f32.mrb[0].mxu0
    %v3579 = vadd.f32 %v3253, %v3578
    %v3580 = vpop.f32.mrb[0].mxu0
    %v3581 = vadd.f32 %v3257, %v3580
    %3582 = vmatprep.mubr.bf16.mxu0 %v3192
    %3583 = vmatmul.mubr.bf16.gmra.mrb[0].mxu0 %v3191
    %v3584 = vpop.f32.mrb[0].mxu0
    %v3585 = vadd.f32 %v3253, %v3584
    %v3586 = vpop.f32.mrb[0].mxu0
    %v3587 = vadd.f32 %v3257, %v3586
    %v3588 = vpop.f32.mrb[0].mxu0
    %v3589 = vadd.f32 %v3253, %v3588
    %v3590 = vpop.f32.mrb[0].mxu0
    %v3591 = vadd.f32 %v3257, %v3590
    %3592 = vmatprep.mubr.bf16.mxu0 %v3195
    %3593 = vmatmul.mubr.bf16.gmra.mrb[0].mxu0 %v3194
    %v3594 = vpop.f32.mrb[0].mxu0
    %v3595 = vadd.f32 %v3253, %v3594
    %v3596 = vpop.f32.mrb[0].mxu0
    %v3597 = vadd.f32 %v3257, %v3596
    %v3598 = vpop.f32.mrb[0].mxu0
    %v3599 = vadd.f32 %v3253, %v3598
    %v3600 = vpop.f32.mrb[0].mxu0
    %v3601 = vadd.f32 %v3257, %v3600
    %3602 = vmatprep.mubr.bf16.mxu0 %v3198
    %3603 = vmatmul.mubr.bf16.gmra.mrb[0].mxu0 %v3197
    %v3604 = vpop.f32.mrb[0].mxu0
    %v3605 = vadd.f32 %v3253, %v3604
    %v3606 = vpop.f32.mrb[0].mxu0
    %v3607 = vadd.f32 %v3257, %v3606
    %v3608 = vpop.f32.mrb[0].mxu0
    %v3609 = vadd.f32 %v3253, %v3608
    %v3610 = vpop.f32.mrb[0].mxu0
    %v3611 = vadd.f32 %v3257, %v3610
    %3612 = vdwg.mxu0
    %3613 = vmatprep.subr.bf16.mxu0 %v3437
    %3614 = vmatpush1.bf16.msra.mxu0 %v3436
    %3615 = vmatprep.subr.bf16.mxu0 %v3439
    %3616 = vmatpush1.bf16.msra.mxu0 %v3438
    %3617 = vmatprep.subr.bf16.mxu0 %v3441
    %3618 = vmatpush1.bf16.msra.mxu0 %v3440
    %3619 = vmatprep.subr.bf16.mxu0 %v3443
    %3620 = vmatpush1.bf16.msra.mxu0 %v3442
    %3621 = vmatprep.subr.bf16.mxu0 %v3445
    %3622 = vmatpush1.bf16.msra.mxu0 %v3444
    %3623 = vmatprep.subr.bf16.mxu0 %v3447
    %3624 = vmatpush1.bf16.msra.mxu0 %v3446
    %3625 = vmatprep.subr.bf16.mxu0 %v3449
    %3626 = vmatpush1.bf16.msra.mxu0 %v3448
    %3627 = vmatprep.subr.bf16.mxu0 %v3451
    %3628 = vmatpush1.bf16.msra.mxu0 %v3450
    %3629 = vmatprep.subr.bf16.mxu0 0
    %3630 = vmatpush1.bf16.msra.mxu0 0
    %3631 = vmatprep.subr.bf16.mxu0 0
    %3632 = vmatpush1.bf16.msra.mxu0 0
    %3633 = vmatprep.subr.bf16.mxu0 0
    %3634 = vmatpush1.bf16.msra.mxu0 0
    %3635 = vmatprep.subr.bf16.mxu0 0
    %3636 = vmatpush1.bf16.msra.mxu0 0
    %3637 = vmatprep.subr.bf16.mxu0 0
    %3638 = vmatpush1.bf16.msra.mxu0 0
    %3639 = vmatprep.subr.bf16.mxu0 0
    %3640 = vmatpush1.bf16.msra.mxu0 0
    %3641 = vmatprep.subr.bf16.mxu0 0
    %3642 = vmatpush1.bf16.msra.mxu0 0
    %3643 = vmatprep.subr.bf16.mxu0 0
    %3644 = vmatpush1.bf16.msra.mxu0 0
    %3645 = vmatprep.mubr.bf16.mxu0 0
    %3646 = vmatmul.mubr.bf16.gmra.mrb[0].mxu0 %v3178
    %v3647 = vpop.f32.mrb[0].mxu0
    %v3648 = vadd.f32 %v3535, %v3647
    %v3649 = vpop.f32.mrb[0].mxu0
    %v3650 = vadd.f32 %v3537, %v3649
    %v3651 = vpop.f32.mrb[0].mxu0
    %v3652 = vadd.f32 %v3539, %v3651
    %v3653 = vpop.f32.mrb[0].mxu0
    %v3654 = vadd.f32 %v3541, %v3653
    %3655 = vmatprep.mubr.bf16.mxu0 0
    %3656 = vmatmul.mubr.bf16.gmra.mrb[0].mxu0 %v3181
    %v3657 = vpop.f32.mrb[0].mxu0
    %v3658 = vadd.f32 %v3545, %v3657
    %v3659 = vpop.f32.mrb[0].mxu0
    %v3660 = vadd.f32 %v3547, %v3659
    %v3661 = vpop.f32.mrb[0].mxu0
    %v3662 = vadd.f32 %v3549, %v3661
    %v3663 = vpop.f32.mrb[0].mxu0
    %v3664 = vadd.f32 %v3551, %v3663
    %3665 = vmatprep.mubr.bf16.mxu0 0
    %3666 = vmatmul.mubr.bf16.gmra.mrb[0].mxu0 %v3184
    %v3667 = vpop.f32.mrb[0].mxu0
    %v3668 = vadd.f32 %v3555, %v3667
    %v3669 = vpop.f32.mrb[0].mxu0
    %v3670 = vadd.f32 %v3557, %v3669
    %v3671 = vpop.f32.mrb[0].mxu0
    %v3672 = vadd.f32 %v3559, %v3671
    %v3673 = vpop.f32.mrb[0].mxu0
    %v3674 = vadd.f32 %v3561, %v3673
    %3675 = vmatprep.mubr.bf16.mxu0 0
    %3676 = vmatmul.mubr.bf16.gmra.mrb[0].mxu0 %v3187
    %v3677 = vpop.f32.mrb[0].mxu0
    %v3678 = vadd.f32 %v3565, %v3677
    %v3679 = vpop.f32.mrb[0].mxu0
    %v3680 = vadd.f32 %v3567, %v3679
    %v3681 = vpop.f32.mrb[0].mxu0
    %v3682 = vadd.f32 %v3569, %v3681
    %v3683 = vpop.f32.mrb[0].mxu0
    %v3684 = vadd.f32 %v3571, %v3683
    %3685 = vmatprep.mubr.bf16.mxu0 0
    %3686 = vmatmul.mubr.bf16.gmra.mrb[0].mxu0 %v3190
    %v3687 = vpop.f32.mrb[0].mxu0
    %v3688 = vadd.f32 %v3575, %v3687
    %v3689 = vpop.f32.mrb[0].mxu0
    %v3690 = vadd.f32 %v3577, %v3689
    %v3691 = vpop.f32.mrb[0].mxu0
    %v3692 = vadd.f32 %v3579, %v3691
    %v3693 = vpop.f32.mrb[0].mxu0
    %v3694 = vadd.f32 %v3581, %v3693
    %3695 = vmatprep.mubr.bf16.mxu0 0
    %3696 = vmatmul.mubr.bf16.gmra.mrb[0].mxu0 %v3193
    %v3697 = vpop.f32.mrb[0].mxu0
    %v3698 = vadd.f32 %v3585, %v3697
    %v3699 = vpop.f32.mrb[0].mxu0
    %v3700 = vadd.f32 %v3587, %v3699
    %v3701 = vpop.f32.mrb[0].mxu0
    %v3702 = vadd.f32 %v3589, %v3701
    %v3703 = vpop.f32.mrb[0].mxu0
    %v3704 = vadd.f32 %v3591, %v3703
    %3705 = vmatprep.mubr.bf16.mxu0 0
    %3706 = vmatmul.mubr.bf16.gmra.mrb[0].mxu0 %v3196
    %v3707 = vpop.f32.mrb[0].mxu0
    %v3708 = vadd.f32 %v3595, %v3707
    %v3709 = vpop.f32.mrb[0].mxu0
    %v3710 = vadd.f32 %v3597, %v3709
    %v3711 = vpop.f32.mrb[0].mxu0
    %v3712 = vadd.f32 %v3599, %v3711
    %v3713 = vpop.f32.mrb[0].mxu0
    %v3714 = vadd.f32 %v3601, %v3713
    %3715 = vmatprep.mubr.bf16.mxu0 0
    %3716 = vmatmul.mubr.bf16.gmra.mrb[0].mxu0 %v3199
    %v3717 = vpop.f32.mrb[0].mxu0
    %v3718 = vadd.f32 %v3605, %v3717
    %v3719 = vpop.f32.mrb[0].mxu0
    %v3720 = vadd.f32 %v3607, %v3719
    %v3721 = vpop.f32.mrb[0].mxu0
    %v3722 = vadd.f32 %v3609, %v3721
    %v3723 = vpop.f32.mrb[0].mxu0
    %v3724 = vadd.f32 %v3611, %v3723
    %3725 = vdwg.mxu0
    %v3726 = vmax.f32 %v3650, -6.0
    %v3727 = vmax.f32 %v3654, -6.0
    %v3728 = vmax.f32 %v3660, -6.0
    %v3729 = vmax.f32 %v3664, -6.0
    %v3730 = vmax.f32 %v3670, -6.0
    %v3731 = vmax.f32 %v3674, -6.0
    %v3732 = vmax.f32 %v3680, -6.0
    %v3733 = vmax.f32 %v3684, -6.0
    %v3734 = vmax.f32 %v3690, -6.0
    %v3735 = vmax.f32 %v3694, -6.0
    %v3736 = vmax.f32 %v3700, -6.0
    %v3737 = vmax.f32 %v3704, -6.0
    %v3738 = vmax.f32 %v3710, -6.0
    %v3739 = vmax.f32 %v3714, -6.0
    %v3740 = vmax.f32 %v3720, -6.0
    %v3741 = vmax.f32 %v3724, -6.0
    %v3742 = vmin.f32 %v3726, 2.0
    %v3743 = vmin.f32 %v3727, 2.0
    %v3744 = vmin.f32 %v3728, 2.0
    %v3745 = vmin.f32 %v3729, 2.0
    %v3746 = vmin.f32 %v3730, 2.0
    %v3747 = vmin.f32 %v3731, 2.0
    %v3748 = vmin.f32 %v3732, 2.0
    %v3749 = vmin.f32 %v3733, 2.0
    %v3750 = vmin.f32 %v3734, 2.0
    %v3751 = vmin.f32 %v3735, 2.0
    %v3752 = vmin.f32 %v3736, 2.0
    %v3753 = vmin.f32 %v3737, 2.0
    %v3754 = vmin.f32 %v3738, 2.0
    %v3755 = vmin.f32 %v3739, 2.0
    %v3756 = vmin.f32 %v3740, 2.0
    %v3757 = vmin.f32 %v3741, 2.0
    %v3758 = vmul.f32 %v3742, 0.5
    %v3759 = vmul.f32 %v3743, 0.5
    %v3760 = vmul.f32 %v3744, 0.5
    %v3761 = vmul.f32 %v3745, 0.5
    %v3762 = vmul.f32 %v3746, 0.5
    %v3763 = vmul.f32 %v3747, 0.5
    %v3764 = vmul.f32 %v3748, 0.5
    %v3765 = vmul.f32 %v3749, 0.5
    %v3766 = vmul.f32 %v3750, 0.5
    %v3767 = vmul.f32 %v3751, 0.5
    %v3768 = vmul.f32 %v3752, 0.5
    %v3769 = vmul.f32 %v3753, 0.5
    %v3770 = vmul.f32 %v3754, 0.5
    %v3771 = vmul.f32 %v3755, 0.5
    %v3772 = vmul.f32 %v3756, 0.5
    %v3773 = vmul.f32 %v3757, 0.5
    %v3774 = vmul.f32 %v3758, 1.442695
    %v3775 = vpow.pop %v3774
    %v3776 = vmul.f32 %v3759, 1.442695
    %v3777 = vpow.pop %v3776
    %v3778 = vmul.f32 %v3760, 1.442695
    %v3779 = vpow.pop %v3778
    %v3780 = vmul.f32 %v3761, 1.442695
    %v3781 = vpow.pop %v3780
    %v3782 = vmul.f32 %v3762, 1.442695
    %v3783 = vpow.pop %v3782
    %v3784 = vmul.f32 %v3763, 1.442695
    %v3785 = vpow.pop %v3784
    %v3786 = vmul.f32 %v3764, 1.442695
    %v3787 = vpow.pop %v3786
    %v3788 = vmul.f32 %v3765, 1.442695
    %v3789 = vpow.pop %v3788
    %v3790 = vmul.f32 %v3766, 1.442695
    %v3791 = vpow.pop %v3790
    %v3792 = vmul.f32 %v3767, 1.442695
    %v3793 = vpow.pop %v3792
    %v3794 = vmul.f32 %v3768, 1.442695
    %v3795 = vpow.pop %v3794
    %v3796 = vmul.f32 %v3769, 1.442695
    %v3797 = vpow.pop %v3796
    %v3798 = vmul.f32 %v3770, 1.442695
    %v3799 = vpow.pop %v3798
    %v3800 = vmul.f32 %v3771, 1.442695
    %v3801 = vpow.pop %v3800
    %v3802 = vmul.f32 %v3772, 1.442695
    %v3803 = vpow.pop %v3802
    %v3804 = vmul.f32 %v3773, 1.442695
    %v3805 = vpow.pop %v3804
    %v3806 = vld [vmem:[%s1] sm:$0xff]
    %v3807 = vld [vmem:[%s1 + $0x8] sm:$0xff]
    %v3808 = vld [vmem:[%s1 + $0x10] sm:$0xff]
    %v3809 = vld [vmem:[%s1 + $0x18] sm:$0xff]
    %v3810 = vld [vmem:[%s1 + $0x20] sm:$0xff]
    %v3811 = vld [vmem:[%s1 + $0x28] sm:$0xff]
    %v3812 = vld [vmem:[%s1 + $0x30] sm:$0xff]
    %v3813 = vld [vmem:[%s1 + $0x38] sm:$0xff]
    %v3814 = vld [vmem:[%s1 + $0x40] sm:$0xff]
    %v3815 = vld [vmem:[%s1 + $0x48] sm:$0xff]
    %v3816 = vld [vmem:[%s1 + $0x50] sm:$0xff]
    %v3817 = vld [vmem:[%s1 + $0x58] sm:$0xff]
    %v3818 = vld [vmem:[%s1 + $0x60] sm:$0xff]
    %v3819 = vld [vmem:[%s1 + $0x68] sm:$0xff]
    %v3820 = vld [vmem:[%s1 + $0x70] sm:$0xff]
    %v3821 = vld [vmem:[%s1 + $0x78] sm:$0xff]
    %v3822 = vmul.f32 %v3806, %v3775
    %v3823 = vmul.f32 %v3807, %v3777
    %v3824 = vmul.f32 %v3808, %v3779
    %v3825 = vmul.f32 %v3809, %v3781
    %v3826 = vmul.f32 %v3810, %v3783
    %v3827 = vmul.f32 %v3811, %v3785
    %v3828 = vmul.f32 %v3812, %v3787
    %v3829 = vmul.f32 %v3813, %v3789
    %v3830 = vmul.f32 %v3814, %v3791
    %v3831 = vmul.f32 %v3815, %v3793
    %v3832 = vmul.f32 %v3816, %v3795
    %v3833 = vmul.f32 %v3817, %v3797
    %v3834 = vmul.f32 %v3818, %v3799
    %v3835 = vmul.f32 %v3819, %v3801
    %v3836 = vmul.f32 %v3820, %v3803
    %v3837 = vmul.f32 %v3821, %v3805
    %v3838 = vadd.f32 %v3822, %v3648
    %v3839 = vadd.f32 %v3823, %v3652
    %v3840 = vadd.f32 %v3824, %v3658
    %v3841 = vadd.f32 %v3825, %v3662
    %v3842 = vadd.f32 %v3826, %v3668
    %v3843 = vadd.f32 %v3827, %v3672
    %v3844 = vadd.f32 %v3828, %v3678
    %v3845 = vadd.f32 %v3829, %v3682
    %v3846 = vadd.f32 %v3830, %v3688
    %v3847 = vadd.f32 %v3831, %v3692
    %v3848 = vadd.f32 %v3832, %v3698
    %v3849 = vadd.f32 %v3833, %v3702
    %v3850 = vadd.f32 %v3834, %v3708
    %v3851 = vadd.f32 %v3835, %v3712
    %v3852 = vadd.f32 %v3836, %v3718
    %v3853 = vadd.f32 %v3837, %v3722
    %v3854 = vpack.c.bf16 %v3839, %v3838
    %v3855 = vpack.c.bf16 %v3841, %v3840
    %v3856 = vpack.c.bf16 %v3843, %v3842
    %v3857 = vpack.c.bf16 %v3845, %v3844
    %v3858 = vpack.c.bf16 %v3847, %v3846
    %v3859 = vpack.c.bf16 %v3849, %v3848
    %v3860 = vpack.c.bf16 %v3851, %v3850
    %v3861 = vpack.c.bf16 %v3853, %v3852
    %v3862 = vld [vmem:[#allocation6] sm:$0xff]
    %v3863 = vld [vmem:[#allocation6 + $0x8] sm:$0xff]
    %v3864 = vld [vmem:[#allocation6 + $0x10] sm:$0xff]
    %v3865 = vld [vmem:[#allocation6 + $0x18] sm:$0xff]
    %v3866 = vld [vmem:[#allocation6 + $0x20] sm:$0xff]
    %v3867 = vld [vmem:[#allocation6 + $0x28] sm:$0xff]
    %v3868 = vld [vmem:[#allocation6 + $0x30] sm:$0xff]
    %v3869 = vld [vmem:[#allocation6 + $0x38] sm:$0xff]
    %v3870 = vld [vmem:[#allocation6 + $0x40] sm:$0xff]
    %v3871 = vld [vmem:[#allocation6 + $0x48] sm:$0xff]
    %v3872 = vld [vmem:[#allocation6 + $0x50] sm:$0xff]
    %v3873 = vld [vmem:[#allocation6 + $0x58] sm:$0xff]
    %v3874 = vld [vmem:[#allocation6 + $0x60] sm:$0xff]
    %v3875 = vld [vmem:[#allocation6 + $0x68] sm:$0xff]
    %v3876 = vld [vmem:[#allocation6 + $0x70] sm:$0xff]
    %v3877 = vld [vmem:[#allocation6 + $0x78] sm:$0xff]
    %v3878 = vld [vmem:[#allocation6 + $0x80] sm:$0xff]
    %v3879 = vld [vmem:[#allocation6 + $0x88] sm:$0xff]
    %v3880 = vld [vmem:[#allocation6 + $0x90] sm:$0xff]
    %v3881 = vld [vmem:[#allocation6 + $0x98] sm:$0xff]
    %v3882 = vld [vmem:[#allocation6 + $0xa0] sm:$0xff]
    %v3883 = vld [vmem:[#allocation6 + $0xa8] sm:$0xff]
    %v3884 = vld [vmem:[#allocation6 + $0xb0] sm:$0xff]
    %v3885 = vld [vmem:[#allocation6 + $0xb8] sm:$0xff]
    %v3886 = vld [vmem:[#allocation6 + $0xc0] sm:$0xff]
    %v3887 = vld [vmem:[#allocation6 + $0xc8] sm:$0xff]
    %v3888 = vld [vmem:[#allocation6 + $0xd0] sm:$0xff]
    %v3889 = vld [vmem:[#allocation6 + $0xd8] sm:$0xff]
    %v3890 = vld [vmem:[#allocation6 + $0xe0] sm:$0xff]
    %v3891 = vld [vmem:[#allocation6 + $0xe8] sm:$0xff]
    %v3892 = vld [vmem:[#allocation6 + $0xf0] sm:$0xff]
    %v3893 = vld [vmem:[#allocation6 + $0xf8] sm:$0xff]
    %v3894 = vld [vmem:[#allocation6 + $0x100] sm:$0xff]
    %v3895 = vld [vmem:[#allocation6 + $0x108] sm:$0xff]
    %v3896 = vld [vmem:[#allocation6 + $0x110] sm:$0xff]
    %v3897 = vld [vmem:[#allocation6 + $0x118] sm:$0xff]
    %v3898 = vld [vmem:[#allocation6 + $0x120] sm:$0xff]
    %v3899 = vld [vmem:[#allocation6 + $0x128] sm:$0xff]
    %v3900 = vld [vmem:[#allocation6 + $0x130] sm:$0xff]
    %v3901 = vld [vmem:[#allocation6 + $0x138] sm:$0xff]
    %v3902 = vld [vmem:[#allocation6 + $0x140] sm:$0xff]
    %v3903 = vld [vmem:[#allocation6 + $0x148] sm:$0xff]
    %v3904 = vld [vmem:[#allocation6 + $0x150] sm:$0xff]
    %v3905 = vld [vmem:[#allocation6 + $0x158] sm:$0xff]
    %v3906 = vld [vmem:[#allocation6 + $0x160] sm:$0xff]
    %v3907 = vld [vmem:[#allocation6 + $0x168] sm:$0xff]
    %v3908 = vld [vmem:[#allocation6 + $0x170] sm:$0xff]
    %v3909 = vld [vmem:[#allocation6 + $0x178] sm:$0xff]
    %v3910 = vld [vmem:[%s8 + $0xe] sm:$0x3f]
    %v3912 = vlaneseq
    %v3913 = vshrl.u32 %v3912, 7
    %v3914 = vsub.s32 0, %v3913
    %v3915 = vrot.slane %v3910, %v3914
    %v3916 = vlaneseq
    %v3917 = vshrl.u32 %v3916, 7
    %v3918 = vsub.s32 1, %v3917
    %v3919 = vrot.slane %v3910, %v3918
    %v3920 = vlaneseq
    %v3921 = vshrl.u32 %v3920, 7
    %v3922 = vsub.s32 2, %v3921
    %v3923 = vrot.slane %v3910, %v3922
    %v3924 = vlaneseq
    %v3925 = vshrl.u32 %v3924, 7
    %v3926 = vsub.s32 3, %v3925
    %v3927 = vrot.slane %v3910, %v3926
    %v3928 = vlaneseq
    %v3929 = vshrl.u32 %v3928, 7
    %v3930 = vsub.s32 4, %v3929
    %v3931 = vrot.slane %v3910, %v3930
    %v3932 = vlaneseq
    %v3933 = vshrl.u32 %v3932, 7
    %v3934 = vsub.s32 5, %v3933
    %v3935 = vrot.slane %v3910, %v3934
    %v3990 = vunpack.c.l.b16 %v3862
    %v3991 = vunpack.c.h.b16 %v3862
    %v3992 = vunpack.c.l.b16 %v3863
    %v3993 = vunpack.c.h.b16 %v3863
    %v3994 = vunpack.c.l.b16 %v3864
    %v3995 = vunpack.c.h.b16 %v3864
    %v3996 = vunpack.c.l.b16 %v3865
    %v3997 = vunpack.c.h.b16 %v3865
    %v3998 = vunpack.c.l.b16 %v3866
    %v3999 = vunpack.c.h.b16 %v3866
    %v4000 = vunpack.c.l.b16 %v3867
    %v4001 = vunpack.c.h.b16 %v3867
    %v4002 = vunpack.c.l.b16 %v3868
    %v4003 = vunpack.c.h.b16 %v3868
    %v4004 = vunpack.c.l.b16 %v3869
    %v4005 = vunpack.c.h.b16 %v3869
    %v4006 = vunpack.c.l.b16 %v3870
    %v4007 = vunpack.c.h.b16 %v3870
    %v4008 = vunpack.c.l.b16 %v3871
    %v4009 = vunpack.c.h.b16 %v3871
    %v4010 = vunpack.c.l.b16 %v3872
    %v4011 = vunpack.c.h.b16 %v3872
    %v4012 = vunpack.c.l.b16 %v3873
    %v4013 = vunpack.c.h.b16 %v3873
    %v4014 = vunpack.c.l.b16 %v3874
    %v4015 = vunpack.c.h.b16 %v3874
    %v4016 = vunpack.c.l.b16 %v3875
    %v4017 = vunpack.c.h.b16 %v3875
    %v4018 = vunpack.c.l.b16 %v3876
    %v4019 = vunpack.c.h.b16 %v3876
    %v4020 = vunpack.c.l.b16 %v3877
    %v4021 = vunpack.c.h.b16 %v3877
    %v4022 = vunpack.c.l.b16 %v3878
    %v4023 = vunpack.c.h.b16 %v3878
    %v4024 = vunpack.c.l.b16 %v3879
    %v4025 = vunpack.c.h.b16 %v3879
    %v4026 = vunpack.c.l.b16 %v3880
    %v4027 = vunpack.c.h.b16 %v3880
    %v4028 = vunpack.c.l.b16 %v3881
    %v4029 = vunpack.c.h.b16 %v3881
    %v4030 = vunpack.c.l.b16 %v3882
    %v4031 = vunpack.c.h.b16 %v3882
    %v4032 = vunpack.c.l.b16 %v3883
    %v4033 = vunpack.c.h.b16 %v3883
    %v4034 = vunpack.c.l.b16 %v3884
    %v4035 = vunpack.c.h.b16 %v3884
    %v4036 = vunpack.c.l.b16 %v3885
    %v4037 = vunpack.c.h.b16 %v3885
    %v4038 = vunpack.c.l.b16 %v3886
    %v4039 = vunpack.c.h.b16 %v3886
    %v4040 = vunpack.c.l.b16 %v3887
    %v4041 = vunpack.c.h.b16 %v3887
    %v4042 = vunpack.c.l.b16 %v3888
    %v4043 = vunpack.c.h.b16 %v3888
    %v4044 = vunpack.c.l.b16 %v3889
    %v4045 = vunpack.c.h.b16 %v3889
    %v4046 = vunpack.c.l.b16 %v3890
    %v4047 = vunpack.c.h.b16 %v3890
    %v4048 = vunpack.c.l.b16 %v3891
    %v4049 = vunpack.c.h.b16 %v3891
    %v4050 = vunpack.c.l.b16 %v3892
    %v4051 = vunpack.c.h.b16 %v3892
    %v4052 = vunpack.c.l.b16 %v3893
    %v4053 = vunpack.c.h.b16 %v3893
    %v4054 = vunpack.c.l.b16 %v3894
    %v4055 = vunpack.c.h.b16 %v3894
    %v4056 = vunpack.c.l.b16 %v3895
    %v4057 = vunpack.c.h.b16 %v3895
    %v4058 = vunpack.c.l.b16 %v3896
    %v4059 = vunpack.c.h.b16 %v3896
    %v4060 = vunpack.c.l.b16 %v3897
    %v4061 = vunpack.c.h.b16 %v3897
    %v4062 = vunpack.c.l.b16 %v3898
    %v4063 = vunpack.c.h.b16 %v3898
    %v4064 = vunpack.c.l.b16 %v3899
    %v4065 = vunpack.c.h.b16 %v3899
    %v4066 = vunpack.c.l.b16 %v3900
    %v4067 = vunpack.c.h.b16 %v3900
    %v4068 = vunpack.c.l.b16 %v3901
    %v4069 = vunpack.c.h.b16 %v3901
    %v4070 = vunpack.c.l.b16 %v3902
    %v4071 = vunpack.c.h.b16 %v3902
    %v4072 = vunpack.c.l.b16 %v3903
    %v4073 = vunpack.c.h.b16 %v3903
    %v4074 = vunpack.c.l.b16 %v3904
    %v4075 = vunpack.c.h.b16 %v3904
    %v4076 = vunpack.c.l.b16 %v3905
    %v4077 = vunpack.c.h.b16 %v3905
    %v4078 = vunpack.c.l.b16 %v3906
    %v4079 = vunpack.c.h.b16 %v3906
    %v4080 = vunpack.c.l.b16 %v3907
    %v4081 = vunpack.c.h.b16 %v3907
    %v4082 = vunpack.c.l.b16 %v3908
    %v4083 = vunpack.c.h.b16 %v3908
    %v4084 = vunpack.c.l.b16 %v3909
    %v4085 = vunpack.c.h.b16 %v3909
    %v4086 = vpack.c.b16 %v3996, %v3990
    %v4087 = vpack.c.b16 %v3997, %v3991
    %v4088 = vpack.c.b16 %v3998, %v3992
    %v4089 = vpack.c.b16 %v3999, %v3993
    %v4090 = vpack.c.b16 %v4000, %v3994
    %v4091 = vpack.c.b16 %v4001, %v3995
    %v4092 = vpack.c.b16 %v4008, %v4002
    %v4093 = vpack.c.b16 %v4009, %v4003
    %v4094 = vpack.c.b16 %v4010, %v4004
    %v4095 = vpack.c.b16 %v4011, %v4005
    %v4096 = vpack.c.b16 %v4012, %v4006
    %v4097 = vpack.c.b16 %v4013, %v4007
    %v4098 = vpack.c.b16 %v4020, %v4014
    %v4099 = vpack.c.b16 %v4021, %v4015
    %v4100 = vpack.c.b16 %v4022, %v4016
    %v4101 = vpack.c.b16 %v4023, %v4017
    %v4102 = vpack.c.b16 %v4024, %v4018
    %v4103 = vpack.c.b16 %v4025, %v4019
    %v4104 = vpack.c.b16 %v4032, %v4026
    %v4105 = vpack.c.b16 %v4033, %v4027
    %v4106 = vpack.c.b16 %v4034, %v4028
    %v4107 = vpack.c.b16 %v4035, %v4029
    %v4108 = vpack.c.b16 %v4036, %v4030
    %v4109 = vpack.c.b16 %v4037, %v4031
    %v4110 = vpack.c.b16 %v4044, %v4038
    %v4111 = vpack.c.b16 %v4045, %v4039
    %v4112 = vpack.c.b16 %v4046, %v4040
    %v4113 = vpack.c.b16 %v4047, %v4041
    %v4114 = vpack.c.b16 %v4048, %v4042
    %v4115 = vpack.c.b16 %v4049, %v4043
    %v4116 = vpack.c.b16 %v4056, %v4050
    %v4117 = vpack.c.b16 %v4057, %v4051
    %v4118 = vpack.c.b16 %v4058, %v4052
    %v4119 = vpack.c.b16 %v4059, %v4053
    %v4120 = vpack.c.b16 %v4060, %v4054
    %v4121 = vpack.c.b16 %v4061, %v4055
    %v4122 = vpack.c.b16 %v4068, %v4062
    %v4123 = vpack.c.b16 %v4069, %v4063
    %v4124 = vpack.c.b16 %v4070, %v4064
    %v4125 = vpack.c.b16 %v4071, %v4065
    %v4126 = vpack.c.b16 %v4072, %v4066
    %v4127 = vpack.c.b16 %v4073, %v4067
    %v4128 = vpack.c.b16 %v4080, %v4074
    %v4129 = vpack.c.b16 %v4081, %v4075
    %v4130 = vpack.c.b16 %v4082, %v4076
    %v4131 = vpack.c.b16 %v4083, %v4077
    %v4132 = vpack.c.b16 %v4084, %v4078
    %v4133 = vpack.c.b16 %v4085, %v4079
    %4182 = vmatprep.subr.bf16.mxu0 %v4087
    %4183 = vmatpush1.bf16.msra.mxu0 %v4086
    %4184 = vmatprep.subr.bf16.mxu0 %v4093
    %4185 = vmatpush1.bf16.msra.mxu0 %v4092
    %4186 = vmatprep.subr.bf16.mxu0 %v4099
    %4187 = vmatpush1.bf16.msra.mxu0 %v4098
    %4188 = vmatprep.subr.bf16.mxu0 %v4105
    %4189 = vmatpush1.bf16.msra.mxu0 %v4104
    %4190 = vmatprep.subr.bf16.mxu0 %v4111
    %4191 = vmatpush1.bf16.msra.mxu0 %v4110
    %4192 = vmatprep.subr.bf16.mxu0 %v4117
    %4193 = vmatpush1.bf16.msra.mxu0 %v4116
    %4194 = vmatprep.subr.bf16.mxu0 %v4123
    %4195 = vmatpush1.bf16.msra.mxu0 %v4122
    %4196 = vmatprep.subr.bf16.mxu0 %v4129
    %4197 = vmatpush1.bf16.msra.mxu0 %v4128
    %4198 = vmatprep.subr.bf16.mxu0 0
    %4199 = vmatpush1.bf16.msra.mxu0 0
    %4200 = vmatprep.subr.bf16.mxu0 0
    %4201 = vmatpush1.bf16.msra.mxu0 0
    %4202 = vmatprep.subr.bf16.mxu0 0
    %4203 = vmatpush1.bf16.msra.mxu0 0
    %4204 = vmatprep.subr.bf16.mxu0 0
    %4205 = vmatpush1.bf16.msra.mxu0 0
    %4206 = vmatprep.subr.bf16.mxu0 0
    %4207 = vmatpush1.bf16.msra.mxu0 0
    %4208 = vmatprep.subr.bf16.mxu0 0
    %4209 = vmatpush1.bf16.msra.mxu0 0
    %4210 = vmatprep.subr.bf16.mxu0 0
    %4211 = vmatpush1.bf16.msra.mxu0 0
    %4212 = vmatprep.subr.bf16.mxu0 0
    %4213 = vmatpush1.bf16.msra.mxu0 0
    %4214 = vmatprep.mubr.bf16.mxu0 0
    %4215 = vmatmul.mubr.bf16.gmra.mrb[0].mxu0 %v3854
    %v4216 = vpop.f32.mrb[0].mxu0
    %v4217 = vadd.f32 %v3915, %v4216
    %v4218 = vpop.f32.mrb[0].mxu0
    %v4219 = vadd.f32 %v3919, %v4218
    %v4220 = vpop.f32.mrb[0].mxu0
    %v4221 = vadd.f32 %v3915, %v4220
    %v4222 = vpop.f32.mrb[0].mxu0
    %v4223 = vadd.f32 %v3919, %v4222
    %4224 = vmatprep.mubr.bf16.mxu0 0
    %4225 = vmatmul.mubr.bf16.gmra.mrb[0].mxu0 %v3855
    %v4226 = vpop.f32.mrb[0].mxu0
    %v4227 = vadd.f32 %v3915, %v4226
    %v4228 = vpop.f32.mrb[0].mxu0
    %v4229 = vadd.f32 %v3919, %v4228
    %v4230 = vpop.f32.mrb[0].mxu0
    %v4231 = vadd.f32 %v3915, %v4230
    %v4232 = vpop.f32.mrb[0].mxu0
    %v4233 = vadd.f32 %v3919, %v4232
    %4234 = vmatprep.mubr.bf16.mxu0 0
    %4235 = vmatmul.mubr.bf16.gmra.mrb[0].mxu0 %v3856
    %v4236 = vpop.f32.mrb[0].mxu0
    %v4237 = vadd.f32 %v3915, %v4236
    %v4238 = vpop.f32.mrb[0].mxu0
    %v4239 = vadd.f32 %v3919, %v4238
    %v4240 = vpop.f32.mrb[0].mxu0
    %v4241 = vadd.f32 %v3915, %v4240
    %v4242 = vpop.f32.mrb[0].mxu0
    %v4243 = vadd.f32 %v3919, %v4242
    %4244 = vmatprep.mubr.bf16.mxu0 0
    %4245 = vmatmul.mubr.bf16.gmra.mrb[0].mxu0 %v3857
    %v4246 = vpop.f32.mrb[0].mxu0
    %v4247 = vadd.f32 %v3915, %v4246
    %v4248 = vpop.f32.mrb[0].mxu0
    %v4249 = vadd.f32 %v3919, %v4248
    %v4250 = vpop.f32.mrb[0].mxu0
    %v4251 = vadd.f32 %v3915, %v4250
    %v4252 = vpop.f32.mrb[0].mxu0
    %v4253 = vadd.f32 %v3919, %v4252
    %4254 = vmatprep.mubr.bf16.mxu0 0
    %4255 = vmatmul.mubr.bf16.gmra.mrb[0].mxu0 %v3858
    %v4256 = vpop.f32.mrb[0].mxu0
    %v4257 = vadd.f32 %v3915, %v4256
    %v4258 = vpop.f32.mrb[0].mxu0
    %v4259 = vadd.f32 %v3919, %v4258
    %v4260 = vpop.f32.mrb[0].mxu0
    %v4261 = vadd.f32 %v3915, %v4260
    %v4262 = vpop.f32.mrb[0].mxu0
    %v4263 = vadd.f32 %v3919, %v4262
    %4264 = vmatprep.mubr.bf16.mxu0 0
    %4265 = vmatmul.mubr.bf16.gmra.mrb[0].mxu0 %v3859
    %v4266 = vpop.f32.mrb[0].mxu0
    %v4267 = vadd.f32 %v3915, %v4266
    %v4268 = vpop.f32.mrb[0].mxu0
    %v4269 = vadd.f32 %v3919, %v4268
    %v4270 = vpop.f32.mrb[0].mxu0
    %v4271 = vadd.f32 %v3915, %v4270
    %v4272 = vpop.f32.mrb[0].mxu0
    %v4273 = vadd.f32 %v3919, %v4272
    %4274 = vmatprep.mubr.bf16.mxu0 0
    %4275 = vmatmul.mubr.bf16.gmra.mrb[0].mxu0 %v3860
    %v4276 = vpop.f32.mrb[0].mxu0
    %v4277 = vadd.f32 %v3915, %v4276
    %v4278 = vpop.f32.mrb[0].mxu0
    %v4279 = vadd.f32 %v3919, %v4278
    %v4280 = vpop.f32.mrb[0].mxu0
    %v4281 = vadd.f32 %v3915, %v4280
    %v4282 = vpop.f32.mrb[0].mxu0
    %v4283 = vadd.f32 %v3919, %v4282
    %4284 = vmatprep.mubr.bf16.mxu0 0
    %4285 = vmatmul.mubr.bf16.gmra.mrb[0].mxu0 %v3861
    %v4286 = vpop.f32.mrb[0].mxu0
    %v4287 = vadd.f32 %v3915, %v4286
    %v4288 = vpop.f32.mrb[0].mxu0
    %v4289 = vadd.f32 %v3919, %v4288
    %v4290 = vpop.f32.mrb[0].mxu0
    %v4291 = vadd.f32 %v3915, %v4290
    %v4292 = vpop.f32.mrb[0].mxu0
    %v4293 = vadd.f32 %v3919, %v4292
    %4294 = vdwg.mxu0
    %4295 = vmatprep.subr.bf16.mxu0 %v4089
    %4296 = vmatpush1.bf16.msra.mxu0 %v4088
    %4297 = vmatprep.subr.bf16.mxu0 %v4095
    %4298 = vmatpush1.bf16.msra.mxu0 %v4094
    %4299 = vmatprep.subr.bf16.mxu0 %v4101
    %4300 = vmatpush1.bf16.msra.mxu0 %v4100
    %4301 = vmatprep.subr.bf16.mxu0 %v4107
    %4302 = vmatpush1.bf16.msra.mxu0 %v4106
    %4303 = vmatprep.subr.bf16.mxu0 %v4113
    %4304 = vmatpush1.bf16.msra.mxu0 %v4112
    %4305 = vmatprep.subr.bf16.mxu0 %v4119
    %4306 = vmatpush1.bf16.msra.mxu0 %v4118
    %4307 = vmatprep.subr.bf16.mxu0 %v4125
    %4308 = vmatpush1.bf16.msra.mxu0 %v4124
    %4309 = vmatprep.subr.bf16.mxu0 %v4131
    %4310 = vmatpush1.bf16.msra.mxu0 %v4130
    %4311 = vmatprep.subr.bf16.mxu0 0
    %4312 = vmatpush1.bf16.msra.mxu0 0
    %4313 = vmatprep.subr.bf16.mxu0 0
    %4314 = vmatpush1.bf16.msra.mxu0 0
    %4315 = vmatprep.subr.bf16.mxu0 0
    %4316 = vmatpush1.bf16.msra.mxu0 0
    %4317 = vmatprep.subr.bf16.mxu0 0
    %4318 = vmatpush1.bf16.msra.mxu0 0
    %4319 = vmatprep.subr.bf16.mxu0 0
    %4320 = vmatpush1.bf16.msra.mxu0 0
    %4321 = vmatprep.subr.bf16.mxu0 0
    %4322 = vmatpush1.bf16.msra.mxu0 0
    %4323 = vmatprep.subr.bf16.mxu0 0
    %4324 = vmatpush1.bf16.msra.mxu0 0
    %4325 = vmatprep.subr.bf16.mxu0 0
    %4326 = vmatpush1.bf16.msra.mxu0 0
    %4327 = vmatprep.mubr.bf16.mxu0 0
    %4328 = vmatmul.mubr.bf16.gmra.mrb[0].mxu0 %v3854
    %v4329 = vpop.f32.mrb[0].mxu0
    %v4330 = vadd.f32 %v3923, %v4329
    %v4331 = vpop.f32.mrb[0].mxu0
    %v4332 = vadd.f32 %v3927, %v4331
    %v4333 = vpop.f32.mrb[0].mxu0
    %v4334 = vadd.f32 %v3923, %v4333
    %v4335 = vpop.f32.mrb[0].mxu0
    %v4336 = vadd.f32 %v3927, %v4335
    %4337 = vmatprep.mubr.bf16.mxu0 0
    %4338 = vmatmul.mubr.bf16.gmra.mrb[0].mxu0 %v3855
    %v4339 = vpop.f32.mrb[0].mxu0
    %v4340 = vadd.f32 %v3923, %v4339
    %v4341 = vpop.f32.mrb[0].mxu0
    %v4342 = vadd.f32 %v3927, %v4341
    %v4343 = vpop.f32.mrb[0].mxu0
    %v4344 = vadd.f32 %v3923, %v4343
    %v4345 = vpop.f32.mrb[0].mxu0
    %v4346 = vadd.f32 %v3927, %v4345
    %4347 = vmatprep.mubr.bf16.mxu0 0
    %4348 = vmatmul.mubr.bf16.gmra.mrb[0].mxu0 %v3856
    %v4349 = vpop.f32.mrb[0].mxu0
    %v4350 = vadd.f32 %v3923, %v4349
    %v4351 = vpop.f32.mrb[0].mxu0
    %v4352 = vadd.f32 %v3927, %v4351
    %v4353 = vpop.f32.mrb[0].mxu0
    %v4354 = vadd.f32 %v3923, %v4353
    %v4355 = vpop.f32.mrb[0].mxu0
    %v4356 = vadd.f32 %v3927, %v4355
    %4357 = vmatprep.mubr.bf16.mxu0 0
    %4358 = vmatmul.mubr.bf16.gmra.mrb[0].mxu0 %v3857
    %v4359 = vpop.f32.mrb[0].mxu0
    %v4360 = vadd.f32 %v3923, %v4359
    %v4361 = vpop.f32.mrb[0].mxu0
    %v4362 = vadd.f32 %v3927, %v4361
    %v4363 = vpop.f32.mrb[0].mxu0
    %v4364 = vadd.f32 %v3923, %v4363
    %v4365 = vpop.f32.mrb[0].mxu0
    %v4366 = vadd.f32 %v3927, %v4365
    %4367 = vmatprep.mubr.bf16.mxu0 0
    %4368 = vmatmul.mubr.bf16.gmra.mrb[0].mxu0 %v3858
    %v4369 = vpop.f32.mrb[0].mxu0
    %v4370 = vadd.f32 %v3923, %v4369
    %v4371 = vpop.f32.mrb[0].mxu0
    %v4372 = vadd.f32 %v3927, %v4371
    %v4373 = vpop.f32.mrb[0].mxu0
    %v4374 = vadd.f32 %v3923, %v4373
    %v4375 = vpop.f32.mrb[0].mxu0
    %v4376 = vadd.f32 %v3927, %v4375
    %4377 = vmatprep.mubr.bf16.mxu0 0
    %4378 = vmatmul.mubr.bf16.gmra.mrb[0].mxu0 %v3859
    %v4379 = vpop.f32.mrb[0].mxu0
    %v4380 = vadd.f32 %v3923, %v4379
    %v4381 = vpop.f32.mrb[0].mxu0
    %v4382 = vadd.f32 %v3927, %v4381
    %v4383 = vpop.f32.mrb[0].mxu0
    %v4384 = vadd.f32 %v3923, %v4383
    %v4385 = vpop.f32.mrb[0].mxu0
    %v4386 = vadd.f32 %v3927, %v4385
    %4387 = vmatprep.mubr.bf16.mxu0 0
    %4388 = vmatmul.mubr.bf16.gmra.mrb[0].mxu0 %v3860
    %v4389 = vpop.f32.mrb[0].mxu0
    %v4390 = vadd.f32 %v3923, %v4389
    %v4391 = vpop.f32.mrb[0].mxu0
    %v4392 = vadd.f32 %v3927, %v4391
    %v4393 = vpop.f32.mrb[0].mxu0
    %v4394 = vadd.f32 %v3923, %v4393
    %v4395 = vpop.f32.mrb[0].mxu0
    %v4396 = vadd.f32 %v3927, %v4395
    %4397 = vmatprep.mubr.bf16.mxu0 0
    %4398 = vmatmul.mubr.bf16.gmra.mrb[0].mxu0 %v3861
    %v4399 = vpop.f32.mrb[0].mxu0
    %v4400 = vadd.f32 %v3923, %v4399
    %v4401 = vpop.f32.mrb[0].mxu0
    %v4402 = vadd.f32 %v3927, %v4401
    %v4403 = vpop.f32.mrb[0].mxu0
    %v4404 = vadd.f32 %v3923, %v4403
    %v4405 = vpop.f32.mrb[0].mxu0
    %v4406 = vadd.f32 %v3927, %v4405
    %4407 = vdwg.mxu0
    %4408 = vmatprep.subr.bf16.mxu0 %v4091
    %4409 = vmatpush1.bf16.msra.mxu0 %v4090
    %4410 = vmatprep.subr.bf16.mxu0 %v4097
    %4411 = vmatpush1.bf16.msra.mxu0 %v4096
    %4412 = vmatprep.subr.bf16.mxu0 %v4103
    %4413 = vmatpush1.bf16.msra.mxu0 %v4102
    %4414 = vmatprep.subr.bf16.mxu0 %v4109
    %4415 = vmatpush1.bf16.msra.mxu0 %v4108
    %4416 = vmatprep.subr.bf16.mxu0 %v4115
    %4417 = vmatpush1.bf16.msra.mxu0 %v4114
    %4418 = vmatprep.subr.bf16.mxu0 %v4121
    %4419 = vmatpush1.bf16.msra.mxu0 %v4120
    %4420 = vmatprep.subr.bf16.mxu0 %v4127
    %4421 = vmatpush1.bf16.msra.mxu0 %v4126
    %4422 = vmatprep.subr.bf16.mxu0 %v4133
    %4423 = vmatpush1.bf16.msra.mxu0 %v4132
    %4424 = vmatprep.subr.bf16.mxu0 0
    %4425 = vmatpush1.bf16.msra.mxu0 0
    %4426 = vmatprep.subr.bf16.mxu0 0
    %4427 = vmatpush1.bf16.msra.mxu0 0
    %4428 = vmatprep.subr.bf16.mxu0 0
    %4429 = vmatpush1.bf16.msra.mxu0 0
    %4430 = vmatprep.subr.bf16.mxu0 0
    %4431 = vmatpush1.bf16.msra.mxu0 0
    %4432 = vmatprep.subr.bf16.mxu0 0
    %4433 = vmatpush1.bf16.msra.mxu0 0
    %4434 = vmatprep.subr.bf16.mxu0 0
    %4435 = vmatpush1.bf16.msra.mxu0 0
    %4436 = vmatprep.subr.bf16.mxu0 0
    %4437 = vmatpush1.bf16.msra.mxu0 0
    %4438 = vmatprep.subr.bf16.mxu0 0
    %4439 = vmatpush1.bf16.msra.mxu0 0
    %4440 = vmatprep.mubr.bf16.mxu0 0
    %4441 = vmatmul.mubr.bf16.gmra.mrb[0].mxu0 %v3854
    %v4442 = vpop.f32.mrb[0].mxu0
    %v4443 = vadd.f32 %v3931, %v4442
    %v4444 = vpop.f32.mrb[0].mxu0
    %v4445 = vadd.f32 %v3935, %v4444
    %v4446 = vpop.f32.mrb[0].mxu0
    %v4447 = vadd.f32 %v3931, %v4446
    %v4448 = vpop.f32.mrb[0].mxu0
    %v4449 = vadd.f32 %v3935, %v4448
    %4450 = vmatprep.mubr.bf16.mxu0 0
    %4451 = vmatmul.mubr.bf16.gmra.mrb[0].mxu0 %v3855
    %v4452 = vpop.f32.mrb[0].mxu0
    %v4453 = vadd.f32 %v3931, %v4452
    %v4454 = vpop.f32.mrb[0].mxu0
    %v4455 = vadd.f32 %v3935, %v4454
    %v4456 = vpop.f32.mrb[0].mxu0
    %v4457 = vadd.f32 %v3931, %v4456
    %v4458 = vpop.f32.mrb[0].mxu0
    %v4459 = vadd.f32 %v3935, %v4458
    %4460 = vmatprep.mubr.bf16.mxu0 0
    %4461 = vmatmul.mubr.bf16.gmra.mrb[0].mxu0 %v3856
    %v4462 = vpop.f32.mrb[0].mxu0
    %v4463 = vadd.f32 %v3931, %v4462
    %v4464 = vpop.f32.mrb[0].mxu0
    %v4465 = vadd.f32 %v3935, %v4464
    %v4466 = vpop.f32.mrb[0].mxu0
    %v4467 = vadd.f32 %v3931, %v4466
    %v4468 = vpop.f32.mrb[0].mxu0
    %v4469 = vadd.f32 %v3935, %v4468
    %4470 = vmatprep.mubr.bf16.mxu0 0
    %4471 = vmatmul.mubr.bf16.gmra.mrb[0].mxu0 %v3857
    %v4472 = vpop.f32.mrb[0].mxu0
    %v4473 = vadd.f32 %v3931, %v4472
    %v4474 = vpop.f32.mrb[0].mxu0
    %v4475 = vadd.f32 %v3935, %v4474
    %v4476 = vpop.f32.mrb[0].mxu0
    %v4477 = vadd.f32 %v3931, %v4476
    %v4478 = vpop.f32.mrb[0].mxu0
    %v4479 = vadd.f32 %v3935, %v4478
    %4480 = vmatprep.mubr.bf16.mxu0 0
    %4481 = vmatmul.mubr.bf16.gmra.mrb[0].mxu0 %v3858
    %v4482 = vpop.f32.mrb[0].mxu0
    %v4483 = vadd.f32 %v3931, %v4482
    %v4484 = vpop.f32.mrb[0].mxu0
    %v4485 = vadd.f32 %v3935, %v4484
    %v4486 = vpop.f32.mrb[0].mxu0
    %v4487 = vadd.f32 %v3931, %v4486
    %v4488 = vpop.f32.mrb[0].mxu0
    %v4489 = vadd.f32 %v3935, %v4488
    %4490 = vmatprep.mubr.bf16.mxu0 0
    %4491 = vmatmul.mubr.bf16.gmra.mrb[0].mxu0 %v3859
    %v4492 = vpop.f32.mrb[0].mxu0
    %v4493 = vadd.f32 %v3931, %v4492
    %v4494 = vpop.f32.mrb[0].mxu0
    %v4495 = vadd.f32 %v3935, %v4494
    %v4496 = vpop.f32.mrb[0].mxu0
    %v4497 = vadd.f32 %v3931, %v4496
    %v4498 = vpop.f32.mrb[0].mxu0
    %v4499 = vadd.f32 %v3935, %v4498
    %4500 = vmatprep.mubr.bf16.mxu0 0
    %4501 = vmatmul.mubr.bf16.gmra.mrb[0].mxu0 %v3860
    %v4502 = vpop.f32.mrb[0].mxu0
    %v4503 = vadd.f32 %v3931, %v4502
    %v4504 = vpop.f32.mrb[0].mxu0
    %v4505 = vadd.f32 %v3935, %v4504
    %v4506 = vpop.f32.mrb[0].mxu0
    %v4507 = vadd.f32 %v3931, %v4506
    %v4508 = vpop.f32.mrb[0].mxu0
    %v4509 = vadd.f32 %v3935, %v4508
    %4510 = vmatprep.mubr.bf16.mxu0 0
    %4511 = vmatmul.mubr.bf16.gmra.mrb[0].mxu0 %v3861
    %v4512 = vpop.f32.mrb[0].mxu0
    %v4513 = vadd.f32 %v3931, %v4512
    %v4514 = vpop.f32.mrb[0].mxu0
    %v4515 = vadd.f32 %v3935, %v4514
    %v4516 = vpop.f32.mrb[0].mxu0
    %v4517 = vadd.f32 %v3931, %v4516
    %v4518 = vpop.f32.mrb[0].mxu0
    %v4519 = vadd.f32 %v3935, %v4518
    %4520 = vdwg.mxu0
    %v4521 = vmul.f32 %v4332, 0.5
    %v4522 = vmul.f32 %v4443, 0.5
    %v4523 = vmul.f32 %v4445, 0.5
    %v4524 = vmul.f32 %v4336, 0.5
    %v4525 = vmul.f32 %v4447, 0.5
    %v4526 = vmul.f32 %v4449, 0.5
    %v4527 = vmul.f32 %v4342, 0.5
    %v4528 = vmul.f32 %v4453, 0.5
    %v4529 = vmul.f32 %v4455, 0.5
    %v4530 = vmul.f32 %v4346, 0.5
    %v4531 = vmul.f32 %v4457, 0.5
    %v4532 = vmul.f32 %v4459, 0.5
    %v4533 = vmul.f32 %v4352, 0.5
    %v4534 = vmul.f32 %v4463, 0.5
    %v4535 = vmul.f32 %v4465, 0.5
    %v4536 = vmul.f32 %v4356, 0.5
    %v4537 = vmul.f32 %v4467, 0.5
    %v4538 = vmul.f32 %v4469, 0.5
    %v4539 = vmul.f32 %v4362, 0.5
    %v4540 = vmul.f32 %v4473, 0.5
    %v4541 = vmul.f32 %v4475, 0.5
    %v4542 = vmul.f32 %v4366, 0.5
    %v4543 = vmul.f32 %v4477, 0.5
    %v4544 = vmul.f32 %v4479, 0.5
    %v4545 = vmul.f32 %v4372, 0.5
    %v4546 = vmul.f32 %v4483, 0.5
    %v4547 = vmul.f32 %v4485, 0.5
    %v4548 = vmul.f32 %v4376, 0.5
    %v4549 = vmul.f32 %v4487, 0.5
    %v4550 = vmul.f32 %v4489, 0.5
    %v4551 = vmul.f32 %v4382, 0.5
    %v4552 = vmul.f32 %v4493, 0.5
    %v4553 = vmul.f32 %v4495, 0.5
    %v4554 = vmul.f32 %v4386, 0.5
    %v4555 = vmul.f32 %v4497, 0.5
    %v4556 = vmul.f32 %v4499, 0.5
    %v4557 = vmul.f32 %v4392, 0.5
    %v4558 = vmul.f32 %v4503, 0.5
    %v4559 = vmul.f32 %v4505, 0.5
    %v4560 = vmul.f32 %v4396, 0.5
    %v4561 = vmul.f32 %v4507, 0.5
    %v4562 = vmul.f32 %v4509, 0.5
    %v4563 = vmul.f32 %v4402, 0.5
    %v4564 = vmul.f32 %v4513, 0.5
    %v4565 = vmul.f32 %v4515, 0.5
    %v4566 = vmul.f32 %v4406, 0.5
    %v4567 = vmul.f32 %v4517, 0.5
    %v4568 = vmul.f32 %v4519, 0.5
    %v4569 = vtanh.pop %v4521
    %v4570 = vtanh.pop %v4522
    %v4571 = vtanh.pop %v4523
    %v4572 = vtanh.pop %v4524
    %v4573 = vtanh.pop %v4525
    %v4574 = vtanh.pop %v4526
    %v4575 = vtanh.pop %v4527
    %v4576 = vtanh.pop %v4528
    %v4577 = vtanh.pop %v4529
    %v4578 = vtanh.pop %v4530
    %v4579 = vtanh.pop %v4531
    %v4580 = vtanh.pop %v4532
    %v4581 = vtanh.pop %v4533
    %v4582 = vtanh.pop %v4534
    %v4583 = vtanh.pop %v4535
    %v4584 = vtanh.pop %v4536
    %v4585 = vtanh.pop %v4537
    %v4586 = vtanh.pop %v4538
    %v4587 = vtanh.pop %v4539
    %v4588 = vtanh.pop %v4540
    %v4589 = vtanh.pop %v4541
    %v4590 = vtanh.pop %v4542
    %v4591 = vtanh.pop %v4543
    %v4592 = vtanh.pop %v4544
    %v4593 = vtanh.pop %v4545
    %v4594 = vtanh.pop %v4546
    %v4595 = vtanh.pop %v4547
    %v4596 = vtanh.pop %v4548
    %v4597 = vtanh.pop %v4549
    %v4598 = vtanh.pop %v4550
    %v4599 = vtanh.pop %v4551
    %v4600 = vtanh.pop %v4552
    %v4601 = vtanh.pop %v4553
    %v4602 = vtanh.pop %v4554
    %v4603 = vtanh.pop %v4555
    %v4604 = vtanh.pop %v4556
    %v4605 = vtanh.pop %v4557
    %v4606 = vtanh.pop %v4558
    %v4607 = vtanh.pop %v4559
    %v4608 = vtanh.pop %v4560
    %v4609 = vtanh.pop %v4561
    %v4610 = vtanh.pop %v4562
    %v4611 = vtanh.pop %v4563
    %v4612 = vtanh.pop %v4564
    %v4613 = vtanh.pop %v4565
    %v4614 = vtanh.pop %v4566
    %v4615 = vtanh.pop %v4567
    %v4616 = vtanh.pop %v4568
    %v4617 = vmul.f32 %v4569, 0.5
    %v4618 = vmul.f32 %v4570, 0.5
    %v4619 = vmul.f32 %v4571, 0.5
    %v4620 = vmul.f32 %v4572, 0.5
    %v4621 = vmul.f32 %v4573, 0.5
    %v4622 = vmul.f32 %v4574, 0.5
    %v4623 = vmul.f32 %v4575, 0.5
    %v4624 = vmul.f32 %v4576, 0.5
    %v4625 = vmul.f32 %v4577, 0.5
    %v4626 = vmul.f32 %v4578, 0.5
    %v4627 = vmul.f32 %v4579, 0.5
    %v4628 = vmul.f32 %v4580, 0.5
    %v4629 = vmul.f32 %v4581, 0.5
    %v4630 = vmul.f32 %v4582, 0.5
    %v4631 = vmul.f32 %v4583, 0.5
    %v4632 = vmul.f32 %v4584, 0.5
    %v4633 = vmul.f32 %v4585, 0.5
    %v4634 = vmul.f32 %v4586, 0.5
    %v4635 = vmul.f32 %v4587, 0.5
    %v4636 = vmul.f32 %v4588, 0.5
    %v4637 = vmul.f32 %v4589, 0.5
    %v4638 = vmul.f32 %v4590, 0.5
    %v4639 = vmul.f32 %v4591, 0.5
    %v4640 = vmul.f32 %v4592, 0.5
    %v4641 = vmul.f32 %v4593, 0.5
    %v4642 = vmul.f32 %v4594, 0.5
    %v4643 = vmul.f32 %v4595, 0.5
    %v4644 = vmul.f32 %v4596, 0.5
    %v4645 = vmul.f32 %v4597, 0.5
    %v4646 = vmul.f32 %v4598, 0.5
    %v4647 = vmul.f32 %v4599, 0.5
    %v4648 = vmul.f32 %v4600, 0.5
    %v4649 = vmul.f32 %v4601, 0.5
    %v4650 = vmul.f32 %v4602, 0.5
    %v4651 = vmul.f32 %v4603, 0.5
    %v4652 = vmul.f32 %v4604, 0.5
    %v4653 = vmul.f32 %v4605, 0.5
    %v4654 = vmul.f32 %v4606, 0.5
    %v4655 = vmul.f32 %v4607, 0.5
    %v4656 = vmul.f32 %v4608, 0.5
    %v4657 = vmul.f32 %v4609, 0.5
    %v4658 = vmul.f32 %v4610, 0.5
    %v4659 = vmul.f32 %v4611, 0.5
    %v4660 = vmul.f32 %v4612, 0.5
    %v4661 = vmul.f32 %v4613, 0.5
    %v4662 = vmul.f32 %v4614, 0.5
    %v4663 = vmul.f32 %v4615, 0.5
    %v4664 = vmul.f32 %v4616, 0.5
    %v4665 = vadd.f32 %v4617, 0.5
    %v4666 = vadd.f32 %v4618, 0.5
    %v4667 = vadd.f32 %v4619, 0.5
    %v4668 = vadd.f32 %v4620, 0.5
    %v4669 = vadd.f32 %v4621, 0.5
    %v4670 = vadd.f32 %v4622, 0.5
    %v4671 = vadd.f32 %v4623, 0.5
    %v4672 = vadd.f32 %v4624, 0.5
    %v4673 = vadd.f32 %v4625, 0.5
    %v4674 = vadd.f32 %v4626, 0.5
    %v4675 = vadd.f32 %v4627, 0.5
    %v4676 = vadd.f32 %v4628, 0.5
    %v4677 = vadd.f32 %v4629, 0.5
    %v4678 = vadd.f32 %v4630, 0.5
    %v4679 = vadd.f32 %v4631, 0.5
    %v4680 = vadd.f32 %v4632, 0.5
    %v4681 = vadd.f32 %v4633, 0.5
    %v4682 = vadd.f32 %v4634, 0.5
    %v4683 = vadd.f32 %v4635, 0.5
    %v4684 = vadd.f32 %v4636, 0.5
    %v4685 = vadd.f32 %v4637, 0.5
    %v4686 = vadd.f32 %v4638, 0.5
    %v4687 = vadd.f32 %v4639, 0.5
    %v4688 = vadd.f32 %v4640, 0.5
    %v4689 = vadd.f32 %v4641, 0.5
    %v4690 = vadd.f32 %v4642, 0.5
    %v4691 = vadd.f32 %v4643, 0.5
    %v4692 = vadd.f32 %v4644, 0.5
    %v4693 = vadd.f32 %v4645, 0.5
    %v4694 = vadd.f32 %v4646, 0.5
    %v4695 = vadd.f32 %v4647, 0.5
    %v4696 = vadd.f32 %v4648, 0.5
    %v4697 = vadd.f32 %v4649, 0.5
    %v4698 = vadd.f32 %v4650, 0.5
    %v4699 = vadd.f32 %v4651, 0.5
    %v4700 = vadd.f32 %v4652, 0.5
    %v4701 = vadd.f32 %v4653, 0.5
    %v4702 = vadd.f32 %v4654, 0.5
    %v4703 = vadd.f32 %v4655, 0.5
    %v4704 = vadd.f32 %v4656, 0.5
    %v4705 = vadd.f32 %v4657, 0.5
    %v4706 = vadd.f32 %v4658, 0.5
    %v4707 = vadd.f32 %v4659, 0.5
    %v4708 = vadd.f32 %v4660, 0.5
    %v4709 = vadd.f32 %v4661, 0.5
    %v4710 = vadd.f32 %v4662, 0.5
    %v4711 = vadd.f32 %v4663, 0.5
    %v4712 = vadd.f32 %v4664, 0.5
    %v4713 = vmul.f32 %v4217, %v4665
    %v4714 = vmul.f32 %v4219, %v4666
    %v4715 = vmul.f32 %v4330, %v4667
    %v4716 = vmul.f32 %v4221, %v4668
    %v4717 = vmul.f32 %v4223, %v4669
    %v4718 = vmul.f32 %v4334, %v4670
    %v4719 = vmul.f32 %v4227, %v4671
    %v4720 = vmul.f32 %v4229, %v4672
    %v4721 = vmul.f32 %v4340, %v4673
    %v4722 = vmul.f32 %v4231, %v4674
    %v4723 = vmul.f32 %v4233, %v4675
    %v4724 = vmul.f32 %v4344, %v4676
    %v4725 = vmul.f32 %v4237, %v4677
    %v4726 = vmul.f32 %v4239, %v4678
    %v4727 = vmul.f32 %v4350, %v4679
    %v4728 = vmul.f32 %v4241, %v4680
    %v4729 = vmul.f32 %v4243, %v4681
    %v4730 = vmul.f32 %v4354, %v4682
    %v4731 = vmul.f32 %v4247, %v4683
    %v4732 = vmul.f32 %v4249, %v4684
    %v4733 = vmul.f32 %v4360, %v4685
    %v4734 = vmul.f32 %v4251, %v4686
    %v4735 = vmul.f32 %v4253, %v4687
    %v4736 = vmul.f32 %v4364, %v4688
    %v4737 = vmul.f32 %v4257, %v4689
    %v4738 = vmul.f32 %v4259, %v4690
    %v4739 = vmul.f32 %v4370, %v4691
    %v4740 = vmul.f32 %v4261, %v4692
    %v4741 = vmul.f32 %v4263, %v4693
    %v4742 = vmul.f32 %v4374, %v4694
    %v4743 = vmul.f32 %v4267, %v4695
    %v4744 = vmul.f32 %v4269, %v4696
    %v4745 = vmul.f32 %v4380, %v4697
    %v4746 = vmul.f32 %v4271, %v4698
    %v4747 = vmul.f32 %v4273, %v4699
    %v4748 = vmul.f32 %v4384, %v4700
    %v4749 = vmul.f32 %v4277, %v4701
    %v4750 = vmul.f32 %v4279, %v4702
    %v4751 = vmul.f32 %v4390, %v4703
    %v4752 = vmul.f32 %v4281, %v4704
    %v4753 = vmul.f32 %v4283, %v4705
    %v4754 = vmul.f32 %v4394, %v4706
    %v4755 = vmul.f32 %v4287, %v4707
    %v4756 = vmul.f32 %v4289, %v4708
    %v4757 = vmul.f32 %v4400, %v4709
    %v4758 = vmul.f32 %v4291, %v4710
    %v4759 = vmul.f32 %v4293, %v4711
    %v4760 = vmul.f32 %v4404, %v4712
    %v4761 = vpack.c.bf16 %v4716, %v4713
    %v4762 = vpack.c.bf16 %v4717, %v4714
    %v4763 = vpack.c.bf16 %v4718, %v4715
    %v4764 = vpack.c.bf16 %v4722, %v4719
    %v4765 = vpack.c.bf16 %v4723, %v4720
    %v4766 = vpack.c.bf16 %v4724, %v4721
    %v4767 = vpack.c.bf16 %v4728, %v4725
    %v4768 = vpack.c.bf16 %v4729, %v4726
    %v4769 = vpack.c.bf16 %v4730, %v4727
    %v4770 = vpack.c.bf16 %v4734, %v4731
    %v4771 = vpack.c.bf16 %v4735, %v4732
    %v4772 = vpack.c.bf16 %v4736, %v4733
    %v4773 = vpack.c.bf16 %v4740, %v4737
    %v4774 = vpack.c.bf16 %v4741, %v4738
    %v4775 = vpack.c.bf16 %v4742, %v4739
    %v4776 = vpack.c.bf16 %v4746, %v4743
    %v4777 = vpack.c.bf16 %v4747, %v4744
    %v4778 = vpack.c.bf16 %v4748, %v4745
    %v4779 = vpack.c.bf16 %v4752, %v4749
    %v4780 = vpack.c.bf16 %v4753, %v4750
    %v4781 = vpack.c.bf16 %v4754, %v4751
    %v4782 = vpack.c.bf16 %v4758, %v4755
    %v4783 = vpack.c.bf16 %v4759, %v4756
    %v4784 = vpack.c.bf16 %v4760, %v4757
    %v4785 = vld [vmem:[#allocation7] sm:$0xff]
    %v4786 = vld [vmem:[#allocation7 + $0x8] sm:$0xff]
    %v4787 = vld [vmem:[#allocation7 + $0x10] sm:$0xff]
    %v4788 = vld [vmem:[#allocation7 + $0x18] sm:$0xff]
    %v4789 = vld [vmem:[#allocation7 + $0x20] sm:$0xff]
    %v4790 = vld [vmem:[#allocation7 + $0x28] sm:$0xff]
    %v4791 = vld [vmem:[#allocation7 + $0x30] sm:$0xff]
    %v4792 = vld [vmem:[#allocation7 + $0x38] sm:$0xff]
    %v4793 = vld [vmem:[#allocation7 + $0x40] sm:$0xff]
    %v4794 = vld [vmem:[#allocation7 + $0x48] sm:$0xff]
    %v4795 = vld [vmem:[#allocation7 + $0x50] sm:$0xff]
    %v4796 = vld [vmem:[#allocation7 + $0x58] sm:$0xff]
    %v4797 = vld [vmem:[#allocation7 + $0x60] sm:$0xff]
    %v4798 = vld [vmem:[#allocation7 + $0x68] sm:$0xff]
    %v4799 = vld [vmem:[#allocation7 + $0x70] sm:$0xff]
    %v4800 = vld [vmem:[#allocation7 + $0x78] sm:$0xff]
    %v4801 = vld [vmem:[#allocation7 + $0x80] sm:$0xff]
    %v4802 = vld [vmem:[#allocation7 + $0x88] sm:$0xff]
    %v4803 = vld [vmem:[#allocation7 + $0x90] sm:$0xff]
    %v4804 = vld [vmem:[#allocation7 + $0x98] sm:$0xff]
    %v4805 = vld [vmem:[#allocation7 + $0xa0] sm:$0xff]
    %v4806 = vld [vmem:[#allocation7 + $0xa8] sm:$0xff]
    %v4807 = vld [vmem:[#allocation7 + $0xb0] sm:$0xff]
    %v4808 = vld [vmem:[#allocation7 + $0xb8] sm:$0xff]
    %v4809 = vld [vmem:[#allocation7 + $0xc0] sm:$0xff]
    %v4810 = vld [vmem:[#allocation7 + $0xc8] sm:$0xff]
    %v4811 = vld [vmem:[#allocation7 + $0xd0] sm:$0xff]
    %v4812 = vld [vmem:[#allocation7 + $0xd8] sm:$0xff]
    %v4813 = vld [vmem:[#allocation7 + $0xe0] sm:$0xff]
    %v4814 = vld [vmem:[#allocation7 + $0xe8] sm:$0xff]
    %v4815 = vld [vmem:[#allocation7 + $0xf0] sm:$0xff]
    %v4816 = vld [vmem:[#allocation7 + $0xf8] sm:$0xff]
    %v4817 = vld [vmem:[#allocation7 + $0x100] sm:$0xff]
    %v4818 = vld [vmem:[#allocation7 + $0x108] sm:$0xff]
    %v4819 = vld [vmem:[#allocation7 + $0x110] sm:$0xff]
    %v4820 = vld [vmem:[#allocation7 + $0x118] sm:$0xff]
    %v4821 = vld [vmem:[#allocation7 + $0x120] sm:$0xff]
    %v4822 = vld [vmem:[#allocation7 + $0x128] sm:$0xff]
    %v4823 = vld [vmem:[#allocation7 + $0x130] sm:$0xff]
    %v4824 = vld [vmem:[#allocation7 + $0x138] sm:$0xff]
    %v4825 = vld [vmem:[#allocation7 + $0x140] sm:$0xff]
    %v4826 = vld [vmem:[#allocation7 + $0x148] sm:$0xff]
    %v4827 = vld [vmem:[#allocation7 + $0x150] sm:$0xff]
    %v4828 = vld [vmem:[#allocation7 + $0x158] sm:$0xff]
    %v4829 = vld [vmem:[#allocation7 + $0x160] sm:$0xff]
    %v4830 = vld [vmem:[#allocation7 + $0x168] sm:$0xff]
    %v4831 = vld [vmem:[#allocation7 + $0x170] sm:$0xff]
    %v4832 = vld [vmem:[#allocation7 + $0x178] sm:$0xff]
    %v4833 = vld [vmem:[#allocation7 + $0x180] sm:$0xff]
    %v4834 = vld [vmem:[#allocation7 + $0x188] sm:$0xff]
    %v4835 = vld [vmem:[#allocation7 + $0x190] sm:$0xff]
    %v4836 = vld [vmem:[#allocation7 + $0x198] sm:$0xff]
    %v4837 = vld [vmem:[#allocation7 + $0x1a0] sm:$0xff]
    %v4838 = vld [vmem:[#allocation7 + $0x1a8] sm:$0xff]
    %v4839 = vld [vmem:[#allocation7 + $0x1b0] sm:$0xff]
    %v4840 = vld [vmem:[#allocation7 + $0x1b8] sm:$0xff]
    %v4841 = vld [vmem:[#allocation7 + $0x1c0] sm:$0xff]
    %v4842 = vld [vmem:[#allocation7 + $0x1c8] sm:$0xff]
    %v4843 = vld [vmem:[#allocation7 + $0x1d0] sm:$0xff]
    %v4844 = vld [vmem:[#allocation7 + $0x1d8] sm:$0xff]
    %v4845 = vld [vmem:[#allocation7 + $0x1e0] sm:$0xff]
    %v4846 = vld [vmem:[#allocation7 + $0x1e8] sm:$0xff]
    %v4847 = vld [vmem:[#allocation7 + $0x1f0] sm:$0xff]
    %v4848 = vld [vmem:[#allocation7 + $0x1f8] sm:$0xff]
    %v4849 = vld [vmem:[#allocation7 + $0x200] sm:$0xff]
    %v4850 = vld [vmem:[#allocation7 + $0x208] sm:$0xff]
    %v4851 = vld [vmem:[#allocation7 + $0x210] sm:$0xff]
    %v4852 = vld [vmem:[#allocation7 + $0x218] sm:$0xff]
    %v4853 = vld [vmem:[#allocation7 + $0x220] sm:$0xff]
    %v4854 = vld [vmem:[#allocation7 + $0x228] sm:$0xff]
    %v4855 = vld [vmem:[#allocation7 + $0x230] sm:$0xff]
    %v4856 = vld [vmem:[#allocation7 + $0x238] sm:$0xff]
    %v4857 = vld [vmem:[#allocation7 + $0x240] sm:$0xff]
    %v4858 = vld [vmem:[#allocation7 + $0x248] sm:$0xff]
    %v4859 = vld [vmem:[#allocation7 + $0x250] sm:$0xff]
    %v4860 = vld [vmem:[#allocation7 + $0x258] sm:$0xff]
    %v4861 = vld [vmem:[#allocation7 + $0x260] sm:$0xff]
    %v4862 = vld [vmem:[#allocation7 + $0x268] sm:$0xff]
    %v4863 = vld [vmem:[#allocation7 + $0x270] sm:$0xff]
    %v4864 = vld [vmem:[#allocation7 + $0x278] sm:$0xff]
    %v4865 = vld [vmem:[#allocation7 + $0x280] sm:$0xff]
    %v4866 = vld [vmem:[#allocation7 + $0x288] sm:$0xff]
    %v4867 = vld [vmem:[#allocation7 + $0x290] sm:$0xff]
    %v4868 = vld [vmem:[#allocation7 + $0x298] sm:$0xff]
    %v4869 = vld [vmem:[#allocation7 + $0x2a0] sm:$0xff]
    %v4870 = vld [vmem:[#allocation7 + $0x2a8] sm:$0xff]
    %v4871 = vld [vmem:[#allocation7 + $0x2b0] sm:$0xff]
    %v4872 = vld [vmem:[#allocation7 + $0x2b8] sm:$0xff]
    %v4873 = vld [vmem:[#allocation7 + $0x2c0] sm:$0xff]
    %v4874 = vld [vmem:[#allocation7 + $0x2c8] sm:$0xff]
    %v4875 = vld [vmem:[#allocation7 + $0x2d0] sm:$0xff]
    %v4876 = vld [vmem:[#allocation7 + $0x2d8] sm:$0xff]
    %v4877 = vld [vmem:[#allocation7 + $0x2e0] sm:$0xff]
    %v4878 = vld [vmem:[#allocation7 + $0x2e8] sm:$0xff]
    %v4879 = vld [vmem:[#allocation7 + $0x2f0] sm:$0xff]
    %v4880 = vld [vmem:[#allocation7 + $0x2f8] sm:$0xff]
    %v4881 = vld [vmem:[#allocation7 + $0x300] sm:$0xff]
    %v4882 = vld [vmem:[#allocation7 + $0x308] sm:$0xff]
    %v4883 = vld [vmem:[#allocation7 + $0x310] sm:$0xff]
    %v4884 = vld [vmem:[#allocation7 + $0x318] sm:$0xff]
    %v4885 = vld [vmem:[#allocation7 + $0x320] sm:$0xff]
    %v4886 = vld [vmem:[#allocation7 + $0x328] sm:$0xff]
    %v4887 = vld [vmem:[#allocation7 + $0x330] sm:$0xff]
    %v4888 = vld [vmem:[#allocation7 + $0x338] sm:$0xff]
    %v4889 = vld [vmem:[#allocation7 + $0x340] sm:$0xff]
    %v4890 = vld [vmem:[#allocation7 + $0x348] sm:$0xff]
    %v4891 = vld [vmem:[#allocation7 + $0x350] sm:$0xff]
    %v4892 = vld [vmem:[#allocation7 + $0x358] sm:$0xff]
    %v4893 = vld [vmem:[#allocation7 + $0x360] sm:$0xff]
    %v4894 = vld [vmem:[#allocation7 + $0x368] sm:$0xff]
    %v4895 = vld [vmem:[#allocation7 + $0x370] sm:$0xff]
    %v4896 = vld [vmem:[#allocation7 + $0x378] sm:$0xff]
    %v4897 = vld [vmem:[#allocation7 + $0x380] sm:$0xff]
    %v4898 = vld [vmem:[#allocation7 + $0x388] sm:$0xff]
    %v4899 = vld [vmem:[#allocation7 + $0x390] sm:$0xff]
    %v4900 = vld [vmem:[#allocation7 + $0x398] sm:$0xff]
    %v4901 = vld [vmem:[#allocation7 + $0x3a0] sm:$0xff]
    %v4902 = vld [vmem:[#allocation7 + $0x3a8] sm:$0xff]
    %v4903 = vld [vmem:[#allocation7 + $0x3b0] sm:$0xff]
    %v4904 = vld [vmem:[#allocation7 + $0x3b8] sm:$0xff]
    %v4905 = vld [vmem:[#allocation7 + $0x3c0] sm:$0xff]
    %v4906 = vld [vmem:[#allocation7 + $0x3c8] sm:$0xff]
    %v4907 = vld [vmem:[#allocation7 + $0x3d0] sm:$0xff]
    %v4908 = vld [vmem:[#allocation7 + $0x3d8] sm:$0xff]
    %v4909 = vld [vmem:[#allocation7 + $0x3e0] sm:$0xff]
    %v4910 = vld [vmem:[#allocation7 + $0x3e8] sm:$0xff]
    %v4911 = vld [vmem:[#allocation7 + $0x3f0] sm:$0xff]
    %v4912 = vld [vmem:[#allocation7 + $0x3f8] sm:$0xff]
    %v4913 = vld [vmem:[#allocation7 + $0x400] sm:$0xff]
    %v4914 = vld [vmem:[#allocation7 + $0x408] sm:$0xff]
    %v4915 = vld [vmem:[#allocation7 + $0x410] sm:$0xff]
    %v4916 = vld [vmem:[#allocation7 + $0x418] sm:$0xff]
    %v4917 = vld [vmem:[#allocation7 + $0x420] sm:$0xff]
    %v4918 = vld [vmem:[#allocation7 + $0x428] sm:$0xff]
    %v4919 = vld [vmem:[#allocation7 + $0x430] sm:$0xff]
    %v4920 = vld [vmem:[#allocation7 + $0x438] sm:$0xff]
    %v4921 = vld [vmem:[#allocation7 + $0x440] sm:$0xff]
    %v4922 = vld [vmem:[#allocation7 + $0x448] sm:$0xff]
    %v4923 = vld [vmem:[#allocation7 + $0x450] sm:$0xff]
    %v4924 = vld [vmem:[#allocation7 + $0x458] sm:$0xff]
    %v4925 = vld [vmem:[#allocation7 + $0x460] sm:$0xff]
    %v4926 = vld [vmem:[#allocation7 + $0x468] sm:$0xff]
    %v4927 = vld [vmem:[#allocation7 + $0x470] sm:$0xff]
    %v4928 = vld [vmem:[#allocation7 + $0x478] sm:$0xff]
    %v4929 = vld [vmem:[%s8 + $0x14] sm:$0x3f]
    %v4931 = vlaneseq
    %v4932 = vshrl.u32 %v4931, 7
    %v4933 = vsub.s32 0, %v4932
    %v4934 = vrot.slane %v4929, %v4933
    %v4935 = vlaneseq
    %v4936 = vshrl.u32 %v4935, 7
    %v4937 = vsub.s32 1, %v4936
    %v4938 = vrot.slane %v4929, %v4937
    %v4939 = vlaneseq
    %v4940 = vshrl.u32 %v4939, 7
    %v4941 = vsub.s32 2, %v4940
    %v4942 = vrot.slane %v4929, %v4941
    %v4943 = vlaneseq
    %v4944 = vshrl.u32 %v4943, 7
    %v4945 = vsub.s32 3, %v4944
    %v4946 = vrot.slane %v4929, %v4945
    %v4947 = vlaneseq
    %v4948 = vshrl.u32 %v4947, 7
    %v4949 = vsub.s32 4, %v4948
    %v4950 = vrot.slane %v4929, %v4949
    %v4951 = vlaneseq
    %v4952 = vshrl.u32 %v4951, 7
    %v4953 = vsub.s32 5, %v4952
    %v4954 = vrot.slane %v4929, %v4953
    %v5105 = vunpack.c.l.b16 %v4785
    %v5106 = vunpack.c.h.b16 %v4785
    %v5107 = vunpack.c.l.b16 %v4786
    %v5108 = vunpack.c.h.b16 %v4786
    %v5109 = vunpack.c.l.b16 %v4787
    %v5110 = vunpack.c.h.b16 %v4787
    %v5111 = vunpack.c.l.b16 %v4788
    %v5112 = vunpack.c.h.b16 %v4788
    %v5113 = vunpack.c.l.b16 %v4789
    %v5114 = vunpack.c.h.b16 %v4789
    %v5115 = vunpack.c.l.b16 %v4790
    %v5116 = vunpack.c.h.b16 %v4790
    %v5117 = vunpack.c.l.b16 %v4791
    %v5118 = vunpack.c.h.b16 %v4791
    %v5119 = vunpack.c.l.b16 %v4792
    %v5120 = vunpack.c.h.b16 %v4792
    %v5121 = vunpack.c.l.b16 %v4793
    %v5122 = vunpack.c.h.b16 %v4793
    %v5123 = vunpack.c.l.b16 %v4794
    %v5124 = vunpack.c.h.b16 %v4794
    %v5125 = vunpack.c.l.b16 %v4795
    %v5126 = vunpack.c.h.b16 %v4795
    %v5127 = vunpack.c.l.b16 %v4796
    %v5128 = vunpack.c.h.b16 %v4796
    %v5129 = vunpack.c.l.b16 %v4797
    %v5130 = vunpack.c.h.b16 %v4797
    %v5131 = vunpack.c.l.b16 %v4798
    %v5132 = vunpack.c.h.b16 %v4798
    %v5133 = vunpack.c.l.b16 %v4799
    %v5134 = vunpack.c.h.b16 %v4799
    %v5135 = vunpack.c.l.b16 %v4800
    %v5136 = vunpack.c.h.b16 %v4800
    %v5137 = vunpack.c.l.b16 %v4801
    %v5138 = vunpack.c.h.b16 %v4801
    %v5139 = vunpack.c.l.b16 %v4802
    %v5140 = vunpack.c.h.b16 %v4802
    %v5141 = vunpack.c.l.b16 %v4803
    %v5142 = vunpack.c.h.b16 %v4803
    %v5143 = vunpack.c.l.b16 %v4804
    %v5144 = vunpack.c.h.b16 %v4804
    %v5145 = vunpack.c.l.b16 %v4805
    %v5146 = vunpack.c.h.b16 %v4805
    %v5147 = vunpack.c.l.b16 %v4806
    %v5148 = vunpack.c.h.b16 %v4806
    %v5149 = vunpack.c.l.b16 %v4807
    %v5150 = vunpack.c.h.b16 %v4807
    %v5151 = vunpack.c.l.b16 %v4808
    %v5152 = vunpack.c.h.b16 %v4808
    %v5153 = vunpack.c.l.b16 %v4809
    %v5154 = vunpack.c.h.b16 %v4809
    %v5155 = vunpack.c.l.b16 %v4810
    %v5156 = vunpack.c.h.b16 %v4810
    %v5157 = vunpack.c.l.b16 %v4811
    %v5158 = vunpack.c.h.b16 %v4811
    %v5159 = vunpack.c.l.b16 %v4812
    %v5160 = vunpack.c.h.b16 %v4812
    %v5161 = vunpack.c.l.b16 %v4813
    %v5162 = vunpack.c.h.b16 %v4813
    %v5163 = vunpack.c.l.b16 %v4814
    %v5164 = vunpack.c.h.b16 %v4814
    %v5165 = vunpack.c.l.b16 %v4815
    %v5166 = vunpack.c.h.b16 %v4815
    %v5167 = vunpack.c.l.b16 %v4816
    %v5168 = vunpack.c.h.b16 %v4816
    %v5169 = vunpack.c.l.b16 %v4817
    %v5170 = vunpack.c.h.b16 %v4817
    %v5171 = vunpack.c.l.b16 %v4818
    %v5172 = vunpack.c.h.b16 %v4818
    %v5173 = vunpack.c.l.b16 %v4819
    %v5174 = vunpack.c.h.b16 %v4819
    %v5175 = vunpack.c.l.b16 %v4820
    %v5176 = vunpack.c.h.b16 %v4820
    %v5177 = vunpack.c.l.b16 %v4821
    %v5178 = vunpack.c.h.b16 %v4821
    %v5179 = vunpack.c.l.b16 %v4822
    %v5180 = vunpack.c.h.b16 %v4822
    %v5181 = vunpack.c.l.b16 %v4823
    %v5182 = vunpack.c.h.b16 %v4823
    %v5183 = vunpack.c.l.b16 %v4824
    %v5184 = vunpack.c.h.b16 %v4824
    %v5185 = vunpack.c.l.b16 %v4825
    %v5186 = vunpack.c.h.b16 %v4825
    %v5187 = vunpack.c.l.b16 %v4826
    %v5188 = vunpack.c.h.b16 %v4826
    %v5189 = vunpack.c.l.b16 %v4827
    %v5190 = vunpack.c.h.b16 %v4827
    %v5191 = vunpack.c.l.b16 %v4828
    %v5192 = vunpack.c.h.b16 %v4828
    %v5193 = vunpack.c.l.b16 %v4829
    %v5194 = vunpack.c.h.b16 %v4829
    %v5195 = vunpack.c.l.b16 %v4830
    %v5196 = vunpack.c.h.b16 %v4830
    %v5197 = vunpack.c.l.b16 %v4831
    %v5198 = vunpack.c.h.b16 %v4831
    %v5199 = vunpack.c.l.b16 %v4832
    %v5200 = vunpack.c.h.b16 %v4832
    %v5201 = vunpack.c.l.b16 %v4833
    %v5202 = vunpack.c.h.b16 %v4833
    %v5203 = vunpack.c.l.b16 %v4834
    %v5204 = vunpack.c.h.b16 %v4834
    %v5205 = vunpack.c.l.b16 %v4835
    %v5206 = vunpack.c.h.b16 %v4835
    %v5207 = vunpack.c.l.b16 %v4836
    %v5208 = vunpack.c.h.b16 %v4836
    %v5209 = vunpack.c.l.b16 %v4837
    %v5210 = vunpack.c.h.b16 %v4837
    %v5211 = vunpack.c.l.b16 %v4838
    %v5212 = vunpack.c.h.b16 %v4838
    %v5213 = vunpack.c.l.b16 %v4839
    %v5214 = vunpack.c.h.b16 %v4839
    %v5215 = vunpack.c.l.b16 %v4840
    %v5216 = vunpack.c.h.b16 %v4840
    %v5217 = vunpack.c.l.b16 %v4841
    %v5218 = vunpack.c.h.b16 %v4841
    %v5219 = vunpack.c.l.b16 %v4842
    %v5220 = vunpack.c.h.b16 %v4842
    %v5221 = vunpack.c.l.b16 %v4843
    %v5222 = vunpack.c.h.b16 %v4843
    %v5223 = vunpack.c.l.b16 %v4844
    %v5224 = vunpack.c.h.b16 %v4844
    %v5225 = vunpack.c.l.b16 %v4845
    %v5226 = vunpack.c.h.b16 %v4845
    %v5227 = vunpack.c.l.b16 %v4846
    %v5228 = vunpack.c.h.b16 %v4846
    %v5229 = vunpack.c.l.b16 %v4847
    %v5230 = vunpack.c.h.b16 %v4847
    %v5231 = vunpack.c.l.b16 %v4848
    %v5232 = vunpack.c.h.b16 %v4848
    %v5233 = vunpack.c.l.b16 %v4849
    %v5234 = vunpack.c.h.b16 %v4849
    %v5235 = vunpack.c.l.b16 %v4850
    %v5236 = vunpack.c.h.b16 %v4850
    %v5237 = vunpack.c.l.b16 %v4851
    %v5238 = vunpack.c.h.b16 %v4851
    %v5239 = vunpack.c.l.b16 %v4852
    %v5240 = vunpack.c.h.b16 %v4852
    %v5241 = vunpack.c.l.b16 %v4853
    %v5242 = vunpack.c.h.b16 %v4853
    %v5243 = vunpack.c.l.b16 %v4854
    %v5244 = vunpack.c.h.b16 %v4854
    %v5245 = vunpack.c.l.b16 %v4855
    %v5246 = vunpack.c.h.b16 %v4855
    %v5247 = vunpack.c.l.b16 %v4856
    %v5248 = vunpack.c.h.b16 %v4856
    %v5249 = vunpack.c.l.b16 %v4857
    %v5250 = vunpack.c.h.b16 %v4857
    %v5251 = vunpack.c.l.b16 %v4858
    %v5252 = vunpack.c.h.b16 %v4858
    %v5253 = vunpack.c.l.b16 %v4859
    %v5254 = vunpack.c.h.b16 %v4859
    %v5255 = vunpack.c.l.b16 %v4860
    %v5256 = vunpack.c.h.b16 %v4860
    %v5257 = vunpack.c.l.b16 %v4861
    %v5258 = vunpack.c.h.b16 %v4861
    %v5259 = vunpack.c.l.b16 %v4862
    %v5260 = vunpack.c.h.b16 %v4862
    %v5261 = vunpack.c.l.b16 %v4863
    %v5262 = vunpack.c.h.b16 %v4863
    %v5263 = vunpack.c.l.b16 %v4864
    %v5264 = vunpack.c.h.b16 %v4864
    %v5265 = vunpack.c.l.b16 %v4865
    %v5266 = vunpack.c.h.b16 %v4865
    %v5267 = vunpack.c.l.b16 %v4866
    %v5268 = vunpack.c.h.b16 %v4866
    %v5269 = vunpack.c.l.b16 %v4867
    %v5270 = vunpack.c.h.b16 %v4867
    %v5271 = vunpack.c.l.b16 %v4868
    %v5272 = vunpack.c.h.b16 %v4868
    %v5273 = vunpack.c.l.b16 %v4869
    %v5274 = vunpack.c.h.b16 %v4869
    %v5275 = vunpack.c.l.b16 %v4870
    %v5276 = vunpack.c.h.b16 %v4870
    %v5277 = vunpack.c.l.b16 %v4871
    %v5278 = vunpack.c.h.b16 %v4871
    %v5279 = vunpack.c.l.b16 %v4872
    %v5280 = vunpack.c.h.b16 %v4872
    %v5281 = vunpack.c.l.b16 %v4873
    %v5282 = vunpack.c.h.b16 %v4873
    %v5283 = vunpack.c.l.b16 %v4874
    %v5284 = vunpack.c.h.b16 %v4874
    %v5285 = vunpack.c.l.b16 %v4875
    %v5286 = vunpack.c.h.b16 %v4875
    %v5287 = vunpack.c.l.b16 %v4876
    %v5288 = vunpack.c.h.b16 %v4876
    %v5289 = vunpack.c.l.b16 %v4877
    %v5290 = vunpack.c.h.b16 %v4877
    %v5291 = vunpack.c.l.b16 %v4878
    %v5292 = vunpack.c.h.b16 %v4878
    %v5293 = vunpack.c.l.b16 %v4879
    %v5294 = vunpack.c.h.b16 %v4879
    %v5295 = vunpack.c.l.b16 %v4880
    %v5296 = vunpack.c.h.b16 %v4880
    %v5297 = vunpack.c.l.b16 %v4881
    %v5298 = vunpack.c.h.b16 %v4881
    %v5299 = vunpack.c.l.b16 %v4882
    %v5300 = vunpack.c.h.b16 %v4882
    %v5301 = vunpack.c.l.b16 %v4883
    %v5302 = vunpack.c.h.b16 %v4883
    %v5303 = vunpack.c.l.b16 %v4884
    %v5304 = vunpack.c.h.b16 %v4884
    %v5305 = vunpack.c.l.b16 %v4885
    %v5306 = vunpack.c.h.b16 %v4885
    %v5307 = vunpack.c.l.b16 %v4886
    %v5308 = vunpack.c.h.b16 %v4886
    %v5309 = vunpack.c.l.b16 %v4887
    %v5310 = vunpack.c.h.b16 %v4887
    %v5311 = vunpack.c.l.b16 %v4888
    %v5312 = vunpack.c.h.b16 %v4888
    %v5313 = vunpack.c.l.b16 %v4889
    %v5314 = vunpack.c.h.b16 %v4889
    %v5315 = vunpack.c.l.b16 %v4890
    %v5316 = vunpack.c.h.b16 %v4890
    %v5317 = vunpack.c.l.b16 %v4891
    %v5318 = vunpack.c.h.b16 %v4891
    %v5319 = vunpack.c.l.b16 %v4892
    %v5320 = vunpack.c.h.b16 %v4892
    %v5321 = vunpack.c.l.b16 %v4893
    %v5322 = vunpack.c.h.b16 %v4893
    %v5323 = vunpack.c.l.b16 %v4894
    %v5324 = vunpack.c.h.b16 %v4894
    %v5325 = vunpack.c.l.b16 %v4895
    %v5326 = vunpack.c.h.b16 %v4895
    %v5327 = vunpack.c.l.b16 %v4896
    %v5328 = vunpack.c.h.b16 %v4896
    %v5329 = vunpack.c.l.b16 %v4897
    %v5330 = vunpack.c.h.b16 %v4897
    %v5331 = vunpack.c.l.b16 %v4898
    %v5332 = vunpack.c.h.b16 %v4898
    %v5333 = vunpack.c.l.b16 %v4899
    %v5334 = vunpack.c.h.b16 %v4899
    %v5335 = vunpack.c.l.b16 %v4900
    %v5336 = vunpack.c.h.b16 %v4900
    %v5337 = vunpack.c.l.b16 %v4901
    %v5338 = vunpack.c.h.b16 %v4901
    %v5339 = vunpack.c.l.b16 %v4902
    %v5340 = vunpack.c.h.b16 %v4902
    %v5341 = vunpack.c.l.b16 %v4903
    %v5342 = vunpack.c.h.b16 %v4903
    %v5343 = vunpack.c.l.b16 %v4904
    %v5344 = vunpack.c.h.b16 %v4904
    %v5345 = vunpack.c.l.b16 %v4905
    %v5346 = vunpack.c.h.b16 %v4905
    %v5347 = vunpack.c.l.b16 %v4906
    %v5348 = vunpack.c.h.b16 %v4906
    %v5349 = vunpack.c.l.b16 %v4907
    %v5350 = vunpack.c.h.b16 %v4907
    %v5351 = vunpack.c.l.b16 %v4908
    %v5352 = vunpack.c.h.b16 %v4908
    %v5353 = vunpack.c.l.b16 %v4909
    %v5354 = vunpack.c.h.b16 %v4909
    %v5355 = vunpack.c.l.b16 %v4910
    %v5356 = vunpack.c.h.b16 %v4910
    %v5357 = vunpack.c.l.b16 %v4911
    %v5358 = vunpack.c.h.b16 %v4911
    %v5359 = vunpack.c.l.b16 %v4912
    %v5360 = vunpack.c.h.b16 %v4912
    %v5361 = vunpack.c.l.b16 %v4913
    %v5362 = vunpack.c.h.b16 %v4913
    %v5363 = vunpack.c.l.b16 %v4914
    %v5364 = vunpack.c.h.b16 %v4914
    %v5365 = vunpack.c.l.b16 %v4915
    %v5366 = vunpack.c.h.b16 %v4915
    %v5367 = vunpack.c.l.b16 %v4916
    %v5368 = vunpack.c.h.b16 %v4916
    %v5369 = vunpack.c.l.b16 %v4917
    %v5370 = vunpack.c.h.b16 %v4917
    %v5371 = vunpack.c.l.b16 %v4918
    %v5372 = vunpack.c.h.b16 %v4918
    %v5373 = vunpack.c.l.b16 %v4919
    %v5374 = vunpack.c.h.b16 %v4919
    %v5375 = vunpack.c.l.b16 %v4920
    %v5376 = vunpack.c.h.b16 %v4920
    %v5377 = vunpack.c.l.b16 %v4921
    %v5378 = vunpack.c.h.b16 %v4921
    %v5379 = vunpack.c.l.b16 %v4922
    %v5380 = vunpack.c.h.b16 %v4922
    %v5381 = vunpack.c.l.b16 %v4923
    %v5382 = vunpack.c.h.b16 %v4923
    %v5383 = vunpack.c.l.b16 %v4924
    %v5384 = vunpack.c.h.b16 %v4924
    %v5385 = vunpack.c.l.b16 %v4925
    %v5386 = vunpack.c.h.b16 %v4925
    %v5387 = vunpack.c.l.b16 %v4926
    %v5388 = vunpack.c.h.b16 %v4926
    %v5389 = vunpack.c.l.b16 %v4927
    %v5390 = vunpack.c.h.b16 %v4927
    %v5391 = vunpack.c.l.b16 %v4928
    %v5392 = vunpack.c.h.b16 %v4928
    %v5393 = vpack.c.b16 %v5111, %v5105
    %v5394 = vpack.c.b16 %v5112, %v5106
    %v5395 = vpack.c.b16 %v5113, %v5107
    %v5396 = vpack.c.b16 %v5114, %v5108
    %v5397 = vpack.c.b16 %v5115, %v5109
    %v5398 = vpack.c.b16 %v5116, %v5110
    %v5399 = vpack.c.b16 %v5123, %v5117
    %v5400 = vpack.c.b16 %v5124, %v5118
    %v5401 = vpack.c.b16 %v5125, %v5119
    %v5402 = vpack.c.b16 %v5126, %v5120
    %v5403 = vpack.c.b16 %v5127, %v5121
    %v5404 = vpack.c.b16 %v5128, %v5122
    %v5405 = vpack.c.b16 %v5135, %v5129
    %v5406 = vpack.c.b16 %v5136, %v5130
    %v5407 = vpack.c.b16 %v5137, %v5131
    %v5408 = vpack.c.b16 %v5138, %v5132
    %v5409 = vpack.c.b16 %v5139, %v5133
    %v5410 = vpack.c.b16 %v5140, %v5134
    %v5411 = vpack.c.b16 %v5147, %v5141
    %v5412 = vpack.c.b16 %v5148, %v5142
    %v5413 = vpack.c.b16 %v5149, %v5143
    %v5414 = vpack.c.b16 %v5150, %v5144
    %v5415 = vpack.c.b16 %v5151, %v5145
    %v5416 = vpack.c.b16 %v5152, %v5146
    %v5417 = vpack.c.b16 %v5159, %v5153
    %v5418 = vpack.c.b16 %v5160, %v5154
    %v5419 = vpack.c.b16 %v5161, %v5155
    %v5420 = vpack.c.b16 %v5162, %v5156
    %v5421 = vpack.c.b16 %v5163, %v5157
    %v5422 = vpack.c.b16 %v5164, %v5158
    %v5423 = vpack.c.b16 %v5171, %v5165
    %v5424 = vpack.c.b16 %v5172, %v5166
    %v5425 = vpack.c.b16 %v5173, %v5167
    %v5426 = vpack.c.b16 %v5174, %v5168
    %v5427 = vpack.c.b16 %v5175, %v5169
    %v5428 = vpack.c.b16 %v5176, %v5170
    %v5429 = vpack.c.b16 %v5183, %v5177
    %v5430 = vpack.c.b16 %v5184, %v5178
    %v5431 = vpack.c.b16 %v5185, %v5179
    %v5432 = vpack.c.b16 %v5186, %v5180
    %v5433 = vpack.c.b16 %v5187, %v5181
    %v5434 = vpack.c.b16 %v5188, %v5182
    %v5435 = vpack.c.b16 %v5195, %v5189
    %v5436 = vpack.c.b16 %v5196, %v5190
    %v5437 = vpack.c.b16 %v5197, %v5191
    %v5438 = vpack.c.b16 %v5198, %v5192
    %v5439 = vpack.c.b16 %v5199, %v5193
    %v5440 = vpack.c.b16 %v5200, %v5194
    %v5441 = vpack.c.b16 %v5207, %v5201
    %v5442 = vpack.c.b16 %v5208, %v5202
    %v5443 = vpack.c.b16 %v5209, %v5203
    %v5444 = vpack.c.b16 %v5210, %v5204
    %v5445 = vpack.c.b16 %v5211, %v5205
    %v5446 = vpack.c.b16 %v5212, %v5206
    %v5447 = vpack.c.b16 %v5219, %v5213
    %v5448 = vpack.c.b16 %v5220, %v5214
    %v5449 = vpack.c.b16 %v5221, %v5215
    %v5450 = vpack.c.b16 %v5222, %v5216
    %v5451 = vpack.c.b16 %v5223, %v5217
    %v5452 = vpack.c.b16 %v5224, %v5218
    %v5453 = vpack.c.b16 %v5231, %v5225
    %v5454 = vpack.c.b16 %v5232, %v5226
    %v5455 = vpack.c.b16 %v5233, %v5227
    %v5456 = vpack.c.b16 %v5234, %v5228
    %v5457 = vpack.c.b16 %v5235, %v5229
    %v5458 = vpack.c.b16 %v5236, %v5230
    %v5459 = vpack.c.b16 %v5243, %v5237
    %v5460 = vpack.c.b16 %v5244, %v5238
    %v5461 = vpack.c.b16 %v5245, %v5239
    %v5462 = vpack.c.b16 %v5246, %v5240
    %v5463 = vpack.c.b16 %v5247, %v5241
    %v5464 = vpack.c.b16 %v5248, %v5242
    %v5465 = vpack.c.b16 %v5255, %v5249
    %v5466 = vpack.c.b16 %v5256, %v5250
    %v5467 = vpack.c.b16 %v5257, %v5251
    %v5468 = vpack.c.b16 %v5258, %v5252
    %v5469 = vpack.c.b16 %v5259, %v5253
    %v5470 = vpack.c.b16 %v5260, %v5254
    %v5471 = vpack.c.b16 %v5267, %v5261
    %v5472 = vpack.c.b16 %v5268, %v5262
    %v5473 = vpack.c.b16 %v5269, %v5263
    %v5474 = vpack.c.b16 %v5270, %v5264
    %v5475 = vpack.c.b16 %v5271, %v5265
    %v5476 = vpack.c.b16 %v5272, %v5266
    %v5477 = vpack.c.b16 %v5279, %v5273
    %v5478 = vpack.c.b16 %v5280, %v5274
    %v5479 = vpack.c.b16 %v5281, %v5275
    %v5480 = vpack.c.b16 %v5282, %v5276
    %v5481 = vpack.c.b16 %v5283, %v5277
    %v5482 = vpack.c.b16 %v5284, %v5278
    %v5483 = vpack.c.b16 %v5291, %v5285
    %v5484 = vpack.c.b16 %v5292, %v5286
    %v5485 = vpack.c.b16 %v5293, %v5287
    %v5486 = vpack.c.b16 %v5294, %v5288
    %v5487 = vpack.c.b16 %v5295, %v5289
    %v5488 = vpack.c.b16 %v5296, %v5290
    %v5489 = vpack.c.b16 %v5303, %v5297
    %v5490 = vpack.c.b16 %v5304, %v5298
    %v5491 = vpack.c.b16 %v5305, %v5299
    %v5492 = vpack.c.b16 %v5306, %v5300
    %v5493 = vpack.c.b16 %v5307, %v5301
    %v5494 = vpack.c.b16 %v5308, %v5302
    %v5495 = vpack.c.b16 %v5315, %v5309
    %v5496 = vpack.c.b16 %v5316, %v5310
    %v5497 = vpack.c.b16 %v5317, %v5311
    %v5498 = vpack.c.b16 %v5318, %v5312
    %v5499 = vpack.c.b16 %v5319, %v5313
    %v5500 = vpack.c.b16 %v5320, %v5314
    %v5501 = vpack.c.b16 %v5327, %v5321
    %v5502 = vpack.c.b16 %v5328, %v5322
    %v5503 = vpack.c.b16 %v5329, %v5323
    %v5504 = vpack.c.b16 %v5330, %v5324
    %v5505 = vpack.c.b16 %v5331, %v5325
    %v5506 = vpack.c.b16 %v5332, %v5326
    %v5507 = vpack.c.b16 %v5339, %v5333
    %v5508 = vpack.c.b16 %v5340, %v5334
    %v5509 = vpack.c.b16 %v5341, %v5335
    %v5510 = vpack.c.b16 %v5342, %v5336
    %v5511 = vpack.c.b16 %v5343, %v5337
    %v5512 = vpack.c.b16 %v5344, %v5338
    %v5513 = vpack.c.b16 %v5351, %v5345
    %v5514 = vpack.c.b16 %v5352, %v5346
    %v5515 = vpack.c.b16 %v5353, %v5347
    %v5516 = vpack.c.b16 %v5354, %v5348
    %v5517 = vpack.c.b16 %v5355, %v5349
    %v5518 = vpack.c.b16 %v5356, %v5350
    %v5519 = vpack.c.b16 %v5363, %v5357
    %v5520 = vpack.c.b16 %v5364, %v5358
    %v5521 = vpack.c.b16 %v5365, %v5359
    %v5522 = vpack.c.b16 %v5366, %v5360
    %v5523 = vpack.c.b16 %v5367, %v5361
    %v5524 = vpack.c.b16 %v5368, %v5362
    %v5525 = vpack.c.b16 %v5375, %v5369
    %v5526 = vpack.c.b16 %v5376, %v5370
    %v5527 = vpack.c.b16 %v5377, %v5371
    %v5528 = vpack.c.b16 %v5378, %v5372
    %v5529 = vpack.c.b16 %v5379, %v5373
    %v5530 = vpack.c.b16 %v5380, %v5374
    %v5531 = vpack.c.b16 %v5387, %v5381
    %v5532 = vpack.c.b16 %v5388, %v5382
    %v5533 = vpack.c.b16 %v5389, %v5383
    %v5534 = vpack.c.b16 %v5390, %v5384
    %v5535 = vpack.c.b16 %v5391, %v5385
    %v5536 = vpack.c.b16 %v5392, %v5386
    %5681 = vmatprep.subr.bf16.mxu0 %v5394
    %5682 = vmatpush1.bf16.msra.mxu0 %v5393
    %5683 = vmatprep.subr.bf16.mxu0 %v5400
    %5684 = vmatpush1.bf16.msra.mxu0 %v5399
    %5685 = vmatprep.subr.bf16.mxu0 %v5406
    %5686 = vmatpush1.bf16.msra.mxu0 %v5405
    %5687 = vmatprep.subr.bf16.mxu0 %v5412
    %5688 = vmatpush1.bf16.msra.mxu0 %v5411
    %5689 = vmatprep.subr.bf16.mxu0 %v5418
    %5690 = vmatpush1.bf16.msra.mxu0 %v5417
    %5691 = vmatprep.subr.bf16.mxu0 %v5424
    %5692 = vmatpush1.bf16.msra.mxu0 %v5423
    %5693 = vmatprep.subr.bf16.mxu0 %v5430
    %5694 = vmatpush1.bf16.msra.mxu0 %v5429
    %5695 = vmatprep.subr.bf16.mxu0 %v5436
    %5696 = vmatpush1.bf16.msra.mxu0 %v5435
    %5697 = vmatprep.subr.bf16.mxu0 %v5442
    %5698 = vmatpush1.bf16.msra.mxu0 %v5441
    %5699 = vmatprep.subr.bf16.mxu0 %v5448
    %5700 = vmatpush1.bf16.msra.mxu0 %v5447
    %5701 = vmatprep.subr.bf16.mxu0 %v5454
    %5702 = vmatpush1.bf16.msra.mxu0 %v5453
    %5703 = vmatprep.subr.bf16.mxu0 %v5460
    %5704 = vmatpush1.bf16.msra.mxu0 %v5459
    %5705 = vmatprep.subr.bf16.mxu0 %v5466
    %5706 = vmatpush1.bf16.msra.mxu0 %v5465
    %5707 = vmatprep.subr.bf16.mxu0 %v5472
    %5708 = vmatpush1.bf16.msra.mxu0 %v5471
    %5709 = vmatprep.subr.bf16.mxu0 %v5478
    %5710 = vmatpush1.bf16.msra.mxu0 %v5477
    %5711 = vmatprep.subr.bf16.mxu0 %v5484
    %5712 = vmatpush1.bf16.msra.mxu0 %v5483
    %5713 = vmatprep.mubr.bf16.mxu0 %v4762
    %5714 = vmatmul.mubr.bf16.gmra.mrb[0].mxu0 %v4761
    %v5715 = vpop.f32.mrb[0].mxu0
    %v5716 = vadd.f32 %v4934, %v5715
    %v5717 = vpop.f32.mrb[0].mxu0
    %v5718 = vadd.f32 %v4938, %v5717
    %v5719 = vpop.f32.mrb[0].mxu0
    %v5720 = vadd.f32 %v4934, %v5719
    %v5721 = vpop.f32.mrb[0].mxu0
    %v5722 = vadd.f32 %v4938, %v5721
    %5723 = vmatprep.mubr.bf16.mxu0 %v4765
    %5724 = vmatmul.mubr.bf16.gmra.mrb[0].mxu0 %v4764
    %v5725 = vpop.f32.mrb[0].mxu0
    %v5726 = vadd.f32 %v4934, %v5725
    %v5727 = vpop.f32.mrb[0].mxu0
    %v5728 = vadd.f32 %v4938, %v5727
    %v5729 = vpop.f32.mrb[0].mxu0
    %v5730 = vadd.f32 %v4934, %v5729
    %v5731 = vpop.f32.mrb[0].mxu0
    %v5732 = vadd.f32 %v4938, %v5731
    %5733 = vmatprep.mubr.bf16.mxu0 %v4768
    %5734 = vmatmul.mubr.bf16.gmra.mrb[0].mxu0 %v4767
    %v5735 = vpop.f32.mrb[0].mxu0
    %v5736 = vadd.f32 %v4934, %v5735
    %v5737 = vpop.f32.mrb[0].mxu0
    %v5738 = vadd.f32 %v4938, %v5737
    %v5739 = vpop.f32.mrb[0].mxu0
    %v5740 = vadd.f32 %v4934, %v5739
    %v5741 = vpop.f32.mrb[0].mxu0
    %v5742 = vadd.f32 %v4938, %v5741
    %5743 = vmatprep.mubr.bf16.mxu0 %v4771
    %5744 = vmatmul.mubr.bf16.gmra.mrb[0].mxu0 %v4770
    %v5745 = vpop.f32.mrb[0].mxu0
    %v5746 = vadd.f32 %v4934, %v5745
    %v5747 = vpop.f32.mrb[0].mxu0
    %v5748 = vadd.f32 %v4938, %v5747
    %v5749 = vpop.f32.mrb[0].mxu0
    %v5750 = vadd.f32 %v4934, %v5749
    %v5751 = vpop.f32.mrb[0].mxu0
    %v5752 = vadd.f32 %v4938, %v5751
    %5753 = vmatprep.mubr.bf16.mxu0 %v4774
    %5754 = vmatmul.mubr.bf16.gmra.mrb[0].mxu0 %v4773
    %v5755 = vpop.f32.mrb[0].mxu0
    %v5756 = vadd.f32 %v4934, %v5755
    %v5757 = vpop.f32.mrb[0].mxu0
    %v5758 = vadd.f32 %v4938, %v5757
    %v5759 = vpop.f32.mrb[0].mxu0
    %v5760 = vadd.f32 %v4934, %v5759
    %v5761 = vpop.f32.mrb[0].mxu0
    %v5762 = vadd.f32 %v4938, %v5761
    %5763 = vmatprep.mubr.bf16.mxu0 %v4777
    %5764 = vmatmul.mubr.bf16.gmra.mrb[0].mxu0 %v4776
    %v5765 = vpop.f32.mrb[0].mxu0
    %v5766 = vadd.f32 %v4934, %v5765
    %v5767 = vpop.f32.mrb[0].mxu0
    %v5768 = vadd.f32 %v4938, %v5767
    %v5769 = vpop.f32.mrb[0].mxu0
    %v5770 = vadd.f32 %v4934, %v5769
    %v5771 = vpop.f32.mrb[0].mxu0
    %v5772 = vadd.f32 %v4938, %v5771
    %5773 = vmatprep.mubr.bf16.mxu0 %v4780
    %5774 = vmatmul.mubr.bf16.gmra.mrb[0].mxu0 %v4779
    %v5775 = vpop.f32.mrb[0].mxu0
    %v5776 = vadd.f32 %v4934, %v5775
    %v5777 = vpop.f32.mrb[0].mxu0
    %v5778 = vadd.f32 %v4938, %v5777
    %v5779 = vpop.f32.mrb[0].mxu0
    %v5780 = vadd.f32 %v4934, %v5779
    %v5781 = vpop.f32.mrb[0].mxu0
    %v5782 = vadd.f32 %v4938, %v5781
    %5783 = vmatprep.mubr.bf16.mxu0 %v4783
    %5784 = vmatmul.mubr.bf16.gmra.mrb[0].mxu0 %v4782
    %v5785 = vpop.f32.mrb[0].mxu0
    %v5786 = vadd.f32 %v4934, %v5785
    %v5787 = vpop.f32.mrb[0].mxu0
    %v5788 = vadd.f32 %v4938, %v5787
    %v5789 = vpop.f32.mrb[0].mxu0
    %v5790 = vadd.f32 %v4934, %v5789
    %v5791 = vpop.f32.mrb[0].mxu0
    %v5792 = vadd.f32 %v4938, %v5791
    %5793 = vdwg.mxu0
    %5794 = vmatprep.subr.bf16.mxu0 %v5490
    %5795 = vmatpush1.bf16.msra.mxu0 %v5489
    %5796 = vmatprep.subr.bf16.mxu0 %v5496
    %5797 = vmatpush1.bf16.msra.mxu0 %v5495
    %5798 = vmatprep.subr.bf16.mxu0 %v5502
    %5799 = vmatpush1.bf16.msra.mxu0 %v5501
    %5800 = vmatprep.subr.bf16.mxu0 %v5508
    %5801 = vmatpush1.bf16.msra.mxu0 %v5507
    %5802 = vmatprep.subr.bf16.mxu0 %v5514
    %5803 = vmatpush1.bf16.msra.mxu0 %v5513
    %5804 = vmatprep.subr.bf16.mxu0 %v5520
    %5805 = vmatpush1.bf16.msra.mxu0 %v5519
    %5806 = vmatprep.subr.bf16.mxu0 %v5526
    %5807 = vmatpush1.bf16.msra.mxu0 %v5525
    %5808 = vmatprep.subr.bf16.mxu0 %v5532
    %5809 = vmatpush1.bf16.msra.mxu0 %v5531
    %5810 = vmatprep.subr.bf16.mxu0 0
    %5811 = vmatpush1.bf16.msra.mxu0 0
    %5812 = vmatprep.subr.bf16.mxu0 0
    %5813 = vmatpush1.bf16.msra.mxu0 0
    %5814 = vmatprep.subr.bf16.mxu0 0
    %5815 = vmatpush1.bf16.msra.mxu0 0
    %5816 = vmatprep.subr.bf16.mxu0 0
    %5817 = vmatpush1.bf16.msra.mxu0 0
    %5818 = vmatprep.subr.bf16.mxu0 0
    %5819 = vmatpush1.bf16.msra.mxu0 0
    %5820 = vmatprep.subr.bf16.mxu0 0
    %5821 = vmatpush1.bf16.msra.mxu0 0
    %5822 = vmatprep.subr.bf16.mxu0 0
    %5823 = vmatpush1.bf16.msra.mxu0 0
    %5824 = vmatprep.subr.bf16.mxu0 0
    %5825 = vmatpush1.bf16.msra.mxu0 0
    %5826 = vmatprep.mubr.bf16.mxu0 0
    %5827 = vmatmul.mubr.bf16.gmra.mrb[0].mxu0 %v4763
    %v5828 = vpop.f32.mrb[0].mxu0
    %v5829 = vadd.f32 %v5716, %v5828
    %v5830 = vpop.f32.mrb[0].mxu0
    %v5831 = vadd.f32 %v5718, %v5830
    %v5832 = vpop.f32.mrb[0].mxu0
    %v5833 = vadd.f32 %v5720, %v5832
    %v5834 = vpop.f32.mrb[0].mxu0
    %v5835 = vadd.f32 %v5722, %v5834
    %5836 = vmatprep.mubr.bf16.mxu0 0
    %5837 = vmatmul.mubr.bf16.gmra.mrb[0].mxu0 %v4766
    %v5838 = vpop.f32.mrb[0].mxu0
    %v5839 = vadd.f32 %v5726, %v5838
    %v5840 = vpop.f32.mrb[0].mxu0
    %v5841 = vadd.f32 %v5728, %v5840
    %v5842 = vpop.f32.mrb[0].mxu0
    %v5843 = vadd.f32 %v5730, %v5842
    %v5844 = vpop.f32.mrb[0].mxu0
    %v5845 = vadd.f32 %v5732, %v5844
    %5846 = vmatprep.mubr.bf16.mxu0 0
    %5847 = vmatmul.mubr.bf16.gmra.mrb[0].mxu0 %v4769
    %v5848 = vpop.f32.mrb[0].mxu0
    %v5849 = vadd.f32 %v5736, %v5848
    %v5850 = vpop.f32.mrb[0].mxu0
    %v5851 = vadd.f32 %v5738, %v5850
    %v5852 = vpop.f32.mrb[0].mxu0
    %v5853 = vadd.f32 %v5740, %v5852
    %v5854 = vpop.f32.mrb[0].mxu0
    %v5855 = vadd.f32 %v5742, %v5854
    %5856 = vmatprep.mubr.bf16.mxu0 0
    %5857 = vmatmul.mubr.bf16.gmra.mrb[0].mxu0 %v4772
    %v5858 = vpop.f32.mrb[0].mxu0
    %v5859 = vadd.f32 %v5746, %v5858
    %v5860 = vpop.f32.mrb[0].mxu0
    %v5861 = vadd.f32 %v5748, %v5860
    %v5862 = vpop.f32.mrb[0].mxu0
    %v5863 = vadd.f32 %v5750, %v5862
    %v5864 = vpop.f32.mrb[0].mxu0
    %v5865 = vadd.f32 %v5752, %v5864
    %5866 = vmatprep.mubr.bf16.mxu0 0
    %5867 = vmatmul.mubr.bf16.gmra.mrb[0].mxu0 %v4775
    %v5868 = vpop.f32.mrb[0].mxu0
    %v5869 = vadd.f32 %v5756, %v5868
    %v5870 = vpop.f32.mrb[0].mxu0
    %v5871 = vadd.f32 %v5758, %v5870
    %v5872 = vpop.f32.mrb[0].mxu0
    %v5873 = vadd.f32 %v5760, %v5872
    %v5874 = vpop.f32.mrb[0].mxu0
    %v5875 = vadd.f32 %v5762, %v5874
    %5876 = vmatprep.mubr.bf16.mxu0 0
    %5877 = vmatmul.mubr.bf16.gmra.mrb[0].mxu0 %v4778
    %v5878 = vpop.f32.mrb[0].mxu0
    %v5879 = vadd.f32 %v5766, %v5878
    %v5880 = vpop.f32.mrb[0].mxu0
    %v5881 = vadd.f32 %v5768, %v5880
    %v5882 = vpop.f32.mrb[0].mxu0
    %v5883 = vadd.f32 %v5770, %v5882
    %v5884 = vpop.f32.mrb[0].mxu0
    %v5885 = vadd.f32 %v5772, %v5884
    %5886 = vmatprep.mubr.bf16.mxu0 0
    %5887 = vmatmul.mubr.bf16.gmra.mrb[0].mxu0 %v4781
    %v5888 = vpop.f32.mrb[0].mxu0
    %v5889 = vadd.f32 %v5776, %v5888
    %v5890 = vpop.f32.mrb[0].mxu0
    %v5891 = vadd.f32 %v5778, %v5890
    %v5892 = vpop.f32.mrb[0].mxu0
    %v5893 = vadd.f32 %v5780, %v5892
    %v5894 = vpop.f32.mrb[0].mxu0
    %v5895 = vadd.f32 %v5782, %v5894
    %5896 = vmatprep.mubr.bf16.mxu0 0
    %5897 = vmatmul.mubr.bf16.gmra.mrb[0].mxu0 %v4784
    %v5898 = vpop.f32.mrb[0].mxu0
    %v5899 = vadd.f32 %v5786, %v5898
    %v5900 = vpop.f32.mrb[0].mxu0
    %v5901 = vadd.f32 %v5788, %v5900
    %v5902 = vpop.f32.mrb[0].mxu0
    %v5903 = vadd.f32 %v5790, %v5902
    %v5904 = vpop.f32.mrb[0].mxu0
    %v5905 = vadd.f32 %v5792, %v5904
    %5906 = vdwg.mxu0
    %5907 = vmatprep.subr.bf16.mxu0 %v5396
    %5908 = vmatpush1.bf16.msra.mxu0 %v5395
    %5909 = vmatprep.subr.bf16.mxu0 %v5402
    %5910 = vmatpush1.bf16.msra.mxu0 %v5401
    %5911 = vmatprep.subr.bf16.mxu0 %v5408
    %5912 = vmatpush1.bf16.msra.mxu0 %v5407
    %5913 = vmatprep.subr.bf16.mxu0 %v5414
    %5914 = vmatpush1.bf16.msra.mxu0 %v5413
    %5915 = vmatprep.subr.bf16.mxu0 %v5420
    %5916 = vmatpush1.bf16.msra.mxu0 %v5419
    %5917 = vmatprep.subr.bf16.mxu0 %v5426
    %5918 = vmatpush1.bf16.msra.mxu0 %v5425
    %5919 = vmatprep.subr.bf16.mxu0 %v5432
    %5920 = vmatpush1.bf16.msra.mxu0 %v5431
    %5921 = vmatprep.subr.bf16.mxu0 %v5438
    %5922 = vmatpush1.bf16.msra.mxu0 %v5437
    %5923 = vmatprep.subr.bf16.mxu0 %v5444
    %5924 = vmatpush1.bf16.msra.mxu0 %v5443
    %5925 = vmatprep.subr.bf16.mxu0 %v5450
    %5926 = vmatpush1.bf16.msra.mxu0 %v5449
    %5927 = vmatprep.subr.bf16.mxu0 %v5456
    %5928 = vmatpush1.bf16.msra.mxu0 %v5455
    %5929 = vmatprep.subr.bf16.mxu0 %v5462
    %5930 = vmatpush1.bf16.msra.mxu0 %v5461
    %5931 = vmatprep.subr.bf16.mxu0 %v5468
    %5932 = vmatpush1.bf16.msra.mxu0 %v5467
    %5933 = vmatprep.subr.bf16.mxu0 %v5474
    %5934 = vmatpush1.bf16.msra.mxu0 %v5473
    %5935 = vmatprep.subr.bf16.mxu0 %v5480
    %5936 = vmatpush1.bf16.msra.mxu0 %v5479
    %5937 = vmatprep.subr.bf16.mxu0 %v5486
    %5938 = vmatpush1.bf16.msra.mxu0 %v5485
    %5939 = vmatprep.mubr.bf16.mxu0 %v4762
    %5940 = vmatmul.mubr.bf16.gmra.mrb[0].mxu0 %v4761
    %v5941 = vpop.f32.mrb[0].mxu0
    %v5942 = vadd.f32 %v4942, %v5941
    %v5943 = vpop.f32.mrb[0].mxu0
    %v5944 = vadd.f32 %v4946, %v5943
    %v5945 = vpop.f32.mrb[0].mxu0
    %v5946 = vadd.f32 %v4942, %v5945
    %v5947 = vpop.f32.mrb[0].mxu0
    %v5948 = vadd.f32 %v4946, %v5947
    %5949 = vmatprep.mubr.bf16.mxu0 %v4765
    %5950 = vmatmul.mubr.bf16.gmra.mrb[0].mxu0 %v4764
    %v5951 = vpop.f32.mrb[0].mxu0
    %v5952 = vadd.f32 %v4942, %v5951
    %v5953 = vpop.f32.mrb[0].mxu0
    %v5954 = vadd.f32 %v4946, %v5953
    %v5955 = vpop.f32.mrb[0].mxu0
    %v5956 = vadd.f32 %v4942, %v5955
    %v5957 = vpop.f32.mrb[0].mxu0
    %v5958 = vadd.f32 %v4946, %v5957
    %5959 = vmatprep.mubr.bf16.mxu0 %v4768
    %5960 = vmatmul.mubr.bf16.gmra.mrb[0].mxu0 %v4767
    %v5961 = vpop.f32.mrb[0].mxu0
    %v5962 = vadd.f32 %v4942, %v5961
    %v5963 = vpop.f32.mrb[0].mxu0
    %v5964 = vadd.f32 %v4946, %v5963
    %v5965 = vpop.f32.mrb[0].mxu0
    %v5966 = vadd.f32 %v4942, %v5965
    %v5967 = vpop.f32.mrb[0].mxu0
    %v5968 = vadd.f32 %v4946, %v5967
    %5969 = vmatprep.mubr.bf16.mxu0 %v4771
    %5970 = vmatmul.mubr.bf16.gmra.mrb[0].mxu0 %v4770
    %v5971 = vpop.f32.mrb[0].mxu0
    %v5972 = vadd.f32 %v4942, %v5971
    %v5973 = vpop.f32.mrb[0].mxu0
    %v5974 = vadd.f32 %v4946, %v5973
    %v5975 = vpop.f32.mrb[0].mxu0
    %v5976 = vadd.f32 %v4942, %v5975
    %v5977 = vpop.f32.mrb[0].mxu0
    %v5978 = vadd.f32 %v4946, %v5977
    %5979 = vmatprep.mubr.bf16.mxu0 %v4774
    %5980 = vmatmul.mubr.bf16.gmra.mrb[0].mxu0 %v4773
    %v5981 = vpop.f32.mrb[0].mxu0
    %v5982 = vadd.f32 %v4942, %v5981
    %v5983 = vpop.f32.mrb[0].mxu0
    %v5984 = vadd.f32 %v4946, %v5983
    %v5985 = vpop.f32.mrb[0].mxu0
    %v5986 = vadd.f32 %v4942, %v5985
    %v5987 = vpop.f32.mrb[0].mxu0
    %v5988 = vadd.f32 %v4946, %v5987
    %5989 = vmatprep.mubr.bf16.mxu0 %v4777
    %5990 = vmatmul.mubr.bf16.gmra.mrb[0].mxu0 %v4776
    %v5991 = vpop.f32.mrb[0].mxu0
    %v5992 = vadd.f32 %v4942, %v5991
    %v5993 = vpop.f32.mrb[0].mxu0
    %v5994 = vadd.f32 %v4946, %v5993
    %v5995 = vpop.f32.mrb[0].mxu0
    %v5996 = vadd.f32 %v4942, %v5995
    %v5997 = vpop.f32.mrb[0].mxu0
    %v5998 = vadd.f32 %v4946, %v5997
    %5999 = vmatprep.mubr.bf16.mxu0 %v4780
    %6000 = vmatmul.mubr.bf16.gmra.mrb[0].mxu0 %v4779
    %v6001 = vpop.f32.mrb[0].mxu0
    %v6002 = vadd.f32 %v4942, %v6001
    %v6003 = vpop.f32.mrb[0].mxu0
    %v6004 = vadd.f32 %v4946, %v6003
    %v6005 = vpop.f32.mrb[0].mxu0
    %v6006 = vadd.f32 %v4942, %v6005
    %v6007 = vpop.f32.mrb[0].mxu0
    %v6008 = vadd.f32 %v4946, %v6007
    %6009 = vmatprep.mubr.bf16.mxu0 %v4783
    %6010 = vmatmul.mubr.bf16.gmra.mrb[0].mxu0 %v4782
    %v6011 = vpop.f32.mrb[0].mxu0
    %v6012 = vadd.f32 %v4942, %v6011
    %v6013 = vpop.f32.mrb[0].mxu0
    %v6014 = vadd.f32 %v4946, %v6013
    %v6015 = vpop.f32.mrb[0].mxu0
    %v6016 = vadd.f32 %v4942, %v6015
    %v6017 = vpop.f32.mrb[0].mxu0
    %v6018 = vadd.f32 %v4946, %v6017
    %6019 = vdwg.mxu0
    %6020 = vmatprep.subr.bf16.mxu0 %v5492
    %6021 = vmatpush1.bf16.msra.mxu0 %v5491
    %6022 = vmatprep.subr.bf16.mxu0 %v5498
    %6023 = vmatpush1.bf16.msra.mxu0 %v5497
    %6024 = vmatprep.subr.bf16.mxu0 %v5504
    %6025 = vmatpush1.bf16.msra.mxu0 %v5503
    %6026 = vmatprep.subr.bf16.mxu0 %v5510
    %6027 = vmatpush1.bf16.msra.mxu0 %v5509
    %6028 = vmatprep.subr.bf16.mxu0 %v5516
    %6029 = vmatpush1.bf16.msra.mxu0 %v5515
    %6030 = vmatprep.subr.bf16.mxu0 %v5522
    %6031 = vmatpush1.bf16.msra.mxu0 %v5521
    %6032 = vmatprep.subr.bf16.mxu0 %v5528
    %6033 = vmatpush1.bf16.msra.mxu0 %v5527
    %6034 = vmatprep.subr.bf16.mxu0 %v5534
    %6035 = vmatpush1.bf16.msra.mxu0 %v5533
    %6036 = vmatprep.subr.bf16.mxu0 0
    %6037 = vmatpush1.bf16.msra.mxu0 0
    %6038 = vmatprep.subr.bf16.mxu0 0
    %6039 = vmatpush1.bf16.msra.mxu0 0
    %6040 = vmatprep.subr.bf16.mxu0 0
    %6041 = vmatpush1.bf16.msra.mxu0 0
    %6042 = vmatprep.subr.bf16.mxu0 0
    %6043 = vmatpush1.bf16.msra.mxu0 0
    %6044 = vmatprep.subr.bf16.mxu0 0
    %6045 = vmatpush1.bf16.msra.mxu0 0
    %6046 = vmatprep.subr.bf16.mxu0 0
    %6047 = vmatpush1.bf16.msra.mxu0 0
    %6048 = vmatprep.subr.bf16.mxu0 0
    %6049 = vmatpush1.bf16.msra.mxu0 0
    %6050 = vmatprep.subr.bf16.mxu0 0
    %6051 = vmatpush1.bf16.msra.mxu0 0
    %6052 = vmatprep.mubr.bf16.mxu0 0
    %6053 = vmatmul.mubr.bf16.gmra.mrb[0].mxu0 %v4763
    %v6054 = vpop.f32.mrb[0].mxu0
    %v6055 = vadd.f32 %v5942, %v6054
    %v6056 = vpop.f32.mrb[0].mxu0
    %v6057 = vadd.f32 %v5944, %v6056
    %v6058 = vpop.f32.mrb[0].mxu0
    %v6059 = vadd.f32 %v5946, %v6058
    %v6060 = vpop.f32.mrb[0].mxu0
    %v6061 = vadd.f32 %v5948, %v6060
    %6062 = vmatprep.mubr.bf16.mxu0 0
    %6063 = vmatmul.mubr.bf16.gmra.mrb[0].mxu0 %v4766
    %v6064 = vpop.f32.mrb[0].mxu0
    %v6065 = vadd.f32 %v5952, %v6064
    %v6066 = vpop.f32.mrb[0].mxu0
    %v6067 = vadd.f32 %v5954, %v6066
    %v6068 = vpop.f32.mrb[0].mxu0
    %v6069 = vadd.f32 %v5956, %v6068
    %v6070 = vpop.f32.mrb[0].mxu0
    %v6071 = vadd.f32 %v5958, %v6070
    %6072 = vmatprep.mubr.bf16.mxu0 0
    %6073 = vmatmul.mubr.bf16.gmra.mrb[0].mxu0 %v4769
    %v6074 = vpop.f32.mrb[0].mxu0
    %v6075 = vadd.f32 %v5962, %v6074
    %v6076 = vpop.f32.mrb[0].mxu0
    %v6077 = vadd.f32 %v5964, %v6076
    %v6078 = vpop.f32.mrb[0].mxu0
    %v6079 = vadd.f32 %v5966, %v6078
    %v6080 = vpop.f32.mrb[0].mxu0
    %v6081 = vadd.f32 %v5968, %v6080
    %6082 = vmatprep.mubr.bf16.mxu0 0
    %6083 = vmatmul.mubr.bf16.gmra.mrb[0].mxu0 %v4772
    %v6084 = vpop.f32.mrb[0].mxu0
    %v6085 = vadd.f32 %v5972, %v6084
    %v6086 = vpop.f32.mrb[0].mxu0
    %v6087 = vadd.f32 %v5974, %v6086
    %v6088 = vpop.f32.mrb[0].mxu0
    %v6089 = vadd.f32 %v5976, %v6088
    %v6090 = vpop.f32.mrb[0].mxu0
    %v6091 = vadd.f32 %v5978, %v6090
    %6092 = vmatprep.mubr.bf16.mxu0 0
    %6093 = vmatmul.mubr.bf16.gmra.mrb[0].mxu0 %v4775
    %v6094 = vpop.f32.mrb[0].mxu0
    %v6095 = vadd.f32 %v5982, %v6094
    %v6096 = vpop.f32.mrb[0].mxu0
    %v6097 = vadd.f32 %v5984, %v6096
    %v6098 = vpop.f32.mrb[0].mxu0
    %v6099 = vadd.f32 %v5986, %v6098
    %v6100 = vpop.f32.mrb[0].mxu0
    %v6101 = vadd.f32 %v5988, %v6100
    %6102 = vmatprep.mubr.bf16.mxu0 0
    %6103 = vmatmul.mubr.bf16.gmra.mrb[0].mxu0 %v4778
    %v6104 = vpop.f32.mrb[0].mxu0
    %v6105 = vadd.f32 %v5992, %v6104
    %v6106 = vpop.f32.mrb[0].mxu0
    %v6107 = vadd.f32 %v5994, %v6106
    %v6108 = vpop.f32.mrb[0].mxu0
    %v6109 = vadd.f32 %v5996, %v6108
    %v6110 = vpop.f32.mrb[0].mxu0
    %v6111 = vadd.f32 %v5998, %v6110
    %6112 = vmatprep.mubr.bf16.mxu0 0
    %6113 = vmatmul.mubr.bf16.gmra.mrb[0].mxu0 %v4781
    %v6114 = vpop.f32.mrb[0].mxu0
    %v6115 = vadd.f32 %v6002, %v6114
    %v6116 = vpop.f32.mrb[0].mxu0
    %v6117 = vadd.f32 %v6004, %v6116
    %v6118 = vpop.f32.mrb[0].mxu0
    %v6119 = vadd.f32 %v6006, %v6118
    %v6120 = vpop.f32.mrb[0].mxu0
    %v6121 = vadd.f32 %v6008, %v6120
    %6122 = vmatprep.mubr.bf16.mxu0 0
    %6123 = vmatmul.mubr.bf16.gmra.mrb[0].mxu0 %v4784
    %v6124 = vpop.f32.mrb[0].mxu0
    %v6125 = vadd.f32 %v6012, %v6124
    %v6126 = vpop.f32.mrb[0].mxu0
    %v6127 = vadd.f32 %v6014, %v6126
    %v6128 = vpop.f32.mrb[0].mxu0
    %v6129 = vadd.f32 %v6016, %v6128
    %v6130 = vpop.f32.mrb[0].mxu0
    %v6131 = vadd.f32 %v6018, %v6130
    %6132 = vdwg.mxu0
    %6133 = vmatprep.subr.bf16.mxu0 %v5398
    %6134 = vmatpush1.bf16.msra.mxu0 %v5397
    %6135 = vmatprep.subr.bf16.mxu0 %v5404
    %6136 = vmatpush1.bf16.msra.mxu0 %v5403
    %6137 = vmatprep.subr.bf16.mxu0 %v5410
    %6138 = vmatpush1.bf16.msra.mxu0 %v5409
    %6139 = vmatprep.subr.bf16.mxu0 %v5416
    %6140 = vmatpush1.bf16.msra.mxu0 %v5415
    %6141 = vmatprep.subr.bf16.mxu0 %v5422
    %6142 = vmatpush1.bf16.msra.mxu0 %v5421
    %6143 = vmatprep.subr.bf16.mxu0 %v5428
    %6144 = vmatpush1.bf16.msra.mxu0 %v5427
    %6145 = vmatprep.subr.bf16.mxu0 %v5434
    %6146 = vmatpush1.bf16.msra.mxu0 %v5433
    %6147 = vmatprep.subr.bf16.mxu0 %v5440
    %6148 = vmatpush1.bf16.msra.mxu0 %v5439
    %6149 = vmatprep.subr.bf16.mxu0 %v5446
    %6150 = vmatpush1.bf16.msra.mxu0 %v5445
    %6151 = vmatprep.subr.bf16.mxu0 %v5452
    %6152 = vmatpush1.bf16.msra.mxu0 %v5451
    %6153 = vmatprep.subr.bf16.mxu0 %v5458
    %6154 = vmatpush1.bf16.msra.mxu0 %v5457
    %6155 = vmatprep.subr.bf16.mxu0 %v5464
    %6156 = vmatpush1.bf16.msra.mxu0 %v5463
    %6157 = vmatprep.subr.bf16.mxu0 %v5470
    %6158 = vmatpush1.bf16.msra.mxu0 %v5469
    %6159 = vmatprep.subr.bf16.mxu0 %v5476
    %6160 = vmatpush1.bf16.msra.mxu0 %v5475
    %6161 = vmatprep.subr.bf16.mxu0 %v5482
    %6162 = vmatpush1.bf16.msra.mxu0 %v5481
    %6163 = vmatprep.subr.bf16.mxu0 %v5488
    %6164 = vmatpush1.bf16.msra.mxu0 %v5487
    %6165 = vmatprep.mubr.bf16.mxu0 %v4762
    %6166 = vmatmul.mubr.bf16.gmra.mrb[0].mxu0 %v4761
    %v6167 = vpop.f32.mrb[0].mxu0
    %v6168 = vadd.f32 %v4950, %v6167
    %v6169 = vpop.f32.mrb[0].mxu0
    %v6170 = vadd.f32 %v4954, %v6169
    %v6171 = vpop.f32.mrb[0].mxu0
    %v6172 = vadd.f32 %v4950, %v6171
    %v6173 = vpop.f32.mrb[0].mxu0
    %v6174 = vadd.f32 %v4954, %v6173
    %6175 = vmatprep.mubr.bf16.mxu0 %v4765
    %6176 = vmatmul.mubr.bf16.gmra.mrb[0].mxu0 %v4764
    %v6177 = vpop.f32.mrb[0].mxu0
    %v6178 = vadd.f32 %v4950, %v6177
    %v6179 = vpop.f32.mrb[0].mxu0
    %v6180 = vadd.f32 %v4954, %v6179
    %v6181 = vpop.f32.mrb[0].mxu0
    %v6182 = vadd.f32 %v4950, %v6181
    %v6183 = vpop.f32.mrb[0].mxu0
    %v6184 = vadd.f32 %v4954, %v6183
    %6185 = vmatprep.mubr.bf16.mxu0 %v4768
    %6186 = vmatmul.mubr.bf16.gmra.mrb[0].mxu0 %v4767
    %v6187 = vpop.f32.mrb[0].mxu0
    %v6188 = vadd.f32 %v4950, %v6187
    %v6189 = vpop.f32.mrb[0].mxu0
    %v6190 = vadd.f32 %v4954, %v6189
    %v6191 = vpop.f32.mrb[0].mxu0
    %v6192 = vadd.f32 %v4950, %v6191
    %v6193 = vpop.f32.mrb[0].mxu0
    %v6194 = vadd.f32 %v4954, %v6193
    %6195 = vmatprep.mubr.bf16.mxu0 %v4771
    %6196 = vmatmul.mubr.bf16.gmra.mrb[0].mxu0 %v4770
    %v6197 = vpop.f32.mrb[0].mxu0
    %v6198 = vadd.f32 %v4950, %v6197
    %v6199 = vpop.f32.mrb[0].mxu0
    %v6200 = vadd.f32 %v4954, %v6199
    %v6201 = vpop.f32.mrb[0].mxu0
    %v6202 = vadd.f32 %v4950, %v6201
    %v6203 = vpop.f32.mrb[0].mxu0
    %v6204 = vadd.f32 %v4954, %v6203
    %6205 = vmatprep.mubr.bf16.mxu0 %v4774
    %6206 = vmatmul.mubr.bf16.gmra.mrb[0].mxu0 %v4773
    %v6207 = vpop.f32.mrb[0].mxu0
    %v6208 = vadd.f32 %v4950, %v6207
    %v6209 = vpop.f32.mrb[0].mxu0
    %v6210 = vadd.f32 %v4954, %v6209
    %v6211 = vpop.f32.mrb[0].mxu0
    %v6212 = vadd.f32 %v4950, %v6211
    %v6213 = vpop.f32.mrb[0].mxu0
    %v6214 = vadd.f32 %v4954, %v6213
    %6215 = vmatprep.mubr.bf16.mxu0 %v4777
    %6216 = vmatmul.mubr.bf16.gmra.mrb[0].mxu0 %v4776
    %v6217 = vpop.f32.mrb[0].mxu0
    %v6218 = vadd.f32 %v4950, %v6217
    %v6219 = vpop.f32.mrb[0].mxu0
    %v6220 = vadd.f32 %v4954, %v6219
    %v6221 = vpop.f32.mrb[0].mxu0
    %v6222 = vadd.f32 %v4950, %v6221
    %v6223 = vpop.f32.mrb[0].mxu0
    %v6224 = vadd.f32 %v4954, %v6223
    %6225 = vmatprep.mubr.bf16.mxu0 %v4780
    %6226 = vmatmul.mubr.bf16.gmra.mrb[0].mxu0 %v4779
    %v6227 = vpop.f32.mrb[0].mxu0
    %v6228 = vadd.f32 %v4950, %v6227
    %v6229 = vpop.f32.mrb[0].mxu0
    %v6230 = vadd.f32 %v4954, %v6229
    %v6231 = vpop.f32.mrb[0].mxu0
    %v6232 = vadd.f32 %v4950, %v6231
    %v6233 = vpop.f32.mrb[0].mxu0
    %v6234 = vadd.f32 %v4954, %v6233
    %6235 = vmatprep.mubr.bf16.mxu0 %v4783
    %6236 = vmatmul.mubr.bf16.gmra.mrb[0].mxu0 %v4782
    %v6237 = vpop.f32.mrb[0].mxu0
    %v6238 = vadd.f32 %v4950, %v6237
    %v6239 = vpop.f32.mrb[0].mxu0
    %v6240 = vadd.f32 %v4954, %v6239
    %v6241 = vpop.f32.mrb[0].mxu0
    %v6242 = vadd.f32 %v4950, %v6241
    %v6243 = vpop.f32.mrb[0].mxu0
    %v6244 = vadd.f32 %v4954, %v6243
    %6245 = vdwg.mxu0
    %6246 = vmatprep.subr.bf16.mxu0 %v5494
    %6247 = vmatpush1.bf16.msra.mxu0 %v5493
    %6248 = vmatprep.subr.bf16.mxu0 %v5500
    %6249 = vmatpush1.bf16.msra.mxu0 %v5499
    %6250 = vmatprep.subr.bf16.mxu0 %v5506
    %6251 = vmatpush1.bf16.msra.mxu0 %v5505
    %6252 = vmatprep.subr.bf16.mxu0 %v5512
    %6253 = vmatpush1.bf16.msra.mxu0 %v5511
    %6254 = vmatprep.subr.bf16.mxu0 %v5518
    %6255 = vmatpush1.bf16.msra.mxu0 %v5517
    %6256 = vmatprep.subr.bf16.mxu0 %v5524
    %6257 = vmatpush1.bf16.msra.mxu0 %v5523
    %6258 = vmatprep.subr.bf16.mxu0 %v5530
    %6259 = vmatpush1.bf16.msra.mxu0 %v5529
    %6260 = vmatprep.subr.bf16.mxu0 %v5536
    %6261 = vmatpush1.bf16.msra.mxu0 %v5535
    %6262 = vmatprep.subr.bf16.mxu0 0
    %6263 = vmatpush1.bf16.msra.mxu0 0
    %6264 = vmatprep.subr.bf16.mxu0 0
    %6265 = vmatpush1.bf16.msra.mxu0 0
    %6266 = vmatprep.subr.bf16.mxu0 0
    %6267 = vmatpush1.bf16.msra.mxu0 0
    %6268 = vmatprep.subr.bf16.mxu0 0
    %6269 = vmatpush1.bf16.msra.mxu0 0
    %6270 = vmatprep.subr.bf16.mxu0 0
    %6271 = vmatpush1.bf16.msra.mxu0 0
    %6272 = vmatprep.subr.bf16.mxu0 0
    %6273 = vmatpush1.bf16.msra.mxu0 0
    %6274 = vmatprep.subr.bf16.mxu0 0
    %6275 = vmatpush1.bf16.msra.mxu0 0
    %6276 = vmatprep.subr.bf16.mxu0 0
    %6277 = vmatpush1.bf16.msra.mxu0 0
    %6278 = vmatprep.mubr.bf16.mxu0 0
    %6279 = vmatmul.mubr.bf16.gmra.mrb[0].mxu0 %v4763
    %v6280 = vpop.f32.mrb[0].mxu0
    %v6281 = vadd.f32 %v6168, %v6280
    %v6282 = vpop.f32.mrb[0].mxu0
    %v6283 = vadd.f32 %v6170, %v6282
    %v6284 = vpop.f32.mrb[0].mxu0
    %v6285 = vadd.f32 %v6172, %v6284
    %v6286 = vpop.f32.mrb[0].mxu0
    %v6287 = vadd.f32 %v6174, %v6286
    %6288 = vmatprep.mubr.bf16.mxu0 0
    %6289 = vmatmul.mubr.bf16.gmra.mrb[0].mxu0 %v4766
    %v6290 = vpop.f32.mrb[0].mxu0
    %v6291 = vadd.f32 %v6178, %v6290
    %v6292 = vpop.f32.mrb[0].mxu0
    %v6293 = vadd.f32 %v6180, %v6292
    %v6294 = vpop.f32.mrb[0].mxu0
    %v6295 = vadd.f32 %v6182, %v6294
    %v6296 = vpop.f32.mrb[0].mxu0
    %v6297 = vadd.f32 %v6184, %v6296
    %6298 = vmatprep.mubr.bf16.mxu0 0
    %6299 = vmatmul.mubr.bf16.gmra.mrb[0].mxu0 %v4769
    %v6300 = vpop.f32.mrb[0].mxu0
    %v6301 = vadd.f32 %v6188, %v6300
    %v6302 = vpop.f32.mrb[0].mxu0
    %v6303 = vadd.f32 %v6190, %v6302
    %v6304 = vpop.f32.mrb[0].mxu0
    %v6305 = vadd.f32 %v6192, %v6304
    %v6306 = vpop.f32.mrb[0].mxu0
    %v6307 = vadd.f32 %v6194, %v6306
    %6308 = vmatprep.mubr.bf16.mxu0 0
    %6309 = vmatmul.mubr.bf16.gmra.mrb[0].mxu0 %v4772
    %v6310 = vpop.f32.mrb[0].mxu0
    %v6311 = vadd.f32 %v6198, %v6310
    %v6312 = vpop.f32.mrb[0].mxu0
    %v6313 = vadd.f32 %v6200, %v6312
    %v6314 = vpop.f32.mrb[0].mxu0
    %v6315 = vadd.f32 %v6202, %v6314
    %v6316 = vpop.f32.mrb[0].mxu0
    %v6317 = vadd.f32 %v6204, %v6316
    %6318 = vmatprep.mubr.bf16.mxu0 0
    %6319 = vmatmul.mubr.bf16.gmra.mrb[0].mxu0 %v4775
    %v6320 = vpop.f32.mrb[0].mxu0
    %v6321 = vadd.f32 %v6208, %v6320
    %v6322 = vpop.f32.mrb[0].mxu0
    %v6323 = vadd.f32 %v6210, %v6322
    %v6324 = vpop.f32.mrb[0].mxu0
    %v6325 = vadd.f32 %v6212, %v6324
    %v6326 = vpop.f32.mrb[0].mxu0
    %v6327 = vadd.f32 %v6214, %v6326
    %6328 = vmatprep.mubr.bf16.mxu0 0
    %6329 = vmatmul.mubr.bf16.gmra.mrb[0].mxu0 %v4778
    %v6330 = vpop.f32.mrb[0].mxu0
    %v6331 = vadd.f32 %v6218, %v6330
    %v6332 = vpop.f32.mrb[0].mxu0
    %v6333 = vadd.f32 %v6220, %v6332
    %v6334 = vpop.f32.mrb[0].mxu0
    %v6335 = vadd.f32 %v6222, %v6334
    %v6336 = vpop.f32.mrb[0].mxu0
    %v6337 = vadd.f32 %v6224, %v6336
    %6338 = vmatprep.mubr.bf16.mxu0 0
    %6339 = vmatmul.mubr.bf16.gmra.mrb[0].mxu0 %v4781
    %v6340 = vpop.f32.mrb[0].mxu0
    %v6341 = vadd.f32 %v6228, %v6340
    %v6342 = vpop.f32.mrb[0].mxu0
    %v6343 = vadd.f32 %v6230, %v6342
    %v6344 = vpop.f32.mrb[0].mxu0
    %v6345 = vadd.f32 %v6232, %v6344
    %v6346 = vpop.f32.mrb[0].mxu0
    %v6347 = vadd.f32 %v6234, %v6346
    %6348 = vmatprep.mubr.bf16.mxu0 0
    %6349 = vmatmul.mubr.bf16.gmra.mrb[0].mxu0 %v4784
    %v6350 = vpop.f32.mrb[0].mxu0
    %v6351 = vadd.f32 %v6238, %v6350
    %v6352 = vpop.f32.mrb[0].mxu0
    %v6353 = vadd.f32 %v6240, %v6352
    %v6354 = vpop.f32.mrb[0].mxu0
    %v6355 = vadd.f32 %v6242, %v6354
    %v6356 = vpop.f32.mrb[0].mxu0
    %v6357 = vadd.f32 %v6244, %v6356
    %6358 = vdwg.mxu0
    %v6359 = vmul.f32 %v6057, 0.5
    %v6360 = vmul.f32 %v6281, 0.5
    %v6361 = vmul.f32 %v6283, 0.5
    %v6362 = vmul.f32 %v6061, 0.5
    %v6363 = vmul.f32 %v6285, 0.5
    %v6364 = vmul.f32 %v6287, 0.5
    %v6365 = vmul.f32 %v6067, 0.5
    %v6366 = vmul.f32 %v6291, 0.5
    %v6367 = vmul.f32 %v6293, 0.5
    %v6368 = vmul.f32 %v6071, 0.5
    %v6369 = vmul.f32 %v6295, 0.5
    %v6370 = vmul.f32 %v6297, 0.5
    %v6371 = vmul.f32 %v6077, 0.5
    %v6372 = vmul.f32 %v6301, 0.5
    %v6373 = vmul.f32 %v6303, 0.5
    %v6374 = vmul.f32 %v6081, 0.5
    %v6375 = vmul.f32 %v6305, 0.5
    %v6376 = vmul.f32 %v6307, 0.5
    %v6377 = vmul.f32 %v6087, 0.5
    %v6378 = vmul.f32 %v6311, 0.5
    %v6379 = vmul.f32 %v6313, 0.5
    %v6380 = vmul.f32 %v6091, 0.5
    %v6381 = vmul.f32 %v6315, 0.5
    %v6382 = vmul.f32 %v6317, 0.5
    %v6383 = vmul.f32 %v6097, 0.5
    %v6384 = vmul.f32 %v6321, 0.5
    %v6385 = vmul.f32 %v6323, 0.5
    %v6386 = vmul.f32 %v6101, 0.5
    %v6387 = vmul.f32 %v6325, 0.5
    %v6388 = vmul.f32 %v6327, 0.5
    %v6389 = vmul.f32 %v6107, 0.5
    %v6390 = vmul.f32 %v6331, 0.5
    %v6391 = vmul.f32 %v6333, 0.5
    %v6392 = vmul.f32 %v6111, 0.5
    %v6393 = vmul.f32 %v6335, 0.5
    %v6394 = vmul.f32 %v6337, 0.5
    %v6395 = vmul.f32 %v6117, 0.5
    %v6396 = vmul.f32 %v6341, 0.5
    %v6397 = vmul.f32 %v6343, 0.5
    %v6398 = vmul.f32 %v6121, 0.5
    %v6399 = vmul.f32 %v6345, 0.5
    %v6400 = vmul.f32 %v6347, 0.5
    %v6401 = vmul.f32 %v6127, 0.5
    %v6402 = vmul.f32 %v6351, 0.5
    %v6403 = vmul.f32 %v6353, 0.5
    %v6404 = vmul.f32 %v6131, 0.5
    %v6405 = vmul.f32 %v6355, 0.5
    %v6406 = vmul.f32 %v6357, 0.5
    %v6407 = vtanh.pop %v6359
    %v6408 = vtanh.pop %v6360
    %v6409 = vtanh.pop %v6361
    %v6410 = vtanh.pop %v6362
    %v6411 = vtanh.pop %v6363
    %v6412 = vtanh.pop %v6364
    %v6413 = vtanh.pop %v6365
    %v6414 = vtanh.pop %v6366
    %v6415 = vtanh.pop %v6367
    %v6416 = vtanh.pop %v6368
    %v6417 = vtanh.pop %v6369
    %v6418 = vtanh.pop %v6370
    %v6419 = vtanh.pop %v6371
    %v6420 = vtanh.pop %v6372
    %v6421 = vtanh.pop %v6373
    %v6422 = vtanh.pop %v6374
    %v6423 = vtanh.pop %v6375
    %v6424 = vtanh.pop %v6376
    %v6425 = vtanh.pop %v6377
    %v6426 = vtanh.pop %v6378
    %v6427 = vtanh.pop %v6379
    %v6428 = vtanh.pop %v6380
    %v6429 = vtanh.pop %v6381
    %v6430 = vtanh.pop %v6382
    %v6431 = vtanh.pop %v6383
    %v6432 = vtanh.pop %v6384
    %v6433 = vtanh.pop %v6385
    %v6434 = vtanh.pop %v6386
    %v6435 = vtanh.pop %v6387
    %v6436 = vtanh.pop %v6388
    %v6437 = vtanh.pop %v6389
    %v6438 = vtanh.pop %v6390
    %v6439 = vtanh.pop %v6391
    %v6440 = vtanh.pop %v6392
    %v6441 = vtanh.pop %v6393
    %v6442 = vtanh.pop %v6394
    %v6443 = vtanh.pop %v6395
    %v6444 = vtanh.pop %v6396
    %v6445 = vtanh.pop %v6397
    %v6446 = vtanh.pop %v6398
    %v6447 = vtanh.pop %v6399
    %v6448 = vtanh.pop %v6400
    %v6449 = vtanh.pop %v6401
    %v6450 = vtanh.pop %v6402
    %v6451 = vtanh.pop %v6403
    %v6452 = vtanh.pop %v6404
    %v6453 = vtanh.pop %v6405
    %v6454 = vtanh.pop %v6406
    %v6455 = vmul.f32 %v6407, 0.5
    %v6456 = vmul.f32 %v6408, 0.5
    %v6457 = vmul.f32 %v6409, 0.5
    %v6458 = vmul.f32 %v6410, 0.5
    %v6459 = vmul.f32 %v6411, 0.5
    %v6460 = vmul.f32 %v6412, 0.5
    %v6461 = vmul.f32 %v6413, 0.5
    %v6462 = vmul.f32 %v6414, 0.5
    %v6463 = vmul.f32 %v6415, 0.5
    %v6464 = vmul.f32 %v6416, 0.5
    %v6465 = vmul.f32 %v6417, 0.5
    %v6466 = vmul.f32 %v6418, 0.5
    %v6467 = vmul.f32 %v6419, 0.5
    %v6468 = vmul.f32 %v6420, 0.5
    %v6469 = vmul.f32 %v6421, 0.5
    %v6470 = vmul.f32 %v6422, 0.5
    %v6471 = vmul.f32 %v6423, 0.5
    %v6472 = vmul.f32 %v6424, 0.5
    %v6473 = vmul.f32 %v6425, 0.5
    %v6474 = vmul.f32 %v6426, 0.5
    %v6475 = vmul.f32 %v6427, 0.5
    %v6476 = vmul.f32 %v6428, 0.5
    %v6477 = vmul.f32 %v6429, 0.5
    %v6478 = vmul.f32 %v6430, 0.5
    %v6479 = vmul.f32 %v6431, 0.5
    %v6480 = vmul.f32 %v6432, 0.5
    %v6481 = vmul.f32 %v6433, 0.5
    %v6482 = vmul.f32 %v6434, 0.5
    %v6483 = vmul.f32 %v6435, 0.5
    %v6484 = vmul.f32 %v6436, 0.5
    %v6485 = vmul.f32 %v6437, 0.5
    %v6486 = vmul.f32 %v6438, 0.5
    %v6487 = vmul.f32 %v6439, 0.5
    %v6488 = vmul.f32 %v6440, 0.5
    %v6489 = vmul.f32 %v6441, 0.5
    %v6490 = vmul.f32 %v6442, 0.5
    %v6491 = vmul.f32 %v6443, 0.5
    %v6492 = vmul.f32 %v6444, 0.5
    %v6493 = vmul.f32 %v6445, 0.5
    %v6494 = vmul.f32 %v6446, 0.5
    %v6495 = vmul.f32 %v6447, 0.5
    %v6496 = vmul.f32 %v6448, 0.5
    %v6497 = vmul.f32 %v6449, 0.5
    %v6498 = vmul.f32 %v6450, 0.5
    %v6499 = vmul.f32 %v6451, 0.5
    %v6500 = vmul.f32 %v6452, 0.5
    %v6501 = vmul.f32 %v6453, 0.5
    %v6502 = vmul.f32 %v6454, 0.5
    %v6503 = vadd.f32 %v6455, 0.5
    %v6504 = vadd.f32 %v6456, 0.5
    %v6505 = vadd.f32 %v6457, 0.5
    %v6506 = vadd.f32 %v6458, 0.5
    %v6507 = vadd.f32 %v6459, 0.5
    %v6508 = vadd.f32 %v6460, 0.5
    %v6509 = vadd.f32 %v6461, 0.5
    %v6510 = vadd.f32 %v6462, 0.5
    %v6511 = vadd.f32 %v6463, 0.5
    %v6512 = vadd.f32 %v6464, 0.5
    %v6513 = vadd.f32 %v6465, 0.5
    %v6514 = vadd.f32 %v6466, 0.5
    %v6515 = vadd.f32 %v6467, 0.5
    %v6516 = vadd.f32 %v6468, 0.5
    %v6517 = vadd.f32 %v6469, 0.5
    %v6518 = vadd.f32 %v6470, 0.5
    %v6519 = vadd.f32 %v6471, 0.5
    %v6520 = vadd.f32 %v6472, 0.5
    %v6521 = vadd.f32 %v6473, 0.5
    %v6522 = vadd.f32 %v6474, 0.5
    %v6523 = vadd.f32 %v6475, 0.5
    %v6524 = vadd.f32 %v6476, 0.5
    %v6525 = vadd.f32 %v6477, 0.5
    %v6526 = vadd.f32 %v6478, 0.5
    %v6527 = vadd.f32 %v6479, 0.5
    %v6528 = vadd.f32 %v6480, 0.5
    %v6529 = vadd.f32 %v6481, 0.5
    %v6530 = vadd.f32 %v6482, 0.5
    %v6531 = vadd.f32 %v6483, 0.5
    %v6532 = vadd.f32 %v6484, 0.5
    %v6533 = vadd.f32 %v6485, 0.5
    %v6534 = vadd.f32 %v6486, 0.5
    %v6535 = vadd.f32 %v6487, 0.5
    %v6536 = vadd.f32 %v6488, 0.5
    %v6537 = vadd.f32 %v6489, 0.5
    %v6538 = vadd.f32 %v6490, 0.5
    %v6539 = vadd.f32 %v6491, 0.5
    %v6540 = vadd.f32 %v6492, 0.5
    %v6541 = vadd.f32 %v6493, 0.5
    %v6542 = vadd.f32 %v6494, 0.5
    %v6543 = vadd.f32 %v6495, 0.5
    %v6544 = vadd.f32 %v6496, 0.5
    %v6545 = vadd.f32 %v6497, 0.5
    %v6546 = vadd.f32 %v6498, 0.5
    %v6547 = vadd.f32 %v6499, 0.5
    %v6548 = vadd.f32 %v6500, 0.5
    %v6549 = vadd.f32 %v6501, 0.5
    %v6550 = vadd.f32 %v6502, 0.5
    %v6551 = vmul.f32 %v5829, %v6503
    %v6552 = vmul.f32 %v5831, %v6504
    %v6553 = vmul.f32 %v6055, %v6505
    %v6554 = vmul.f32 %v5833, %v6506
    %v6555 = vmul.f32 %v5835, %v6507
    %v6556 = vmul.f32 %v6059, %v6508
    %v6557 = vmul.f32 %v5839, %v6509
    %v6558 = vmul.f32 %v5841, %v6510
    %v6559 = vmul.f32 %v6065, %v6511
    %v6560 = vmul.f32 %v5843, %v6512
    %v6561 = vmul.f32 %v5845, %v6513
    %v6562 = vmul.f32 %v6069, %v6514
    %v6563 = vmul.f32 %v5849, %v6515
    %v6564 = vmul.f32 %v5851, %v6516
    %v6565 = vmul.f32 %v6075, %v6517
    %v6566 = vmul.f32 %v5853, %v6518
    %v6567 = vmul.f32 %v5855, %v6519
    %v6568 = vmul.f32 %v6079, %v6520
    %v6569 = vmul.f32 %v5859, %v6521
    %v6570 = vmul.f32 %v5861, %v6522
    %v6571 = vmul.f32 %v6085, %v6523
    %v6572 = vmul.f32 %v5863, %v6524
    %v6573 = vmul.f32 %v5865, %v6525
    %v6574 = vmul.f32 %v6089, %v6526
    %v6575 = vmul.f32 %v5869, %v6527
    %v6576 = vmul.f32 %v5871, %v6528
    %v6577 = vmul.f32 %v6095, %v6529
    %v6578 = vmul.f32 %v5873, %v6530
    %v6579 = vmul.f32 %v5875, %v6531
    %v6580 = vmul.f32 %v6099, %v6532
    %v6581 = vmul.f32 %v5879, %v6533
    %v6582 = vmul.f32 %v5881, %v6534
    %v6583 = vmul.f32 %v6105, %v6535
    %v6584 = vmul.f32 %v5883, %v6536
    %v6585 = vmul.f32 %v5885, %v6537
    %v6586 = vmul.f32 %v6109, %v6538
    %v6587 = vmul.f32 %v5889, %v6539
    %v6588 = vmul.f32 %v5891, %v6540
    %v6589 = vmul.f32 %v6115, %v6541
    %v6590 = vmul.f32 %v5893, %v6542
    %v6591 = vmul.f32 %v5895, %v6543
    %v6592 = vmul.f32 %v6119, %v6544
    %v6593 = vmul.f32 %v5899, %v6545
    %v6594 = vmul.f32 %v5901, %v6546
    %v6595 = vmul.f32 %v6125, %v6547
    %v6596 = vmul.f32 %v5903, %v6548
    %v6597 = vmul.f32 %v5905, %v6549
    %v6598 = vmul.f32 %v6129, %v6550
    %v6599 = vpack.c.bf16 %v6554, %v6551
    %v6600 = vpack.c.bf16 %v6555, %v6552
    %v6601 = vpack.c.bf16 %v6556, %v6553
    %v6602 = vpack.c.bf16 %v6560, %v6557
    %v6603 = vpack.c.bf16 %v6561, %v6558
    %v6604 = vpack.c.bf16 %v6562, %v6559
    %v6605 = vpack.c.bf16 %v6566, %v6563
    %v6606 = vpack.c.bf16 %v6567, %v6564
    %v6607 = vpack.c.bf16 %v6568, %v6565
    %v6608 = vpack.c.bf16 %v6572, %v6569
    %v6609 = vpack.c.bf16 %v6573, %v6570
    %v6610 = vpack.c.bf16 %v6574, %v6571
    %v6611 = vpack.c.bf16 %v6578, %v6575
    %v6612 = vpack.c.bf16 %v6579, %v6576
    %v6613 = vpack.c.bf16 %v6580, %v6577
    %v6614 = vpack.c.bf16 %v6584, %v6581
    %v6615 = vpack.c.bf16 %v6585, %v6582
    %v6616 = vpack.c.bf16 %v6586, %v6583
    %v6617 = vpack.c.bf16 %v6590, %v6587
    %v6618 = vpack.c.bf16 %v6591, %v6588
    %v6619 = vpack.c.bf16 %v6592, %v6589
    %v6620 = vpack.c.bf16 %v6596, %v6593
    %v6621 = vpack.c.bf16 %v6597, %v6594
    %v6622 = vpack.c.bf16 %v6598, %v6595
    %v6623 = vld [vmem:[#allocation9] sm:$0xff]
    %v6624 = vld [vmem:[#allocation9 + $0x8] sm:$0xff]
    %v6625 = vld [vmem:[#allocation9 + $0x10] sm:$0xff]
    %v6626 = vld [vmem:[#allocation9 + $0x18] sm:$0xff]
    %v6627 = vld [vmem:[#allocation9 + $0x20] sm:$0xff]
    %v6628 = vld [vmem:[#allocation9 + $0x28] sm:$0xff]
    %v6629 = vld [vmem:[#allocation9 + $0x30] sm:$0xff]
    %v6630 = vld [vmem:[#allocation9 + $0x38] sm:$0xff]
    %v6631 = vld [vmem:[#allocation9 + $0x40] sm:$0xff]
    %v6632 = vld [vmem:[#allocation9 + $0x48] sm:$0xff]
    %v6633 = vld [vmem:[#allocation9 + $0x50] sm:$0xff]
    %v6634 = vld [vmem:[#allocation9 + $0x58] sm:$0xff]
    %v6635 = vld [vmem:[#allocation9 + $0x60] sm:$0xff]
    %v6636 = vld [vmem:[#allocation9 + $0x68] sm:$0xff]
    %v6637 = vld [vmem:[#allocation9 + $0x70] sm:$0xff]
    %v6638 = vld [vmem:[#allocation9 + $0x78] sm:$0xff]
    %v6639 = vld [vmem:[#allocation9 + $0x80] sm:$0xff]
    %v6640 = vld [vmem:[#allocation9 + $0x88] sm:$0xff]
    %v6641 = vld [vmem:[#allocation9 + $0x90] sm:$0xff]
    %v6642 = vld [vmem:[#allocation9 + $0x98] sm:$0xff]
    %v6643 = vld [vmem:[#allocation9 + $0xa0] sm:$0xff]
    %v6644 = vld [vmem:[#allocation9 + $0xa8] sm:$0xff]
    %v6645 = vld [vmem:[#allocation9 + $0xb0] sm:$0xff]
    %v6646 = vld [vmem:[#allocation9 + $0xb8] sm:$0xff]
    %v6647 = vld [vmem:[#allocation9 + $0xc0] sm:$0xff]
    %v6648 = vld [vmem:[#allocation9 + $0xc8] sm:$0xff]
    %v6649 = vld [vmem:[#allocation9 + $0xd0] sm:$0xff]
    %v6650 = vld [vmem:[#allocation9 + $0xd8] sm:$0xff]
    %v6651 = vld [vmem:[#allocation9 + $0xe0] sm:$0xff]
    %v6652 = vld [vmem:[#allocation9 + $0xe8] sm:$0xff]
    %v6653 = vld [vmem:[#allocation9 + $0xf0] sm:$0xff]
    %v6654 = vld [vmem:[#allocation9 + $0xf8] sm:$0xff]
    %v6655 = vld [vmem:[#allocation9 + $0x100] sm:$0xff]
    %v6656 = vld [vmem:[#allocation9 + $0x108] sm:$0xff]
    %v6657 = vld [vmem:[#allocation9 + $0x110] sm:$0xff]
    %v6658 = vld [vmem:[#allocation9 + $0x118] sm:$0xff]
    %v6659 = vld [vmem:[#allocation9 + $0x120] sm:$0xff]
    %v6660 = vld [vmem:[#allocation9 + $0x128] sm:$0xff]
    %v6661 = vld [vmem:[#allocation9 + $0x130] sm:$0xff]
    %v6662 = vld [vmem:[#allocation9 + $0x138] sm:$0xff]
    %v6663 = vld [vmem:[#allocation9 + $0x140] sm:$0xff]
    %v6664 = vld [vmem:[#allocation9 + $0x148] sm:$0xff]
    %v6665 = vld [vmem:[#allocation9 + $0x150] sm:$0xff]
    %v6666 = vld [vmem:[#allocation9 + $0x158] sm:$0xff]
    %v6667 = vld [vmem:[#allocation9 + $0x160] sm:$0xff]
    %v6668 = vld [vmem:[#allocation9 + $0x168] sm:$0xff]
    %v6669 = vld [vmem:[#allocation9 + $0x170] sm:$0xff]
    %v6670 = vld [vmem:[#allocation9 + $0x178] sm:$0xff]
    %v6671 = vld [vmem:[#allocation9 + $0x180] sm:$0xff]
    %v6672 = vld [vmem:[#allocation9 + $0x188] sm:$0xff]
    %v6673 = vld [vmem:[#allocation9 + $0x190] sm:$0xff]
    %v6674 = vld [vmem:[#allocation9 + $0x198] sm:$0xff]
    %v6675 = vld [vmem:[#allocation9 + $0x1a0] sm:$0xff]
    %v6676 = vld [vmem:[#allocation9 + $0x1a8] sm:$0xff]
    %v6677 = vld [vmem:[#allocation9 + $0x1b0] sm:$0xff]
    %v6678 = vld [vmem:[#allocation9 + $0x1b8] sm:$0xff]
    %v6679 = vld [vmem:[#allocation9 + $0x1c0] sm:$0xff]
    %v6680 = vld [vmem:[#allocation9 + $0x1c8] sm:$0xff]
    %v6681 = vld [vmem:[#allocation9 + $0x1d0] sm:$0xff]
    %v6682 = vld [vmem:[#allocation9 + $0x1d8] sm:$0xff]
    %v6683 = vld [vmem:[#allocation9 + $0x1e0] sm:$0xff]
    %v6684 = vld [vmem:[#allocation9 + $0x1e8] sm:$0xff]
    %v6685 = vld [vmem:[#allocation9 + $0x1f0] sm:$0xff]
    %v6686 = vld [vmem:[#allocation9 + $0x1f8] sm:$0xff]
    %v6687 = vld [vmem:[#allocation9 + $0x200] sm:$0xff]
    %v6688 = vld [vmem:[#allocation9 + $0x208] sm:$0xff]
    %v6689 = vld [vmem:[#allocation9 + $0x210] sm:$0xff]
    %v6690 = vld [vmem:[#allocation9 + $0x218] sm:$0xff]
    %v6691 = vld [vmem:[#allocation9 + $0x220] sm:$0xff]
    %v6692 = vld [vmem:[#allocation9 + $0x228] sm:$0xff]
    %v6693 = vld [vmem:[#allocation9 + $0x230] sm:$0xff]
    %v6694 = vld [vmem:[#allocation9 + $0x238] sm:$0xff]
    %v6695 = vld [vmem:[#allocation9 + $0x240] sm:$0xff]
    %v6696 = vld [vmem:[#allocation9 + $0x248] sm:$0xff]
    %v6697 = vld [vmem:[#allocation9 + $0x250] sm:$0xff]
    %v6698 = vld [vmem:[#allocation9 + $0x258] sm:$0xff]
    %v6699 = vld [vmem:[#allocation9 + $0x260] sm:$0xff]
    %v6700 = vld [vmem:[#allocation9 + $0x268] sm:$0xff]
    %v6701 = vld [vmem:[#allocation9 + $0x270] sm:$0xff]
    %v6702 = vld [vmem:[#allocation9 + $0x278] sm:$0xff]
    %v6703 = vld [vmem:[#allocation9 + $0x280] sm:$0xff]
    %v6704 = vld [vmem:[#allocation9 + $0x288] sm:$0xff]
    %v6705 = vld [vmem:[#allocation9 + $0x290] sm:$0xff]
    %v6706 = vld [vmem:[#allocation9 + $0x298] sm:$0xff]
    %v6707 = vld [vmem:[#allocation9 + $0x2a0] sm:$0xff]
    %v6708 = vld [vmem:[#allocation9 + $0x2a8] sm:$0xff]
    %v6709 = vld [vmem:[#allocation9 + $0x2b0] sm:$0xff]
    %v6710 = vld [vmem:[#allocation9 + $0x2b8] sm:$0xff]
    %v6711 = vld [vmem:[#allocation9 + $0x2c0] sm:$0xff]
    %v6712 = vld [vmem:[#allocation9 + $0x2c8] sm:$0xff]
    %v6713 = vld [vmem:[#allocation9 + $0x2d0] sm:$0xff]
    %v6714 = vld [vmem:[#allocation9 + $0x2d8] sm:$0xff]
    %v6715 = vld [vmem:[#allocation9 + $0x2e0] sm:$0xff]
    %v6716 = vld [vmem:[#allocation9 + $0x2e8] sm:$0xff]
    %v6717 = vld [vmem:[#allocation9 + $0x2f0] sm:$0xff]
    %v6718 = vld [vmem:[#allocation9 + $0x2f8] sm:$0xff]
    %v6719 = vld [vmem:[%s8 + $0x1a] sm:$0xf]
    %v6721 = vlaneseq
    %v6722 = vshrl.u32 %v6721, 7
    %v6723 = vsub.s32 0, %v6722
    %v6724 = vrot.slane %v6719, %v6723
    %v6725 = vlaneseq
    %v6726 = vshrl.u32 %v6725, 7
    %v6727 = vsub.s32 1, %v6726
    %v6728 = vrot.slane %v6719, %v6727
    %v6729 = vlaneseq
    %v6730 = vshrl.u32 %v6729, 7
    %v6731 = vsub.s32 2, %v6730
    %v6732 = vrot.slane %v6719, %v6731
    %v6733 = vlaneseq
    %v6734 = vshrl.u32 %v6733, 7
    %v6735 = vsub.s32 3, %v6734
    %v6736 = vrot.slane %v6719, %v6735
    %v6837 = vunpack.c.l.b16 %v6623
    %v6838 = vunpack.c.h.b16 %v6623
    %v6839 = vunpack.c.l.b16 %v6624
    %v6840 = vunpack.c.h.b16 %v6624
    %v6841 = vunpack.c.l.b16 %v6625
    %v6842 = vunpack.c.h.b16 %v6625
    %v6843 = vunpack.c.l.b16 %v6626
    %v6844 = vunpack.c.h.b16 %v6626
    %v6845 = vunpack.c.l.b16 %v6627
    %v6846 = vunpack.c.h.b16 %v6627
    %v6847 = vunpack.c.l.b16 %v6628
    %v6848 = vunpack.c.h.b16 %v6628
    %v6849 = vunpack.c.l.b16 %v6629
    %v6850 = vunpack.c.h.b16 %v6629
    %v6851 = vunpack.c.l.b16 %v6630
    %v6852 = vunpack.c.h.b16 %v6630
    %v6853 = vunpack.c.l.b16 %v6631
    %v6854 = vunpack.c.h.b16 %v6631
    %v6855 = vunpack.c.l.b16 %v6632
    %v6856 = vunpack.c.h.b16 %v6632
    %v6857 = vunpack.c.l.b16 %v6633
    %v6858 = vunpack.c.h.b16 %v6633
    %v6859 = vunpack.c.l.b16 %v6634
    %v6860 = vunpack.c.h.b16 %v6634
    %v6861 = vunpack.c.l.b16 %v6635
    %v6862 = vunpack.c.h.b16 %v6635
    %v6863 = vunpack.c.l.b16 %v6636
    %v6864 = vunpack.c.h.b16 %v6636
    %v6865 = vunpack.c.l.b16 %v6637
    %v6866 = vunpack.c.h.b16 %v6637
    %v6867 = vunpack.c.l.b16 %v6638
    %v6868 = vunpack.c.h.b16 %v6638
    %v6869 = vunpack.c.l.b16 %v6639
    %v6870 = vunpack.c.h.b16 %v6639
    %v6871 = vunpack.c.l.b16 %v6640
    %v6872 = vunpack.c.h.b16 %v6640
    %v6873 = vunpack.c.l.b16 %v6641
    %v6874 = vunpack.c.h.b16 %v6641
    %v6875 = vunpack.c.l.b16 %v6642
    %v6876 = vunpack.c.h.b16 %v6642
    %v6877 = vunpack.c.l.b16 %v6643
    %v6878 = vunpack.c.h.b16 %v6643
    %v6879 = vunpack.c.l.b16 %v6644
    %v6880 = vunpack.c.h.b16 %v6644
    %v6881 = vunpack.c.l.b16 %v6645
    %v6882 = vunpack.c.h.b16 %v6645
    %v6883 = vunpack.c.l.b16 %v6646
    %v6884 = vunpack.c.h.b16 %v6646
    %v6885 = vunpack.c.l.b16 %v6647
    %v6886 = vunpack.c.h.b16 %v6647
    %v6887 = vunpack.c.l.b16 %v6648
    %v6888 = vunpack.c.h.b16 %v6648
    %v6889 = vunpack.c.l.b16 %v6649
    %v6890 = vunpack.c.h.b16 %v6649
    %v6891 = vunpack.c.l.b16 %v6650
    %v6892 = vunpack.c.h.b16 %v6650
    %v6893 = vunpack.c.l.b16 %v6651
    %v6894 = vunpack.c.h.b16 %v6651
    %v6895 = vunpack.c.l.b16 %v6652
    %v6896 = vunpack.c.h.b16 %v6652
    %v6897 = vunpack.c.l.b16 %v6653
    %v6898 = vunpack.c.h.b16 %v6653
    %v6899 = vunpack.c.l.b16 %v6654
    %v6900 = vunpack.c.h.b16 %v6654
    %v6901 = vunpack.c.l.b16 %v6655
    %v6902 = vunpack.c.h.b16 %v6655
    %v6903 = vunpack.c.l.b16 %v6656
    %v6904 = vunpack.c.h.b16 %v6656
    %v6905 = vunpack.c.l.b16 %v6657
    %v6906 = vunpack.c.h.b16 %v6657
    %v6907 = vunpack.c.l.b16 %v6658
    %v6908 = vunpack.c.h.b16 %v6658
    %v6909 = vunpack.c.l.b16 %v6659
    %v6910 = vunpack.c.h.b16 %v6659
    %v6911 = vunpack.c.l.b16 %v6660
    %v6912 = vunpack.c.h.b16 %v6660
    %v6913 = vunpack.c.l.b16 %v6661
    %v6914 = vunpack.c.h.b16 %v6661
    %v6915 = vunpack.c.l.b16 %v6662
    %v6916 = vunpack.c.h.b16 %v6662
    %v6917 = vunpack.c.l.b16 %v6663
    %v6918 = vunpack.c.h.b16 %v6663
    %v6919 = vunpack.c.l.b16 %v6664
    %v6920 = vunpack.c.h.b16 %v6664
    %v6921 = vunpack.c.l.b16 %v6665
    %v6922 = vunpack.c.h.b16 %v6665
    %v6923 = vunpack.c.l.b16 %v6666
    %v6924 = vunpack.c.h.b16 %v6666
    %v6925 = vunpack.c.l.b16 %v6667
    %v6926 = vunpack.c.h.b16 %v6667
    %v6927 = vunpack.c.l.b16 %v6668
    %v6928 = vunpack.c.h.b16 %v6668
    %v6929 = vunpack.c.l.b16 %v6669
    %v6930 = vunpack.c.h.b16 %v6669
    %v6931 = vunpack.c.l.b16 %v6670
    %v6932 = vunpack.c.h.b16 %v6670
    %v6933 = vunpack.c.l.b16 %v6671
    %v6934 = vunpack.c.h.b16 %v6671
    %v6935 = vunpack.c.l.b16 %v6672
    %v6936 = vunpack.c.h.b16 %v6672
    %v6937 = vunpack.c.l.b16 %v6673
    %v6938 = vunpack.c.h.b16 %v6673
    %v6939 = vunpack.c.l.b16 %v6674
    %v6940 = vunpack.c.h.b16 %v6674
    %v6941 = vunpack.c.l.b16 %v6675
    %v6942 = vunpack.c.h.b16 %v6675
    %v6943 = vunpack.c.l.b16 %v6676
    %v6944 = vunpack.c.h.b16 %v6676
    %v6945 = vunpack.c.l.b16 %v6677
    %v6946 = vunpack.c.h.b16 %v6677
    %v6947 = vunpack.c.l.b16 %v6678
    %v6948 = vunpack.c.h.b16 %v6678
    %v6949 = vunpack.c.l.b16 %v6679
    %v6950 = vunpack.c.h.b16 %v6679
    %v6951 = vunpack.c.l.b16 %v6680
    %v6952 = vunpack.c.h.b16 %v6680
    %v6953 = vunpack.c.l.b16 %v6681
    %v6954 = vunpack.c.h.b16 %v6681
    %v6955 = vunpack.c.l.b16 %v6682
    %v6956 = vunpack.c.h.b16 %v6682
    %v6957 = vunpack.c.l.b16 %v6683
    %v6958 = vunpack.c.h.b16 %v6683
    %v6959 = vunpack.c.l.b16 %v6684
    %v6960 = vunpack.c.h.b16 %v6684
    %v6961 = vunpack.c.l.b16 %v6685
    %v6962 = vunpack.c.h.b16 %v6685
    %v6963 = vunpack.c.l.b16 %v6686
    %v6964 = vunpack.c.h.b16 %v6686
    %v6965 = vunpack.c.l.b16 %v6687
    %v6966 = vunpack.c.h.b16 %v6687
    %v6967 = vunpack.c.l.b16 %v6688
    %v6968 = vunpack.c.h.b16 %v6688
    %v6969 = vunpack.c.l.b16 %v6689
    %v6970 = vunpack.c.h.b16 %v6689
    %v6971 = vunpack.c.l.b16 %v6690
    %v6972 = vunpack.c.h.b16 %v6690
    %v6973 = vunpack.c.l.b16 %v6691
    %v6974 = vunpack.c.h.b16 %v6691
    %v6975 = vunpack.c.l.b16 %v6692
    %v6976 = vunpack.c.h.b16 %v6692
    %v6977 = vunpack.c.l.b16 %v6693
    %v6978 = vunpack.c.h.b16 %v6693
    %v6979 = vunpack.c.l.b16 %v6694
    %v6980 = vunpack.c.h.b16 %v6694
    %v6981 = vunpack.c.l.b16 %v6695
    %v6982 = vunpack.c.h.b16 %v6695
    %v6983 = vunpack.c.l.b16 %v6696
    %v6984 = vunpack.c.h.b16 %v6696
    %v6985 = vunpack.c.l.b16 %v6697
    %v6986 = vunpack.c.h.b16 %v6697
    %v6987 = vunpack.c.l.b16 %v6698
    %v6988 = vunpack.c.h.b16 %v6698
    %v6989 = vunpack.c.l.b16 %v6699
    %v6990 = vunpack.c.h.b16 %v6699
    %v6991 = vunpack.c.l.b16 %v6700
    %v6992 = vunpack.c.h.b16 %v6700
    %v6993 = vunpack.c.l.b16 %v6701
    %v6994 = vunpack.c.h.b16 %v6701
    %v6995 = vunpack.c.l.b16 %v6702
    %v6996 = vunpack.c.h.b16 %v6702
    %v6997 = vunpack.c.l.b16 %v6703
    %v6998 = vunpack.c.h.b16 %v6703
    %v6999 = vunpack.c.l.b16 %v6704
    %v7000 = vunpack.c.h.b16 %v6704
    %v7001 = vunpack.c.l.b16 %v6705
    %v7002 = vunpack.c.h.b16 %v6705
    %v7003 = vunpack.c.l.b16 %v6706
    %v7004 = vunpack.c.h.b16 %v6706
    %v7005 = vunpack.c.l.b16 %v6707
    %v7006 = vunpack.c.h.b16 %v6707
    %v7007 = vunpack.c.l.b16 %v6708
    %v7008 = vunpack.c.h.b16 %v6708
    %v7009 = vunpack.c.l.b16 %v6709
    %v7010 = vunpack.c.h.b16 %v6709
    %v7011 = vunpack.c.l.b16 %v6710
    %v7012 = vunpack.c.h.b16 %v6710
    %v7013 = vunpack.c.l.b16 %v6711
    %v7014 = vunpack.c.h.b16 %v6711
    %v7015 = vunpack.c.l.b16 %v6712
    %v7016 = vunpack.c.h.b16 %v6712
    %v7017 = vunpack.c.l.b16 %v6713
    %v7018 = vunpack.c.h.b16 %v6713
    %v7019 = vunpack.c.l.b16 %v6714
    %v7020 = vunpack.c.h.b16 %v6714
    %v7021 = vunpack.c.l.b16 %v6715
    %v7022 = vunpack.c.h.b16 %v6715
    %v7023 = vunpack.c.l.b16 %v6716
    %v7024 = vunpack.c.h.b16 %v6716
    %v7025 = vunpack.c.l.b16 %v6717
    %v7026 = vunpack.c.h.b16 %v6717
    %v7027 = vunpack.c.l.b16 %v6718
    %v7028 = vunpack.c.h.b16 %v6718
    %v7029 = vpack.c.b16 %v6841, %v6837
    %v7030 = vpack.c.b16 %v6842, %v6838
    %v7031 = vpack.c.b16 %v6843, %v6839
    %v7032 = vpack.c.b16 %v6844, %v6840
    %v7033 = vpack.c.b16 %v6849, %v6845
    %v7034 = vpack.c.b16 %v6850, %v6846
    %v7035 = vpack.c.b16 %v6851, %v6847
    %v7036 = vpack.c.b16 %v6852, %v6848
    %v7037 = vpack.c.b16 %v6857, %v6853
    %v7038 = vpack.c.b16 %v6858, %v6854
    %v7039 = vpack.c.b16 %v6859, %v6855
    %v7040 = vpack.c.b16 %v6860, %v6856
    %v7041 = vpack.c.b16 %v6865, %v6861
    %v7042 = vpack.c.b16 %v6866, %v6862
    %v7043 = vpack.c.b16 %v6867, %v6863
    %v7044 = vpack.c.b16 %v6868, %v6864
    %v7045 = vpack.c.b16 %v6873, %v6869
    %v7046 = vpack.c.b16 %v6874, %v6870
    %v7047 = vpack.c.b16 %v6875, %v6871
    %v7048 = vpack.c.b16 %v6876, %v6872
    %v7049 = vpack.c.b16 %v6881, %v6877
    %v7050 = vpack.c.b16 %v6882, %v6878
    %v7051 = vpack.c.b16 %v6883, %v6879
    %v7052 = vpack.c.b16 %v6884, %v6880
    %v7053 = vpack.c.b16 %v6889, %v6885
    %v7054 = vpack.c.b16 %v6890, %v6886
    %v7055 = vpack.c.b16 %v6891, %v6887
    %v7056 = vpack.c.b16 %v6892, %v6888
    %v7057 = vpack.c.b16 %v6897, %v6893
    %v7058 = vpack.c.b16 %v6898, %v6894
    %v7059 = vpack.c.b16 %v6899, %v6895
    %v7060 = vpack.c.b16 %v6900, %v6896
    %v7061 = vpack.c.b16 %v6905, %v6901
    %v7062 = vpack.c.b16 %v6906, %v6902
    %v7063 = vpack.c.b16 %v6907, %v6903
    %v7064 = vpack.c.b16 %v6908, %v6904
    %v7065 = vpack.c.b16 %v6913, %v6909
    %v7066 = vpack.c.b16 %v6914, %v6910
    %v7067 = vpack.c.b16 %v6915, %v6911
    %v7068 = vpack.c.b16 %v6916, %v6912
    %v7069 = vpack.c.b16 %v6921, %v6917
    %v7070 = vpack.c.b16 %v6922, %v6918
    %v7071 = vpack.c.b16 %v6923, %v6919
    %v7072 = vpack.c.b16 %v6924, %v6920
    %v7073 = vpack.c.b16 %v6929, %v6925
    %v7074 = vpack.c.b16 %v6930, %v6926
    %v7075 = vpack.c.b16 %v6931, %v6927
    %v7076 = vpack.c.b16 %v6932, %v6928
    %v7077 = vpack.c.b16 %v6937, %v6933
    %v7078 = vpack.c.b16 %v6938, %v6934
    %v7079 = vpack.c.b16 %v6939, %v6935
    %v7080 = vpack.c.b16 %v6940, %v6936
    %v7081 = vpack.c.b16 %v6945, %v6941
    %v7082 = vpack.c.b16 %v6946, %v6942
    %v7083 = vpack.c.b16 %v6947, %v6943
    %v7084 = vpack.c.b16 %v6948, %v6944
    %v7085 = vpack.c.b16 %v6953, %v6949
    %v7086 = vpack.c.b16 %v6954, %v6950
    %v7087 = vpack.c.b16 %v6955, %v6951
    %v7088 = vpack.c.b16 %v6956, %v6952
    %v7089 = vpack.c.b16 %v6961, %v6957
    %v7090 = vpack.c.b16 %v6962, %v6958
    %v7091 = vpack.c.b16 %v6963, %v6959
    %v7092 = vpack.c.b16 %v6964, %v6960
    %v7093 = vpack.c.b16 %v6969, %v6965
    %v7094 = vpack.c.b16 %v6970, %v6966
    %v7095 = vpack.c.b16 %v6971, %v6967
    %v7096 = vpack.c.b16 %v6972, %v6968
    %v7097 = vpack.c.b16 %v6977, %v6973
    %v7098 = vpack.c.b16 %v6978, %v6974
    %v7099 = vpack.c.b16 %v6979, %v6975
    %v7100 = vpack.c.b16 %v6980, %v6976
    %v7101 = vpack.c.b16 %v6985, %v6981
    %v7102 = vpack.c.b16 %v6986, %v6982
    %v7103 = vpack.c.b16 %v6987, %v6983
    %v7104 = vpack.c.b16 %v6988, %v6984
    %v7105 = vpack.c.b16 %v6993, %v6989
    %v7106 = vpack.c.b16 %v6994, %v6990
    %v7107 = vpack.c.b16 %v6995, %v6991
    %v7108 = vpack.c.b16 %v6996, %v6992
    %v7109 = vpack.c.b16 %v7001, %v6997
    %v7110 = vpack.c.b16 %v7002, %v6998
    %v7111 = vpack.c.b16 %v7003, %v6999
    %v7112 = vpack.c.b16 %v7004, %v7000
    %v7113 = vpack.c.b16 %v7009, %v7005
    %v7114 = vpack.c.b16 %v7010, %v7006
    %v7115 = vpack.c.b16 %v7011, %v7007
    %v7116 = vpack.c.b16 %v7012, %v7008
    %v7117 = vpack.c.b16 %v7017, %v7013
    %v7118 = vpack.c.b16 %v7018, %v7014
    %v7119 = vpack.c.b16 %v7019, %v7015
    %v7120 = vpack.c.b16 %v7020, %v7016
    %v7121 = vpack.c.b16 %v7025, %v7021
    %v7122 = vpack.c.b16 %v7026, %v7022
    %v7123 = vpack.c.b16 %v7027, %v7023
    %v7124 = vpack.c.b16 %v7028, %v7024
    %7221 = vmatprep.subr.bf16.mxu0 %v7030
    %7222 = vmatpush1.bf16.msra.mxu0 %v7029
    %7223 = vmatprep.subr.bf16.mxu0 %v7034
    %7224 = vmatpush1.bf16.msra.mxu0 %v7033
    %7225 = vmatprep.subr.bf16.mxu0 %v7038
    %7226 = vmatpush1.bf16.msra.mxu0 %v7037
    %7227 = vmatprep.subr.bf16.mxu0 %v7042
    %7228 = vmatpush1.bf16.msra.mxu0 %v7041
    %7229 = vmatprep.subr.bf16.mxu0 %v7046
    %7230 = vmatpush1.bf16.msra.mxu0 %v7045
    %7231 = vmatprep.subr.bf16.mxu0 %v7050
    %7232 = vmatpush1.bf16.msra.mxu0 %v7049
    %7233 = vmatprep.subr.bf16.mxu0 %v7054
    %7234 = vmatpush1.bf16.msra.mxu0 %v7053
    %7235 = vmatprep.subr.bf16.mxu0 %v7058
    %7236 = vmatpush1.bf16.msra.mxu0 %v7057
    %7237 = vmatprep.subr.bf16.mxu0 %v7062
    %7238 = vmatpush1.bf16.msra.mxu0 %v7061
    %7239 = vmatprep.subr.bf16.mxu0 %v7066
    %7240 = vmatpush1.bf16.msra.mxu0 %v7065
    %7241 = vmatprep.subr.bf16.mxu0 %v7070
    %7242 = vmatpush1.bf16.msra.mxu0 %v7069
    %7243 = vmatprep.subr.bf16.mxu0 %v7074
    %7244 = vmatpush1.bf16.msra.mxu0 %v7073
    %7245 = vmatprep.subr.bf16.mxu0 %v7078
    %7246 = vmatpush1.bf16.msra.mxu0 %v7077
    %7247 = vmatprep.subr.bf16.mxu0 %v7082
    %7248 = vmatpush1.bf16.msra.mxu0 %v7081
    %7249 = vmatprep.subr.bf16.mxu0 %v7086
    %7250 = vmatpush1.bf16.msra.mxu0 %v7085
    %7251 = vmatprep.subr.bf16.mxu0 %v7090
    %7252 = vmatpush1.bf16.msra.mxu0 %v7089
    %7253 = vmatprep.mubr.bf16.mxu0 %v6600
    %7254 = vmatmul.mubr.bf16.gmra.mrb[0].mxu0 %v6599
    %v7255 = vpop.f32.mrb[0].mxu0
    %v7256 = vadd.f32 %v6724, %v7255
    %v7257 = vpop.f32.mrb[0].mxu0
    %v7258 = vadd.f32 %v6728, %v7257
    %v7259 = vpop.f32.mrb[0].mxu0
    %v7260 = vadd.f32 %v6724, %v7259
    %v7261 = vpop.f32.mrb[0].mxu0
    %v7262 = vadd.f32 %v6728, %v7261
    %7263 = vmatprep.mubr.bf16.mxu0 %v6603
    %7264 = vmatmul.mubr.bf16.gmra.mrb[0].mxu0 %v6602
    %v7265 = vpop.f32.mrb[0].mxu0
    %v7266 = vadd.f32 %v6724, %v7265
    %v7267 = vpop.f32.mrb[0].mxu0
    %v7268 = vadd.f32 %v6728, %v7267
    %v7269 = vpop.f32.mrb[0].mxu0
    %v7270 = vadd.f32 %v6724, %v7269
    %v7271 = vpop.f32.mrb[0].mxu0
    %v7272 = vadd.f32 %v6728, %v7271
    %7273 = vmatprep.mubr.bf16.mxu0 %v6606
    %7274 = vmatmul.mubr.bf16.gmra.mrb[0].mxu0 %v6605
    %v7275 = vpop.f32.mrb[0].mxu0
    %v7276 = vadd.f32 %v6724, %v7275
    %v7277 = vpop.f32.mrb[0].mxu0
    %v7278 = vadd.f32 %v6728, %v7277
    %v7279 = vpop.f32.mrb[0].mxu0
    %v7280 = vadd.f32 %v6724, %v7279
    %v7281 = vpop.f32.mrb[0].mxu0
    %v7282 = vadd.f32 %v6728, %v7281
    %7283 = vmatprep.mubr.bf16.mxu0 %v6609
    %7284 = vmatmul.mubr.bf16.gmra.mrb[0].mxu0 %v6608
    %v7285 = vpop.f32.mrb[0].mxu0
    %v7286 = vadd.f32 %v6724, %v7285
    %v7287 = vpop.f32.mrb[0].mxu0
    %v7288 = vadd.f32 %v6728, %v7287
    %v7289 = vpop.f32.mrb[0].mxu0
    %v7290 = vadd.f32 %v6724, %v7289
    %v7291 = vpop.f32.mrb[0].mxu0
    %v7292 = vadd.f32 %v6728, %v7291
    %7293 = vmatprep.mubr.bf16.mxu0 %v6612
    %7294 = vmatmul.mubr.bf16.gmra.mrb[0].mxu0 %v6611
    %v7295 = vpop.f32.mrb[0].mxu0
    %v7296 = vadd.f32 %v6724, %v7295
    %v7297 = vpop.f32.mrb[0].mxu0
    %v7298 = vadd.f32 %v6728, %v7297
    %v7299 = vpop.f32.mrb[0].mxu0
    %v7300 = vadd.f32 %v6724, %v7299
    %v7301 = vpop.f32.mrb[0].mxu0
    %v7302 = vadd.f32 %v6728, %v7301
    %7303 = vmatprep.mubr.bf16.mxu0 %v6615
    %7304 = vmatmul.mubr.bf16.gmra.mrb[0].mxu0 %v6614
    %v7305 = vpop.f32.mrb[0].mxu0
    %v7306 = vadd.f32 %v6724, %v7305
    %v7307 = vpop.f32.mrb[0].mxu0
    %v7308 = vadd.f32 %v6728, %v7307
    %v7309 = vpop.f32.mrb[0].mxu0
    %v7310 = vadd.f32 %v6724, %v7309
    %v7311 = vpop.f32.mrb[0].mxu0
    %v7312 = vadd.f32 %v6728, %v7311
    %7313 = vmatprep.mubr.bf16.mxu0 %v6618
    %7314 = vmatmul.mubr.bf16.gmra.mrb[0].mxu0 %v6617
    %v7315 = vpop.f32.mrb[0].mxu0
    %v7316 = vadd.f32 %v6724, %v7315
    %v7317 = vpop.f32.mrb[0].mxu0
    %v7318 = vadd.f32 %v6728, %v7317
    %v7319 = vpop.f32.mrb[0].mxu0
    %v7320 = vadd.f32 %v6724, %v7319
    %v7321 = vpop.f32.mrb[0].mxu0
    %v7322 = vadd.f32 %v6728, %v7321
    %7323 = vmatprep.mubr.bf16.mxu0 %v6621
    %7324 = vmatmul.mubr.bf16.gmra.mrb[0].mxu0 %v6620
    %v7325 = vpop.f32.mrb[0].mxu0
    %v7326 = vadd.f32 %v6724, %v7325
    %v7327 = vpop.f32.mrb[0].mxu0
    %v7328 = vadd.f32 %v6728, %v7327
    %v7329 = vpop.f32.mrb[0].mxu0
    %v7330 = vadd.f32 %v6724, %v7329
    %v7331 = vpop.f32.mrb[0].mxu0
    %v7332 = vadd.f32 %v6728, %v7331
    %7333 = vdwg.mxu0
    %7334 = vmatprep.subr.bf16.mxu0 %v7094
    %7335 = vmatpush1.bf16.msra.mxu0 %v7093
    %7336 = vmatprep.subr.bf16.mxu0 %v7098
    %7337 = vmatpush1.bf16.msra.mxu0 %v7097
    %7338 = vmatprep.subr.bf16.mxu0 %v7102
    %7339 = vmatpush1.bf16.msra.mxu0 %v7101
    %7340 = vmatprep.subr.bf16.mxu0 %v7106
    %7341 = vmatpush1.bf16.msra.mxu0 %v7105
    %7342 = vmatprep.subr.bf16.mxu0 %v7110
    %7343 = vmatpush1.bf16.msra.mxu0 %v7109
    %7344 = vmatprep.subr.bf16.mxu0 %v7114
    %7345 = vmatpush1.bf16.msra.mxu0 %v7113
    %7346 = vmatprep.subr.bf16.mxu0 %v7118
    %7347 = vmatpush1.bf16.msra.mxu0 %v7117
    %7348 = vmatprep.subr.bf16.mxu0 %v7122
    %7349 = vmatpush1.bf16.msra.mxu0 %v7121
    %7350 = vmatprep.subr.bf16.mxu0 0
    %7351 = vmatpush1.bf16.msra.mxu0 0
    %7352 = vmatprep.subr.bf16.mxu0 0
    %7353 = vmatpush1.bf16.msra.mxu0 0
    %7354 = vmatprep.subr.bf16.mxu0 0
    %7355 = vmatpush1.bf16.msra.mxu0 0
    %7356 = vmatprep.subr.bf16.mxu0 0
    %7357 = vmatpush1.bf16.msra.mxu0 0
    %7358 = vmatprep.subr.bf16.mxu0 0
    %7359 = vmatpush1.bf16.msra.mxu0 0
    %7360 = vmatprep.subr.bf16.mxu0 0
    %7361 = vmatpush1.bf16.msra.mxu0 0
    %7362 = vmatprep.subr.bf16.mxu0 0
    %7363 = vmatpush1.bf16.msra.mxu0 0
    %7364 = vmatprep.subr.bf16.mxu0 0
    %7365 = vmatpush1.bf16.msra.mxu0 0
    %7366 = vmatprep.mubr.bf16.mxu0 0
    %7367 = vmatmul.mubr.bf16.gmra.mrb[0].mxu0 %v6601
    %v7368 = vpop.f32.mrb[0].mxu0
    %v7369 = vadd.f32 %v7256, %v7368
    %v7370 = vpop.f32.mrb[0].mxu0
    %v7371 = vadd.f32 %v7258, %v7370
    %v7372 = vpop.f32.mrb[0].mxu0
    %v7373 = vadd.f32 %v7260, %v7372
    %v7374 = vpop.f32.mrb[0].mxu0
    %v7375 = vadd.f32 %v7262, %v7374
    %7376 = vmatprep.mubr.bf16.mxu0 0
    %7377 = vmatmul.mubr.bf16.gmra.mrb[0].mxu0 %v6604
    %v7378 = vpop.f32.mrb[0].mxu0
    %v7379 = vadd.f32 %v7266, %v7378
    %v7380 = vpop.f32.mrb[0].mxu0
    %v7381 = vadd.f32 %v7268, %v7380
    %v7382 = vpop.f32.mrb[0].mxu0
    %v7383 = vadd.f32 %v7270, %v7382
    %v7384 = vpop.f32.mrb[0].mxu0
    %v7385 = vadd.f32 %v7272, %v7384
    %7386 = vmatprep.mubr.bf16.mxu0 0
    %7387 = vmatmul.mubr.bf16.gmra.mrb[0].mxu0 %v6607
    %v7388 = vpop.f32.mrb[0].mxu0
    %v7389 = vadd.f32 %v7276, %v7388
    %v7390 = vpop.f32.mrb[0].mxu0
    %v7391 = vadd.f32 %v7278, %v7390
    %v7392 = vpop.f32.mrb[0].mxu0
    %v7393 = vadd.f32 %v7280, %v7392
    %v7394 = vpop.f32.mrb[0].mxu0
    %v7395 = vadd.f32 %v7282, %v7394
    %7396 = vmatprep.mubr.bf16.mxu0 0
    %7397 = vmatmul.mubr.bf16.gmra.mrb[0].mxu0 %v6610
    %v7398 = vpop.f32.mrb[0].mxu0
    %v7399 = vadd.f32 %v7286, %v7398
    %v7400 = vpop.f32.mrb[0].mxu0
    %v7401 = vadd.f32 %v7288, %v7400
    %v7402 = vpop.f32.mrb[0].mxu0
    %v7403 = vadd.f32 %v7290, %v7402
    %v7404 = vpop.f32.mrb[0].mxu0
    %v7405 = vadd.f32 %v7292, %v7404
    %7406 = vmatprep.mubr.bf16.mxu0 0
    %7407 = vmatmul.mubr.bf16.gmra.mrb[0].mxu0 %v6613
    %v7408 = vpop.f32.mrb[0].mxu0
    %v7409 = vadd.f32 %v7296, %v7408
    %v7410 = vpop.f32.mrb[0].mxu0
    %v7411 = vadd.f32 %v7298, %v7410
    %v7412 = vpop.f32.mrb[0].mxu0
    %v7413 = vadd.f32 %v7300, %v7412
    %v7414 = vpop.f32.mrb[0].mxu0
    %v7415 = vadd.f32 %v7302, %v7414
    %7416 = vmatprep.mubr.bf16.mxu0 0
    %7417 = vmatmul.mubr.bf16.gmra.mrb[0].mxu0 %v6616
    %v7418 = vpop.f32.mrb[0].mxu0
    %v7419 = vadd.f32 %v7306, %v7418
    %v7420 = vpop.f32.mrb[0].mxu0
    %v7421 = vadd.f32 %v7308, %v7420
    %v7422 = vpop.f32.mrb[0].mxu0
    %v7423 = vadd.f32 %v7310, %v7422
    %v7424 = vpop.f32.mrb[0].mxu0
    %v7425 = vadd.f32 %v7312, %v7424
    %7426 = vmatprep.mubr.bf16.mxu0 0
    %7427 = vmatmul.mubr.bf16.gmra.mrb[0].mxu0 %v6619
    %v7428 = vpop.f32.mrb[0].mxu0
    %v7429 = vadd.f32 %v7316, %v7428
    %v7430 = vpop.f32.mrb[0].mxu0
    %v7431 = vadd.f32 %v7318, %v7430
    %v7432 = vpop.f32.mrb[0].mxu0
    %v7433 = vadd.f32 %v7320, %v7432
    %v7434 = vpop.f32.mrb[0].mxu0
    %v7435 = vadd.f32 %v7322, %v7434
    %7436 = vmatprep.mubr.bf16.mxu0 0
    %7437 = vmatmul.mubr.bf16.gmra.mrb[0].mxu0 %v6622
    %v7438 = vpop.f32.mrb[0].mxu0
    %v7439 = vadd.f32 %v7326, %v7438
    %v7440 = vpop.f32.mrb[0].mxu0
    %v7441 = vadd.f32 %v7328, %v7440
    %v7442 = vpop.f32.mrb[0].mxu0
    %v7443 = vadd.f32 %v7330, %v7442
    %v7444 = vpop.f32.mrb[0].mxu0
    %v7445 = vadd.f32 %v7332, %v7444
    %7446 = vdwg.mxu0
    %7447 = vmatprep.subr.bf16.mxu0 %v7032
    %7448 = vmatpush1.bf16.msra.mxu0 %v7031
    %7449 = vmatprep.subr.bf16.mxu0 %v7036
    %7450 = vmatpush1.bf16.msra.mxu0 %v7035
    %7451 = vmatprep.subr.bf16.mxu0 %v7040
    %7452 = vmatpush1.bf16.msra.mxu0 %v7039
    %7453 = vmatprep.subr.bf16.mxu0 %v7044
    %7454 = vmatpush1.bf16.msra.mxu0 %v7043
    %7455 = vmatprep.subr.bf16.mxu0 %v7048
    %7456 = vmatpush1.bf16.msra.mxu0 %v7047
    %7457 = vmatprep.subr.bf16.mxu0 %v7052
    %7458 = vmatpush1.bf16.msra.mxu0 %v7051
    %7459 = vmatprep.subr.bf16.mxu0 %v7056
    %7460 = vmatpush1.bf16.msra.mxu0 %v7055
    %7461 = vmatprep.subr.bf16.mxu0 %v7060
    %7462 = vmatpush1.bf16.msra.mxu0 %v7059
    %7463 = vmatprep.subr.bf16.mxu0 %v7064
    %7464 = vmatpush1.bf16.msra.mxu0 %v7063
    %7465 = vmatprep.subr.bf16.mxu0 %v7068
    %7466 = vmatpush1.bf16.msra.mxu0 %v7067
    %7467 = vmatprep.subr.bf16.mxu0 %v7072
    %7468 = vmatpush1.bf16.msra.mxu0 %v7071
    %7469 = vmatprep.subr.bf16.mxu0 %v7076
    %7470 = vmatpush1.bf16.msra.mxu0 %v7075
    %7471 = vmatprep.subr.bf16.mxu0 %v7080
    %7472 = vmatpush1.bf16.msra.mxu0 %v7079
    %7473 = vmatprep.subr.bf16.mxu0 %v7084
    %7474 = vmatpush1.bf16.msra.mxu0 %v7083
    %7475 = vmatprep.subr.bf16.mxu0 %v7088
    %7476 = vmatpush1.bf16.msra.mxu0 %v7087
    %7477 = vmatprep.subr.bf16.mxu0 %v7092
    %7478 = vmatpush1.bf16.msra.mxu0 %v7091
    %7479 = vmatprep.mubr.bf16.mxu0 %v6600
    %7480 = vmatmul.mubr.bf16.gmra.mrb[0].mxu0 %v6599
    %v7481 = vpop.f32.mrb[0].mxu0
    %v7482 = vadd.f32 %v6732, %v7481
    %v7483 = vpop.f32.mrb[0].mxu0
    %v7484 = vadd.f32 %v6736, %v7483
    %v7485 = vpop.f32.mrb[0].mxu0
    %v7486 = vadd.f32 %v6732, %v7485
    %v7487 = vpop.f32.mrb[0].mxu0
    %v7488 = vadd.f32 %v6736, %v7487
    %7489 = vmatprep.mubr.bf16.mxu0 %v6603
    %7490 = vmatmul.mubr.bf16.gmra.mrb[0].mxu0 %v6602
    %v7491 = vpop.f32.mrb[0].mxu0
    %v7492 = vadd.f32 %v6732, %v7491
    %v7493 = vpop.f32.mrb[0].mxu0
    %v7494 = vadd.f32 %v6736, %v7493
    %v7495 = vpop.f32.mrb[0].mxu0
    %v7496 = vadd.f32 %v6732, %v7495
    %v7497 = vpop.f32.mrb[0].mxu0
    %v7498 = vadd.f32 %v6736, %v7497
    %7499 = vmatprep.mubr.bf16.mxu0 %v6606
    %7500 = vmatmul.mubr.bf16.gmra.mrb[0].mxu0 %v6605
    %v7501 = vpop.f32.mrb[0].mxu0
    %v7502 = vadd.f32 %v6732, %v7501
    %v7503 = vpop.f32.mrb[0].mxu0
    %v7504 = vadd.f32 %v6736, %v7503
    %v7505 = vpop.f32.mrb[0].mxu0
    %v7506 = vadd.f32 %v6732, %v7505
    %v7507 = vpop.f32.mrb[0].mxu0
    %v7508 = vadd.f32 %v6736, %v7507
    %7509 = vmatprep.mubr.bf16.mxu0 %v6609
    %7510 = vmatmul.mubr.bf16.gmra.mrb[0].mxu0 %v6608
    %v7511 = vpop.f32.mrb[0].mxu0
    %v7512 = vadd.f32 %v6732, %v7511
    %v7513 = vpop.f32.mrb[0].mxu0
    %v7514 = vadd.f32 %v6736, %v7513
    %v7515 = vpop.f32.mrb[0].mxu0
    %v7516 = vadd.f32 %v6732, %v7515
    %v7517 = vpop.f32.mrb[0].mxu0
    %v7518 = vadd.f32 %v6736, %v7517
    %7519 = vmatprep.mubr.bf16.mxu0 %v6612
    %7520 = vmatmul.mubr.bf16.gmra.mrb[0].mxu0 %v6611
    %v7521 = vpop.f32.mrb[0].mxu0
    %v7522 = vadd.f32 %v6732, %v7521
    %v7523 = vpop.f32.mrb[0].mxu0
    %v7524 = vadd.f32 %v6736, %v7523
    %v7525 = vpop.f32.mrb[0].mxu0
    %v7526 = vadd.f32 %v6732, %v7525
    %v7527 = vpop.f32.mrb[0].mxu0
    %v7528 = vadd.f32 %v6736, %v7527
    %7529 = vmatprep.mubr.bf16.mxu0 %v6615
    %7530 = vmatmul.mubr.bf16.gmra.mrb[0].mxu0 %v6614
    %v7531 = vpop.f32.mrb[0].mxu0
    %v7532 = vadd.f32 %v6732, %v7531
    %v7533 = vpop.f32.mrb[0].mxu0
    %v7534 = vadd.f32 %v6736, %v7533
    %v7535 = vpop.f32.mrb[0].mxu0
    %v7536 = vadd.f32 %v6732, %v7535
    %v7537 = vpop.f32.mrb[0].mxu0
    %v7538 = vadd.f32 %v6736, %v7537
    %7539 = vmatprep.mubr.bf16.mxu0 %v6618
    %7540 = vmatmul.mubr.bf16.gmra.mrb[0].mxu0 %v6617
    %v7541 = vpop.f32.mrb[0].mxu0
    %v7542 = vadd.f32 %v6732, %v7541
    %v7543 = vpop.f32.mrb[0].mxu0
    %v7544 = vadd.f32 %v6736, %v7543
    %v7545 = vpop.f32.mrb[0].mxu0
    %v7546 = vadd.f32 %v6732, %v7545
    %v7547 = vpop.f32.mrb[0].mxu0
    %v7548 = vadd.f32 %v6736, %v7547
    %7549 = vmatprep.mubr.bf16.mxu0 %v6621
    %7550 = vmatmul.mubr.bf16.gmra.mrb[0].mxu0 %v6620
    %v7551 = vpop.f32.mrb[0].mxu0
    %v7552 = vadd.f32 %v6732, %v7551
    %v7553 = vpop.f32.mrb[0].mxu0
    %v7554 = vadd.f32 %v6736, %v7553
    %v7555 = vpop.f32.mrb[0].mxu0
    %v7556 = vadd.f32 %v6732, %v7555
    %v7557 = vpop.f32.mrb[0].mxu0
    %v7558 = vadd.f32 %v6736, %v7557
    %7559 = vdwg.mxu0
    %7560 = vmatprep.subr.bf16.mxu0 %v7096
    %7561 = vmatpush1.bf16.msra.mxu0 %v7095
    %7562 = vmatprep.subr.bf16.mxu0 %v7100
    %7563 = vmatpush1.bf16.msra.mxu0 %v7099
    %7564 = vmatprep.subr.bf16.mxu0 %v7104
    %7565 = vmatpush1.bf16.msra.mxu0 %v7103
    %7566 = vmatprep.subr.bf16.mxu0 %v7108
    %7567 = vmatpush1.bf16.msra.mxu0 %v7107
    %7568 = vmatprep.subr.bf16.mxu0 %v7112
    %7569 = vmatpush1.bf16.msra.mxu0 %v7111
    %7570 = vmatprep.subr.bf16.mxu0 %v7116
    %7571 = vmatpush1.bf16.msra.mxu0 %v7115
    %7572 = vmatprep.subr.bf16.mxu0 %v7120
    %7573 = vmatpush1.bf16.msra.mxu0 %v7119
    %7574 = vmatprep.subr.bf16.mxu0 %v7124
    %7575 = vmatpush1.bf16.msra.mxu0 %v7123
    %7576 = vmatprep.subr.bf16.mxu0 0
    %7577 = vmatpush1.bf16.msra.mxu0 0
    %7578 = vmatprep.subr.bf16.mxu0 0
    %7579 = vmatpush1.bf16.msra.mxu0 0
    %7580 = vmatprep.subr.bf16.mxu0 0
    %7581 = vmatpush1.bf16.msra.mxu0 0
    %7582 = vmatprep.subr.bf16.mxu0 0
    %7583 = vmatpush1.bf16.msra.mxu0 0
    %7584 = vmatprep.subr.bf16.mxu0 0
    %7585 = vmatpush1.bf16.msra.mxu0 0
    %7586 = vmatprep.subr.bf16.mxu0 0
    %7587 = vmatpush1.bf16.msra.mxu0 0
    %7588 = vmatprep.subr.bf16.mxu0 0
    %7589 = vmatpush1.bf16.msra.mxu0 0
    %7590 = vmatprep.subr.bf16.mxu0 0
    %7591 = vmatpush1.bf16.msra.mxu0 0
    %7592 = vmatprep.mubr.bf16.mxu0 0
    %7593 = vmatmul.mubr.bf16.gmra.mrb[0].mxu0 %v6601
    %v7594 = vpop.f32.mrb[0].mxu0
    %v7595 = vadd.f32 %v7482, %v7594
    %v7596 = vpop.f32.mrb[0].mxu0
    %v7597 = vadd.f32 %v7484, %v7596
    %v7598 = vpop.f32.mrb[0].mxu0
    %v7599 = vadd.f32 %v7486, %v7598
    %v7600 = vpop.f32.mrb[0].mxu0
    %v7601 = vadd.f32 %v7488, %v7600
    %7602 = vmatprep.mubr.bf16.mxu0 0
    %7603 = vmatmul.mubr.bf16.gmra.mrb[0].mxu0 %v6604
    %v7604 = vpop.f32.mrb[0].mxu0
    %v7605 = vadd.f32 %v7492, %v7604
    %v7606 = vpop.f32.mrb[0].mxu0
    %v7607 = vadd.f32 %v7494, %v7606
    %v7608 = vpop.f32.mrb[0].mxu0
    %v7609 = vadd.f32 %v7496, %v7608
    %v7610 = vpop.f32.mrb[0].mxu0
    %v7611 = vadd.f32 %v7498, %v7610
    %7612 = vmatprep.mubr.bf16.mxu0 0
    %7613 = vmatmul.mubr.bf16.gmra.mrb[0].mxu0 %v6607
    %v7614 = vpop.f32.mrb[0].mxu0
    %v7615 = vadd.f32 %v7502, %v7614
    %v7616 = vpop.f32.mrb[0].mxu0
    %v7617 = vadd.f32 %v7504, %v7616
    %v7618 = vpop.f32.mrb[0].mxu0
    %v7619 = vadd.f32 %v7506, %v7618
    %v7620 = vpop.f32.mrb[0].mxu0
    %v7621 = vadd.f32 %v7508, %v7620
    %7622 = vmatprep.mubr.bf16.mxu0 0
    %7623 = vmatmul.mubr.bf16.gmra.mrb[0].mxu0 %v6610
    %v7624 = vpop.f32.mrb[0].mxu0
    %v7625 = vadd.f32 %v7512, %v7624
    %v7626 = vpop.f32.mrb[0].mxu0
    %v7627 = vadd.f32 %v7514, %v7626
    %v7628 = vpop.f32.mrb[0].mxu0
    %v7629 = vadd.f32 %v7516, %v7628
    %v7630 = vpop.f32.mrb[0].mxu0
    %v7631 = vadd.f32 %v7518, %v7630
    %7632 = vmatprep.mubr.bf16.mxu0 0
    %7633 = vmatmul.mubr.bf16.gmra.mrb[0].mxu0 %v6613
    %v7634 = vpop.f32.mrb[0].mxu0
    %v7635 = vadd.f32 %v7522, %v7634
    %v7636 = vpop.f32.mrb[0].mxu0
    %v7637 = vadd.f32 %v7524, %v7636
    %v7638 = vpop.f32.mrb[0].mxu0
    %v7639 = vadd.f32 %v7526, %v7638
    %v7640 = vpop.f32.mrb[0].mxu0
    %v7641 = vadd.f32 %v7528, %v7640
    %7642 = vmatprep.mubr.bf16.mxu0 0
    %7643 = vmatmul.mubr.bf16.gmra.mrb[0].mxu0 %v6616
    %v7644 = vpop.f32.mrb[0].mxu0
    %v7645 = vadd.f32 %v7532, %v7644
    %v7646 = vpop.f32.mrb[0].mxu0
    %v7647 = vadd.f32 %v7534, %v7646
    %v7648 = vpop.f32.mrb[0].mxu0
    %v7649 = vadd.f32 %v7536, %v7648
    %v7650 = vpop.f32.mrb[0].mxu0
    %v7651 = vadd.f32 %v7538, %v7650
    %7652 = vmatprep.mubr.bf16.mxu0 0
    %7653 = vmatmul.mubr.bf16.gmra.mrb[0].mxu0 %v6619
    %v7654 = vpop.f32.mrb[0].mxu0
    %v7655 = vadd.f32 %v7542, %v7654
    %v7656 = vpop.f32.mrb[0].mxu0
    %v7657 = vadd.f32 %v7544, %v7656
    %v7658 = vpop.f32.mrb[0].mxu0
    %v7659 = vadd.f32 %v7546, %v7658
    %v7660 = vpop.f32.mrb[0].mxu0
    %v7661 = vadd.f32 %v7548, %v7660
    %7662 = vmatprep.mubr.bf16.mxu0 0
    %7663 = vmatmul.mubr.bf16.gmra.mrb[0].mxu0 %v6622
    %v7664 = vpop.f32.mrb[0].mxu0
    %v7665 = vadd.f32 %v7552, %v7664
    %v7666 = vpop.f32.mrb[0].mxu0
    %v7667 = vadd.f32 %v7554, %v7666
    %v7668 = vpop.f32.mrb[0].mxu0
    %v7669 = vadd.f32 %v7556, %v7668
    %v7670 = vpop.f32.mrb[0].mxu0
    %v7671 = vadd.f32 %v7558, %v7670
    %7672 = vdwg.mxu0
    %v7673 = vmul.f32 %v7369, 0.5
    %v7674 = vmul.f32 %v7371, 0.5
    %v7675 = vmul.f32 %v7373, 0.5
    %v7676 = vmul.f32 %v7375, 0.5
    %v7677 = vmul.f32 %v7379, 0.5
    %v7678 = vmul.f32 %v7381, 0.5
    %v7679 = vmul.f32 %v7383, 0.5
    %v7680 = vmul.f32 %v7385, 0.5
    %v7681 = vmul.f32 %v7389, 0.5
    %v7682 = vmul.f32 %v7391, 0.5
    %v7683 = vmul.f32 %v7393, 0.5
    %v7684 = vmul.f32 %v7395, 0.5
    %v7685 = vmul.f32 %v7399, 0.5
    %v7686 = vmul.f32 %v7401, 0.5
    %v7687 = vmul.f32 %v7403, 0.5
    %v7688 = vmul.f32 %v7405, 0.5
    %v7689 = vmul.f32 %v7409, 0.5
    %v7690 = vmul.f32 %v7411, 0.5
    %v7691 = vmul.f32 %v7413, 0.5
    %v7692 = vmul.f32 %v7415, 0.5
    %v7693 = vmul.f32 %v7419, 0.5
    %v7694 = vmul.f32 %v7421, 0.5
    %v7695 = vmul.f32 %v7423, 0.5
    %v7696 = vmul.f32 %v7425, 0.5
    %v7697 = vmul.f32 %v7429, 0.5
    %v7698 = vmul.f32 %v7431, 0.5
    %v7699 = vmul.f32 %v7433, 0.5
    %v7700 = vmul.f32 %v7435, 0.5
    %v7701 = vmul.f32 %v7439, 0.5
    %v7702 = vmul.f32 %v7441, 0.5
    %v7703 = vmul.f32 %v7443, 0.5
    %v7704 = vmul.f32 %v7445, 0.5
    %v7705 = vtanh.pop %v7673
    %v7706 = vtanh.pop %v7674
    %v7707 = vtanh.pop %v7675
    %v7708 = vtanh.pop %v7676
    %v7709 = vtanh.pop %v7677
    %v7710 = vtanh.pop %v7678
    %v7711 = vtanh.pop %v7679
    %v7712 = vtanh.pop %v7680
    %v7713 = vtanh.pop %v7681
    %v7714 = vtanh.pop %v7682
    %v7715 = vtanh.pop %v7683
    %v7716 = vtanh.pop %v7684
    %v7717 = vtanh.pop %v7685
    %v7718 = vtanh.pop %v7686
    %v7719 = vtanh.pop %v7687
    %v7720 = vtanh.pop %v7688
    %v7721 = vtanh.pop %v7689
    %v7722 = vtanh.pop %v7690
    %v7723 = vtanh.pop %v7691
    %v7724 = vtanh.pop %v7692
    %v7725 = vtanh.pop %v7693
    %v7726 = vtanh.pop %v7694
    %v7727 = vtanh.pop %v7695
    %v7728 = vtanh.pop %v7696
    %v7729 = vtanh.pop %v7697
    %v7730 = vtanh.pop %v7698
    %v7731 = vtanh.pop %v7699
    %v7732 = vtanh.pop %v7700
    %v7733 = vtanh.pop %v7701
    %v7734 = vtanh.pop %v7702
    %v7735 = vtanh.pop %v7703
    %v7736 = vtanh.pop %v7704
    %v7737 = vmul.f32 %v7705, 0.5
    %v7738 = vmul.f32 %v7706, 0.5
    %v7739 = vmul.f32 %v7707, 0.5
    %v7740 = vmul.f32 %v7708, 0.5
    %v7741 = vmul.f32 %v7709, 0.5
    %v7742 = vmul.f32 %v7710, 0.5
    %v7743 = vmul.f32 %v7711, 0.5
    %v7744 = vmul.f32 %v7712, 0.5
    %v7745 = vmul.f32 %v7713, 0.5
    %v7746 = vmul.f32 %v7714, 0.5
    %v7747 = vmul.f32 %v7715, 0.5
    %v7748 = vmul.f32 %v7716, 0.5
    %v7749 = vmul.f32 %v7717, 0.5
    %v7750 = vmul.f32 %v7718, 0.5
    %v7751 = vmul.f32 %v7719, 0.5
    %v7752 = vmul.f32 %v7720, 0.5
    %v7753 = vmul.f32 %v7721, 0.5
    %v7754 = vmul.f32 %v7722, 0.5
    %v7755 = vmul.f32 %v7723, 0.5
    %v7756 = vmul.f32 %v7724, 0.5
    %v7757 = vmul.f32 %v7725, 0.5
    %v7758 = vmul.f32 %v7726, 0.5
    %v7759 = vmul.f32 %v7727, 0.5
    %v7760 = vmul.f32 %v7728, 0.5
    %v7761 = vmul.f32 %v7729, 0.5
    %v7762 = vmul.f32 %v7730, 0.5
    %v7763 = vmul.f32 %v7731, 0.5
    %v7764 = vmul.f32 %v7732, 0.5
    %v7765 = vmul.f32 %v7733, 0.5
    %v7766 = vmul.f32 %v7734, 0.5
    %v7767 = vmul.f32 %v7735, 0.5
    %v7768 = vmul.f32 %v7736, 0.5
    %v7769 = vadd.f32 %v7737, 0.5
    %v7770 = vadd.f32 %v7738, 0.5
    %v7771 = vadd.f32 %v7739, 0.5
    %v7772 = vadd.f32 %v7740, 0.5
    %v7773 = vadd.f32 %v7741, 0.5
    %v7774 = vadd.f32 %v7742, 0.5
    %v7775 = vadd.f32 %v7743, 0.5
    %v7776 = vadd.f32 %v7744, 0.5
    %v7777 = vadd.f32 %v7745, 0.5
    %v7778 = vadd.f32 %v7746, 0.5
    %v7779 = vadd.f32 %v7747, 0.5
    %v7780 = vadd.f32 %v7748, 0.5
    %v7781 = vadd.f32 %v7749, 0.5
    %v7782 = vadd.f32 %v7750, 0.5
    %v7783 = vadd.f32 %v7751, 0.5
    %v7784 = vadd.f32 %v7752, 0.5
    %v7785 = vadd.f32 %v7753, 0.5
    %v7786 = vadd.f32 %v7754, 0.5
    %v7787 = vadd.f32 %v7755, 0.5
    %v7788 = vadd.f32 %v7756, 0.5
    %v7789 = vadd.f32 %v7757, 0.5
    %v7790 = vadd.f32 %v7758, 0.5
    %v7791 = vadd.f32 %v7759, 0.5
    %v7792 = vadd.f32 %v7760, 0.5
    %v7793 = vadd.f32 %v7761, 0.5
    %v7794 = vadd.f32 %v7762, 0.5
    %v7795 = vadd.f32 %v7763, 0.5
    %v7796 = vadd.f32 %v7764, 0.5
    %v7797 = vadd.f32 %v7765, 0.5
    %v7798 = vadd.f32 %v7766, 0.5
    %v7799 = vadd.f32 %v7767, 0.5
    %v7800 = vadd.f32 %v7768, 0.5
    %v7801 = vmax.f32 %v7769, 0.001953125
    %v7802 = vmax.f32 %v7770, 0.001953125
    %v7803 = vmax.f32 %v7771, 0.001953125
    %v7804 = vmax.f32 %v7772, 0.001953125
    %v7805 = vmax.f32 %v7773, 0.001953125
    %v7806 = vmax.f32 %v7774, 0.001953125
    %v7807 = vmax.f32 %v7775, 0.001953125
    %v7808 = vmax.f32 %v7776, 0.001953125
    %v7809 = vmax.f32 %v7777, 0.001953125
    %v7810 = vmax.f32 %v7778, 0.001953125
    %v7811 = vmax.f32 %v7779, 0.001953125
    %v7812 = vmax.f32 %v7780, 0.001953125
    %v7813 = vmax.f32 %v7781, 0.001953125
    %v7814 = vmax.f32 %v7782, 0.001953125
    %v7815 = vmax.f32 %v7783, 0.001953125
    %v7816 = vmax.f32 %v7784, 0.001953125
    %v7817 = vmax.f32 %v7785, 0.001953125
    %v7818 = vmax.f32 %v7786, 0.001953125
    %v7819 = vmax.f32 %v7787, 0.001953125
    %v7820 = vmax.f32 %v7788, 0.001953125
    %v7821 = vmax.f32 %v7789, 0.001953125
    %v7822 = vmax.f32 %v7790, 0.001953125
    %v7823 = vmax.f32 %v7791, 0.001953125
    %v7824 = vmax.f32 %v7792, 0.001953125
    %v7825 = vmax.f32 %v7793, 0.001953125
    %v7826 = vmax.f32 %v7794, 0.001953125
    %v7827 = vmax.f32 %v7795, 0.001953125
    %v7828 = vmax.f32 %v7796, 0.001953125
    %v7829 = vmax.f32 %v7797, 0.001953125
    %v7830 = vmax.f32 %v7798, 0.001953125
    %v7831 = vmax.f32 %v7799, 0.001953125
    %v7832 = vmax.f32 %v7800, 0.001953125
    %v7833 = vmin.f32 %v7801, 0.9980469
    %v7834 = vmin.f32 %v7802, 0.9980469
    %v7835 = vmin.f32 %v7803, 0.9980469
    %v7836 = vmin.f32 %v7804, 0.9980469
    %v7837 = vmin.f32 %v7805, 0.9980469
    %v7838 = vmin.f32 %v7806, 0.9980469
    %v7839 = vmin.f32 %v7807, 0.9980469
    %v7840 = vmin.f32 %v7808, 0.9980469
    %v7841 = vmin.f32 %v7809, 0.9980469
    %v7842 = vmin.f32 %v7810, 0.9980469
    %v7843 = vmin.f32 %v7811, 0.9980469
    %v7844 = vmin.f32 %v7812, 0.9980469
    %v7845 = vmin.f32 %v7813, 0.9980469
    %v7846 = vmin.f32 %v7814, 0.9980469
    %v7847 = vmin.f32 %v7815, 0.9980469
    %v7848 = vmin.f32 %v7816, 0.9980469
    %v7849 = vmin.f32 %v7817, 0.9980469
    %v7850 = vmin.f32 %v7818, 0.9980469
    %v7851 = vmin.f32 %v7819, 0.9980469
    %v7852 = vmin.f32 %v7820, 0.9980469
    %v7853 = vmin.f32 %v7821, 0.9980469
    %v7854 = vmin.f32 %v7822, 0.9980469
    %v7855 = vmin.f32 %v7823, 0.9980469
    %v7856 = vmin.f32 %v7824, 0.9980469
    %v7857 = vmin.f32 %v7825, 0.9980469
    %v7858 = vmin.f32 %v7826, 0.9980469
    %v7859 = vmin.f32 %v7827, 0.9980469
    %v7860 = vmin.f32 %v7828, 0.9980469
    %v7861 = vmin.f32 %v7829, 0.9980469
    %v7862 = vmin.f32 %v7830, 0.9980469
    %v7863 = vmin.f32 %v7831, 0.9980469
    %v7864 = vmin.f32 %v7832, 0.9980469
    %v7865 = vmax.f32 %v7595, -4.5
    %v7866 = vmax.f32 %v7597, -4.5
    %v7867 = vmax.f32 %v7599, -4.5
    %v7868 = vmax.f32 %v7601, -4.5
    %v7869 = vmax.f32 %v7605, -4.5
    %v7870 = vmax.f32 %v7607, -4.5
    %v7871 = vmax.f32 %v7609, -4.5
    %v7872 = vmax.f32 %v7611, -4.5
    %v7873 = vmax.f32 %v7615, -4.5
    %v7874 = vmax.f32 %v7617, -4.5
    %v7875 = vmax.f32 %v7619, -4.5
    %v7876 = vmax.f32 %v7621, -4.5
    %v7877 = vmax.f32 %v7625, -4.5
    %v7878 = vmax.f32 %v7627, -4.5
    %v7879 = vmax.f32 %v7629, -4.5
    %v7880 = vmax.f32 %v7631, -4.5
    %v7881 = vmax.f32 %v7635, -4.5
    %v7882 = vmax.f32 %v7637, -4.5
    %v7883 = vmax.f32 %v7639, -4.5
    %v7884 = vmax.f32 %v7641, -4.5
    %v7885 = vmax.f32 %v7645, -4.5
    %v7886 = vmax.f32 %v7647, -4.5
    %v7887 = vmax.f32 %v7649, -4.5
    %v7888 = vmax.f32 %v7651, -4.5
    %v7889 = vmax.f32 %v7655, -4.5
    %v7890 = vmax.f32 %v7657, -4.5
    %v7891 = vmax.f32 %v7659, -4.5
    %v7892 = vmax.f32 %v7661, -4.5
    %v7893 = vmax.f32 %v7665, -4.5
    %v7894 = vmax.f32 %v7667, -4.5
    %v7895 = vmax.f32 %v7669, -4.5
    %v7896 = vmax.f32 %v7671, -4.5
    %v7897 = vmin.f32 %v7865, 0.0
    %v7898 = vmin.f32 %v7866, 0.0
    %v7899 = vmin.f32 %v7867, 0.0
    %v7900 = vmin.f32 %v7868, 0.0
    %v7901 = vmin.f32 %v7869, 0.0
    %v7902 = vmin.f32 %v7870, 0.0
    %v7903 = vmin.f32 %v7871, 0.0
    %v7904 = vmin.f32 %v7872, 0.0
    %v7905 = vmin.f32 %v7873, 0.0
    %v7906 = vmin.f32 %v7874, 0.0
    %v7907 = vmin.f32 %v7875, 0.0
    %v7908 = vmin.f32 %v7876, 0.0
    %v7909 = vmin.f32 %v7877, 0.0
    %v7910 = vmin.f32 %v7878, 0.0
    %v7911 = vmin.f32 %v7879, 0.0
    %v7912 = vmin.f32 %v7880, 0.0
    %v7913 = vmin.f32 %v7881, 0.0
    %v7914 = vmin.f32 %v7882, 0.0
    %v7915 = vmin.f32 %v7883, 0.0
    %v7916 = vmin.f32 %v7884, 0.0
    %v7917 = vmin.f32 %v7885, 0.0
    %v7918 = vmin.f32 %v7886, 0.0
    %v7919 = vmin.f32 %v7887, 0.0
    %v7920 = vmin.f32 %v7888, 0.0
    %v7921 = vmin.f32 %v7889, 0.0
    %v7922 = vmin.f32 %v7890, 0.0
    %v7923 = vmin.f32 %v7891, 0.0
    %v7924 = vmin.f32 %v7892, 0.0
    %v7925 = vmin.f32 %v7893, 0.0
    %v7926 = vmin.f32 %v7894, 0.0
    %v7927 = vmin.f32 %v7895, 0.0
    %v7928 = vmin.f32 %v7896, 0.0
    %v7929 = vpack.c.bf16 %v7835, %v7833
    %v7930 = vpack.c.bf16 %v7836, %v7834
    %v7931 = vpack.c.bf16 %v7839, %v7837
    %v7932 = vpack.c.bf16 %v7840, %v7838
    %v7933 = vpack.c.bf16 %v7843, %v7841
    %v7934 = vpack.c.bf16 %v7844, %v7842
    %v7935 = vpack.c.bf16 %v7847, %v7845
    %v7936 = vpack.c.bf16 %v7848, %v7846
    %v7937 = vpack.c.bf16 %v7851, %v7849
    %v7938 = vpack.c.bf16 %v7852, %v7850
    %v7939 = vpack.c.bf16 %v7855, %v7853
    %v7940 = vpack.c.bf16 %v7856, %v7854
    %v7941 = vpack.c.bf16 %v7859, %v7857
    %v7942 = vpack.c.bf16 %v7860, %v7858
    %v7943 = vpack.c.bf16 %v7863, %v7861
    %v7944 = vpack.c.bf16 %v7864, %v7862
    %v7961 = vunpack.c.l.b16 %v7929
    %v7962 = vunpack.c.l.b16 %v7930
    %v7963 = vunpack.c.h.b16 %v7929
    %v7964 = vunpack.c.h.b16 %v7930
    %v7965 = vunpack.c.l.b16 %v7931
    %v7966 = vunpack.c.l.b16 %v7932
    %v7967 = vunpack.c.h.b16 %v7931
    %v7968 = vunpack.c.h.b16 %v7932
    %v7969 = vunpack.c.l.b16 %v7933
    %v7970 = vunpack.c.l.b16 %v7934
    %v7971 = vunpack.c.h.b16 %v7933
    %v7972 = vunpack.c.h.b16 %v7934
    %v7973 = vunpack.c.l.b16 %v7935
    %v7974 = vunpack.c.l.b16 %v7936
    %v7975 = vunpack.c.h.b16 %v7935
    %v7976 = vunpack.c.h.b16 %v7936
    %v7977 = vunpack.c.l.b16 %v7937
    %v7978 = vunpack.c.l.b16 %v7938
    %v7979 = vunpack.c.h.b16 %v7937
    %v7980 = vunpack.c.h.b16 %v7938
    %v7981 = vunpack.c.l.b16 %v7939
    %v7982 = vunpack.c.l.b16 %v7940
    %v7983 = vunpack.c.h.b16 %v7939
    %v7984 = vunpack.c.h.b16 %v7940
    %v7985 = vunpack.c.l.b16 %v7941
    %v7986 = vunpack.c.l.b16 %v7942
    %v7987 = vunpack.c.h.b16 %v7941
    %v7988 = vunpack.c.h.b16 %v7942
    %v7989 = vunpack.c.l.b16 %v7943
    %v7990 = vunpack.c.l.b16 %v7944
    %v7991 = vunpack.c.h.b16 %v7943
    %v7992 = vunpack.c.h.b16 %v7944
    %v7993 = vpack.c.b16 %v7962, %v7961
    %v7994 = vpack.c.b16 %v7964, %v7963
    %v7995 = vpack.c.b16 %v7966, %v7965
    %v7996 = vpack.c.b16 %v7968, %v7967
    %v7997 = vpack.c.b16 %v7970, %v7969
    %v7998 = vpack.c.b16 %v7972, %v7971
    %v7999 = vpack.c.b16 %v7974, %v7973
    %v8000 = vpack.c.b16 %v7976, %v7975
    %v8001 = vpack.c.b16 %v7978, %v7977
    %v8002 = vpack.c.b16 %v7980, %v7979
    %v8003 = vpack.c.b16 %v7982, %v7981
    %v8004 = vpack.c.b16 %v7984, %v7983
    %v8005 = vpack.c.b16 %v7986, %v7985
    %v8006 = vpack.c.b16 %v7988, %v7987
    %v8007 = vpack.c.b16 %v7990, %v7989
    %v8008 = vpack.c.b16 %v7992, %v7991
    %8025 = vst [vmem:[%s9] sm:$0xff] %v7993
    %8026 = vst [vmem:[%s9 + $0x10] sm:$0xff] %v7994
    %8027 = vst [vmem:[%s9 + $0x20] sm:$0xff] %v7995
    %8028 = vst [vmem:[%s9 + $0x30] sm:$0xff] %v7996
    %8029 = vst [vmem:[%s9 + $0x40] sm:$0xff] %v7997
    %8030 = vst [vmem:[%s9 + $0x50] sm:$0xff] %v7998
    %8031 = vst [vmem:[%s9 + $0x60] sm:$0xff] %v7999
    %8032 = vst [vmem:[%s9 + $0x70] sm:$0xff] %v8000
    %8033 = vst [vmem:[%s9 + $0x80] sm:$0xff] %v8001
    %8034 = vst [vmem:[%s9 + $0x90] sm:$0xff] %v8002
    %8035 = vst [vmem:[%s9 + $0xa0] sm:$0xff] %v8003
    %8036 = vst [vmem:[%s9 + $0xb0] sm:$0xff] %v8004
    %8037 = vst [vmem:[%s9 + $0xc0] sm:$0xff] %v8005
    %8038 = vst [vmem:[%s9 + $0xd0] sm:$0xff] %v8006
    %8039 = vst [vmem:[%s9 + $0xe0] sm:$0xff] %v8007
    %8040 = vst [vmem:[%s9 + $0xf0] sm:$0xff] %v8008
    %v8041 = vpack.c.bf16 %v7899, %v7897
    %v8042 = vpack.c.bf16 %v7900, %v7898
    %v8043 = vpack.c.bf16 %v7903, %v7901
    %v8044 = vpack.c.bf16 %v7904, %v7902
    %v8045 = vpack.c.bf16 %v7907, %v7905
    %v8046 = vpack.c.bf16 %v7908, %v7906
    %v8047 = vpack.c.bf16 %v7911, %v7909
    %v8048 = vpack.c.bf16 %v7912, %v7910
    %v8049 = vpack.c.bf16 %v7915, %v7913
    %v8050 = vpack.c.bf16 %v7916, %v7914
    %v8051 = vpack.c.bf16 %v7919, %v7917
    %v8052 = vpack.c.bf16 %v7920, %v7918
    %v8053 = vpack.c.bf16 %v7923, %v7921
    %v8054 = vpack.c.bf16 %v7924, %v7922
    %v8055 = vpack.c.bf16 %v7927, %v7925
    %v8056 = vpack.c.bf16 %v7928, %v7926
    %v8073 = vunpack.c.l.b16 %v8041
    %v8074 = vunpack.c.l.b16 %v8042
    %v8075 = vunpack.c.h.b16 %v8041
    %v8076 = vunpack.c.h.b16 %v8042
    %v8077 = vunpack.c.l.b16 %v8043
    %v8078 = vunpack.c.l.b16 %v8044
    %v8079 = vunpack.c.h.b16 %v8043
    %v8080 = vunpack.c.h.b16 %v8044
    %v8081 = vunpack.c.l.b16 %v8045
    %v8082 = vunpack.c.l.b16 %v8046
    %v8083 = vunpack.c.h.b16 %v8045
    %v8084 = vunpack.c.h.b16 %v8046
    %v8085 = vunpack.c.l.b16 %v8047
    %v8086 = vunpack.c.l.b16 %v8048
    %v8087 = vunpack.c.h.b16 %v8047
    %v8088 = vunpack.c.h.b16 %v8048
    %v8089 = vunpack.c.l.b16 %v8049
    %v8090 = vunpack.c.l.b16 %v8050
    %v8091 = vunpack.c.h.b16 %v8049
    %v8092 = vunpack.c.h.b16 %v8050
    %v8093 = vunpack.c.l.b16 %v8051
    %v8094 = vunpack.c.l.b16 %v8052
    %v8095 = vunpack.c.h.b16 %v8051
    %v8096 = vunpack.c.h.b16 %v8052
    %v8097 = vunpack.c.l.b16 %v8053
    %v8098 = vunpack.c.l.b16 %v8054
    %v8099 = vunpack.c.h.b16 %v8053
    %v8100 = vunpack.c.h.b16 %v8054
    %v8101 = vunpack.c.l.b16 %v8055
    %v8102 = vunpack.c.l.b16 %v8056
    %v8103 = vunpack.c.h.b16 %v8055
    %v8104 = vunpack.c.h.b16 %v8056
    %v8105 = vpack.c.b16 %v8074, %v8073
    %v8106 = vpack.c.b16 %v8076, %v8075
    %v8107 = vpack.c.b16 %v8078, %v8077
    %v8108 = vpack.c.b16 %v8080, %v8079
    %v8109 = vpack.c.b16 %v8082, %v8081
    %v8110 = vpack.c.b16 %v8084, %v8083
    %v8111 = vpack.c.b16 %v8086, %v8085
    %v8112 = vpack.c.b16 %v8088, %v8087
    %v8113 = vpack.c.b16 %v8090, %v8089
    %v8114 = vpack.c.b16 %v8092, %v8091
    %v8115 = vpack.c.b16 %v8094, %v8093
    %v8116 = vpack.c.b16 %v8096, %v8095
    %v8117 = vpack.c.b16 %v8098, %v8097
    %v8118 = vpack.c.b16 %v8100, %v8099
    %v8119 = vpack.c.b16 %v8102, %v8101
    %v8120 = vpack.c.b16 %v8104, %v8103
    %8137 = vst [vmem:[%s9 + $0x8] sm:$0xff] %v8105
    %8138 = vst [vmem:[%s9 + $0x18] sm:$0xff] %v8106
    %8139 = vst [vmem:[%s9 + $0x28] sm:$0xff] %v8107
    %8140 = vst [vmem:[%s9 + $0x38] sm:$0xff] %v8108
    %8141 = vst [vmem:[%s9 + $0x48] sm:$0xff] %v8109
    %8142 = vst [vmem:[%s9 + $0x58] sm:$0xff] %v8110
    %8143 = vst [vmem:[%s9 + $0x68] sm:$0xff] %v8111
    %8144 = vst [vmem:[%s9 + $0x78] sm:$0xff] %v8112
    %8145 = vst [vmem:[%s9 + $0x88] sm:$0xff] %v8113
    %8146 = vst [vmem:[%s9 + $0x98] sm:$0xff] %v8114
    %8147 = vst [vmem:[%s9 + $0xa8] sm:$0xff] %v8115
    %8148 = vst [vmem:[%s9 + $0xb8] sm:$0xff] %v8116
    %8149 = vst [vmem:[%s9 + $0xc8] sm:$0xff] %v8117
    %8150 = vst [vmem:[%s9 + $0xd8] sm:$0xff] %v8118
    %8151 = vst [vmem:[%s9 + $0xe8] sm:$0xff] %v8119
    %8152 = vst [vmem:[%s9 + $0xf8] sm:$0xff] %v8120
    %v8161 = vunpack.c.l.b16 %v3854
    %v8162 = vunpack.c.h.b16 %v3854
    %v8163 = vunpack.c.l.b16 %v3855
    %v8164 = vunpack.c.h.b16 %v3855
    %v8165 = vunpack.c.l.b16 %v3856
    %v8166 = vunpack.c.h.b16 %v3856
    %v8167 = vunpack.c.l.b16 %v3857
    %v8168 = vunpack.c.h.b16 %v3857
    %v8169 = vunpack.c.l.b16 %v3858
    %v8170 = vunpack.c.h.b16 %v3858
    %v8171 = vunpack.c.l.b16 %v3859
    %v8172 = vunpack.c.h.b16 %v3859
    %v8173 = vunpack.c.l.b16 %v3860
    %v8174 = vunpack.c.h.b16 %v3860
    %v8175 = vunpack.c.l.b16 %v3861
    %v8176 = vunpack.c.h.b16 %v3861
    %v8177 = vpack.c.b16 %v8161, %v8161
    %v8178 = vpack.c.b16 %v8162, %v8162
    %v8179 = vpack.c.b16 %v8163, %v8163
    %v8180 = vpack.c.b16 %v8164, %v8164
    %v8181 = vpack.c.b16 %v8165, %v8165
    %v8182 = vpack.c.b16 %v8166, %v8166
    %v8183 = vpack.c.b16 %v8167, %v8167
    %v8184 = vpack.c.b16 %v8168, %v8168
    %v8185 = vpack.c.b16 %v8169, %v8169
    %v8186 = vpack.c.b16 %v8170, %v8170
    %v8187 = vpack.c.b16 %v8171, %v8171
    %v8188 = vpack.c.b16 %v8172, %v8172
    %v8189 = vpack.c.b16 %v8173, %v8173
    %v8190 = vpack.c.b16 %v8174, %v8174
    %v8191 = vpack.c.b16 %v8175, %v8175
    %v8192 = vpack.c.b16 %v8176, %v8176
    %8209 = vst [vmem:[%s10] sm:$0xf] %v8177
    %8210 = vst [vmem:[%s10 + $0xc] sm:$0xf] %v8178
    %8211 = vst [vmem:[%s10 + $0x18] sm:$0xf] %v8179
    %8212 = vst [vmem:[%s10 + $0x24] sm:$0xf] %v8180
    %8213 = vst [vmem:[%s10 + $0x30] sm:$0xf] %v8181
    %8214 = vst [vmem:[%s10 + $0x3c] sm:$0xf] %v8182
    %8215 = vst [vmem:[%s10 + $0x48] sm:$0xf] %v8183
    %8216 = vst [vmem:[%s10 + $0x54] sm:$0xf] %v8184
    %8217 = vst [vmem:[%s10 + $0x60] sm:$0xf] %v8185
    %8218 = vst [vmem:[%s10 + $0x6c] sm:$0xf] %v8186
    %8219 = vst [vmem:[%s10 + $0x78] sm:$0xf] %v8187
    %8220 = vst [vmem:[%s10 + $0x84] sm:$0xf] %v8188
    %8221 = vst [vmem:[%s10 + $0x90] sm:$0xf] %v8189
    %8222 = vst [vmem:[%s10 + $0x9c] sm:$0xf] %v8190
    %8223 = vst [vmem:[%s10 + $0xa8] sm:$0xf] %v8191
    %8224 = vst [vmem:[%s10 + $0xb4] sm:$0xf] %v8192
    %v8225 = vpack.c.bf16 %v3652, %v3648
    %v8226 = vpack.c.bf16 %v3662, %v3658
    %v8227 = vpack.c.bf16 %v3672, %v3668
    %v8228 = vpack.c.bf16 %v3682, %v3678
    %v8229 = vpack.c.bf16 %v3692, %v3688
    %v8230 = vpack.c.bf16 %v3702, %v3698
    %v8231 = vpack.c.bf16 %v3712, %v3708
    %v8232 = vpack.c.bf16 %v3722, %v3718
    %v8241 = vunpack.c.l.b16 %v8225
    %v8242 = vunpack.c.h.b16 %v8225
    %v8243 = vunpack.c.l.b16 %v8226
    %v8244 = vunpack.c.h.b16 %v8226
    %v8245 = vunpack.c.l.b16 %v8227
    %v8246 = vunpack.c.h.b16 %v8227
    %v8247 = vunpack.c.l.b16 %v8228
    %v8248 = vunpack.c.h.b16 %v8228
    %v8249 = vunpack.c.l.b16 %v8229
    %v8250 = vunpack.c.h.b16 %v8229
    %v8251 = vunpack.c.l.b16 %v8230
    %v8252 = vunpack.c.h.b16 %v8230
    %v8253 = vunpack.c.l.b16 %v8231
    %v8254 = vunpack.c.h.b16 %v8231
    %v8255 = vunpack.c.l.b16 %v8232
    %v8256 = vunpack.c.h.b16 %v8232
    %v8257 = vpack.c.b16 %v8241, %v8241
    %v8258 = vpack.c.b16 %v8242, %v8242
    %v8259 = vpack.c.b16 %v8243, %v8243
    %v8260 = vpack.c.b16 %v8244, %v8244
    %v8261 = vpack.c.b16 %v8245, %v8245
    %v8262 = vpack.c.b16 %v8246, %v8246
    %v8263 = vpack.c.b16 %v8247, %v8247
    %v8264 = vpack.c.b16 %v8248, %v8248
    %v8265 = vpack.c.b16 %v8249, %v8249
    %v8266 = vpack.c.b16 %v8250, %v8250
    %v8267 = vpack.c.b16 %v8251, %v8251
    %v8268 = vpack.c.b16 %v8252, %v8252
    %v8269 = vpack.c.b16 %v8253, %v8253
    %v8270 = vpack.c.b16 %v8254, %v8254
    %v8271 = vpack.c.b16 %v8255, %v8255
    %v8272 = vpack.c.b16 %v8256, %v8256
    %8289 = vst [vmem:[%s10 + $0x4] sm:$0xf] %v8257
    %8290 = vst [vmem:[%s10 + $0x10] sm:$0xf] %v8258
    %8291 = vst [vmem:[%s10 + $0x1c] sm:$0xf] %v8259
    %8292 = vst [vmem:[%s10 + $0x28] sm:$0xf] %v8260
    %8293 = vst [vmem:[%s10 + $0x34] sm:$0xf] %v8261
    %8294 = vst [vmem:[%s10 + $0x40] sm:$0xf] %v8262
    %8295 = vst [vmem:[%s10 + $0x4c] sm:$0xf] %v8263
    %8296 = vst [vmem:[%s10 + $0x58] sm:$0xf] %v8264
    %8297 = vst [vmem:[%s10 + $0x64] sm:$0xf] %v8265
    %8298 = vst [vmem:[%s10 + $0x70] sm:$0xf] %v8266
    %8299 = vst [vmem:[%s10 + $0x7c] sm:$0xf] %v8267
    %8300 = vst [vmem:[%s10 + $0x88] sm:$0xf] %v8268
    %8301 = vst [vmem:[%s10 + $0x94] sm:$0xf] %v8269
    %8302 = vst [vmem:[%s10 + $0xa0] sm:$0xf] %v8270
    %8303 = vst [vmem:[%s10 + $0xac] sm:$0xf] %v8271
    %8304 = vst [vmem:[%s10 + $0xb8] sm:$0xf] %v8272
    %v8305 = vpack.c.bf16 %v3743, %v3742
    %v8306 = vpack.c.bf16 %v3745, %v3744
    %v8307 = vpack.c.bf16 %v3747, %v3746
    %v8308 = vpack.c.bf16 %v3749, %v3748
    %v8309 = vpack.c.bf16 %v3751, %v3750
    %v8310 = vpack.c.bf16 %v3753, %v3752
    %v8311 = vpack.c.bf16 %v3755, %v3754
    %v8312 = vpack.c.bf16 %v3757, %v3756
    %v8321 = vunpack.c.l.b16 %v8305
    %v8322 = vunpack.c.h.b16 %v8305
    %v8323 = vunpack.c.l.b16 %v8306
    %v8324 = vunpack.c.h.b16 %v8306
    %v8325 = vunpack.c.l.b16 %v8307
    %v8326 = vunpack.c.h.b16 %v8307
    %v8327 = vunpack.c.l.b16 %v8308
    %v8328 = vunpack.c.h.b16 %v8308
    %v8329 = vunpack.c.l.b16 %v8309
    %v8330 = vunpack.c.h.b16 %v8309
    %v8331 = vunpack.c.l.b16 %v8310
    %v8332 = vunpack.c.h.b16 %v8310
    %v8333 = vunpack.c.l.b16 %v8311
    %v8334 = vunpack.c.h.b16 %v8311
    %v8335 = vunpack.c.l.b16 %v8312
    %v8336 = vunpack.c.h.b16 %v8312
    %v8337 = vpack.c.b16 %v8321, %v8321
    %v8338 = vpack.c.b16 %v8322, %v8322
    %v8339 = vpack.c.b16 %v8323, %v8323
    %v8340 = vpack.c.b16 %v8324, %v8324
    %v8341 = vpack.c.b16 %v8325, %v8325
    %v8342 = vpack.c.b16 %v8326, %v8326
    %v8343 = vpack.c.b16 %v8327, %v8327
    %v8344 = vpack.c.b16 %v8328, %v8328
    %v8345 = vpack.c.b16 %v8329, %v8329
    %v8346 = vpack.c.b16 %v8330, %v8330
    %v8347 = vpack.c.b16 %v8331, %v8331
    %v8348 = vpack.c.b16 %v8332, %v8332
    %v8349 = vpack.c.b16 %v8333, %v8333
    %v8350 = vpack.c.b16 %v8334, %v8334
    %v8351 = vpack.c.b16 %v8335, %v8335
    %v8352 = vpack.c.b16 %v8336, %v8336
    %8369 = vst [vmem:[%s10 + $0x8] sm:$0xf] %v8337
    %8370 = vst [vmem:[%s10 + $0x14] sm:$0xf] %v8338
    %8371 = vst [vmem:[%s10 + $0x20] sm:$0xf] %v8339
    %8372 = vst [vmem:[%s10 + $0x2c] sm:$0xf] %v8340
    %8373 = vst [vmem:[%s10 + $0x38] sm:$0xf] %v8341
    %8374 = vst [vmem:[%s10 + $0x44] sm:$0xf] %v8342
    %8375 = vst [vmem:[%s10 + $0x50] sm:$0xf] %v8343
    %8376 = vst [vmem:[%s10 + $0x5c] sm:$0xf] %v8344
    %8377 = vst [vmem:[%s10 + $0x68] sm:$0xf] %v8345
    %8378 = vst [vmem:[%s10 + $0x74] sm:$0xf] %v8346
    %8379 = vst [vmem:[%s10 + $0x80] sm:$0xf] %v8347
    %8380 = vst [vmem:[%s10 + $0x8c] sm:$0xf] %v8348
    %8381 = vst [vmem:[%s10 + $0x98] sm:$0xf] %v8349
    %8382 = vst [vmem:[%s10 + $0xa4] sm:$0xf] %v8350
    %8383 = vst [vmem:[%s10 + $0xb0] sm:$0xf] %v8351
    %8384 = vst [vmem:[%s10 + $0xbc] sm:$0xf] %v8352
    // Predicated region
    $region58: #{vae_forward.1} parent=1 // pred_check
      _
    $region59: #{vae_forward.1} parent=1 // pred_check_branch
      %8386 = sbr.rel (0) target = $region61
    $region60: #{vae_forward.1} parent=1 // pred_region
      _
    $region61: #{vae_forward.1} parent=1 // pred_fallthru
      _
    // Predicated region
    $region62: #{vae_forward.1} parent=1 // pred_check
      _
    $region63: #{vae_forward.1} parent=1 // pred_check_branch
      %8388 = sbr.rel (0) target = $region65
    $region64: #{vae_forward.1} parent=1 // pred_region
      _
    $region65: #{vae_forward.1} parent=1 // pred_fallthru
      _
    // Predicated region
    $region66: #{vae_forward.1} parent=1 // pred_check
      _
    $region67: #{vae_forward.1} parent=1 // pred_check_branch
      %8390 = sbr.rel (0) target = $region69
    $region68: #{vae_forward.1} parent=1 // pred_region
      _
    $region69: #{vae_forward.1} parent=1 // pred_fallthru
      _
    // Predicated region
    $region70: #{vae_forward.1} parent=1 // pred_check
      _
    $region71: #{vae_forward.1} parent=1 // pred_check_branch
      %8392 = sbr.rel (0) target = $region73
    $region72: #{vae_forward.1} parent=1 // pred_region
      _
    $region73: #{vae_forward.1} parent=1 // pred_fallthru
      _
    %8393 = vsyncpa [#allocation3], 1
    %8394 = vsyncpa [#allocation5], 1
    %8395 = vsyncpa [#allocation8], 1

</llo_original>
